<compile_context>
chip_gen: v6e
topology: v6e:2x2x1
jax: 0.10.0
libtpu: 0.0.40
codegen_flags: <defaults>
</compile_context>

<pallas_src>
import functools
import math

import jax
import jax.numpy as jnp
from jax.experimental import pallas as pl
from jax.experimental.pallas import tpu as pltpu

_VMEM = pl.BlockSpec(memory_space=pltpu.MemorySpace.VMEM)
_IN_EPS = 1e-5


# ----------------------------- in-kernel helpers ------------------------------
def _gelu(x):
    # exact (erf-based) GELU == torch.nn.GELU(approximate='none')
    return 0.5 * x * (1.0 + jax.lax.erf(x * (1.0 / math.sqrt(2.0))))


def _silu(x):
    return x * jax.nn.sigmoid(x)


def _instance_norm(x, eps=_IN_EPS):
    # nn.InstanceNorm1d(C, affine=False): per-(b,c) stats over L (last axis), biased var
    mu = jnp.mean(x, axis=-1, keepdims=True)
    var = jnp.mean(jnp.square(x - mu), axis=-1, keepdims=True)
    return (x - mu) * jax.lax.rsqrt(var + eps)


def _linear(x, w_ref, b_ref):
    # x: (B, in); w pre-transposed to (in, out); b: (1, out)  -> MXU matmul
    return jnp.dot(x, w_ref[...], preferred_element_type=jnp.float32) + b_ref[...]


# ------------------------------- Pallas kernels -------------------------------
def _embed_kernel(num_blocks,
                  t_ref, c_ref, freqs_ref,
                  tw1_ref, tb1_ref, tw2_ref, tb2_ref,
                  cw1_ref, cb1_ref, cw2_ref, cb2_ref,
                  ada_w_ref, ada_b_ref,
                  mod_ref):
    """TimestepEmbedder(t) + c_emb(c), plus every block's adaLN modulation."""
    t = t_ref[...]                                  # (B, 1)
    args = t * freqs_ref[...]                       # (B, half)
    emb = jnp.concatenate([jnp.cos(args), jnp.sin(args)], axis=-1)   # (B, 2*half)
    t_emb = _linear(_silu(_linear(emb, tw1_ref, tb1_ref)), tw2_ref, tb2_ref)
    c_emb = _linear(_silu(_linear(c_ref[...], cw1_ref, cb1_ref)), cw2_ref, cb2_ref)
    g = _gelu(t_emb + c_emb)                        # ada_ln's GELU, hoisted here once
    for n in range(num_blocks):                     # static unroll: tiny MXU matmuls
        mod_ref[n] = (jnp.dot(g, ada_w_ref[n], preferred_element_type=jnp.float32)
                      + ada_b_ref[n])               # (B, 6C)


def _fused_forward_kernel(B, Cblk,
                          x_ref, ciw_ref, cib_ref, mod_ref, T_ref, D_ref,
                          w1_ref, b1_ref, w2_ref, b2_ref, cow_ref, cob_ref,
                          o_ref, carry_ref):
    """conv_in -> num_blocks x DenoiserBlock -> conv_out, carry resident in VMEM.

    grid = (num_blocks, C // Cblk); activations are channel-major (C, B, L).
    """
    blk = pl.program_id(0)
    ci = pl.program_id(1)
    n_blk = pl.num_programs(0)
    n_ct = pl.num_programs(1)

    # ---- conv_in (grouped 1x1, block-diagonal dense): very first grid step only ----
    @pl.when(jnp.logical_and(blk == 0, ci == 0))
    def _():
        for b in range(B):                           # static unroll over small batch
            carry_ref[:, b, :] = (
                jnp.dot(ciw_ref[...], x_ref[:, b, :],
                        preferred_element_type=jnp.float32) + cib_ref[...])

    # ---- time-mixing branch for channel tile `ci` of block `blk` ----
    c0 = pl.multiple_of(ci * Cblk, Cblk)
    csl = pl.ds(c0, Cblk)
    xt = carry_ref[csl, :, :]                        # (Cblk, B, L)
    y = _instance_norm(xt)                           # norm1
    mt = mod_ref[0, csl, :, :]                       # (Cblk, B, 6) adaLN mods for tile
    y = y * (1.0 + mt[:, :, 1:2]) + mt[:, :, 0:1]    # scale_tm / shift_tm
    # FFTConv linear op: bidirectional depthwise long conv as a channel-batched
    # Toeplitz matmul on the MXU, plus the D skip.
    y_tm = jax.lax.dot_general(
        y, T_ref[0], (((2,), (2,)), ((0,), (0,))),
        preferred_element_type=jnp.float32)          # (Cblk, B, L)
    y_tm = y_tm + D_ref[0] * y
    carry_ref[csl, :, :] = xt + mt[:, :, 2:3] * _gelu(y_tm)   # act1=GELU, gate_tm

    # ---- channel-mixing branch (needs all channels): after the last channel tile ----
    @pl.when(ci == n_ct - 1)
    def _():
        mc = mod_ref[0]                              # (C, B, 6)
        for b in range(B):                           # static unroll: clean 2-D matmuls
            xb = carry_ref[:, b, :]                  # (C, L)
            yb = _instance_norm(xb)                  # norm2
            yb = yb * (1.0 + mc[:, b, 4:5]) + mc[:, b, 3:4]     # scale_cm / shift_cm
            hb = _gelu(jnp.dot(w1_ref[0], yb,
                               preferred_element_type=jnp.float32) + b1_ref[0])
            zb = jnp.dot(w2_ref[0], hb,
                         preferred_element_type=jnp.float32) + b2_ref[0]
            carry_ref[:, b, :] = xb + mc[:, b, 5:6] * zb        # act2 = Identity

    # ---- conv_out: once, after the last block's last channel tile ----
    @pl.when(jnp.logical_and(blk == n_blk - 1, ci == n_ct - 1))
    def _():
        for b in range(B):
            o_ref[:, b, :] = (
                jnp.dot(cow_ref[...], carry_ref[:, b, :],
                        preferred_element_type=jnp.float32) + cob_ref[...])


# --------------------------------- wrappers -----------------------------------
def _vmem_limit_bytes():
    try:
        cap = int(pltpu.get_tpu_info().vmem_capacity_bytes)
    except Exception:
        cap = 64 * 1024 * 1024        # conservative fallback (v7x physical VMEM)
    return int(cap * 0.8)


def _choose_cblk(C, L, t_budget_bytes):
    """Largest channel tile (divisor of C, multiple of 8 or == C) whose double-buffered
    (Cblk, L, L) f32 Toeplitz tile fits the budget."""
    per_ch = 2 * L * L * 4
    best = None
    for d in range(1, C + 1):
        if C % d:
            continue
        if d != C and d % 8:
            continue
        if d * per_ch <= t_budget_bytes:
            best = d
    if best is None:
        best = next(d for d in range(1, C + 1) if C % d == 0 and (d == C or d % 8 == 0))
    return best


def embed_and_modulate(p, t, c):
    """-> adaLN modulations, laid out (num_blocks, C, B, 6) for the fused kernel."""
    B = t.shape[0]
    num_blocks, _, six_c = p["ada_w"].shape
    C = six_c // 6
    mod_flat = pl.pallas_call(
        functools.partial(_embed_kernel, num_blocks),
        out_shape=jax.ShapeDtypeStruct((num_blocks, B, 6 * C), jnp.float32),
        in_specs=[_VMEM] * 13,
        out_specs=_VMEM,
    )(t.reshape(B, 1).astype(jnp.float32), c.astype(jnp.float32), p["freqs"],
      p["t_w1"], p["t_b1"], p["t_w2"], p["t_b2"],
      p["c_w1"], p["c_b1"], p["c_w2"], p["c_b2"],
      p["ada_w"], p["ada_b"])
    # layout glue (tiny): (nb, B, 6C) -> (nb, C, B, 6), preserving chunk(6, dim=1) order
    return mod_flat.reshape(num_blocks, B, 6, C).transpose(0, 3, 1, 2)


def fused_forward(p, x_cbl, mod):
    C_in, B, L = x_cbl.shape
    num_blocks, C = p["T"].shape[0], p["T"].shape[1]
    vmem_limit = _vmem_limit_bytes()
    Cblk = _choose_cblk(C, L, vmem_limit // 2)       # ~half the budget for T's buffers
    n_ct = C // Cblk

    return pl.pallas_call(
        functools.partial(_fused_forward_kernel, B, Cblk),
        out_shape=jax.ShapeDtypeStruct((C_in, B, L), jnp.float32),
        grid=(num_blocks, n_ct),
        in_specs=[
            pl.BlockSpec((C_in, B, L), lambda blk, ci: (0, 0, 0)),           # x (resident)
            pl.BlockSpec((C, C_in), lambda blk, ci: (0, 0)),                 # conv_in W
            pl.BlockSpec((C, 1), lambda blk, ci: (0, 0)),                    # conv_in b
            pl.BlockSpec((1, C, B, 6), lambda blk, ci: (blk, 0, 0, 0)),      # adaLN mods
            pl.BlockSpec((1, Cblk, L, L), lambda blk, ci: (blk, ci, 0, 0)),  # Toeplitz T
            pl.BlockSpec((1, Cblk, 1, 1), lambda blk, ci: (blk, ci, 0, 0)),  # D skip
            pl.BlockSpec((1, 2 * C, C), lambda blk, ci: (blk, 0, 0)),        # cm W1
            pl.BlockSpec((1, 2 * C, 1), lambda blk, ci: (blk, 0, 0)),        # cm b1
            pl.BlockSpec((1, C, 2 * C), lambda blk, ci: (blk, 0, 0)),        # cm W2
            pl.BlockSpec((1, C, 1), lambda blk, ci: (blk, 0, 0)),            # cm b2
            pl.BlockSpec((C_in, C), lambda blk, ci: (0, 0)),                 # conv_out W
            pl.BlockSpec((C_in, 1), lambda blk, ci: (0, 0)),                 # conv_out b
        ],
        out_specs=pl.BlockSpec((C_in, B, L), lambda blk, ci: (0, 0, 0)),
        scratch_shapes=[pltpu.VMEM((C, B, L), jnp.float32)],                 # carry
        compiler_params=pltpu.CompilerParams(
            dimension_semantics=("arbitrary", "arbitrary"),
            vmem_limit_bytes=vmem_limit),
    )(x_cbl, p["conv_in_w"], p["conv_in_b"], mod, p["T"], p["D"],
      p["cm_w1"], p["cm_b1"], p["cm_w2"], p["cm_b2"],
      p["conv_out_w"], p["conv_out_b"])


def conditional_denoiser_forward(params, x, t, c):
    mod = embed_and_modulate(params, t, c)
    x_cbl = jnp.transpose(x, (1, 0, 2)).astype(jnp.float32)   # -> (C_in, B, L)
    y = fused_forward(params, x_cbl, mod)
    return jnp.transpose(y, (1, 0, 2))                        # back to torch (B, C_in, L)


# --------------------------- parameter setup (glue) ----------------------------
def _expand_grouped_1x1(w, groups):
    """(C_out, C_in // groups) grouped 1x1-conv weight -> block-diagonal (C_out, C_in).
    Kept dense (off-diagonal zeros) so conv_in/out stay single MXU matmuls fused into
    the forward kernel; extra FLOPs are negligible at these group counts."""
    c_out, cpg_in = w.shape
    cpg_out = c_out // groups
    c_in = cpg_in * groups
    full = jnp.zeros((c_out, c_in), w.dtype)
    for g in range(groups):
        full = full.at[g * cpg_out:(g + 1) * cpg_out,
                       g * cpg_in:(g + 1) * cpg_in].set(w[g * cpg_out:(g + 1) * cpg_out])
    return full


def _toeplitz_from_kernels(k_fwd, k_bwd):
    """Linear operator applied by bidirectional FFTConv:
       y[l] = sum_j (k_fwd[l-j] if l >= j else k_bwd[j-l-1]) * x[j]      (per channel)."""
    C, L = k_fwd.shape
    li = jnp.arange(L)[:, None]
    ji = jnp.arange(L)[None, :]
    d = li - ji
    fwd = k_fwd[:, jnp.clip(d, 0, L - 1)]        # (C, L, L)
    bwd = k_bwd[:, jnp.clip(-d - 1, 0, L - 1)]   # (C, L, L)
    return jnp.where((d >= 0)[None], fwd, bwd)


def init_params(key, C_in, C, L, num_blocks, condition_dim, freq_dim=256):
    ks = iter(jax.random.split(key, 128))

    def nrm(shape, scale=0.05):
        return scale * jax.random.normal(next(ks), shape, jnp.float32)

    in_groups = C_in if (C % C_in == 0 and C > C_in) else 1
    c4 = C // 4
    half = freq_dim // 2
    p = {
        "conv_in_w": _expand_grouped_1x1(nrm((C, C_in // in_groups)), in_groups),
        "conv_in_b": nrm((C, 1)),
        "conv_out_w": _expand_grouped_1x1(nrm((C_in, C // in_groups)), in_groups),
        "conv_out_b": nrm((C_in, 1)),
        # embedder weights pre-transposed to (in, out); biases stored lane-dense (1, out)
        "t_w1": nrm((freq_dim, c4)), "t_b1": nrm((1, c4)),
        "t_w2": nrm((c4, c4)), "t_b2": nrm((1, c4)),
        "c_w1": nrm((condition_dim, c4)), "c_b1": nrm((1, c4)),
        "c_w2": nrm((c4, c4)), "c_b2": nrm((1, c4)),
        "freqs": jnp.exp(-math.log(10000.0) * jnp.arange(half, dtype=jnp.float32)
                         / half).reshape(1, half),
    }
    # per-block params stacked on a leading num_blocks axis -> streamed by grid axis 0
    ada_w, ada_b, T, D, w1, b1, w2, b2 = [], [], [], [], [], [], [], []
    for _ in range(num_blocks):
        # NOTE: torch zero-inits ada_ln's Linear; small random values are used here so
        # the full data path is exercised (shapes identical).
        ada_w.append(nrm((c4, 6 * C)))          # pre-transposed (in, out)
        ada_b.append(nrm((1, 6 * C)))
        D.append(nrm((C, 1, 1)))
        w1.append(nrm((2 * C, C)))              # torch (out,in) == natural lhs in CBL layout
        b1.append(nrm((2 * C, 1)))
        w2.append(nrm((C, 2 * C)))
        b2.append(nrm((C, 1)))
        T.append(_toeplitz_from_kernels(nrm((C, L)), nrm((C, L))))
    p["ada_w"] = jnp.stack(ada_w)               # (nb, C//4, 6C)
    p["ada_b"] = jnp.stack(ada_b)               # (nb, 1, 6C)
    p["T"] = jnp.stack(T)                       # (nb, C, L, L)
    p["D"] = jnp.stack(D)                       # (nb, C, 1, 1)
    p["cm_w1"] = jnp.stack(w1); p["cm_b1"] = jnp.stack(b1)
    p["cm_w2"] = jnp.stack(w2); p["cm_b2"] = jnp.stack(b2)
    return p


# ----------------------------------- main --------------------------------------
if __name__ == "__main__":
    # L = 128 keeps the lane (last) dimension dense; other dims stay small.
    B, C_in, C, L = 2, 4, 32, 128
    num_blocks, condition_dim = 6, 2

    key = jax.random.PRNGKey(0)
    kp, kx, kt, kc = jax.random.split(key, 4)
    params = init_params(kp, C_in, C, L, num_blocks, condition_dim)

    x = jax.random.normal(kx, (B, C_in, L), jnp.float32)
    t = jax.random.uniform(kt, (B,), jnp.float32, 0.0, 1000.0)
    c = jax.random.normal(kc, (B, condition_dim), jnp.float32)

    fwd = jax.jit(functools.partial(conditional_denoiser_forward, params))
    y = fwd(x, t, c)
    jax.block_until_ready(y)
    assert y.shape == (B, C_in, L) and y.dtype == jnp.float32
    assert bool(jnp.all(jnp.isfinite(y)))
    print("KERNEL_OK")
</pallas_src>

<mosaic_0001>
module attributes {stable_mosaic.version = 11 : i64} {
  func.func @_embed_kernel(%arg0: memref<2x1xf32, #tpu.memory_space<vmem>>, %arg1: memref<2x2xf32, #tpu.memory_space<vmem>>, %arg2: memref<1x128xf32, #tpu.memory_space<vmem>>, %arg3: memref<256x8xf32, #tpu.memory_space<vmem>>, %arg4: memref<1x8xf32, #tpu.memory_space<vmem>>, %arg5: memref<8x8xf32, #tpu.memory_space<vmem>>, %arg6: memref<1x8xf32, #tpu.memory_space<vmem>>, %arg7: memref<2x8xf32, #tpu.memory_space<vmem>>, %arg8: memref<1x8xf32, #tpu.memory_space<vmem>>, %arg9: memref<8x8xf32, #tpu.memory_space<vmem>>, %arg10: memref<1x8xf32, #tpu.memory_space<vmem>>, %arg11: memref<6x8x192xf32, #tpu.memory_space<vmem>>, %arg12: memref<6x1x192xf32, #tpu.memory_space<vmem>>, %arg13: memref<6x2x192xf32, #tpu.memory_space<vmem>>) attributes {dimension_semantics = [], scalar_prefetch = 0 : i64, scratch_operands = 0 : i64, tpu.core_type = #tpu.core_type<tc>} {
    %c0 = arith.constant 0 : index
    %c0_0 = arith.constant 0 : index
    %0 = vector.load %arg0[%c0, %c0_0] : memref<2x1xf32, #tpu.memory_space<vmem>>, vector<2x1xf32>
    %c0_1 = arith.constant 0 : index
    %c0_2 = arith.constant 0 : index
    %1 = vector.load %arg2[%c0_1, %c0_2] : memref<1x128xf32, #tpu.memory_space<vmem>>, vector<1x128xf32>
    %2 = vector.broadcast %0 : vector<2x1xf32> to vector<2x128xf32>
    %3 = vector.broadcast %1 : vector<1x128xf32> to vector<2x128xf32>
    %4 = arith.mulf %2, %3 : vector<2x128xf32>
    %5 = math.cos %4 : vector<2x128xf32>
    %6 = math.sin %4 : vector<2x128xf32>
    %7 = tpu.concatenate %5, %6 in 1 : vector<2x128xf32>, vector<2x128xf32> -> vector<2x256xf32>
    %c0_3 = arith.constant 0 : index
    %c0_4 = arith.constant 0 : index
    %8 = vector.load %arg3[%c0_3, %c0_4] : memref<256x8xf32, #tpu.memory_space<vmem>>, vector<256x8xf32>
    %cst = arith.constant dense<0.000000e+00> : vector<2x8xf32>
    %9 = tpu.matmul %7, %8, %cst {dimension_numbers = #tpu.dot_dimension_numbers<[1], [0], [0], [1], [0, 0, 1, 1], [], []>} : vector<2x256xf32>, vector<256x8xf32>, vector<2x8xf32> -> vector<2x8xf32>
    %c0_5 = arith.constant 0 : index
    %c0_6 = arith.constant 0 : index
    %10 = vector.load %arg4[%c0_5, %c0_6] : memref<1x8xf32, #tpu.memory_space<vmem>>, vector<1x8xf32>
    %11 = vector.broadcast %10 : vector<1x8xf32> to vector<2x8xf32>
    %12 = arith.addf %9, %11 : vector<2x8xf32>
    %13 = arith.negf %12 : vector<2x8xf32>
    %14 = math.exp %13 : vector<2x8xf32>
    %cst_7 = arith.constant 1.000000e+00 : f32
    %15 = vector.broadcast %cst_7 : f32 to vector<2x8xf32>
    %16 = arith.addf %15, %14 : vector<2x8xf32>
    %17 = arith.divf %15, %16 : vector<2x8xf32>
    %18 = arith.mulf %12, %17 : vector<2x8xf32>
    %c0_8 = arith.constant 0 : index
    %c0_9 = arith.constant 0 : index
    %19 = vector.load %arg5[%c0_8, %c0_9] : memref<8x8xf32, #tpu.memory_space<vmem>>, vector<8x8xf32>
    %cst_10 = arith.constant dense<0.000000e+00> : vector<2x8xf32>
    %20 = tpu.matmul %18, %19, %cst_10 {dimension_numbers = #tpu.dot_dimension_numbers<[1], [0], [0], [1], [0, 0, 1, 1], [], []>} : vector<2x8xf32>, vector<8x8xf32>, vector<2x8xf32> -> vector<2x8xf32>
    %c0_11 = arith.constant 0 : index
    %c0_12 = arith.constant 0 : index
    %21 = vector.load %arg6[%c0_11, %c0_12] : memref<1x8xf32, #tpu.memory_space<vmem>>, vector<1x8xf32>
    %22 = vector.broadcast %21 : vector<1x8xf32> to vector<2x8xf32>
    %23 = arith.addf %20, %22 : vector<2x8xf32>
    %c0_13 = arith.constant 0 : index
    %c0_14 = arith.constant 0 : index
    %24 = vector.load %arg1[%c0_13, %c0_14] : memref<2x2xf32, #tpu.memory_space<vmem>>, vector<2x2xf32>
    %c0_15 = arith.constant 0 : index
    %c0_16 = arith.constant 0 : index
    %25 = vector.load %arg7[%c0_15, %c0_16] : memref<2x8xf32, #tpu.memory_space<vmem>>, vector<2x8xf32>
    %cst_17 = arith.constant dense<0.000000e+00> : vector<2x8xf32>
    %26 = tpu.matmul %24, %25, %cst_17 {dimension_numbers = #tpu.dot_dimension_numbers<[1], [0], [0], [1], [0, 0, 1, 1], [], []>} : vector<2x2xf32>, vector<2x8xf32>, vector<2x8xf32> -> vector<2x8xf32>
    %c0_18 = arith.constant 0 : index
    %c0_19 = arith.constant 0 : index
    %27 = vector.load %arg8[%c0_18, %c0_19] : memref<1x8xf32, #tpu.memory_space<vmem>>, vector<1x8xf32>
    %28 = vector.broadcast %27 : vector<1x8xf32> to vector<2x8xf32>
    %29 = arith.addf %26, %28 : vector<2x8xf32>
    %30 = arith.negf %29 : vector<2x8xf32>
    %31 = math.exp %30 : vector<2x8xf32>
    %cst_20 = arith.constant 1.000000e+00 : f32
    %32 = vector.broadcast %cst_20 : f32 to vector<2x8xf32>
    %33 = arith.addf %32, %31 : vector<2x8xf32>
    %34 = arith.divf %32, %33 : vector<2x8xf32>
    %35 = arith.mulf %29, %34 : vector<2x8xf32>
    %c0_21 = arith.constant 0 : index
    %c0_22 = arith.constant 0 : index
    %36 = vector.load %arg9[%c0_21, %c0_22] : memref<8x8xf32, #tpu.memory_space<vmem>>, vector<8x8xf32>
    %cst_23 = arith.constant dense<0.000000e+00> : vector<2x8xf32>
    %37 = tpu.matmul %35, %36, %cst_23 {dimension_numbers = #tpu.dot_dimension_numbers<[1], [0], [0], [1], [0, 0, 1, 1], [], []>} : vector<2x8xf32>, vector<8x8xf32>, vector<2x8xf32> -> vector<2x8xf32>
    %c0_24 = arith.constant 0 : index
    %c0_25 = arith.constant 0 : index
    %38 = vector.load %arg10[%c0_24, %c0_25] : memref<1x8xf32, #tpu.memory_space<vmem>>, vector<1x8xf32>
    %39 = vector.broadcast %38 : vector<1x8xf32> to vector<2x8xf32>
    %40 = arith.addf %37, %39 : vector<2x8xf32>
    %41 = arith.addf %23, %40 : vector<2x8xf32>
    %cst_26 = arith.constant 5.000000e-01 : f32
    %42 = vector.broadcast %cst_26 : f32 to vector<2x8xf32>
    %43 = arith.mulf %42, %41 : vector<2x8xf32>
    %cst_27 = arith.constant 0.707106769 : f32
    %44 = vector.broadcast %cst_27 : f32 to vector<2x8xf32>
    %45 = arith.mulf %41, %44 : vector<2x8xf32>
    %46 = math.erf %45 : vector<2x8xf32>
    %cst_28 = arith.constant 1.000000e+00 : f32
    %47 = vector.broadcast %cst_28 : f32 to vector<2x8xf32>
    %48 = arith.addf %47, %46 : vector<2x8xf32>
    %49 = arith.mulf %43, %48 : vector<2x8xf32>
    %c0_29 = arith.constant 0 : index
    %c0_30 = arith.constant 0 : index
    %c0_31 = arith.constant 0 : index
    %50 = vector.load %arg11[%c0_29, %c0_30, %c0_31] : memref<6x8x192xf32, #tpu.memory_space<vmem>>, vector<1x8x192xf32>
    %51 = vector.shape_cast %50 : vector<1x8x192xf32> to vector<8x192xf32>
    %cst_32 = arith.constant dense<0.000000e+00> : vector<2x192xf32>
    %52 = tpu.matmul %49, %51, %cst_32 {dimension_numbers = #tpu.dot_dimension_numbers<[1], [0], [0], [1], [0, 0, 1, 1], [], []>} : vector<2x8xf32>, vector<8x192xf32>, vector<2x192xf32> -> vector<2x192xf32>
    %c0_33 = arith.constant 0 : index
    %c0_34 = arith.constant 0 : index
    %c0_35 = arith.constant 0 : index
    %53 = vector.load %arg12[%c0_33, %c0_34, %c0_35] : memref<6x1x192xf32, #tpu.memory_space<vmem>>, vector<1x1x192xf32>
    %54 = vector.shape_cast %53 : vector<1x1x192xf32> to vector<1x192xf32>
    %55 = vector.broadcast %54 : vector<1x192xf32> to vector<2x192xf32>
    %56 = arith.addf %52, %55 : vector<2x192xf32>
    %c0_36 = arith.constant 0 : index
    %c0_37 = arith.constant 0 : index
    %c0_38 = arith.constant 0 : index
    %57 = vector.load %arg13[%c0_36, %c0_37, %c0_38] : memref<6x2x192xf32, #tpu.memory_space<vmem>>, vector<1x2x192xf32>
    %58 = vector.shape_cast %57 : vector<1x2x192xf32> to vector<2x192xf32>
    %59 = vector.shape_cast %56 : vector<2x192xf32> to vector<1x2x192xf32>
    tpu.vector_store %arg13[%c0_36, %c0_37, %c0_38], %59 {strides = array<i32>} : memref<6x2x192xf32, #tpu.memory_space<vmem>>, vector<1x2x192xf32>,
    %c1 = arith.constant 1 : index
    %c0_39 = arith.constant 0 : index
    %c0_40 = arith.constant 0 : index
    %60 = vector.load %arg11[%c1, %c0_39, %c0_40] : memref<6x8x192xf32, #tpu.memory_space<vmem>>, vector<1x8x192xf32>
    %61 = vector.shape_cast %60 : vector<1x8x192xf32> to vector<8x192xf32>
    %cst_41 = arith.constant dense<0.000000e+00> : vector<2x192xf32>
    %62 = tpu.matmul %49, %61, %cst_41 {dimension_numbers = #tpu.dot_dimension_numbers<[1], [0], [0], [1], [0, 0, 1, 1], [], []>} : vector<2x8xf32>, vector<8x192xf32>, vector<2x192xf32> -> vector<2x192xf32>
    %c1_42 = arith.constant 1 : index
    %c0_43 = arith.constant 0 : index
    %c0_44 = arith.constant 0 : index
    %63 = vector.load %arg12[%c1_42, %c0_43, %c0_44] : memref<6x1x192xf32, #tpu.memory_space<vmem>>, vector<1x1x192xf32>
    %64 = vector.shape_cast %63 : vector<1x1x192xf32> to vector<1x192xf32>
    %65 = vector.broadcast %64 : vector<1x192xf32> to vector<2x192xf32>
    %66 = arith.addf %62, %65 : vector<2x192xf32>
    %c1_45 = arith.constant 1 : index
    %c0_46 = arith.constant 0 : index
    %c0_47 = arith.constant 0 : index
    %67 = vector.load %arg13[%c1_45, %c0_46, %c0_47] : memref<6x2x192xf32, #tpu.memory_space<vmem>>, vector<1x2x192xf32>
    %68 = vector.shape_cast %67 : vector<1x2x192xf32> to vector<2x192xf32>
    %69 = vector.shape_cast %66 : vector<2x192xf32> to vector<1x2x192xf32>
    tpu.vector_store %arg13[%c1_45, %c0_46, %c0_47], %69 {strides = array<i32>} : memref<6x2x192xf32, #tpu.memory_space<vmem>>, vector<1x2x192xf32>,
    %c2 = arith.constant 2 : index
    %c0_48 = arith.constant 0 : index
    %c0_49 = arith.constant 0 : index
    %70 = vector.load %arg11[%c2, %c0_48, %c0_49] : memref<6x8x192xf32, #tpu.memory_space<vmem>>, vector<1x8x192xf32>
    %71 = vector.shape_cast %70 : vector<1x8x192xf32> to vector<8x192xf32>
    %cst_50 = arith.constant dense<0.000000e+00> : vector<2x192xf32>
    %72 = tpu.matmul %49, %71, %cst_50 {dimension_numbers = #tpu.dot_dimension_numbers<[1], [0], [0], [1], [0, 0, 1, 1], [], []>} : vector<2x8xf32>, vector<8x192xf32>, vector<2x192xf32> -> vector<2x192xf32>
    %c2_51 = arith.constant 2 : index
    %c0_52 = arith.constant 0 : index
    %c0_53 = arith.constant 0 : index
    %73 = vector.load %arg12[%c2_51, %c0_52, %c0_53] : memref<6x1x192xf32, #tpu.memory_space<vmem>>, vector<1x1x192xf32>
    %74 = vector.shape_cast %73 : vector<1x1x192xf32> to vector<1x192xf32>
    %75 = vector.broadcast %74 : vector<1x192xf32> to vector<2x192xf32>
    %76 = arith.addf %72, %75 : vector<2x192xf32>
    %c2_54 = arith.constant 2 : index
    %c0_55 = arith.constant 0 : index
    %c0_56 = arith.constant 0 : index
    %77 = vector.load %arg13[%c2_54, %c0_55, %c0_56] : memref<6x2x192xf32, #tpu.memory_space<vmem>>, vector<1x2x192xf32>
    %78 = vector.shape_cast %77 : vector<1x2x192xf32> to vector<2x192xf32>
    %79 = vector.shape_cast %76 : vector<2x192xf32> to vector<1x2x192xf32>
    tpu.vector_store %arg13[%c2_54, %c0_55, %c0_56], %79 {strides = array<i32>} : memref<6x2x192xf32, #tpu.memory_space<vmem>>, vector<1x2x192xf32>,
    %c3 = arith.constant 3 : index
    %c0_57 = arith.constant 0 : index
    %c0_58 = arith.constant 0 : index
    %80 = vector.load %arg11[%c3, %c0_57, %c0_58] : memref<6x8x192xf32, #tpu.memory_space<vmem>>, vector<1x8x192xf32>
    %81 = vector.shape_cast %80 : vector<1x8x192xf32> to vector<8x192xf32>
    %cst_59 = arith.constant dense<0.000000e+00> : vector<2x192xf32>
    %82 = tpu.matmul %49, %81, %cst_59 {dimension_numbers = #tpu.dot_dimension_numbers<[1], [0], [0], [1], [0, 0, 1, 1], [], []>} : vector<2x8xf32>, vector<8x192xf32>, vector<2x192xf32> -> vector<2x192xf32>
    %c3_60 = arith.constant 3 : index
    %c0_61 = arith.constant 0 : index
    %c0_62 = arith.constant 0 : index
    %83 = vector.load %arg12[%c3_60, %c0_61, %c0_62] : memref<6x1x192xf32, #tpu.memory_space<vmem>>, vector<1x1x192xf32>
    %84 = vector.shape_cast %83 : vector<1x1x192xf32> to vector<1x192xf32>
    %85 = vector.broadcast %84 : vector<1x192xf32> to vector<2x192xf32>
    %86 = arith.addf %82, %85 : vector<2x192xf32>
    %c3_63 = arith.constant 3 : index
    %c0_64 = arith.constant 0 : index
    %c0_65 = arith.constant 0 : index
    %87 = vector.load %arg13[%c3_63, %c0_64, %c0_65] : memref<6x2x192xf32, #tpu.memory_space<vmem>>, vector<1x2x192xf32>
    %88 = vector.shape_cast %87 : vector<1x2x192xf32> to vector<2x192xf32>
    %89 = vector.shape_cast %86 : vector<2x192xf32> to vector<1x2x192xf32>
    tpu.vector_store %arg13[%c3_63, %c0_64, %c0_65], %89 {strides = array<i32>} : memref<6x2x192xf32, #tpu.memory_space<vmem>>, vector<1x2x192xf32>,
    %c4 = arith.constant 4 : index
    %c0_66 = arith.constant 0 : index
    %c0_67 = arith.constant 0 : index
    %90 = vector.load %arg11[%c4, %c0_66, %c0_67] : memref<6x8x192xf32, #tpu.memory_space<vmem>>, vector<1x8x192xf32>
    %91 = vector.shape_cast %90 : vector<1x8x192xf32> to vector<8x192xf32>
    %cst_68 = arith.constant dense<0.000000e+00> : vector<2x192xf32>
    %92 = tpu.matmul %49, %91, %cst_68 {dimension_numbers = #tpu.dot_dimension_numbers<[1], [0], [0], [1], [0, 0, 1, 1], [], []>} : vector<2x8xf32>, vector<8x192xf32>, vector<2x192xf32> -> vector<2x192xf32>
    %c4_69 = arith.constant 4 : index
    %c0_70 = arith.constant 0 : index
    %c0_71 = arith.constant 0 : index
    %93 = vector.load %arg12[%c4_69, %c0_70, %c0_71] : memref<6x1x192xf32, #tpu.memory_space<vmem>>, vector<1x1x192xf32>
    %94 = vector.shape_cast %93 : vector<1x1x192xf32> to vector<1x192xf32>
    %95 = vector.broadcast %94 : vector<1x192xf32> to vector<2x192xf32>
    %96 = arith.addf %92, %95 : vector<2x192xf32>
    %c4_72 = arith.constant 4 : index
    %c0_73 = arith.constant 0 : index
    %c0_74 = arith.constant 0 : index
    %97 = vector.load %arg13[%c4_72, %c0_73, %c0_74] : memref<6x2x192xf32, #tpu.memory_space<vmem>>, vector<1x2x192xf32>
    %98 = vector.shape_cast %97 : vector<1x2x192xf32> to vector<2x192xf32>
    %99 = vector.shape_cast %96 : vector<2x192xf32> to vector<1x2x192xf32>
    tpu.vector_store %arg13[%c4_72, %c0_73, %c0_74], %99 {strides = array<i32>} : memref<6x2x192xf32, #tpu.memory_space<vmem>>, vector<1x2x192xf32>,
    %c5 = arith.constant 5 : index
    %c0_75 = arith.constant 0 : index
    %c0_76 = arith.constant 0 : index
    %100 = vector.load %arg11[%c5, %c0_75, %c0_76] : memref<6x8x192xf32, #tpu.memory_space<vmem>>, vector<1x8x192xf32>
    %101 = vector.shape_cast %100 : vector<1x8x192xf32> to vector<8x192xf32>
    %cst_77 = arith.constant dense<0.000000e+00> : vector<2x192xf32>
    %102 = tpu.matmul %49, %101, %cst_77 {dimension_numbers = #tpu.dot_dimension_numbers<[1], [0], [0], [1], [0, 0, 1, 1], [], []>} : vector<2x8xf32>, vector<8x192xf32>, vector<2x192xf32> -> vector<2x192xf32>
    %c5_78 = arith.constant 5 : index
    %c0_79 = arith.constant 0 : index
    %c0_80 = arith.constant 0 : index
    %103 = vector.load %arg12[%c5_78, %c0_79, %c0_80] : memref<6x1x192xf32, #tpu.memory_space<vmem>>, vector<1x1x192xf32>
    %104 = vector.shape_cast %103 : vector<1x1x192xf32> to vector<1x192xf32>
    %105 = vector.broadcast %104 : vector<1x192xf32> to vector<2x192xf32>
    %106 = arith.addf %102, %105 : vector<2x192xf32>
    %c5_81 = arith.constant 5 : index
    %c0_82 = arith.constant 0 : index
    %c0_83 = arith.constant 0 : index
    %107 = vector.load %arg13[%c5_81, %c0_82, %c0_83] : memref<6x2x192xf32, #tpu.memory_space<vmem>>, vector<1x2x192xf32>
    %108 = vector.shape_cast %107 : vector<1x2x192xf32> to vector<2x192xf32>
    %109 = vector.shape_cast %106 : vector<2x192xf32> to vector<1x2x192xf32>
    tpu.vector_store %arg13[%c5_81, %c0_82, %c0_83], %109 {strides = array<i32>} : memref<6x2x192xf32, #tpu.memory_space<vmem>>, vector<1x2x192xf32>,
    return
  }
}

module attributes {stable_mosaic.version = 11 : i64} {
  func.func @_fused_forward_kernel(%arg0: i32, %arg1: i32, %arg2: memref<4x2x128xf32, #tpu.memory_space<vmem>>, %arg3: memref<32x4xf32, #tpu.memory_space<vmem>>, %arg4: memref<32x1xf32, #tpu.memory_space<vmem>>, %arg5: memref<1x32x2x6xf32, #tpu.memory_space<vmem>>, %arg6: memref<1x32x128x128xf32, #tpu.memory_space<vmem>>, %arg7: memref<1x32x1x1xf32, #tpu.memory_space<vmem>>, %arg8: memref<1x64x32xf32, #tpu.memory_space<vmem>>, %arg9: memref<1x64x1xf32, #tpu.memory_space<vmem>>, %arg10: memref<1x32x64xf32, #tpu.memory_space<vmem>>, %arg11: memref<1x32x1xf32, #tpu.memory_space<vmem>>, %arg12: memref<4x32xf32, #tpu.memory_space<vmem>>, %arg13: memref<4x1xf32, #tpu.memory_space<vmem>>, %arg14: memref<4x2x128xf32, #tpu.memory_space<vmem>>, %arg15: memref<32x2x128xf32, #tpu.memory_space<vmem>>) attributes {dimension_semantics = [#tpu.dimension_semantics<arbitrary>, #tpu.dimension_semantics<arbitrary>], iteration_bounds = array<i64: 6, 1>, scalar_prefetch = 0 : i64, scratch_operands = 1 : i64, tpu.core_type = #tpu.core_type<tc>, window_params = [{pipeline_mode = #tpu.pipeline_mode<synchronous>, transform_indices = @transform_0, window_bounds = array<i64: 4, 2, 128>}, {pipeline_mode = #tpu.pipeline_mode<synchronous>, transform_indices = @transform_1, window_bounds = array<i64: 32, 4>}, {pipeline_mode = #tpu.pipeline_mode<synchronous>, transform_indices = @transform_2, window_bounds = array<i64: 32, 1>}, {transform_indices = @transform_3, window_bounds = array<i64: 1, 32, 2, 6>}, {transform_indices = @transform_4, window_bounds = array<i64: 1, 32, 128, 128>}, {transform_indices = @transform_5, window_bounds = array<i64: 1, 32, 1, 1>}, {transform_indices = @transform_6, window_bounds = array<i64: 1, 64, 32>}, {transform_indices = @transform_7, window_bounds = array<i64: 1, 64, 1>}, {transform_indices = @transform_8, window_bounds = array<i64: 1, 32, 64>}, {transform_indices = @transform_9, window_bounds = array<i64: 1, 32, 1>}, {pipeline_mode = #tpu.pipeline_mode<synchronous>, transform_indices = @transform_10, window_bounds = array<i64: 4, 32>}, {pipeline_mode = #tpu.pipeline_mode<synchronous>, transform_indices = @transform_11, window_bounds = array<i64: 4, 1>}, {pipeline_mode = #tpu.pipeline_mode<synchronous>, transform_indices = @transform_12, window_bounds = array<i64: 4, 2, 128>}]} {
    %c0_i32 = arith.constant 0 : i32
    %0 = arith.cmpi eq, %arg0, %c0_i32 : i32
    %c0_i32_0 = arith.constant 0 : i32
    %1 = arith.cmpi eq, %arg1, %c0_i32_0 : i32
    %2 = arith.andi %0, %1 : i1
    %3 = arith.extui %2 : i1 to i32
    %c0_i32_1 = arith.constant 0 : i32
    %4 = arith.cmpi ne, %3, %c0_i32_1 : i32
    scf.if %4 {
      %c0_29 = arith.constant 0 : index
      %c0_30 = arith.constant 0 : index
      %68 = vector.load %arg3[%c0_29, %c0_30] : memref<32x4xf32, #tpu.memory_space<vmem>>, vector<32x4xf32>
      %c0_31 = arith.constant 0 : index
      %c0_32 = arith.constant 0 : index
      %c0_33 = arith.constant 0 : index
      %69 = vector.load %arg2[%c0_31, %c0_32, %c0_33] : memref<4x2x128xf32, #tpu.memory_space<vmem>>, vector<4x1x128xf32>
      %70 = vector.shape_cast %69 : vector<4x1x128xf32> to vector<4x128xf32>
      %cst_34 = arith.constant dense<0.000000e+00> : vector<32x128xf32>
      %71 = tpu.matmul %68, %70, %cst_34 {dimension_numbers = #tpu.dot_dimension_numbers<[1], [0], [0], [1], [0, 0, 1, 1], [], []>} : vector<32x4xf32>, vector<4x128xf32>, vector<32x128xf32> -> vector<32x128xf32>
      %c0_35 = arith.constant 0 : index
      %c0_36 = arith.constant 0 : index
      %72 = vector.load %arg4[%c0_35, %c0_36] : memref<32x1xf32, #tpu.memory_space<vmem>>, vector<32x1xf32>
      %73 = vector.broadcast %72 : vector<32x1xf32> to vector<32x128xf32>
      %74 = arith.addf %71, %73 : vector<32x128xf32>
      %c0_37 = arith.constant 0 : index
      %c0_38 = arith.constant 0 : index
      %c0_39 = arith.constant 0 : index
      %75 = vector.load %arg15[%c0_37, %c0_38, %c0_39] : memref<32x2x128xf32, #tpu.memory_space<vmem>>, vector<32x1x128xf32>
      %76 = vector.shape_cast %75 : vector<32x1x128xf32> to vector<32x128xf32>
      %77 = vector.shape_cast %74 : vector<32x128xf32> to vector<32x1x128xf32>
      tpu.vector_store %arg15[%c0_37, %c0_38, %c0_39], %77 {strides = array<i32>} : memref<32x2x128xf32, #tpu.memory_space<vmem>>, vector<32x1x128xf32>,
      %c0_40 = arith.constant 0 : index
      %c0_41 = arith.constant 0 : index
      %78 = vector.load %arg3[%c0_40, %c0_41] : memref<32x4xf32, #tpu.memory_space<vmem>>, vector<32x4xf32>
      %c0_42 = arith.constant 0 : index
      %c1 = arith.constant 1 : index
      %c0_43 = arith.constant 0 : index
      %79 = vector.load %arg2[%c0_42, %c1, %c0_43] : memref<4x2x128xf32, #tpu.memory_space<vmem>>, vector<4x1x128xf32>
      %80 = vector.shape_cast %79 : vector<4x1x128xf32> to vector<4x128xf32>
      %cst_44 = arith.constant dense<0.000000e+00> : vector<32x128xf32>
      %81 = tpu.matmul %78, %80, %cst_44 {dimension_numbers = #tpu.dot_dimension_numbers<[1], [0], [0], [1], [0, 0, 1, 1], [], []>} : vector<32x4xf32>, vector<4x128xf32>, vector<32x128xf32> -> vector<32x128xf32>
      %c0_45 = arith.constant 0 : index
      %c0_46 = arith.constant 0 : index
      %82 = vector.load %arg4[%c0_45, %c0_46] : memref<32x1xf32, #tpu.memory_space<vmem>>, vector<32x1xf32>
      %83 = vector.broadcast %82 : vector<32x1xf32> to vector<32x128xf32>
      %84 = arith.addf %81, %83 : vector<32x128xf32>
      %c0_47 = arith.constant 0 : index
      %c1_48 = arith.constant 1 : index
      %c0_49 = arith.constant 0 : index
      %85 = vector.load %arg15[%c0_47, %c1_48, %c0_49] : memref<32x2x128xf32, #tpu.memory_space<vmem>>, vector<32x1x128xf32>
      %86 = vector.shape_cast %85 : vector<32x1x128xf32> to vector<32x128xf32>
      %87 = vector.shape_cast %84 : vector<32x128xf32> to vector<32x1x128xf32>
      tpu.vector_store %arg15[%c0_47, %c1_48, %c0_49], %87 {strides = array<i32>} : memref<32x2x128xf32, #tpu.memory_space<vmem>>, vector<32x1x128xf32>,
    } else {
    }
    %c32_i32 = arith.constant 32 : i32
    %5 = arith.muli %arg1, %c32_i32 : i32
    %6 = tpu.assume_multiple %5, 32 : i32
    %7 = arith.index_cast %6 : i32 to index
    %c0 = arith.constant 0 : index
    %c0_2 = arith.constant 0 : index
    %8 = vector.load %arg15[%7, %c0, %c0_2] : memref<32x2x128xf32, #tpu.memory_space<vmem>>, vector<32x2x128xf32>
    %cst = arith.constant dense<0.000000e+00> : vector<32x2xf32>
    %9 = vector.multi_reduction <add>, %8, %cst [2] : vector<32x2x128xf32> to vector<32x2xf32>
    %10 = vector.shape_cast %9 : vector<32x2xf32> to vector<32x2x1xf32>
    %cst_3 = arith.constant 1.280000e+02 : f32
    %11 = vector.broadcast %cst_3 : f32 to vector<32x2x1xf32>
    %12 = arith.divf %10, %11 : vector<32x2x1xf32>
    %13 = vector.broadcast %12 : vector<32x2x1xf32> to vector<32x2x128xf32>
    %14 = arith.subf %8, %13 : vector<32x2x128xf32>
    %15 = arith.mulf %14, %14 : vector<32x2x128xf32>
    %cst_4 = arith.constant dense<0.000000e+00> : vector<32x2xf32>
    %16 = vector.multi_reduction <add>, %15, %cst_4 [2] : vector<32x2x128xf32> to vector<32x2xf32>
    %17 = vector.shape_cast %16 : vector<32x2xf32> to vector<32x2x1xf32>
    %cst_5 = arith.constant 1.280000e+02 : f32
    %18 = vector.broadcast %cst_5 : f32 to vector<32x2x1xf32>
    %19 = arith.divf %17, %18 : vector<32x2x1xf32>
    %20 = vector.broadcast %12 : vector<32x2x1xf32> to vector<32x2x128xf32>
    %21 = arith.subf %8, %20 : vector<32x2x128xf32>
    %cst_6 = arith.constant 9.99999974E-6 : f32
    %22 = vector.broadcast %cst_6 : f32 to vector<32x2x1xf32>
    %23 = arith.addf %19, %22 : vector<32x2x1xf32>
    %24 = math.rsqrt %23 : vector<32x2x1xf32>
    %25 = vector.broadcast %24 : vector<32x2x1xf32> to vector<32x2x128xf32>
    %26 = arith.mulf %21, %25 : vector<32x2x128xf32>
    %c0_7 = arith.constant 0 : index
    %27 = arith.index_cast %6 : i32 to index
    %c0_8 = arith.constant 0 : index
    %c0_9 = arith.constant 0 : index
    %28 = vector.load %arg5[%c0_7, %27, %c0_8, %c0_9] : memref<1x32x2x6xf32, #tpu.memory_space<vmem>>, vector<1x32x2x6xf32>
    %29 = vector.shape_cast %28 : vector<1x32x2x6xf32> to vector<32x2x6xf32>
    %30 = vector.extract_strided_slice %29 {offsets = [0, 0, 1], sizes = [32, 2, 1], strides = [1, 1, 1]} : vector<32x2x6xf32> to vector<32x2x1xf32>
    %cst_10 = arith.constant 1.000000e+00 : f32
    %31 = vector.broadcast %cst_10 : f32 to vector<32x2x1xf32>
    %32 = arith.addf %31, %30 : vector<32x2x1xf32>
    %33 = vector.broadcast %32 : vector<32x2x1xf32> to vector<32x2x128xf32>
    %34 = arith.mulf %26, %33 : vector<32x2x128xf32>
    %35 = vector.extract_strided_slice %29 {offsets = [0, 0, 0], sizes = [32, 2, 1], strides = [1, 1, 1]} : vector<32x2x6xf32> to vector<32x2x1xf32>
    %36 = vector.broadcast %35 : vector<32x2x1xf32> to vector<32x2x128xf32>
    %37 = arith.addf %34, %36 : vector<32x2x128xf32>
    %c0_11 = arith.constant 0 : index
    %c0_12 = arith.constant 0 : index
    %c0_13 = arith.constant 0 : index
    %c0_14 = arith.constant 0 : index
    %38 = vector.load %arg6[%c0_11, %c0_12, %c0_13, %c0_14] : memref<1x32x128x128xf32, #tpu.memory_space<vmem>>, vector<1x32x128x128xf32>
    %39 = vector.shape_cast %38 : vector<1x32x128x128xf32> to vector<32x128x128xf32>
    %cst_15 = arith.constant dense<0.000000e+00> : vector<32x2x128xf32>
    %40 = tpu.matmul %37, %39, %cst_15 {dimension_numbers = #tpu.dot_dimension_numbers<[2], [2], [1], [1], [0, 0, 0, 1, 1, 1], [0], [0]>} : vector<32x2x128xf32>, vector<32x128x128xf32>, vector<32x2x128xf32> -> vector<32x2x128xf32>
    %c0_16 = arith.constant 0 : index
    %c0_17 = arith.constant 0 : index
    %c0_18 = arith.constant 0 : index
    %c0_19 = arith.constant 0 : index
    %41 = vector.load %arg7[%c0_16, %c0_17, %c0_18, %c0_19] : memref<1x32x1x1xf32, #tpu.memory_space<vmem>>, vector<1x32x1x1xf32>
    %42 = vector.shape_cast %41 : vector<1x32x1x1xf32> to vector<32x1x1xf32>
    %43 = vector.broadcast %42 : vector<32x1x1xf32> to vector<32x2x128xf32>
    %44 = arith.mulf %43, %37 : vector<32x2x128xf32>
    %45 = arith.addf %40, %44 : vector<32x2x128xf32>
    %46 = vector.extract_strided_slice %29 {offsets = [0, 0, 2], sizes = [32, 2, 1], strides = [1, 1, 1]} : vector<32x2x6xf32> to vector<32x2x1xf32>
    %cst_20 = arith.constant 5.000000e-01 : f32
    %47 = vector.broadcast %cst_20 : f32 to vector<32x2x128xf32>
    %48 = arith.mulf %47, %45 : vector<32x2x128xf32>
    %cst_21 = arith.constant 0.707106769 : f32
    %49 = vector.broadcast %cst_21 : f32 to vector<32x2x128xf32>
    %50 = arith.mulf %45, %49 : vector<32x2x128xf32>
    %51 = math.erf %50 : vector<32x2x128xf32>
    %cst_22 = arith.constant 1.000000e+00 : f32
    %52 = vector.broadcast %cst_22 : f32 to vector<32x2x128xf32>
    %53 = arith.addf %52, %51 : vector<32x2x128xf32>
    %54 = arith.mulf %48, %53 : vector<32x2x128xf32>
    %55 = vector.broadcast %46 : vector<32x2x1xf32> to vector<32x2x128xf32>
    %56 = arith.mulf %55, %54 : vector<32x2x128xf32>
    %57 = arith.addf %8, %56 : vector<32x2x128xf32>
    %58 = arith.index_cast %6 : i32 to index
    %c0_23 = arith.constant 0 : index
    %c0_24 = arith.constant 0 : index
    %59 = vector.load %arg15[%58, %c0_23, %c0_24] : memref<32x2x128xf32, #tpu.memory_space<vmem>>, vector<32x2x128xf32>
    tpu.vector_store %arg15[%58, %c0_23, %c0_24], %57 {strides = array<i32>} : memref<32x2x128xf32, #tpu.memory_space<vmem>>, vector<32x2x128xf32>,
    %c0_i32_25 = arith.constant 0 : i32
    %60 = arith.cmpi eq, %arg1, %c0_i32_25 : i32
    %61 = arith.extui %60 : i1 to i32
    %c0_i32_26 = arith.constant 0 : i32
    %62 = arith.cmpi ne, %61, %c0_i32_26 : i32
    scf.if %62 {
      %c0_29 = arith.constant 0 : index
      %c0_30 = arith.constant 0 : index
      %c0_31 = arith.constant 0 : index
      %c0_32 = arith.constant 0 : index
      %68 = vector.load %arg5[%c0_29, %c0_30, %c0_31, %c0_32] : memref<1x32x2x6xf32, #tpu.memory_space<vmem>>, vector<1x32x2x6xf32>
      %69 = vector.shape_cast %68 : vector<1x32x2x6xf32> to vector<32x2x6xf32>
      %c0_33 = arith.constant 0 : index
      %c0_34 = arith.constant 0 : index
      %c0_35 = arith.constant 0 : index
      %70 = vector.load %arg15[%c0_33, %c0_34, %c0_35] : memref<32x2x128xf32, #tpu.memory_space<vmem>>, vector<32x1x128xf32>
      %71 = vector.shape_cast %70 : vector<32x1x128xf32> to vector<32x128xf32>
      %cst_36 = arith.constant dense<0.000000e+00> : vector<32xf32>
      %72 = vector.multi_reduction <add>, %71, %cst_36 [1] : vector<32x128xf32> to vector<32xf32>
      %73 = vector.shape_cast %72 : vector<32xf32> to vector<32x1xf32>
      %cst_37 = arith.constant 1.280000e+02 : f32
      %74 = vector.broadcast %cst_37 : f32 to vector<32x1xf32>
      %75 = arith.divf %73, %74 : vector<32x1xf32>
      %76 = vector.broadcast %75 : vector<32x1xf32> to vector<32x128xf32>
      %77 = arith.subf %71, %76 : vector<32x128xf32>
      %78 = arith.mulf %77, %77 : vector<32x128xf32>
      %cst_38 = arith.constant dense<0.000000e+00> : vector<32xf32>
      %79 = vector.multi_reduction <add>, %78, %cst_38 [1] : vector<32x128xf32> to vector<32xf32>
      %80 = vector.shape_cast %79 : vector<32xf32> to vector<32x1xf32>
      %cst_39 = arith.constant 1.280000e+02 : f32
      %81 = vector.broadcast %cst_39 : f32 to vector<32x1xf32>
      %82 = arith.divf %80, %81 : vector<32x1xf32>
      %83 = vector.broadcast %75 : vector<32x1xf32> to vector<32x128xf32>
      %84 = arith.subf %71, %83 : vector<32x128xf32>
      %cst_40 = arith.constant 9.99999974E-6 : f32
      %85 = vector.broadcast %cst_40 : f32 to vector<32x1xf32>
      %86 = arith.addf %82, %85 : vector<32x1xf32>
      %87 = math.rsqrt %86 : vector<32x1xf32>
      %88 = vector.broadcast %87 : vector<32x1xf32> to vector<32x128xf32>
      %89 = arith.mulf %84, %88 : vector<32x128xf32>
      %90 = vector.extract_strided_slice %69 {offsets = [0, 0, 4], sizes = [32, 1, 1], strides = [1, 1, 1]} : vector<32x2x6xf32> to vector<32x1x1xf32>
      %91 = vector.shape_cast %90 : vector<32x1x1xf32> to vector<32x1xf32>
      %cst_41 = arith.constant 1.000000e+00 : f32
      %92 = vector.broadcast %cst_41 : f32 to vector<32x1xf32>
      %93 = arith.addf %92, %91 : vector<32x1xf32>
      %94 = vector.broadcast %93 : vector<32x1xf32> to vector<32x128xf32>
      %95 = arith.mulf %89, %94 : vector<32x128xf32>
      %96 = vector.extract_strided_slice %69 {offsets = [0, 0, 3], sizes = [32, 1, 1], strides = [1, 1, 1]} : vector<32x2x6xf32> to vector<32x1x1xf32>
      %97 = vector.shape_cast %96 : vector<32x1x1xf32> to vector<32x1xf32>
      %98 = vector.broadcast %97 : vector<32x1xf32> to vector<32x128xf32>
      %99 = arith.addf %95, %98 : vector<32x128xf32>
      %c0_42 = arith.constant 0 : index
      %c0_43 = arith.constant 0 : index
      %c0_44 = arith.constant 0 : index
      %100 = vector.load %arg8[%c0_42, %c0_43, %c0_44] : memref<1x64x32xf32, #tpu.memory_space<vmem>>, vector<1x64x32xf32>
      %101 = vector.shape_cast %100 : vector<1x64x32xf32> to vector<64x32xf32>
      %cst_45 = arith.constant dense<0.000000e+00> : vector<64x128xf32>
      %102 = tpu.matmul %101, %99, %cst_45 {dimension_numbers = #tpu.dot_dimension_numbers<[1], [0], [0], [1], [0, 0, 1, 1], [], []>} : vector<64x32xf32>, vector<32x128xf32>, vector<64x128xf32> -> vector<64x128xf32>
      %c0_46 = arith.constant 0 : index
      %c0_47 = arith.constant 0 : index
      %c0_48 = arith.constant 0 : index
      %103 = vector.load %arg9[%c0_46, %c0_47, %c0_48] : memref<1x64x1xf32, #tpu.memory_space<vmem>>, vector<1x64x1xf32>
      %104 = vector.shape_cast %103 : vector<1x64x1xf32> to vector<64x1xf32>
      %105 = vector.broadcast %104 : vector<64x1xf32> to vector<64x128xf32>
      %106 = arith.addf %102, %105 : vector<64x128xf32>
      %cst_49 = arith.constant 5.000000e-01 : f32
      %107 = vector.broadcast %cst_49 : f32 to vector<64x128xf32>
      %108 = arith.mulf %107, %106 : vector<64x128xf32>
      %cst_50 = arith.constant 0.707106769 : f32
      %109 = vector.broadcast %cst_50 : f32 to vector<64x128xf32>
      %110 = arith.mulf %106, %109 : vector<64x128xf32>
      %111 = math.erf %110 : vector<64x128xf32>
      %cst_51 = arith.constant 1.000000e+00 : f32
      %112 = vector.broadcast %cst_51 : f32 to vector<64x128xf32>
      %113 = arith.addf %112, %111 : vector<64x128xf32>
      %114 = arith.mulf %108, %113 : vector<64x128xf32>
      %c0_52 = arith.constant 0 : index
      %c0_53 = arith.constant 0 : index
      %c0_54 = arith.constant 0 : index
      %115 = vector.load %arg10[%c0_52, %c0_53, %c0_54] : memref<1x32x64xf32, #tpu.memory_space<vmem>>, vector<1x32x64xf32>
      %116 = vector.shape_cast %115 : vector<1x32x64xf32> to vector<32x64xf32>
      %cst_55 = arith.constant dense<0.000000e+00> : vector<32x128xf32>
      %117 = tpu.matmul %116, %114, %cst_55 {dimension_numbers = #tpu.dot_dimension_numbers<[1], [0], [0], [1], [0, 0, 1, 1], [], []>} : vector<32x64xf32>, vector<64x128xf32>, vector<32x128xf32> -> vector<32x128xf32>
      %c0_56 = arith.constant 0 : index
      %c0_57 = arith.constant 0 : index
      %c0_58 = arith.constant 0 : index
      %118 = vector.load %arg11[%c0_56, %c0_57, %c0_58] : memref<1x32x1xf32, #tpu.memory_space<vmem>>, vector<1x32x1xf32>
      %119 = vector.shape_cast %118 : vector<1x32x1xf32> to vector<32x1xf32>
      %120 = vector.broadcast %119 : vector<32x1xf32> to vector<32x128xf32>
      %121 = arith.addf %117, %120 : vector<32x128xf32>
      %122 = vector.extract_strided_slice %69 {offsets = [0, 0, 5], sizes = [32, 1, 1], strides = [1, 1, 1]} : vector<32x2x6xf32> to vector<32x1x1xf32>
      %123 = vector.shape_cast %122 : vector<32x1x1xf32> to vector<32x1xf32>
      %124 = vector.broadcast %123 : vector<32x1xf32> to vector<32x128xf32>
      %125 = arith.mulf %124, %121 : vector<32x128xf32>
      %126 = arith.addf %71, %125 : vector<32x128xf32>
      %c0_59 = arith.constant 0 : index
      %c0_60 = arith.constant 0 : index
      %c0_61 = arith.constant 0 : index
      %127 = vector.load %arg15[%c0_59, %c0_60, %c0_61] : memref<32x2x128xf32, #tpu.memory_space<vmem>>, vector<32x1x128xf32>
      %128 = vector.shape_cast %127 : vector<32x1x128xf32> to vector<32x128xf32>
      %129 = vector.shape_cast %126 : vector<32x128xf32> to vector<32x1x128xf32>
      tpu.vector_store %arg15[%c0_59, %c0_60, %c0_61], %129 {strides = array<i32>} : memref<32x2x128xf32, #tpu.memory_space<vmem>>, vector<32x1x128xf32>,
      %c0_62 = arith.constant 0 : index
      %c1 = arith.constant 1 : index
      %c0_63 = arith.constant 0 : index
      %130 = vector.load %arg15[%c0_62, %c1, %c0_63] : memref<32x2x128xf32, #tpu.memory_space<vmem>>, vector<32x1x128xf32>
      %131 = vector.shape_cast %130 : vector<32x1x128xf32> to vector<32x128xf32>
      %cst_64 = arith.constant dense<0.000000e+00> : vector<32xf32>
      %132 = vector.multi_reduction <add>, %131, %cst_64 [1] : vector<32x128xf32> to vector<32xf32>
      %133 = vector.shape_cast %132 : vector<32xf32> to vector<32x1xf32>
      %cst_65 = arith.constant 1.280000e+02 : f32
      %134 = vector.broadcast %cst_65 : f32 to vector<32x1xf32>
      %135 = arith.divf %133, %134 : vector<32x1xf32>
      %136 = vector.broadcast %135 : vector<32x1xf32> to vector<32x128xf32>
      %137 = arith.subf %131, %136 : vector<32x128xf32>
      %138 = arith.mulf %137, %137 : vector<32x128xf32>
      %cst_66 = arith.constant dense<0.000000e+00> : vector<32xf32>
      %139 = vector.multi_reduction <add>, %138, %cst_66 [1] : vector<32x128xf32> to vector<32xf32>
      %140 = vector.shape_cast %139 : vector<32xf32> to vector<32x1xf32>
      %cst_67 = arith.constant 1.280000e+02 : f32
      %141 = vector.broadcast %cst_67 : f32 to vector<32x1xf32>
      %142 = arith.divf %140, %141 : vector<32x1xf32>
      %143 = vector.broadcast %135 : vector<32x1xf32> to vector<32x128xf32>
      %144 = arith.subf %131, %143 : vector<32x128xf32>
      %cst_68 = arith.constant 9.99999974E-6 : f32
      %145 = vector.broadcast %cst_68 : f32 to vector<32x1xf32>
      %146 = arith.addf %142, %145 : vector<32x1xf32>
      %147 = math.rsqrt %146 : vector<32x1xf32>
      %148 = vector.broadcast %147 : vector<32x1xf32> to vector<32x128xf32>
      %149 = arith.mulf %144, %148 : vector<32x128xf32>
      %150 = vector.extract_strided_slice %69 {offsets = [0, 1, 4], sizes = [32, 1, 1], strides = [1, 1, 1]} : vector<32x2x6xf32> to vector<32x1x1xf32>
      %151 = vector.shape_cast %150 : vector<32x1x1xf32> to vector<32x1xf32>
      %cst_69 = arith.constant 1.000000e+00 : f32
      %152 = vector.broadcast %cst_69 : f32 to vector<32x1xf32>
      %153 = arith.addf %152, %151 : vector<32x1xf32>
      %154 = vector.broadcast %153 : vector<32x1xf32> to vector<32x128xf32>
      %155 = arith.mulf %149, %154 : vector<32x128xf32>
      %156 = vector.extract_strided_slice %69 {offsets = [0, 1, 3], sizes = [32, 1, 1], strides = [1, 1, 1]} : vector<32x2x6xf32> to vector<32x1x1xf32>
      %157 = vector.shape_cast %156 : vector<32x1x1xf32> to vector<32x1xf32>
      %158 = vector.broadcast %157 : vector<32x1xf32> to vector<32x128xf32>
      %159 = arith.addf %155, %158 : vector<32x128xf32>
      %c0_70 = arith.constant 0 : index
      %c0_71 = arith.constant 0 : index
      %c0_72 = arith.constant 0 : index
      %160 = vector.load %arg8[%c0_70, %c0_71, %c0_72] : memref<1x64x32xf32, #tpu.memory_space<vmem>>, vector<1x64x32xf32>
      %161 = vector.shape_cast %160 : vector<1x64x32xf32> to vector<64x32xf32>
      %cst_73 = arith.constant dense<0.000000e+00> : vector<64x128xf32>
      %162 = tpu.matmul %161, %159, %cst_73 {dimension_numbers = #tpu.dot_dimension_numbers<[1], [0], [0], [1], [0, 0, 1, 1], [], []>} : vector<64x32xf32>, vector<32x128xf32>, vector<64x128xf32> -> vector<64x128xf32>
      %c0_74 = arith.constant 0 : index
      %c0_75 = arith.constant 0 : index
      %c0_76 = arith.constant 0 : index
      %163 = vector.load %arg9[%c0_74, %c0_75, %c0_76] : memref<1x64x1xf32, #tpu.memory_space<vmem>>, vector<1x64x1xf32>
      %164 = vector.shape_cast %163 : vector<1x64x1xf32> to vector<64x1xf32>
      %165 = vector.broadcast %164 : vector<64x1xf32> to vector<64x128xf32>
      %166 = arith.addf %162, %165 : vector<64x128xf32>
      %cst_77 = arith.constant 5.000000e-01 : f32
      %167 = vector.broadcast %cst_77 : f32 to vector<64x128xf32>
      %168 = arith.mulf %167, %166 : vector<64x128xf32>
      %cst_78 = arith.constant 0.707106769 : f32
      %169 = vector.broadcast %cst_78 : f32 to vector<64x128xf32>
      %170 = arith.mulf %166, %169 : vector<64x128xf32>
      %171 = math.erf %170 : vector<64x128xf32>
      %cst_79 = arith.constant 1.000000e+00 : f32
      %172 = vector.broadcast %cst_79 : f32 to vector<64x128xf32>
      %173 = arith.addf %172, %171 : vector<64x128xf32>
      %174 = arith.mulf %168, %173 : vector<64x128xf32>
      %c0_80 = arith.constant 0 : index
      %c0_81 = arith.constant 0 : index
      %c0_82 = arith.constant 0 : index
      %175 = vector.load %arg10[%c0_80, %c0_81, %c0_82] : memref<1x32x64xf32, #tpu.memory_space<vmem>>, vector<1x32x64xf32>
      %176 = vector.shape_cast %175 : vector<1x32x64xf32> to vector<32x64xf32>
      %cst_83 = arith.constant dense<0.000000e+00> : vector<32x128xf32>
      %177 = tpu.matmul %176, %174, %cst_83 {dimension_numbers = #tpu.dot_dimension_numbers<[1], [0], [0], [1], [0, 0, 1, 1], [], []>} : vector<32x64xf32>, vector<64x128xf32>, vector<32x128xf32> -> vector<32x128xf32>
      %c0_84 = arith.constant 0 : index
      %c0_85 = arith.constant 0 : index
      %c0_86 = arith.constant 0 : index
      %178 = vector.load %arg11[%c0_84, %c0_85, %c0_86] : memref<1x32x1xf32, #tpu.memory_space<vmem>>, vector<1x32x1xf32>
      %179 = vector.shape_cast %178 : vector<1x32x1xf32> to vector<32x1xf32>
      %180 = vector.broadcast %179 : vector<32x1xf32> to vector<32x128xf32>
      %181 = arith.addf %177, %180 : vector<32x128xf32>
      %182 = vector.extract_strided_slice %69 {offsets = [0, 1, 5], sizes = [32, 1, 1], strides = [1, 1, 1]} : vector<32x2x6xf32> to vector<32x1x1xf32>
      %183 = vector.shape_cast %182 : vector<32x1x1xf32> to vector<32x1xf32>
      %184 = vector.broadcast %183 : vector<32x1xf32> to vector<32x128xf32>
      %185 = arith.mulf %184, %181 : vector<32x128xf32>
      %186 = arith.addf %131, %185 : vector<32x128xf32>
      %c0_87 = arith.constant 0 : index
      %c1_88 = arith.constant 1 : index
      %c0_89 = arith.constant 0 : index
      %187 = vector.load %arg15[%c0_87, %c1_88, %c0_89] : memref<32x2x128xf32, #tpu.memory_space<vmem>>, vector<32x1x128xf32>
      %188 = vector.shape_cast %187 : vector<32x1x128xf32> to vector<32x128xf32>
      %189 = vector.shape_cast %186 : vector<32x128xf32> to vector<32x1x128xf32>
      tpu.vector_store %arg15[%c0_87, %c1_88, %c0_89], %189 {strides = array<i32>} : memref<32x2x128xf32, #tpu.memory_space<vmem>>, vector<32x1x128xf32>,
    } else {
    }
    %c5_i32 = arith.constant 5 : i32
    %63 = arith.cmpi eq, %arg0, %c5_i32 : i32
    %c0_i32_27 = arith.constant 0 : i32
    %64 = arith.cmpi eq, %arg1, %c0_i32_27 : i32
    %65 = arith.andi %63, %64 : i1
    %66 = arith.extui %65 : i1 to i32
    %c0_i32_28 = arith.constant 0 : i32
    %67 = arith.cmpi ne, %66, %c0_i32_28 : i32
    scf.if %67 {
      %c0_29 = arith.constant 0 : index
      %c0_30 = arith.constant 0 : index
      %68 = vector.load %arg12[%c0_29, %c0_30] : memref<4x32xf32, #tpu.memory_space<vmem>>, vector<4x32xf32>
      %c0_31 = arith.constant 0 : index
      %c0_32 = arith.constant 0 : index
      %c0_33 = arith.constant 0 : index
      %69 = vector.load %arg15[%c0_31, %c0_32, %c0_33] : memref<32x2x128xf32, #tpu.memory_space<vmem>>, vector<32x1x128xf32>
      %70 = vector.shape_cast %69 : vector<32x1x128xf32> to vector<32x128xf32>
      %cst_34 = arith.constant dense<0.000000e+00> : vector<4x128xf32>
      %71 = tpu.matmul %68, %70, %cst_34 {dimension_numbers = #tpu.dot_dimension_numbers<[1], [0], [0], [1], [0, 0, 1, 1], [], []>} : vector<4x32xf32>, vector<32x128xf32>, vector<4x128xf32> -> vector<4x128xf32>
      %c0_35 = arith.constant 0 : index
      %c0_36 = arith.constant 0 : index
      %72 = vector.load %arg13[%c0_35, %c0_36] : memref<4x1xf32, #tpu.memory_space<vmem>>, vector<4x1xf32>
      %73 = vector.broadcast %72 : vector<4x1xf32> to vector<4x128xf32>
      %74 = arith.addf %71, %73 : vector<4x128xf32>
      %c0_37 = arith.constant 0 : index
      %c0_38 = arith.constant 0 : index
      %c0_39 = arith.constant 0 : index
      %75 = vector.load %arg14[%c0_37, %c0_38, %c0_39] : memref<4x2x128xf32, #tpu.memory_space<vmem>>, vector<4x1x128xf32>
      %76 = vector.shape_cast %75 : vector<4x1x128xf32> to vector<4x128xf32>
      %77 = vector.shape_cast %74 : vector<4x128xf32> to vector<4x1x128xf32>
      tpu.vector_store %arg14[%c0_37, %c0_38, %c0_39], %77 {strides = array<i32>} : memref<4x2x128xf32, #tpu.memory_space<vmem>>, vector<4x1x128xf32>,
      %c0_40 = arith.constant 0 : index
      %c0_41 = arith.constant 0 : index
      %78 = vector.load %arg12[%c0_40, %c0_41] : memref<4x32xf32, #tpu.memory_space<vmem>>, vector<4x32xf32>
      %c0_42 = arith.constant 0 : index
      %c1 = arith.constant 1 : index
      %c0_43 = arith.constant 0 : index
      %79 = vector.load %arg15[%c0_42, %c1, %c0_43] : memref<32x2x128xf32, #tpu.memory_space<vmem>>, vector<32x1x128xf32>
      %80 = vector.shape_cast %79 : vector<32x1x128xf32> to vector<32x128xf32>
      %cst_44 = arith.constant dense<0.000000e+00> : vector<4x128xf32>
      %81 = tpu.matmul %78, %80, %cst_44 {dimension_numbers = #tpu.dot_dimension_numbers<[1], [0], [0], [1], [0, 0, 1, 1], [], []>} : vector<4x32xf32>, vector<32x128xf32>, vector<4x128xf32> -> vector<4x128xf32>
      %c0_45 = arith.constant 0 : index
      %c0_46 = arith.constant 0 : index
      %82 = vector.load %arg13[%c0_45, %c0_46] : memref<4x1xf32, #tpu.memory_space<vmem>>, vector<4x1xf32>
      %83 = vector.broadcast %82 : vector<4x1xf32> to vector<4x128xf32>
      %84 = arith.addf %81, %83 : vector<4x128xf32>
      %c0_47 = arith.constant 0 : index
      %c1_48 = arith.constant 1 : index
      %c0_49 = arith.constant 0 : index
      %85 = vector.load %arg14[%c0_47, %c1_48, %c0_49] : memref<4x2x128xf32, #tpu.memory_space<vmem>>, vector<4x1x128xf32>
      %86 = vector.shape_cast %85 : vector<4x1x128xf32> to vector<4x128xf32>
      %87 = vector.shape_cast %84 : vector<4x128xf32> to vector<4x1x128xf32>
      tpu.vector_store %arg14[%c0_47, %c1_48, %c0_49], %87 {strides = array<i32>} : memref<4x2x128xf32, #tpu.memory_space<vmem>>, vector<4x1x128xf32>,
    } else {
    }
    return
  }
  func.func @transform_0(%arg0: i32, %arg1: i32) -> (i32, i32, i32) {
    %c0_i32 = arith.constant 0 : i32
    %c0_i32_0 = arith.constant 0 : i32
    %c0_i32_1 = arith.constant 0 : i32
    %c0_i32_2 = arith.constant 0 : i32
    return %c0_i32, %c0_i32_0, %c0_i32_1 : i32, i32, i32
  }
  func.func @transform_1(%arg0: i32, %arg1: i32) -> (i32, i32) {
    %c0_i32 = arith.constant 0 : i32
    %c0_i32_0 = arith.constant 0 : i32
    %c0_i32_1 = arith.constant 0 : i32
    return %c0_i32, %c0_i32_0 : i32, i32
  }
  func.func @transform_2(%arg0: i32, %arg1: i32) -> (i32, i32) {
    %c0_i32 = arith.constant 0 : i32
    %c0_i32_0 = arith.constant 0 : i32
    %c0_i32_1 = arith.constant 0 : i32
    return %c0_i32, %c0_i32_0 : i32, i32
  }
  func.func @transform_3(%arg0: i32, %arg1: i32) -> (i32, i32, i32, i32) {
    %c0_i32 = arith.constant 0 : i32
    %c0_i32_0 = arith.constant 0 : i32
    %c0_i32_1 = arith.constant 0 : i32
    %c0_i32_2 = arith.constant 0 : i32
    return %arg0, %c0_i32, %c0_i32_0, %c0_i32_1 : i32, i32, i32, i32
  }
  func.func @transform_4(%arg0: i32, %arg1: i32) -> (i32, i32, i32, i32) {
    %c0_i32 = arith.constant 0 : i32
    %c0_i32_0 = arith.constant 0 : i32
    %c0_i32_1 = arith.constant 0 : i32
    return %arg0, %arg1, %c0_i32, %c0_i32_0 : i32, i32, i32, i32
  }
  func.func @transform_5(%arg0: i32, %arg1: i32) -> (i32, i32, i32, i32) {
    %c0_i32 = arith.constant 0 : i32
    %c0_i32_0 = arith.constant 0 : i32
    %c0_i32_1 = arith.constant 0 : i32
    return %arg0, %arg1, %c0_i32, %c0_i32_0 : i32, i32, i32, i32
  }
  func.func @transform_6(%arg0: i32, %arg1: i32) -> (i32, i32, i32) {
    %c0_i32 = arith.constant 0 : i32
    %c0_i32_0 = arith.constant 0 : i32
    %c0_i32_1 = arith.constant 0 : i32
    return %arg0, %c0_i32, %c0_i32_0 : i32, i32, i32
  }
  func.func @transform_7(%arg0: i32, %arg1: i32) -> (i32, i32, i32) {
    %c0_i32 = arith.constant 0 : i32
    %c0_i32_0 = arith.constant 0 : i32
    %c0_i32_1 = arith.constant 0 : i32
    return %arg0, %c0_i32, %c0_i32_0 : i32, i32, i32
  }
  func.func @transform_8(%arg0: i32, %arg1: i32) -> (i32, i32, i32) {
    %c0_i32 = arith.constant 0 : i32
    %c0_i32_0 = arith.constant 0 : i32
    %c0_i32_1 = arith.constant 0 : i32
    return %arg0, %c0_i32, %c0_i32_0 : i32, i32, i32
  }
  func.func @transform_9(%arg0: i32, %arg1: i32) -> (i32, i32, i32) {
    %c0_i32 = arith.constant 0 : i32
    %c0_i32_0 = arith.constant 0 : i32
    %c0_i32_1 = arith.constant 0 : i32
    return %arg0, %c0_i32, %c0_i32_0 : i32, i32, i32
  }
  func.func @transform_10(%arg0: i32, %arg1: i32) -> (i32, i32) {
    %c0_i32 = arith.constant 0 : i32
    %c0_i32_0 = arith.constant 0 : i32
    %c0_i32_1 = arith.constant 0 : i32
    return %c0_i32, %c0_i32_0 : i32, i32
  }
  func.func @transform_11(%arg0: i32, %arg1: i32) -> (i32, i32) {
    %c0_i32 = arith.constant 0 : i32
    %c0_i32_0 = arith.constant 0 : i32
    %c0_i32_1 = arith.constant 0 : i32
    return %c0_i32, %c0_i32_0 : i32, i32
  }
  func.func @transform_12(%arg0: i32, %arg1: i32) -> (i32, i32, i32) {
    %c0_i32 = arith.constant 0 : i32
    %c0_i32_0 = arith.constant 0 : i32
    %c0_i32_1 = arith.constant 0 : i32
    %c0_i32_2 = arith.constant 0 : i32
    return %c0_i32, %c0_i32_0, %c0_i32_1 : i32, i32, i32
  }
}

</mosaic_0001>

<llo_original>
// kernel: conditional_denoiser_forward.2
$region0: #{conditional_denoiser_forward.2}
  #allocation0 [shape = 'u32[]', space=smem, size = 0x4, offset = 0x4, fixed_abs, tag = 'smem constant byte address 0x4 - core index']
  #allocation1 [shape = 'u32[144,128]{1,0:T(1,128)}', space=vmem, size = 0x12000, scoped, tag = 'internal scratch']
  %s0 = inlined_call_operand.vmem [shape: f32[2,1], index: 0, kind: input, shape index: {}]
  %s1 = inlined_call_operand.hbm [shape: f32[2,2], index: 1, kind: input, shape index: {}]
  %s2 = inlined_call_operand.hbm [shape: f32[1,128], index: 2, kind: input, shape index: {}]
  %s3 = inlined_call_operand.hbm [shape: f32[256,8], index: 3, kind: input, shape index: {}]
  %s4 = inlined_call_operand.hbm [shape: f32[1,8], index: 4, kind: input, shape index: {}]
  %s5 = inlined_call_operand.hbm [shape: f32[8,8], index: 5, kind: input, shape index: {}]
  %s6 = inlined_call_operand.hbm [shape: f32[1,8], index: 6, kind: input, shape index: {}]
  %s7 = inlined_call_operand.hbm [shape: f32[2,8], index: 7, kind: input, shape index: {}]
  %s8 = inlined_call_operand.hbm [shape: f32[1,8], index: 8, kind: input, shape index: {}]
  %s9 = inlined_call_operand.hbm [shape: f32[8,8], index: 9, kind: input, shape index: {}]
  %s10 = inlined_call_operand.hbm [shape: f32[1,8], index: 10, kind: input, shape index: {}]
  %s11 = inlined_call_operand.hbm [shape: f32[6,8,192], index: 11, kind: input, shape index: {}]
  %s12 = inlined_call_operand.hbm [shape: f32[6,1,192], index: 12, kind: input, shape index: {}]
  %s13 = inlined_call_operand.vmem [shape: f32[6,2,192], index: 13, kind: output, shape index: {}]
  %s14 = sld [smem:[#allocation0]]
  $region110: #{conditional_denoiser_forward.2} parent=0
    _
  %s16 = ssub.s32 1, %s14
  %s17 = scalar_select 0, %s16, %s14
  $region1: #{conditional_denoiser_forward.2} parent=0
    #allocation2 [shape = 'u8[1024]{0}', space=vmem, size = 0x400, scoped, tag = 'input window, operand 1, single buffered']
    #allocation3 [shape = 's32[1]{0}', space=sflag, size = 0x4, scoped, tag = 'scoped memory for conditional_denoiser_forward.2']
    #allocation4 [shape = 'u8[512]{0}', space=vmem, size = 0x400, scoped, tag = 'input window, operand 2, single buffered']
    #allocation5 [shape = 's32[1]{0}', space=sflag, size = 0x4, scoped, tag = 'scoped memory for conditional_denoiser_forward.2']
    #allocation6 [shape = 'u8[131072]{0}', space=vmem, size = 0x20000, scoped, tag = 'input window, operand 3, single buffered']
    #allocation7 [shape = 'u8[512]{0}', space=vmem, size = 0x400, scoped, tag = 'input window, operand 4, single buffered']
    #allocation8 [shape = 's32[1]{0}', space=sflag, size = 0x4, scoped, tag = 'scoped memory for conditional_denoiser_forward.2']
    #allocation9 [shape = 'u8[4096]{0}', space=vmem, size = 0x1000, scoped, tag = 'input window, operand 5, single buffered']
    #allocation10 [shape = 'u8[512]{0}', space=vmem, size = 0x400, scoped, tag = 'input window, operand 6, single buffered']
    #allocation11 [shape = 's32[1]{0}', space=sflag, size = 0x4, scoped, tag = 'scoped memory for conditional_denoiser_forward.2']
    #allocation12 [shape = 'u8[1024]{0}', space=vmem, size = 0x400, scoped, tag = 'input window, operand 7, single buffered']
    #allocation13 [shape = 'u8[512]{0}', space=vmem, size = 0x400, scoped, tag = 'input window, operand 8, single buffered']
    #allocation14 [shape = 's32[1]{0}', space=sflag, size = 0x4, scoped, tag = 'scoped memory for conditional_denoiser_forward.2']
    #allocation15 [shape = 'u8[4096]{0}', space=vmem, size = 0x1000, scoped, tag = 'input window, operand 9, single buffered']
    #allocation16 [shape = 'u8[512]{0}', space=vmem, size = 0x400, scoped, tag = 'input window, operand 10, single buffered']
    #allocation17 [shape = 's32[1]{0}', space=sflag, size = 0x4, scoped, tag = 'scoped memory for conditional_denoiser_forward.2']
    #allocation18 [shape = 'u8[49152]{0}', space=vmem, size = 0xc000, scoped, tag = 'input window, operand 11, single buffered']
    #allocation19 [shape = 'u8[6144]{0}', space=vmem, size = 0x1800, scoped, tag = 'input window, operand 12, single buffered']
    #allocation20 [shape = 's32[1]{0}', space=sflag, size = 0x4, scoped, tag = 'scoped memory for conditional_denoiser_forward.2']
    %18 = vsyncpa [#allocation3], 0
    %19 = vsyncpa [#allocation5], 0
    %20 = vsyncpa [#allocation8], 0
    %21 = vsyncpa [#allocation11], 0
    %22 = vsyncpa [#allocation14], 0
    %23 = vsyncpa [#allocation17], 0
    %24 = vsyncpa [#allocation20], 0
    // Predicated region
    $region2: #{conditional_denoiser_forward.2} parent=1 // pred_check
      _
    $region3: #{conditional_denoiser_forward.2} parent=1 // pred_check_branch
      %26 = sbr.rel (0) target = $region5
    $region4: #{conditional_denoiser_forward.2} parent=1 // pred_region
      _
    $region5: #{conditional_denoiser_forward.2} parent=1 // pred_fallthru
      _
    // Predicated region
    $region6: #{conditional_denoiser_forward.2} parent=1 // pred_check
      _
    $region7: #{conditional_denoiser_forward.2} parent=1 // pred_check_branch
      %28 = sbr.rel (0) target = $region9
    $region8: #{conditional_denoiser_forward.2} parent=1 // pred_region
      %s30 = ssub.s32 32, 32
      %31 = vsyncadd [#allocation3], %s30
      %s33 = sshll.u32 [#allocation2], 4
      %s34 = int_to_ptr.vmem [resolvable:$true] %s33
      %36 = dma.hbm_to_vmem [thread:$0]  %s1, 32, %s34, [#allocation3]
    $region9: #{conditional_denoiser_forward.2} parent=1 // pred_fallthru
      _
    // Predicated region
    $region10: #{conditional_denoiser_forward.2} parent=1 // pred_check
      _
    $region11: #{conditional_denoiser_forward.2} parent=1 // pred_check_branch
      %38 = sbr.rel (0) target = $region13
    $region12: #{conditional_denoiser_forward.2} parent=1 // pred_region
      %s40 = ssub.s32 16, 16
      %41 = vsyncadd [#allocation5], %s40
      %s43 = sshll.u32 [#allocation4], 4
      %s44 = int_to_ptr.vmem [resolvable:$true] %s43
      %46 = dma.hbm_to_vmem [thread:$0]  %s2, 16, %s44, [#allocation5]
    $region13: #{conditional_denoiser_forward.2} parent=1 // pred_fallthru
      _
    // Predicated region
    $region14: #{conditional_denoiser_forward.2} parent=1 // pred_check
      _
    $region15: #{conditional_denoiser_forward.2} parent=1 // pred_check_branch
      %48 = sbr.rel (0) target = $region17
    $region16: #{conditional_denoiser_forward.2} parent=1 // pred_region
      %s50 = ssub.s32 4096, 4096
      %51 = vsyncadd [#allocation5], %s50
      %s52 = sshll.u32 [#allocation6], 4
      %s53 = int_to_ptr.vmem [resolvable:$true] %s52
      %58 = dma.hbm_to_vmem [thread:$0]  %s3, 4096, %s53, [#allocation5], 128, 128, 8
    $region17: #{conditional_denoiser_forward.2} parent=1 // pred_fallthru
      _
    // Predicated region
    $region18: #{conditional_denoiser_forward.2} parent=1 // pred_check
      _
    $region19: #{conditional_denoiser_forward.2} parent=1 // pred_check_branch
      %60 = sbr.rel (0) target = $region21
    $region20: #{conditional_denoiser_forward.2} parent=1 // pred_region
      %s62 = ssub.s32 16, 16
      %63 = vsyncadd [#allocation8], %s62
      %s65 = sshll.u32 [#allocation7], 4
      %s66 = int_to_ptr.vmem [resolvable:$true] %s65
      %68 = dma.hbm_to_vmem [thread:$0]  %s4, 16, %s66, [#allocation8]
    $region21: #{conditional_denoiser_forward.2} parent=1 // pred_fallthru
      _
    // Predicated region
    $region22: #{conditional_denoiser_forward.2} parent=1 // pred_check
      _
    $region23: #{conditional_denoiser_forward.2} parent=1 // pred_check_branch
      %70 = sbr.rel (0) target = $region25
    $region24: #{conditional_denoiser_forward.2} parent=1 // pred_region
      %s72 = ssub.s32 128, 128
      %73 = vsyncadd [#allocation8], %s72
      %s75 = sshll.u32 [#allocation9], 4
      %s76 = int_to_ptr.vmem [resolvable:$true] %s75
      %78 = dma.hbm_to_vmem [thread:$0]  %s5, 128, %s76, [#allocation8]
    $region25: #{conditional_denoiser_forward.2} parent=1 // pred_fallthru
      _
    // Predicated region
    $region26: #{conditional_denoiser_forward.2} parent=1 // pred_check
      _
    $region27: #{conditional_denoiser_forward.2} parent=1 // pred_check_branch
      %80 = sbr.rel (0) target = $region29
    $region28: #{conditional_denoiser_forward.2} parent=1 // pred_region
      %s82 = ssub.s32 16, 16
      %83 = vsyncadd [#allocation11], %s82
      %s85 = sshll.u32 [#allocation10], 4
      %s86 = int_to_ptr.vmem [resolvable:$true] %s85
      %88 = dma.hbm_to_vmem [thread:$0]  %s6, 16, %s86, [#allocation11]
    $region29: #{conditional_denoiser_forward.2} parent=1 // pred_fallthru
      _
    // Predicated region
    $region30: #{conditional_denoiser_forward.2} parent=1 // pred_check
      _
    $region31: #{conditional_denoiser_forward.2} parent=1 // pred_check_branch
      %90 = sbr.rel (0) target = $region33
    $region32: #{conditional_denoiser_forward.2} parent=1 // pred_region
      %s92 = ssub.s32 32, 32
      %93 = vsyncadd [#allocation11], %s92
      %s95 = sshll.u32 [#allocation12], 4
      %s96 = int_to_ptr.vmem [resolvable:$true] %s95
      %98 = dma.hbm_to_vmem [thread:$0]  %s7, 32, %s96, [#allocation11]
    $region33: #{conditional_denoiser_forward.2} parent=1 // pred_fallthru
      _
    // Predicated region
    $region34: #{conditional_denoiser_forward.2} parent=1 // pred_check
      _
    $region35: #{conditional_denoiser_forward.2} parent=1 // pred_check_branch
      %100 = sbr.rel (0) target = $region37
    $region36: #{conditional_denoiser_forward.2} parent=1 // pred_region
      %s102 = ssub.s32 16, 16
      %103 = vsyncadd [#allocation14], %s102
      %s105 = sshll.u32 [#allocation13], 4
      %s106 = int_to_ptr.vmem [resolvable:$true] %s105
      %108 = dma.hbm_to_vmem [thread:$0]  %s8, 16, %s106, [#allocation14]
    $region37: #{conditional_denoiser_forward.2} parent=1 // pred_fallthru
      _
    // Predicated region
    $region38: #{conditional_denoiser_forward.2} parent=1 // pred_check
      _
    $region39: #{conditional_denoiser_forward.2} parent=1 // pred_check_branch
      %110 = sbr.rel (0) target = $region41
    $region40: #{conditional_denoiser_forward.2} parent=1 // pred_region
      %s112 = ssub.s32 128, 128
      %113 = vsyncadd [#allocation14], %s112
      %s115 = sshll.u32 [#allocation15], 4
      %s116 = int_to_ptr.vmem [resolvable:$true] %s115
      %118 = dma.hbm_to_vmem [thread:$0]  %s9, 128, %s116, [#allocation14]
    $region41: #{conditional_denoiser_forward.2} parent=1 // pred_fallthru
      _
    // Predicated region
    $region42: #{conditional_denoiser_forward.2} parent=1 // pred_check
      _
    $region43: #{conditional_denoiser_forward.2} parent=1 // pred_check_branch
      %120 = sbr.rel (0) target = $region45
    $region44: #{conditional_denoiser_forward.2} parent=1 // pred_region
      %s122 = ssub.s32 16, 16
      %123 = vsyncadd [#allocation17], %s122
      %s125 = sshll.u32 [#allocation16], 4
      %s126 = int_to_ptr.vmem [resolvable:$true] %s125
      %128 = dma.hbm_to_vmem [thread:$0]  %s10, 16, %s126, [#allocation17]
    $region45: #{conditional_denoiser_forward.2} parent=1 // pred_fallthru
      _
    // Predicated region
    $region46: #{conditional_denoiser_forward.2} parent=1 // pred_check
      _
    $region47: #{conditional_denoiser_forward.2} parent=1 // pred_check_branch
      %130 = sbr.rel (0) target = $region49
    $region48: #{conditional_denoiser_forward.2} parent=1 // pred_region
      %s132 = ssub.s32 1536, 1536
      %133 = vsyncadd [#allocation17], %s132
      %s134 = sshll.u32 [#allocation18], 4
      %s135 = int_to_ptr.vmem [resolvable:$true] %s134
      %140 = dma.hbm_to_vmem [thread:$0]  %s11, 1536, %s135, [#allocation17], 256, 256, 16
    $region49: #{conditional_denoiser_forward.2} parent=1 // pred_fallthru
      _
    // Predicated region
    $region50: #{conditional_denoiser_forward.2} parent=1 // pred_check
      _
    $region51: #{conditional_denoiser_forward.2} parent=1 // pred_check_branch
      %142 = sbr.rel (0) target = $region53
    $region52: #{conditional_denoiser_forward.2} parent=1 // pred_region
      %s144 = ssub.s32 192, 192
      %145 = vsyncadd [#allocation20], %s144
      %s146 = sshll.u32 [#allocation19], 4
      %s147 = int_to_ptr.vmem [resolvable:$true] %s146
      %152 = dma.hbm_to_vmem [thread:$0]  %s12, 192, %s147, [#allocation20], 32, 32, 2
    $region53: #{conditional_denoiser_forward.2} parent=1 // pred_fallthru
      _
    // Predicated region
    $region54: #{conditional_denoiser_forward.2} parent=1 // pred_check
      _
    $region55: #{conditional_denoiser_forward.2} parent=1 // pred_check_branch
      %154 = sbr.rel (0) target = $region57
    $region56: #{conditional_denoiser_forward.2} parent=1 // pred_region
      %155 = dma.done [#allocation3], 32
    $region57: #{conditional_denoiser_forward.2} parent=1 // pred_fallthru
      _
    // Predicated region
    $region58: #{conditional_denoiser_forward.2} parent=1 // pred_check
      _
    $region59: #{conditional_denoiser_forward.2} parent=1 // pred_check_branch
      %157 = sbr.rel (0) target = $region61
    $region60: #{conditional_denoiser_forward.2} parent=1 // pred_region
      %158 = dma.done [#allocation5], 16
    $region61: #{conditional_denoiser_forward.2} parent=1 // pred_fallthru
      _
    // Predicated region
    $region62: #{conditional_denoiser_forward.2} parent=1 // pred_check
      _
    $region63: #{conditional_denoiser_forward.2} parent=1 // pred_check_branch
      %160 = sbr.rel (0) target = $region65
    $region64: #{conditional_denoiser_forward.2} parent=1 // pred_region
      %161 = dma.done [#allocation5], 4096
    $region65: #{conditional_denoiser_forward.2} parent=1 // pred_fallthru
      _
    // Predicated region
    $region66: #{conditional_denoiser_forward.2} parent=1 // pred_check
      _
    $region67: #{conditional_denoiser_forward.2} parent=1 // pred_check_branch
      %163 = sbr.rel (0) target = $region69
    $region68: #{conditional_denoiser_forward.2} parent=1 // pred_region
      %164 = dma.done [#allocation8], 16
    $region69: #{conditional_denoiser_forward.2} parent=1 // pred_fallthru
      _
    // Predicated region
    $region70: #{conditional_denoiser_forward.2} parent=1 // pred_check
      _
    $region71: #{conditional_denoiser_forward.2} parent=1 // pred_check_branch
      %166 = sbr.rel (0) target = $region73
    $region72: #{conditional_denoiser_forward.2} parent=1 // pred_region
      %167 = dma.done [#allocation8], 128
    $region73: #{conditional_denoiser_forward.2} parent=1 // pred_fallthru
      _
    // Predicated region
    $region74: #{conditional_denoiser_forward.2} parent=1 // pred_check
      _
    $region75: #{conditional_denoiser_forward.2} parent=1 // pred_check_branch
      %169 = sbr.rel (0) target = $region77
    $region76: #{conditional_denoiser_forward.2} parent=1 // pred_region
      %170 = dma.done [#allocation11], 16
    $region77: #{conditional_denoiser_forward.2} parent=1 // pred_fallthru
      _
    // Predicated region
    $region78: #{conditional_denoiser_forward.2} parent=1 // pred_check
      _
    $region79: #{conditional_denoiser_forward.2} parent=1 // pred_check_branch
      %172 = sbr.rel (0) target = $region81
    $region80: #{conditional_denoiser_forward.2} parent=1 // pred_region
      %173 = dma.done [#allocation11], 32
    $region81: #{conditional_denoiser_forward.2} parent=1 // pred_fallthru
      _
    // Predicated region
    $region82: #{conditional_denoiser_forward.2} parent=1 // pred_check
      _
    $region83: #{conditional_denoiser_forward.2} parent=1 // pred_check_branch
      %175 = sbr.rel (0) target = $region85
    $region84: #{conditional_denoiser_forward.2} parent=1 // pred_region
      %176 = dma.done [#allocation14], 16
    $region85: #{conditional_denoiser_forward.2} parent=1 // pred_fallthru
      _
    // Predicated region
    $region86: #{conditional_denoiser_forward.2} parent=1 // pred_check
      _
    $region87: #{conditional_denoiser_forward.2} parent=1 // pred_check_branch
      %178 = sbr.rel (0) target = $region89
    $region88: #{conditional_denoiser_forward.2} parent=1 // pred_region
      %179 = dma.done [#allocation14], 128
    $region89: #{conditional_denoiser_forward.2} parent=1 // pred_fallthru
      _
    // Predicated region
    $region90: #{conditional_denoiser_forward.2} parent=1 // pred_check
      _
    $region91: #{conditional_denoiser_forward.2} parent=1 // pred_check_branch
      %181 = sbr.rel (0) target = $region93
    $region92: #{conditional_denoiser_forward.2} parent=1 // pred_region
      %182 = dma.done [#allocation17], 16
    $region93: #{conditional_denoiser_forward.2} parent=1 // pred_fallthru
      _
    // Predicated region
    $region94: #{conditional_denoiser_forward.2} parent=1 // pred_check
      _
    $region95: #{conditional_denoiser_forward.2} parent=1 // pred_check_branch
      %184 = sbr.rel (0) target = $region97
    $region96: #{conditional_denoiser_forward.2} parent=1 // pred_region
      %185 = dma.done [#allocation17], 1536
    $region97: #{conditional_denoiser_forward.2} parent=1 // pred_fallthru
      _
    // Predicated region
    $region98: #{conditional_denoiser_forward.2} parent=1 // pred_check
      _
    $region99: #{conditional_denoiser_forward.2} parent=1 // pred_check_branch
      %187 = sbr.rel (0) target = $region101
    $region100: #{conditional_denoiser_forward.2} parent=1 // pred_region
      %188 = dma.done [#allocation20], 192
    $region101: #{conditional_denoiser_forward.2} parent=1 // pred_fallthru
      _
    %v189 = vld [vmem:[%s0] sm:$0x3]
    %v190 = vld [vmem:[#allocation4] sm:$0x1]
    %192 = vset.pattern.permute.xlu0 0
    %193 = vperm.xlu0 %192, %v189
    %v194 = vpop.permute.xlu0 %193
    %v197 = vlaneseq
    %v198 = vshrl.u32 %v197, 7
    %v199 = vsub.s32 0, %v198
    %v200 = vrot.slane %v190, %v199
    %v202 = vmul.f32 %v194, %v200
    %v203 = vand.u32 2147483647, %v202
    %vm204 = vcmp.le.f32.partialorder %v203, 0.7853982
    %vm205 = vcmp.lt.s32.totalorder %v202, 0
    %v206 = vand.u32 %v202, 2139095040
    %v207 = vshrl.u32 %v206, 23
    %v208 = vsub.s32 %v207, 127
    %v209 = vand.u32 2147483647, %v202
    %v210 = vand.u32 %v209, 8388607
    %v211 = vor.u32 %v210, 8388608
    %v212 = vsub.s32 0, %v211
    %v213 = vadd.s32 %v208, 1
    %vm214 = vcmp.gt.s32.totalorder %v213, 0
    %v215 = vsel %vm214, %v213, 0
    %v216 = vshrl.u32 %v215, 5
    %v217 = vand.u32 %v215, 31
    %v218 = vsub.s32 32, %v217
    %v219 = vshrl.u32 683565275, %v218
    %v220 = vshll.u32 683565275, %v217
    %v221 = vshrl.u32 2475754826, %v218
    %v222 = vor.u32 %v220, %v221
    %v223 = vshll.u32 2475754826, %v217
    %v224 = vshrl.u32 2131351028, %v218
    %v225 = vor.u32 %v223, %v224
    %v226 = vshll.u32 2131351028, %v217
    %v227 = vshrl.u32 2102212464, %v218
    %v228 = vor.u32 %v226, %v227
    %v229 = vshll.u32 2102212464, %v217
    %v230 = vshrl.u32 920167782, %v218
    %v231 = vor.u32 %v229, %v230
    %v232 = vshll.u32 920167782, %v217
    %v233 = vshrl.u32 1326507024, %v218
    %v234 = vor.u32 %v232, %v233
    %vm235 = vcmp.lt.s32.totalorder %v216, 1
    %vm236 = vcmp.lt.s32.totalorder %v216, 2
    %vm237 = vcmp.lt.s32.totalorder %v216, 3
    %vm238 = vcmp.lt.s32.totalorder %v216, 4
    %v239 = vsel %vm235, %v219, %v222
    %v240 = vsel %vm238, %v228, 2102212464
    %v241 = vsel %vm237, %v225, %v240
    %v242 = vsel %vm236, %v239, %v241
    %v243 = vsel %vm235, %v222, %v225
    %v244 = vsel %vm238, %v231, 920167782
    %v245 = vsel %vm237, %v228, %v244
    %v246 = vsel %vm236, %v243, %v245
    %v247 = vsel %vm235, %v225, %v228
    %v248 = vsel %vm238, %v234, 1326507024
    %v249 = vsel %vm237, %v231, %v248
    %v250 = vsel %vm236, %v247, %v249
    %v251 = vshll.u32 %v211, 8
    %v252 = vmul.u32.u64.compose %v251, %v250
    %v253 = vextract.low.u32 %v252
    %v254 = vextract.high.u32 %v252
    %v255 = vmul.u32.u64.compose %v251, %v246
    %v256 = vextract.low.u32 %v255
    %v257 = vextract.high.u32 %v255
    %v258 = vmul.u32 %v251, %v242
    %v259 = vadd.s32 %v254, %v256
    %vm260 = vc.u32 %v254, %v256
    %v261 = vadd.s32 %v257, 1
    %v262 = vsel %vm260, %v261, %v257
    %v263 = vadd.s32 %v258, %v262
    %v264 = vadd.s32 %v263, 536870912
    %v265 = vshrl.u32 %v264, 30
    %v266 = vshll.u32 %v265, 30
    %v267 = vsub.s32 %v263, %v266
    %vm268 = vcmp.lt.s32.totalorder %v267, 0
    %v269 = vsub.s32 0, %v267
    %v270 = vsel %vm268, %v269, %v267
    %v271 = vclz %v270
    %v272 = vsub.s32 %v271, 2
    %vm273 = vcmp.gt.s32.totalorder 0, %v272
    %v274 = vsel %vm273, 0, %v272
    %v275 = vsub.s32 32, %v274
    %v276 = vshll.u32 %v267, %v274
    %v277 = vshrl.u32 %v259, %v275
    %v278 = vor.u32 %v276, %v277
    %v279 = vsub.s32 4294967266, %v274
    %v280 = vadd.s32 %v279, 127
    %v281 = vshll.u32 %v280, 23
    %v282 = vor.u32 4788187, %v281
    %v283 = vand.u32 2147483647, %v282
    %v285 = vcvt.s32.f32 %v278
    %v286 = vmul.f32 %v285, %v283
    %v287 = vxor.u32 %v286, 2147483648
    %v288 = vsel %vm205, %v287, %v286
    %v289 = vsub.s32 4, %v265
    %v290 = vsel %vm205, %v289, %v265
    %v291 = vsel %vm204, %v202, %v288
    %v292 = vsel %vm204, 0, %v290
    %v293 = vcosq.f32.pop %v291
    %v294 = vsinq.f32.pop %v291
    %vm295 = vweird.f32 %v202
    %v296 = vand.u32 %v292, 3
    %vm297 = vcmp.lt.s32.totalorder %v296, 2
    %vm298 = vcmp.eq.s32.totalorder %v296, 0
    %v299 = vxor.u32 %v294, 2147483648
    %v300 = vsel %vm298, %v293, %v299
    %vm301 = vcmp.eq.s32.totalorder %v296, 2
    %v302 = vxor.u32 %v293, 2147483648
    %v303 = vsel %vm301, %v302, %v294
    %v304 = vsel %vm297, %v300, %v303
    %v305 = vsel %vm295, nan, %v304
    %v306 = vand.u32 2147483647, %v202
    %vm307 = vcmp.le.f32.partialorder %v306, 0.7853982
    %vm308 = vcmp.lt.s32.totalorder %v202, 0
    %v309 = vand.u32 %v202, 2139095040
    %v310 = vshrl.u32 %v309, 23
    %v311 = vsub.s32 %v310, 127
    %v312 = vand.u32 2147483647, %v202
    %v313 = vand.u32 %v312, 8388607
    %v314 = vor.u32 %v313, 8388608
    %v315 = vsub.s32 0, %v314
    %v316 = vadd.s32 %v311, 1
    %vm317 = vcmp.gt.s32.totalorder %v316, 0
    %v318 = vsel %vm317, %v316, 0
    %v319 = vshrl.u32 %v318, 5
    %v320 = vand.u32 %v318, 31
    %v321 = vsub.s32 32, %v320
    %v322 = vshrl.u32 683565275, %v321
    %v323 = vshll.u32 683565275, %v320
    %v324 = vshrl.u32 2475754826, %v321
    %v325 = vor.u32 %v323, %v324
    %v326 = vshll.u32 2475754826, %v320
    %v327 = vshrl.u32 2131351028, %v321
    %v328 = vor.u32 %v326, %v327
    %v329 = vshll.u32 2131351028, %v320
    %v330 = vshrl.u32 2102212464, %v321
    %v331 = vor.u32 %v329, %v330
    %v332 = vshll.u32 2102212464, %v320
    %v333 = vshrl.u32 920167782, %v321
    %v334 = vor.u32 %v332, %v333
    %v335 = vshll.u32 920167782, %v320
    %v336 = vshrl.u32 1326507024, %v321
    %v337 = vor.u32 %v335, %v336
    %vm338 = vcmp.lt.s32.totalorder %v319, 1
    %vm339 = vcmp.lt.s32.totalorder %v319, 2
    %vm340 = vcmp.lt.s32.totalorder %v319, 3
    %vm341 = vcmp.lt.s32.totalorder %v319, 4
    %v342 = vsel %vm338, %v322, %v325
    %v343 = vsel %vm341, %v331, 2102212464
    %v344 = vsel %vm340, %v328, %v343
    %v345 = vsel %vm339, %v342, %v344
    %v346 = vsel %vm338, %v325, %v328
    %v347 = vsel %vm341, %v334, 920167782
    %v348 = vsel %vm340, %v331, %v347
    %v349 = vsel %vm339, %v346, %v348
    %v350 = vsel %vm338, %v328, %v331
    %v351 = vsel %vm341, %v337, 1326507024
    %v352 = vsel %vm340, %v334, %v351
    %v353 = vsel %vm339, %v350, %v352
    %v354 = vshll.u32 %v314, 8
    %v355 = vmul.u32.u64.compose %v354, %v353
    %v356 = vextract.low.u32 %v355
    %v357 = vextract.high.u32 %v355
    %v358 = vmul.u32.u64.compose %v354, %v349
    %v359 = vextract.low.u32 %v358
    %v360 = vextract.high.u32 %v358
    %v361 = vmul.u32 %v354, %v345
    %v362 = vadd.s32 %v357, %v359
    %vm363 = vc.u32 %v357, %v359
    %v364 = vadd.s32 %v360, 1
    %v365 = vsel %vm363, %v364, %v360
    %v366 = vadd.s32 %v361, %v365
    %v367 = vadd.s32 %v366, 536870912
    %v368 = vshrl.u32 %v367, 30
    %v369 = vshll.u32 %v368, 30
    %v370 = vsub.s32 %v366, %v369
    %vm371 = vcmp.lt.s32.totalorder %v370, 0
    %v372 = vsub.s32 0, %v370
    %v373 = vsel %vm371, %v372, %v370
    %v374 = vclz %v373
    %v375 = vsub.s32 %v374, 2
    %vm376 = vcmp.gt.s32.totalorder 0, %v375
    %v377 = vsel %vm376, 0, %v375
    %v378 = vsub.s32 32, %v377
    %v379 = vshll.u32 %v370, %v377
    %v380 = vshrl.u32 %v362, %v378
    %v381 = vor.u32 %v379, %v380
    %v382 = vsub.s32 4294967266, %v377
    %v383 = vadd.s32 %v382, 127
    %v384 = vshll.u32 %v383, 23
    %v385 = vor.u32 4788187, %v384
    %v386 = vand.u32 2147483647, %v385
    %v388 = vcvt.s32.f32 %v381
    %v389 = vmul.f32 %v388, %v386
    %v390 = vxor.u32 %v389, 2147483648
    %v391 = vsel %vm308, %v390, %v389
    %v392 = vsub.s32 4, %v368
    %v393 = vsel %vm308, %v392, %v368
    %v394 = vsel %vm307, %v202, %v391
    %v395 = vsel %vm307, 0, %v393
    %v396 = vcosq.f32.pop %v394
    %v397 = vsinq.f32.pop %v394
    %vm398 = vweird.f32 %v202
    %v399 = vadd.s32 %v395, 3
    %v400 = vand.u32 %v399, 3
    %vm401 = vcmp.lt.s32.totalorder %v400, 2
    %vm402 = vcmp.eq.s32.totalorder %v400, 0
    %v403 = vxor.u32 %v397, 2147483648
    %v404 = vsel %vm402, %v396, %v403
    %vm405 = vcmp.eq.s32.totalorder %v400, 2
    %v406 = vxor.u32 %v396, 2147483648
    %v407 = vsel %vm405, %v406, %v397
    %v408 = vsel %vm401, %v404, %v407
    %v409 = vsel %vm398, nan, %v408
    %v410 = vld [vmem:[#allocation6] sm:$0xff]
    %v411 = vld [vmem:[#allocation6 + $0x8] sm:$0xff]
    %v412 = vld [vmem:[#allocation6 + $0x10] sm:$0xff]
    %v413 = vld [vmem:[#allocation6 + $0x18] sm:$0xff]
    %v414 = vld [vmem:[#allocation6 + $0x20] sm:$0xff]
    %v415 = vld [vmem:[#allocation6 + $0x28] sm:$0xff]
    %v416 = vld [vmem:[#allocation6 + $0x30] sm:$0xff]
    %v417 = vld [vmem:[#allocation6 + $0x38] sm:$0xff]
    %v418 = vld [vmem:[#allocation6 + $0x40] sm:$0xff]
    %v419 = vld [vmem:[#allocation6 + $0x48] sm:$0xff]
    %v420 = vld [vmem:[#allocation6 + $0x50] sm:$0xff]
    %v421 = vld [vmem:[#allocation6 + $0x58] sm:$0xff]
    %v422 = vld [vmem:[#allocation6 + $0x60] sm:$0xff]
    %v423 = vld [vmem:[#allocation6 + $0x68] sm:$0xff]
    %v424 = vld [vmem:[#allocation6 + $0x70] sm:$0xff]
    %v425 = vld [vmem:[#allocation6 + $0x78] sm:$0xff]
    %v426 = vld [vmem:[#allocation6 + $0x80] sm:$0xff]
    %v427 = vld [vmem:[#allocation6 + $0x88] sm:$0xff]
    %v428 = vld [vmem:[#allocation6 + $0x90] sm:$0xff]
    %v429 = vld [vmem:[#allocation6 + $0x98] sm:$0xff]
    %v430 = vld [vmem:[#allocation6 + $0xa0] sm:$0xff]
    %v431 = vld [vmem:[#allocation6 + $0xa8] sm:$0xff]
    %v432 = vld [vmem:[#allocation6 + $0xb0] sm:$0xff]
    %v433 = vld [vmem:[#allocation6 + $0xb8] sm:$0xff]
    %v434 = vld [vmem:[#allocation6 + $0xc0] sm:$0xff]
    %v435 = vld [vmem:[#allocation6 + $0xc8] sm:$0xff]
    %v436 = vld [vmem:[#allocation6 + $0xd0] sm:$0xff]
    %v437 = vld [vmem:[#allocation6 + $0xd8] sm:$0xff]
    %v438 = vld [vmem:[#allocation6 + $0xe0] sm:$0xff]
    %v439 = vld [vmem:[#allocation6 + $0xe8] sm:$0xff]
    %v440 = vld [vmem:[#allocation6 + $0xf0] sm:$0xff]
    %v441 = vld [vmem:[#allocation6 + $0xf8] sm:$0xff]
    %v442 = vld [vmem:[#allocation7] sm:$0x1]
    %v444 = vlaneseq
    %v445 = vshrl.u32 %v444, 7
    %v446 = vsub.s32 0, %v445
    %v447 = vrot.slane %v442, %v446
    %449 = vmatprep.subr.mxu0 0.0
    %450 = vmatpush1.msra.mxu0 %v425
    %451 = vmatprep.subr.mxu0 0.0
    %452 = vmatpush1.msra.mxu0 %v424
    %453 = vmatprep.subr.mxu0 0.0
    %454 = vmatpush1.msra.mxu0 %v423
    %455 = vmatprep.subr.mxu0 0.0
    %456 = vmatpush1.msra.mxu0 %v422
    %457 = vmatprep.subr.mxu0 0.0
    %458 = vmatpush1.msra.mxu0 %v421
    %459 = vmatprep.subr.mxu0 0.0
    %460 = vmatpush1.msra.mxu0 %v420
    %461 = vmatprep.subr.mxu0 0.0
    %462 = vmatpush1.msra.mxu0 %v419
    %463 = vmatprep.subr.mxu0 0.0
    %464 = vmatpush1.msra.mxu0 %v418
    %465 = vmatprep.subr.mxu0 0.0
    %466 = vmatpush1.msra.mxu0 %v417
    %467 = vmatprep.subr.mxu0 0.0
    %468 = vmatpush1.msra.mxu0 %v416
    %469 = vmatprep.subr.mxu0 0.0
    %470 = vmatpush1.msra.mxu0 %v415
    %471 = vmatprep.subr.mxu0 0.0
    %472 = vmatpush1.msra.mxu0 %v414
    %473 = vmatprep.subr.mxu0 0.0
    %474 = vmatpush1.msra.mxu0 %v413
    %475 = vmatprep.subr.mxu0 0.0
    %476 = vmatpush1.msra.mxu0 %v412
    %477 = vmatprep.subr.mxu0 0.0
    %478 = vmatpush1.msra.mxu0 %v411
    %479 = vmatprep.subr.mxu0 0.0
    %480 = vmatpush1.msra.mxu0 %v410
    %481 = vmatprep.subr.mxu0 0.0
    %482 = vmatpush2.msra.mxu0 %v441
    %483 = vmatprep.subr.mxu0 0.0
    %484 = vmatpush2.msra.mxu0 %v440
    %485 = vmatprep.subr.mxu0 0.0
    %486 = vmatpush2.msra.mxu0 %v439
    %487 = vmatprep.subr.mxu0 0.0
    %488 = vmatpush2.msra.mxu0 %v438
    %489 = vmatprep.subr.mxu0 0.0
    %490 = vmatpush2.msra.mxu0 %v437
    %491 = vmatprep.subr.mxu0 0.0
    %492 = vmatpush2.msra.mxu0 %v436
    %493 = vmatprep.subr.mxu0 0.0
    %494 = vmatpush2.msra.mxu0 %v435
    %495 = vmatprep.subr.mxu0 0.0
    %496 = vmatpush2.msra.mxu0 %v434
    %497 = vmatprep.subr.mxu0 0.0
    %498 = vmatpush2.msra.mxu0 %v433
    %499 = vmatprep.subr.mxu0 0.0
    %500 = vmatpush2.msra.mxu0 %v432
    %501 = vmatprep.subr.mxu0 0.0
    %502 = vmatpush2.msra.mxu0 %v431
    %503 = vmatprep.subr.mxu0 0.0
    %504 = vmatpush2.msra.mxu0 %v430
    %505 = vmatprep.subr.mxu0 0.0
    %506 = vmatpush2.msra.mxu0 %v429
    %507 = vmatprep.subr.mxu0 0.0
    %508 = vmatpush2.msra.mxu0 %v428
    %509 = vmatprep.subr.mxu0 0.0
    %510 = vmatpush2.msra.mxu0 %v427
    %511 = vmatprep.subr.mxu0 0.0
    %512 = vmatpush2.msra.mxu0 %v426
    %513 = vmatprep.mubr.f32.mxu0 %v409
    %514 = vmatmul.mubr.f32.gmra.mxu0 %v305
    %v515 = vpop.f32.mrf.mxu0
    %v516 = vadd.f32 %v447, %v515
    %v517 = vpop.f32.mrf.mxu0
    %518 = vdwg.mxu0
    %v519 = vxor.u32 %v516, 2147483648
    %v520 = vmul.f32 %v519, 1.442695
    %v521 = vpow.pop %v520
    %v522 = vadd.f32 %v521, 1.0
    %v523 = vrcp.pop %v522
    %v524 = vmul.f32 1.0, %v523
    %v525 = vmul.f32 %v516, %v524
    %v526 = vld [vmem:[#allocation9] sm:$0xff]
    %v527 = vld [vmem:[#allocation10] sm:$0x1]
    %v529 = vlaneseq
    %v530 = vshrl.u32 %v529, 7
    %v531 = vsub.s32 0, %v530
    %v532 = vrot.slane %v527, %v531
    %vm534 = vcmask 64512
    %v536 = vsel %vm534, %v525, 0
    %538 = vmatprep.subr.mxu0 0.0
    %539 = vmatpush1.msra.mxu0 0.0
    %540 = vmatprep.subr.mxu0 0.0
    %541 = vmatpush1.msra.mxu0 0.0
    %542 = vmatprep.subr.mxu0 0.0
    %543 = vmatpush1.msra.mxu0 0.0
    %544 = vmatprep.subr.mxu0 0.0
    %545 = vmatpush1.msra.mxu0 0.0
    %546 = vmatprep.subr.mxu0 0.0
    %547 = vmatpush1.msra.mxu0 0.0
    %548 = vmatprep.subr.mxu0 0.0
    %549 = vmatpush1.msra.mxu0 0.0
    %550 = vmatprep.subr.mxu0 0.0
    %551 = vmatpush1.msra.mxu0 0.0
    %552 = vmatprep.subr.mxu0 0.0
    %553 = vmatpush1.msra.mxu0 0.0
    %554 = vmatprep.subr.mxu0 0.0
    %555 = vmatpush1.msra.mxu0 0.0
    %556 = vmatprep.subr.mxu0 0.0
    %557 = vmatpush1.msra.mxu0 0.0
    %558 = vmatprep.subr.mxu0 0.0
    %559 = vmatpush1.msra.mxu0 0.0
    %560 = vmatprep.subr.mxu0 0.0
    %561 = vmatpush1.msra.mxu0 0.0
    %562 = vmatprep.subr.mxu0 0.0
    %563 = vmatpush1.msra.mxu0 0.0
    %564 = vmatprep.subr.mxu0 0.0
    %565 = vmatpush1.msra.mxu0 0.0
    %566 = vmatprep.subr.mxu0 0.0
    %567 = vmatpush1.msra.mxu0 0.0
    %568 = vmatprep.subr.mxu0 0.0
    %569 = vmatpush1.msra.mxu0 %v526
    %570 = vmatprep.subr.mxu0 0.0
    %571 = vmatpush2.msra.mxu0 0.0
    %572 = vmatprep.subr.mxu0 0.0
    %573 = vmatpush2.msra.mxu0 0.0
    %574 = vmatprep.subr.mxu0 0.0
    %575 = vmatpush2.msra.mxu0 0.0
    %576 = vmatprep.subr.mxu0 0.0
    %577 = vmatpush2.msra.mxu0 0.0
    %578 = vmatprep.subr.mxu0 0.0
    %579 = vmatpush2.msra.mxu0 0.0
    %580 = vmatprep.subr.mxu0 0.0
    %581 = vmatpush2.msra.mxu0 0.0
    %582 = vmatprep.subr.mxu0 0.0
    %583 = vmatpush2.msra.mxu0 0.0
    %584 = vmatprep.subr.mxu0 0.0
    %585 = vmatpush2.msra.mxu0 0.0
    %586 = vmatprep.subr.mxu0 0.0
    %587 = vmatpush2.msra.mxu0 0.0
    %588 = vmatprep.subr.mxu0 0.0
    %589 = vmatpush2.msra.mxu0 0.0
    %590 = vmatprep.subr.mxu0 0.0
    %591 = vmatpush2.msra.mxu0 0.0
    %592 = vmatprep.subr.mxu0 0.0
    %593 = vmatpush2.msra.mxu0 0.0
    %594 = vmatprep.subr.mxu0 0.0
    %595 = vmatpush2.msra.mxu0 0.0
    %596 = vmatprep.subr.mxu0 0.0
    %597 = vmatpush2.msra.mxu0 0.0
    %598 = vmatprep.subr.mxu0 0.0
    %599 = vmatpush2.msra.mxu0 0.0
    %600 = vmatprep.subr.mxu0 0.0
    %601 = vmatpush2.msra.mxu0 0.0
    %602 = vmatprep.mubr.f32.mxu0 0.0
    %603 = vmatmul.mubr.f32.gmra.mxu0 %v536
    %v604 = vpop.f32.mrf.mxu0
    %v605 = vadd.f32 %v532, %v604
    %v606 = vpop.f32.mrf.mxu0
    %607 = vdwg.mxu0
    %v608 = vld [vmem:[#allocation2] sm:$0x3]
    %v609 = vld [vmem:[#allocation12] sm:$0x3]
    %v610 = vld [vmem:[#allocation13] sm:$0x1]
    %v612 = vlaneseq
    %v613 = vshrl.u32 %v612, 7
    %v614 = vsub.s32 0, %v613
    %v615 = vrot.slane %v610, %v614
    %vm617 = vcmask 15360
    %v619 = vsel %vm617, %v608, 0
    %vm621 = vcmask 1041408
    %v623 = vsel %vm621, %v609, 0
    %625 = vmatprep.subr.mxu0 0.0
    %626 = vmatpush1.msra.mxu0 0.0
    %627 = vmatprep.subr.mxu0 0.0
    %628 = vmatpush1.msra.mxu0 0.0
    %629 = vmatprep.subr.mxu0 0.0
    %630 = vmatpush1.msra.mxu0 0.0
    %631 = vmatprep.subr.mxu0 0.0
    %632 = vmatpush1.msra.mxu0 0.0
    %633 = vmatprep.subr.mxu0 0.0
    %634 = vmatpush1.msra.mxu0 0.0
    %635 = vmatprep.subr.mxu0 0.0
    %636 = vmatpush1.msra.mxu0 0.0
    %637 = vmatprep.subr.mxu0 0.0
    %638 = vmatpush1.msra.mxu0 0.0
    %639 = vmatprep.subr.mxu0 0.0
    %640 = vmatpush1.msra.mxu0 0.0
    %641 = vmatprep.subr.mxu0 0.0
    %642 = vmatpush1.msra.mxu0 0.0
    %643 = vmatprep.subr.mxu0 0.0
    %644 = vmatpush1.msra.mxu0 0.0
    %645 = vmatprep.subr.mxu0 0.0
    %646 = vmatpush1.msra.mxu0 0.0
    %647 = vmatprep.subr.mxu0 0.0
    %648 = vmatpush1.msra.mxu0 0.0
    %649 = vmatprep.subr.mxu0 0.0
    %650 = vmatpush1.msra.mxu0 0.0
    %651 = vmatprep.subr.mxu0 0.0
    %652 = vmatpush1.msra.mxu0 0.0
    %653 = vmatprep.subr.mxu0 0.0
    %654 = vmatpush1.msra.mxu0 0.0
    %655 = vmatprep.subr.mxu0 0.0
    %656 = vmatpush1.msra.mxu0 %v623
    %657 = vmatprep.subr.mxu0 0.0
    %658 = vmatpush2.msra.mxu0 0.0
    %659 = vmatprep.subr.mxu0 0.0
    %660 = vmatpush2.msra.mxu0 0.0
    %661 = vmatprep.subr.mxu0 0.0
    %662 = vmatpush2.msra.mxu0 0.0
    %663 = vmatprep.subr.mxu0 0.0
    %664 = vmatpush2.msra.mxu0 0.0
    %665 = vmatprep.subr.mxu0 0.0
    %666 = vmatpush2.msra.mxu0 0.0
    %667 = vmatprep.subr.mxu0 0.0
    %668 = vmatpush2.msra.mxu0 0.0
    %669 = vmatprep.subr.mxu0 0.0
    %670 = vmatpush2.msra.mxu0 0.0
    %671 = vmatprep.subr.mxu0 0.0
    %672 = vmatpush2.msra.mxu0 0.0
    %673 = vmatprep.subr.mxu0 0.0
    %674 = vmatpush2.msra.mxu0 0.0
    %675 = vmatprep.subr.mxu0 0.0
    %676 = vmatpush2.msra.mxu0 0.0
    %677 = vmatprep.subr.mxu0 0.0
    %678 = vmatpush2.msra.mxu0 0.0
    %679 = vmatprep.subr.mxu0 0.0
    %680 = vmatpush2.msra.mxu0 0.0
    %681 = vmatprep.subr.mxu0 0.0
    %682 = vmatpush2.msra.mxu0 0.0
    %683 = vmatprep.subr.mxu0 0.0
    %684 = vmatpush2.msra.mxu0 0.0
    %685 = vmatprep.subr.mxu0 0.0
    %686 = vmatpush2.msra.mxu0 0.0
    %687 = vmatprep.subr.mxu0 0.0
    %688 = vmatpush2.msra.mxu0 0.0
    %689 = vmatprep.mubr.f32.mxu0 0.0
    %690 = vmatmul.mubr.f32.gmra.mxu0 %v619
    %v691 = vpop.f32.mrf.mxu0
    %v692 = vadd.f32 %v615, %v691
    %v693 = vpop.f32.mrf.mxu0
    %694 = vdwg.mxu0
    %v695 = vxor.u32 %v692, 2147483648
    %v696 = vmul.f32 %v695, 1.442695
    %v697 = vpow.pop %v696
    %v698 = vadd.f32 %v697, 1.0
    %v699 = vrcp.pop %v698
    %v700 = vmul.f32 1.0, %v699
    %v701 = vmul.f32 %v692, %v700
    %v702 = vld [vmem:[#allocation15] sm:$0xff]
    %v703 = vld [vmem:[#allocation16] sm:$0x1]
    %v705 = vlaneseq
    %v706 = vshrl.u32 %v705, 7
    %v707 = vsub.s32 0, %v706
    %v708 = vrot.slane %v703, %v707
    %v711 = vsel %vm534, %v701, 0
    %713 = vmatprep.subr.mxu0 0.0
    %714 = vmatpush1.msra.mxu0 0.0
    %715 = vmatprep.subr.mxu0 0.0
    %716 = vmatpush1.msra.mxu0 0.0
    %717 = vmatprep.subr.mxu0 0.0
    %718 = vmatpush1.msra.mxu0 0.0
    %719 = vmatprep.subr.mxu0 0.0
    %720 = vmatpush1.msra.mxu0 0.0
    %721 = vmatprep.subr.mxu0 0.0
    %722 = vmatpush1.msra.mxu0 0.0
    %723 = vmatprep.subr.mxu0 0.0
    %724 = vmatpush1.msra.mxu0 0.0
    %725 = vmatprep.subr.mxu0 0.0
    %726 = vmatpush1.msra.mxu0 0.0
    %727 = vmatprep.subr.mxu0 0.0
    %728 = vmatpush1.msra.mxu0 0.0
    %729 = vmatprep.subr.mxu0 0.0
    %730 = vmatpush1.msra.mxu0 0.0
    %731 = vmatprep.subr.mxu0 0.0
    %732 = vmatpush1.msra.mxu0 0.0
    %733 = vmatprep.subr.mxu0 0.0
    %734 = vmatpush1.msra.mxu0 0.0
    %735 = vmatprep.subr.mxu0 0.0
    %736 = vmatpush1.msra.mxu0 0.0
    %737 = vmatprep.subr.mxu0 0.0
    %738 = vmatpush1.msra.mxu0 0.0
    %739 = vmatprep.subr.mxu0 0.0
    %740 = vmatpush1.msra.mxu0 0.0
    %741 = vmatprep.subr.mxu0 0.0
    %742 = vmatpush1.msra.mxu0 0.0
    %743 = vmatprep.subr.mxu0 0.0
    %744 = vmatpush1.msra.mxu0 %v702
    %745 = vmatprep.subr.mxu0 0.0
    %746 = vmatpush2.msra.mxu0 0.0
    %747 = vmatprep.subr.mxu0 0.0
    %748 = vmatpush2.msra.mxu0 0.0
    %749 = vmatprep.subr.mxu0 0.0
    %750 = vmatpush2.msra.mxu0 0.0
    %751 = vmatprep.subr.mxu0 0.0
    %752 = vmatpush2.msra.mxu0 0.0
    %753 = vmatprep.subr.mxu0 0.0
    %754 = vmatpush2.msra.mxu0 0.0
    %755 = vmatprep.subr.mxu0 0.0
    %756 = vmatpush2.msra.mxu0 0.0
    %757 = vmatprep.subr.mxu0 0.0
    %758 = vmatpush2.msra.mxu0 0.0
    %759 = vmatprep.subr.mxu0 0.0
    %760 = vmatpush2.msra.mxu0 0.0
    %761 = vmatprep.subr.mxu0 0.0
    %762 = vmatpush2.msra.mxu0 0.0
    %763 = vmatprep.subr.mxu0 0.0
    %764 = vmatpush2.msra.mxu0 0.0
    %765 = vmatprep.subr.mxu0 0.0
    %766 = vmatpush2.msra.mxu0 0.0
    %767 = vmatprep.subr.mxu0 0.0
    %768 = vmatpush2.msra.mxu0 0.0
    %769 = vmatprep.subr.mxu0 0.0
    %770 = vmatpush2.msra.mxu0 0.0
    %771 = vmatprep.subr.mxu0 0.0
    %772 = vmatpush2.msra.mxu0 0.0
    %773 = vmatprep.subr.mxu0 0.0
    %774 = vmatpush2.msra.mxu0 0.0
    %775 = vmatprep.subr.mxu0 0.0
    %776 = vmatpush2.msra.mxu0 0.0
    %777 = vmatprep.mubr.f32.mxu0 0.0
    %778 = vmatmul.mubr.f32.gmra.mxu0 %v711
    %v779 = vpop.f32.mrf.mxu0
    %v780 = vadd.f32 %v708, %v779
    %v781 = vpop.f32.mrf.mxu0
    %782 = vdwg.mxu0
    %v783 = vadd.f32 %v605, %v780
    %v784 = vmul.f32 %v783, 0.5
    %v785 = vmul.f32 %v783, 0.70710677
    %v786 = verf.f32.pop %v785
    %v787 = vadd.f32 %v786, 1.0
    %v788 = vmul.f32 %v784, %v787
    %v789 = vld [vmem:[#allocation18] sm:$0xff]
    %v790 = vld [vmem:[#allocation18 + $0x8] sm:$0xff]
    %v791 = vld [vmem:[#allocation19] sm:$0x3]
    %v793 = vlaneseq
    %v794 = vshrl.u32 %v793, 7
    %v795 = vsub.s32 0, %v794
    %v796 = vrot.slane %v791, %v795
    %v797 = vlaneseq
    %v798 = vshrl.u32 %v797, 7
    %v799 = vsub.s32 1, %v798
    %v800 = vrot.slane %v791, %v799
    %v804 = vsel %vm534, %v788, 0
    %806 = vmatprep.subr.mxu0 0.0
    %807 = vmatpush1.msra.mxu0 0.0
    %808 = vmatprep.subr.mxu0 0.0
    %809 = vmatpush1.msra.mxu0 0.0
    %810 = vmatprep.subr.mxu0 0.0
    %811 = vmatpush1.msra.mxu0 0.0
    %812 = vmatprep.subr.mxu0 0.0
    %813 = vmatpush1.msra.mxu0 0.0
    %814 = vmatprep.subr.mxu0 0.0
    %815 = vmatpush1.msra.mxu0 0.0
    %816 = vmatprep.subr.mxu0 0.0
    %817 = vmatpush1.msra.mxu0 0.0
    %818 = vmatprep.subr.mxu0 0.0
    %819 = vmatpush1.msra.mxu0 0.0
    %820 = vmatprep.subr.mxu0 0.0
    %821 = vmatpush1.msra.mxu0 0.0
    %822 = vmatprep.subr.mxu0 0.0
    %823 = vmatpush1.msra.mxu0 0.0
    %824 = vmatprep.subr.mxu0 0.0
    %825 = vmatpush1.msra.mxu0 0.0
    %826 = vmatprep.subr.mxu0 0.0
    %827 = vmatpush1.msra.mxu0 0.0
    %828 = vmatprep.subr.mxu0 0.0
    %829 = vmatpush1.msra.mxu0 0.0
    %830 = vmatprep.subr.mxu0 0.0
    %831 = vmatpush1.msra.mxu0 0.0
    %832 = vmatprep.subr.mxu0 0.0
    %833 = vmatpush1.msra.mxu0 0.0
    %834 = vmatprep.subr.mxu0 0.0
    %835 = vmatpush1.msra.mxu0 0.0
    %836 = vmatprep.subr.mxu0 %v790
    %837 = vmatpush1.msra.mxu0 %v789
    %838 = vmatprep.subr.mxu0 0.0
    %839 = vmatpush2.msra.mxu0 0.0
    %840 = vmatprep.subr.mxu0 0.0
    %841 = vmatpush2.msra.mxu0 0.0
    %842 = vmatprep.subr.mxu0 0.0
    %843 = vmatpush2.msra.mxu0 0.0
    %844 = vmatprep.subr.mxu0 0.0
    %845 = vmatpush2.msra.mxu0 0.0
    %846 = vmatprep.subr.mxu0 0.0
    %847 = vmatpush2.msra.mxu0 0.0
    %848 = vmatprep.subr.mxu0 0.0
    %849 = vmatpush2.msra.mxu0 0.0
    %850 = vmatprep.subr.mxu0 0.0
    %851 = vmatpush2.msra.mxu0 0.0
    %852 = vmatprep.subr.mxu0 0.0
    %853 = vmatpush2.msra.mxu0 0.0
    %854 = vmatprep.subr.mxu0 0.0
    %855 = vmatpush2.msra.mxu0 0.0
    %856 = vmatprep.subr.mxu0 0.0
    %857 = vmatpush2.msra.mxu0 0.0
    %858 = vmatprep.subr.mxu0 0.0
    %859 = vmatpush2.msra.mxu0 0.0
    %860 = vmatprep.subr.mxu0 0.0
    %861 = vmatpush2.msra.mxu0 0.0
    %862 = vmatprep.subr.mxu0 0.0
    %863 = vmatpush2.msra.mxu0 0.0
    %864 = vmatprep.subr.mxu0 0.0
    %865 = vmatpush2.msra.mxu0 0.0
    %866 = vmatprep.subr.mxu0 0.0
    %867 = vmatpush2.msra.mxu0 0.0
    %868 = vmatprep.subr.mxu0 0.0
    %869 = vmatpush2.msra.mxu0 0.0
    %870 = vmatprep.mubr.f32.mxu0 0.0
    %871 = vmatmul.mubr.f32.gmra.mxu0 %v804
    %v872 = vpop.f32.mrf.mxu0
    %v873 = vadd.f32 %v796, %v872
    %v874 = vpop.f32.mrf.mxu0
    %v875 = vadd.f32 %v800, %v874
    %876 = vdwg.mxu0
    %v879 = vcombine.low %v873, %v875
    %v881 = vunpack.c.l.s4 1983009808
    %v882 = vunpack.c.0.s8 %v881
    %v883 = vlaneseq
    %v884 = vshrl.u32 %v883, 7
    %v885 = vsub.s32 %v882, %v884
    %v886 = vrot.slane %v879, %v885
    %vm888 = vcmask 519170
    %vm889 = vmor %vm888, %vm621
    %890 = vst.msk [vmem:[%s13] sm:$0xf] %vm889, %v886
    %s891 = scalar_lea.vmem [#allocation18], 16
    %v892 = vld [vmem:[%s891] sm:$0xff]
    %v893 = vld [vmem:[%s891 + $0x8] sm:$0xff]
    %s894 = scalar_lea.vmem [#allocation19], 2
    %v895 = vld [vmem:[%s894] sm:$0x3]
    %v897 = vlaneseq
    %v898 = vshrl.u32 %v897, 7
    %v899 = vsub.s32 0, %v898
    %v900 = vrot.slane %v895, %v899
    %v901 = vlaneseq
    %v902 = vshrl.u32 %v901, 7
    %v903 = vsub.s32 1, %v902
    %v904 = vrot.slane %v895, %v903
    %907 = vmatprep.subr.mxu0 0.0
    %908 = vmatpush1.msra.mxu0 0.0
    %909 = vmatprep.subr.mxu0 0.0
    %910 = vmatpush1.msra.mxu0 0.0
    %911 = vmatprep.subr.mxu0 0.0
    %912 = vmatpush1.msra.mxu0 0.0
    %913 = vmatprep.subr.mxu0 0.0
    %914 = vmatpush1.msra.mxu0 0.0
    %915 = vmatprep.subr.mxu0 0.0
    %916 = vmatpush1.msra.mxu0 0.0
    %917 = vmatprep.subr.mxu0 0.0
    %918 = vmatpush1.msra.mxu0 0.0
    %919 = vmatprep.subr.mxu0 0.0
    %920 = vmatpush1.msra.mxu0 0.0
    %921 = vmatprep.subr.mxu0 0.0
    %922 = vmatpush1.msra.mxu0 0.0
    %923 = vmatprep.subr.mxu0 0.0
    %924 = vmatpush1.msra.mxu0 0.0
    %925 = vmatprep.subr.mxu0 0.0
    %926 = vmatpush1.msra.mxu0 0.0
    %927 = vmatprep.subr.mxu0 0.0
    %928 = vmatpush1.msra.mxu0 0.0
    %929 = vmatprep.subr.mxu0 0.0
    %930 = vmatpush1.msra.mxu0 0.0
    %931 = vmatprep.subr.mxu0 0.0
    %932 = vmatpush1.msra.mxu0 0.0
    %933 = vmatprep.subr.mxu0 0.0
    %934 = vmatpush1.msra.mxu0 0.0
    %935 = vmatprep.subr.mxu0 0.0
    %936 = vmatpush1.msra.mxu0 0.0
    %937 = vmatprep.subr.mxu0 %v893
    %938 = vmatpush1.msra.mxu0 %v892
    %939 = vmatprep.subr.mxu0 0.0
    %940 = vmatpush2.msra.mxu0 0.0
    %941 = vmatprep.subr.mxu0 0.0
    %942 = vmatpush2.msra.mxu0 0.0
    %943 = vmatprep.subr.mxu0 0.0
    %944 = vmatpush2.msra.mxu0 0.0
    %945 = vmatprep.subr.mxu0 0.0
    %946 = vmatpush2.msra.mxu0 0.0
    %947 = vmatprep.subr.mxu0 0.0
    %948 = vmatpush2.msra.mxu0 0.0
    %949 = vmatprep.subr.mxu0 0.0
    %950 = vmatpush2.msra.mxu0 0.0
    %951 = vmatprep.subr.mxu0 0.0
    %952 = vmatpush2.msra.mxu0 0.0
    %953 = vmatprep.subr.mxu0 0.0
    %954 = vmatpush2.msra.mxu0 0.0
    %955 = vmatprep.subr.mxu0 0.0
    %956 = vmatpush2.msra.mxu0 0.0
    %957 = vmatprep.subr.mxu0 0.0
    %958 = vmatpush2.msra.mxu0 0.0
    %959 = vmatprep.subr.mxu0 0.0
    %960 = vmatpush2.msra.mxu0 0.0
    %961 = vmatprep.subr.mxu0 0.0
    %962 = vmatpush2.msra.mxu0 0.0
    %963 = vmatprep.subr.mxu0 0.0
    %964 = vmatpush2.msra.mxu0 0.0
    %965 = vmatprep.subr.mxu0 0.0
    %966 = vmatpush2.msra.mxu0 0.0
    %967 = vmatprep.subr.mxu0 0.0
    %968 = vmatpush2.msra.mxu0 0.0
    %969 = vmatprep.subr.mxu0 0.0
    %970 = vmatpush2.msra.mxu0 0.0
    %971 = vmatprep.mubr.f32.mxu0 0.0
    %972 = vmatmul.mubr.f32.gmra.mxu0 %v804
    %v973 = vpop.f32.mrf.mxu0
    %v974 = vadd.f32 %v900, %v973
    %v975 = vpop.f32.mrf.mxu0
    %v976 = vadd.f32 %v904, %v975
    %977 = vdwg.mxu0
    %v980 = vcombine.low %v974, %v976
    %v982 = vunpack.c.l.s4 1983009808
    %v983 = vunpack.c.0.s8 %v982
    %v984 = vlaneseq
    %v985 = vshrl.u32 %v984, 7
    %v986 = vsub.s32 %v983, %v985
    %v987 = vrot.slane %v980, %v986
    %s989 = scalar_lea.vmem %s13, 4
    %990 = vst.msk [vmem:[%s989] sm:$0xf] %vm889, %v987
    %s991 = scalar_lea.vmem [#allocation18], 32
    %v992 = vld [vmem:[%s991] sm:$0xff]
    %v993 = vld [vmem:[%s991 + $0x8] sm:$0xff]
    %s994 = scalar_lea.vmem [#allocation19], 4
    %v995 = vld [vmem:[%s994] sm:$0x3]
    %v997 = vlaneseq
    %v998 = vshrl.u32 %v997, 7
    %v999 = vsub.s32 0, %v998
    %v1000 = vrot.slane %v995, %v999
    %v1001 = vlaneseq
    %v1002 = vshrl.u32 %v1001, 7
    %v1003 = vsub.s32 1, %v1002
    %v1004 = vrot.slane %v995, %v1003
    %1007 = vmatprep.subr.mxu0 0.0
    %1008 = vmatpush1.msra.mxu0 0.0
    %1009 = vmatprep.subr.mxu0 0.0
    %1010 = vmatpush1.msra.mxu0 0.0
    %1011 = vmatprep.subr.mxu0 0.0
    %1012 = vmatpush1.msra.mxu0 0.0
    %1013 = vmatprep.subr.mxu0 0.0
    %1014 = vmatpush1.msra.mxu0 0.0
    %1015 = vmatprep.subr.mxu0 0.0
    %1016 = vmatpush1.msra.mxu0 0.0
    %1017 = vmatprep.subr.mxu0 0.0
    %1018 = vmatpush1.msra.mxu0 0.0
    %1019 = vmatprep.subr.mxu0 0.0
    %1020 = vmatpush1.msra.mxu0 0.0
    %1021 = vmatprep.subr.mxu0 0.0
    %1022 = vmatpush1.msra.mxu0 0.0
    %1023 = vmatprep.subr.mxu0 0.0
    %1024 = vmatpush1.msra.mxu0 0.0
    %1025 = vmatprep.subr.mxu0 0.0
    %1026 = vmatpush1.msra.mxu0 0.0
    %1027 = vmatprep.subr.mxu0 0.0
    %1028 = vmatpush1.msra.mxu0 0.0
    %1029 = vmatprep.subr.mxu0 0.0
    %1030 = vmatpush1.msra.mxu0 0.0
    %1031 = vmatprep.subr.mxu0 0.0
    %1032 = vmatpush1.msra.mxu0 0.0
    %1033 = vmatprep.subr.mxu0 0.0
    %1034 = vmatpush1.msra.mxu0 0.0
    %1035 = vmatprep.subr.mxu0 0.0
    %1036 = vmatpush1.msra.mxu0 0.0
    %1037 = vmatprep.subr.mxu0 %v993
    %1038 = vmatpush1.msra.mxu0 %v992
    %1039 = vmatprep.subr.mxu0 0.0
    %1040 = vmatpush2.msra.mxu0 0.0
    %1041 = vmatprep.subr.mxu0 0.0
    %1042 = vmatpush2.msra.mxu0 0.0
    %1043 = vmatprep.subr.mxu0 0.0
    %1044 = vmatpush2.msra.mxu0 0.0
    %1045 = vmatprep.subr.mxu0 0.0
    %1046 = vmatpush2.msra.mxu0 0.0
    %1047 = vmatprep.subr.mxu0 0.0
    %1048 = vmatpush2.msra.mxu0 0.0
    %1049 = vmatprep.subr.mxu0 0.0
    %1050 = vmatpush2.msra.mxu0 0.0
    %1051 = vmatprep.subr.mxu0 0.0
    %1052 = vmatpush2.msra.mxu0 0.0
    %1053 = vmatprep.subr.mxu0 0.0
    %1054 = vmatpush2.msra.mxu0 0.0
    %1055 = vmatprep.subr.mxu0 0.0
    %1056 = vmatpush2.msra.mxu0 0.0
    %1057 = vmatprep.subr.mxu0 0.0
    %1058 = vmatpush2.msra.mxu0 0.0
    %1059 = vmatprep.subr.mxu0 0.0
    %1060 = vmatpush2.msra.mxu0 0.0
    %1061 = vmatprep.subr.mxu0 0.0
    %1062 = vmatpush2.msra.mxu0 0.0
    %1063 = vmatprep.subr.mxu0 0.0
    %1064 = vmatpush2.msra.mxu0 0.0
    %1065 = vmatprep.subr.mxu0 0.0
    %1066 = vmatpush2.msra.mxu0 0.0
    %1067 = vmatprep.subr.mxu0 0.0
    %1068 = vmatpush2.msra.mxu0 0.0
    %1069 = vmatprep.subr.mxu0 0.0
    %1070 = vmatpush2.msra.mxu0 0.0
    %1071 = vmatprep.mubr.f32.mxu0 0.0
    %1072 = vmatmul.mubr.f32.gmra.mxu0 %v804
    %v1073 = vpop.f32.mrf.mxu0
    %v1074 = vadd.f32 %v1000, %v1073
    %v1075 = vpop.f32.mrf.mxu0
    %v1076 = vadd.f32 %v1004, %v1075
    %1077 = vdwg.mxu0
    %v1080 = vcombine.low %v1074, %v1076
    %v1082 = vunpack.c.l.s4 1983009808
    %v1083 = vunpack.c.0.s8 %v1082
    %v1084 = vlaneseq
    %v1085 = vshrl.u32 %v1084, 7
    %v1086 = vsub.s32 %v1083, %v1085
    %v1087 = vrot.slane %v1080, %v1086
    %s1089 = scalar_lea.vmem %s13, 8
    %1090 = vst.msk [vmem:[%s1089] sm:$0xf] %vm889, %v1087
    %s1091 = scalar_lea.vmem [#allocation18], 48
    %v1092 = vld [vmem:[%s1091] sm:$0xff]
    %v1093 = vld [vmem:[%s1091 + $0x8] sm:$0xff]
    %s1094 = scalar_lea.vmem [#allocation19], 6
    %v1095 = vld [vmem:[%s1094] sm:$0x3]
    %v1097 = vlaneseq
    %v1098 = vshrl.u32 %v1097, 7
    %v1099 = vsub.s32 0, %v1098
    %v1100 = vrot.slane %v1095, %v1099
    %v1101 = vlaneseq
    %v1102 = vshrl.u32 %v1101, 7
    %v1103 = vsub.s32 1, %v1102
    %v1104 = vrot.slane %v1095, %v1103
    %1107 = vmatprep.subr.mxu0 0.0
    %1108 = vmatpush1.msra.mxu0 0.0
    %1109 = vmatprep.subr.mxu0 0.0
    %1110 = vmatpush1.msra.mxu0 0.0
    %1111 = vmatprep.subr.mxu0 0.0
    %1112 = vmatpush1.msra.mxu0 0.0
    %1113 = vmatprep.subr.mxu0 0.0
    %1114 = vmatpush1.msra.mxu0 0.0
    %1115 = vmatprep.subr.mxu0 0.0
    %1116 = vmatpush1.msra.mxu0 0.0
    %1117 = vmatprep.subr.mxu0 0.0
    %1118 = vmatpush1.msra.mxu0 0.0
    %1119 = vmatprep.subr.mxu0 0.0
    %1120 = vmatpush1.msra.mxu0 0.0
    %1121 = vmatprep.subr.mxu0 0.0
    %1122 = vmatpush1.msra.mxu0 0.0
    %1123 = vmatprep.subr.mxu0 0.0
    %1124 = vmatpush1.msra.mxu0 0.0
    %1125 = vmatprep.subr.mxu0 0.0
    %1126 = vmatpush1.msra.mxu0 0.0
    %1127 = vmatprep.subr.mxu0 0.0
    %1128 = vmatpush1.msra.mxu0 0.0
    %1129 = vmatprep.subr.mxu0 0.0
    %1130 = vmatpush1.msra.mxu0 0.0
    %1131 = vmatprep.subr.mxu0 0.0
    %1132 = vmatpush1.msra.mxu0 0.0
    %1133 = vmatprep.subr.mxu0 0.0
    %1134 = vmatpush1.msra.mxu0 0.0
    %1135 = vmatprep.subr.mxu0 0.0
    %1136 = vmatpush1.msra.mxu0 0.0
    %1137 = vmatprep.subr.mxu0 %v1093
    %1138 = vmatpush1.msra.mxu0 %v1092
    %1139 = vmatprep.subr.mxu0 0.0
    %1140 = vmatpush2.msra.mxu0 0.0
    %1141 = vmatprep.subr.mxu0 0.0
    %1142 = vmatpush2.msra.mxu0 0.0
    %1143 = vmatprep.subr.mxu0 0.0
    %1144 = vmatpush2.msra.mxu0 0.0
    %1145 = vmatprep.subr.mxu0 0.0
    %1146 = vmatpush2.msra.mxu0 0.0
    %1147 = vmatprep.subr.mxu0 0.0
    %1148 = vmatpush2.msra.mxu0 0.0
    %1149 = vmatprep.subr.mxu0 0.0
    %1150 = vmatpush2.msra.mxu0 0.0
    %1151 = vmatprep.subr.mxu0 0.0
    %1152 = vmatpush2.msra.mxu0 0.0
    %1153 = vmatprep.subr.mxu0 0.0
    %1154 = vmatpush2.msra.mxu0 0.0
    %1155 = vmatprep.subr.mxu0 0.0
    %1156 = vmatpush2.msra.mxu0 0.0
    %1157 = vmatprep.subr.mxu0 0.0
    %1158 = vmatpush2.msra.mxu0 0.0
    %1159 = vmatprep.subr.mxu0 0.0
    %1160 = vmatpush2.msra.mxu0 0.0
    %1161 = vmatprep.subr.mxu0 0.0
    %1162 = vmatpush2.msra.mxu0 0.0
    %1163 = vmatprep.subr.mxu0 0.0
    %1164 = vmatpush2.msra.mxu0 0.0
    %1165 = vmatprep.subr.mxu0 0.0
    %1166 = vmatpush2.msra.mxu0 0.0
    %1167 = vmatprep.subr.mxu0 0.0
    %1168 = vmatpush2.msra.mxu0 0.0
    %1169 = vmatprep.subr.mxu0 0.0
    %1170 = vmatpush2.msra.mxu0 0.0
    %1171 = vmatprep.mubr.f32.mxu0 0.0
    %1172 = vmatmul.mubr.f32.gmra.mxu0 %v804
    %v1173 = vpop.f32.mrf.mxu0
    %v1174 = vadd.f32 %v1100, %v1173
    %v1175 = vpop.f32.mrf.mxu0
    %v1176 = vadd.f32 %v1104, %v1175
    %1177 = vdwg.mxu0
    %v1180 = vcombine.low %v1174, %v1176
    %v1182 = vunpack.c.l.s4 1983009808
    %v1183 = vunpack.c.0.s8 %v1182
    %v1184 = vlaneseq
    %v1185 = vshrl.u32 %v1184, 7
    %v1186 = vsub.s32 %v1183, %v1185
    %v1187 = vrot.slane %v1180, %v1186
    %s1189 = scalar_lea.vmem %s13, 12
    %1190 = vst.msk [vmem:[%s1189] sm:$0xf] %vm889, %v1187
    %s1191 = scalar_lea.vmem [#allocation18], 64
    %v1192 = vld [vmem:[%s1191] sm:$0xff]
    %v1193 = vld [vmem:[%s1191 + $0x8] sm:$0xff]
    %s1194 = scalar_lea.vmem [#allocation19], 8
    %v1195 = vld [vmem:[%s1194] sm:$0x3]
    %v1197 = vlaneseq
    %v1198 = vshrl.u32 %v1197, 7
    %v1199 = vsub.s32 0, %v1198
    %v1200 = vrot.slane %v1195, %v1199
    %v1201 = vlaneseq
    %v1202 = vshrl.u32 %v1201, 7
    %v1203 = vsub.s32 1, %v1202
    %v1204 = vrot.slane %v1195, %v1203
    %1207 = vmatprep.subr.mxu0 0.0
    %1208 = vmatpush1.msra.mxu0 0.0
    %1209 = vmatprep.subr.mxu0 0.0
    %1210 = vmatpush1.msra.mxu0 0.0
    %1211 = vmatprep.subr.mxu0 0.0
    %1212 = vmatpush1.msra.mxu0 0.0
    %1213 = vmatprep.subr.mxu0 0.0
    %1214 = vmatpush1.msra.mxu0 0.0
    %1215 = vmatprep.subr.mxu0 0.0
    %1216 = vmatpush1.msra.mxu0 0.0
    %1217 = vmatprep.subr.mxu0 0.0
    %1218 = vmatpush1.msra.mxu0 0.0
    %1219 = vmatprep.subr.mxu0 0.0
    %1220 = vmatpush1.msra.mxu0 0.0
    %1221 = vmatprep.subr.mxu0 0.0
    %1222 = vmatpush1.msra.mxu0 0.0
    %1223 = vmatprep.subr.mxu0 0.0
    %1224 = vmatpush1.msra.mxu0 0.0
    %1225 = vmatprep.subr.mxu0 0.0
    %1226 = vmatpush1.msra.mxu0 0.0
    %1227 = vmatprep.subr.mxu0 0.0
    %1228 = vmatpush1.msra.mxu0 0.0
    %1229 = vmatprep.subr.mxu0 0.0
    %1230 = vmatpush1.msra.mxu0 0.0
    %1231 = vmatprep.subr.mxu0 0.0
    %1232 = vmatpush1.msra.mxu0 0.0
    %1233 = vmatprep.subr.mxu0 0.0
    %1234 = vmatpush1.msra.mxu0 0.0
    %1235 = vmatprep.subr.mxu0 0.0
    %1236 = vmatpush1.msra.mxu0 0.0
    %1237 = vmatprep.subr.mxu0 %v1193
    %1238 = vmatpush1.msra.mxu0 %v1192
    %1239 = vmatprep.subr.mxu0 0.0
    %1240 = vmatpush2.msra.mxu0 0.0
    %1241 = vmatprep.subr.mxu0 0.0
    %1242 = vmatpush2.msra.mxu0 0.0
    %1243 = vmatprep.subr.mxu0 0.0
    %1244 = vmatpush2.msra.mxu0 0.0
    %1245 = vmatprep.subr.mxu0 0.0
    %1246 = vmatpush2.msra.mxu0 0.0
    %1247 = vmatprep.subr.mxu0 0.0
    %1248 = vmatpush2.msra.mxu0 0.0
    %1249 = vmatprep.subr.mxu0 0.0
    %1250 = vmatpush2.msra.mxu0 0.0
    %1251 = vmatprep.subr.mxu0 0.0
    %1252 = vmatpush2.msra.mxu0 0.0
    %1253 = vmatprep.subr.mxu0 0.0
    %1254 = vmatpush2.msra.mxu0 0.0
    %1255 = vmatprep.subr.mxu0 0.0
    %1256 = vmatpush2.msra.mxu0 0.0
    %1257 = vmatprep.subr.mxu0 0.0
    %1258 = vmatpush2.msra.mxu0 0.0
    %1259 = vmatprep.subr.mxu0 0.0
    %1260 = vmatpush2.msra.mxu0 0.0
    %1261 = vmatprep.subr.mxu0 0.0
    %1262 = vmatpush2.msra.mxu0 0.0
    %1263 = vmatprep.subr.mxu0 0.0
    %1264 = vmatpush2.msra.mxu0 0.0
    %1265 = vmatprep.subr.mxu0 0.0
    %1266 = vmatpush2.msra.mxu0 0.0
    %1267 = vmatprep.subr.mxu0 0.0
    %1268 = vmatpush2.msra.mxu0 0.0
    %1269 = vmatprep.subr.mxu0 0.0
    %1270 = vmatpush2.msra.mxu0 0.0
    %1271 = vmatprep.mubr.f32.mxu0 0.0
    %1272 = vmatmul.mubr.f32.gmra.mxu0 %v804
    %v1273 = vpop.f32.mrf.mxu0
    %v1274 = vadd.f32 %v1200, %v1273
    %v1275 = vpop.f32.mrf.mxu0
    %v1276 = vadd.f32 %v1204, %v1275
    %1277 = vdwg.mxu0
    %v1280 = vcombine.low %v1274, %v1276
    %v1282 = vunpack.c.l.s4 1983009808
    %v1283 = vunpack.c.0.s8 %v1282
    %v1284 = vlaneseq
    %v1285 = vshrl.u32 %v1284, 7
    %v1286 = vsub.s32 %v1283, %v1285
    %v1287 = vrot.slane %v1280, %v1286
    %s1289 = scalar_lea.vmem %s13, 16
    %1290 = vst.msk [vmem:[%s1289] sm:$0xf] %vm889, %v1287
    %s1291 = scalar_lea.vmem [#allocation18], 80
    %v1292 = vld [vmem:[%s1291] sm:$0xff]
    %v1293 = vld [vmem:[%s1291 + $0x8] sm:$0xff]
    %s1294 = scalar_lea.vmem [#allocation19], 10
    %v1295 = vld [vmem:[%s1294] sm:$0x3]
    %v1297 = vlaneseq
    %v1298 = vshrl.u32 %v1297, 7
    %v1299 = vsub.s32 0, %v1298
    %v1300 = vrot.slane %v1295, %v1299
    %v1301 = vlaneseq
    %v1302 = vshrl.u32 %v1301, 7
    %v1303 = vsub.s32 1, %v1302
    %v1304 = vrot.slane %v1295, %v1303
    %1307 = vmatprep.subr.mxu0 0.0
    %1308 = vmatpush1.msra.mxu0 0.0
    %1309 = vmatprep.subr.mxu0 0.0
    %1310 = vmatpush1.msra.mxu0 0.0
    %1311 = vmatprep.subr.mxu0 0.0
    %1312 = vmatpush1.msra.mxu0 0.0
    %1313 = vmatprep.subr.mxu0 0.0
    %1314 = vmatpush1.msra.mxu0 0.0
    %1315 = vmatprep.subr.mxu0 0.0
    %1316 = vmatpush1.msra.mxu0 0.0
    %1317 = vmatprep.subr.mxu0 0.0
    %1318 = vmatpush1.msra.mxu0 0.0
    %1319 = vmatprep.subr.mxu0 0.0
    %1320 = vmatpush1.msra.mxu0 0.0
    %1321 = vmatprep.subr.mxu0 0.0
    %1322 = vmatpush1.msra.mxu0 0.0
    %1323 = vmatprep.subr.mxu0 0.0
    %1324 = vmatpush1.msra.mxu0 0.0
    %1325 = vmatprep.subr.mxu0 0.0
    %1326 = vmatpush1.msra.mxu0 0.0
    %1327 = vmatprep.subr.mxu0 0.0
    %1328 = vmatpush1.msra.mxu0 0.0
    %1329 = vmatprep.subr.mxu0 0.0
    %1330 = vmatpush1.msra.mxu0 0.0
    %1331 = vmatprep.subr.mxu0 0.0
    %1332 = vmatpush1.msra.mxu0 0.0
    %1333 = vmatprep.subr.mxu0 0.0
    %1334 = vmatpush1.msra.mxu0 0.0
    %1335 = vmatprep.subr.mxu0 0.0
    %1336 = vmatpush1.msra.mxu0 0.0
    %1337 = vmatprep.subr.mxu0 %v1293
    %1338 = vmatpush1.msra.mxu0 %v1292
    %1339 = vmatprep.subr.mxu0 0.0
    %1340 = vmatpush2.msra.mxu0 0.0
    %1341 = vmatprep.subr.mxu0 0.0
    %1342 = vmatpush2.msra.mxu0 0.0
    %1343 = vmatprep.subr.mxu0 0.0
    %1344 = vmatpush2.msra.mxu0 0.0
    %1345 = vmatprep.subr.mxu0 0.0
    %1346 = vmatpush2.msra.mxu0 0.0
    %1347 = vmatprep.subr.mxu0 0.0
    %1348 = vmatpush2.msra.mxu0 0.0
    %1349 = vmatprep.subr.mxu0 0.0
    %1350 = vmatpush2.msra.mxu0 0.0
    %1351 = vmatprep.subr.mxu0 0.0
    %1352 = vmatpush2.msra.mxu0 0.0
    %1353 = vmatprep.subr.mxu0 0.0
    %1354 = vmatpush2.msra.mxu0 0.0
    %1355 = vmatprep.subr.mxu0 0.0
    %1356 = vmatpush2.msra.mxu0 0.0
    %1357 = vmatprep.subr.mxu0 0.0
    %1358 = vmatpush2.msra.mxu0 0.0
    %1359 = vmatprep.subr.mxu0 0.0
    %1360 = vmatpush2.msra.mxu0 0.0
    %1361 = vmatprep.subr.mxu0 0.0
    %1362 = vmatpush2.msra.mxu0 0.0
    %1363 = vmatprep.subr.mxu0 0.0
    %1364 = vmatpush2.msra.mxu0 0.0
    %1365 = vmatprep.subr.mxu0 0.0
    %1366 = vmatpush2.msra.mxu0 0.0
    %1367 = vmatprep.subr.mxu0 0.0
    %1368 = vmatpush2.msra.mxu0 0.0
    %1369 = vmatprep.subr.mxu0 0.0
    %1370 = vmatpush2.msra.mxu0 0.0
    %1371 = vmatprep.mubr.f32.mxu0 0.0
    %1372 = vmatmul.mubr.f32.gmra.mxu0 %v804
    %v1373 = vpop.f32.mrf.mxu0
    %v1374 = vadd.f32 %v1300, %v1373
    %v1375 = vpop.f32.mrf.mxu0
    %v1376 = vadd.f32 %v1304, %v1375
    %1377 = vdwg.mxu0
    %v1380 = vcombine.low %v1374, %v1376
    %v1382 = vunpack.c.l.s4 1983009808
    %v1383 = vunpack.c.0.s8 %v1382
    %v1384 = vlaneseq
    %v1385 = vshrl.u32 %v1384, 7
    %v1386 = vsub.s32 %v1383, %v1385
    %v1387 = vrot.slane %v1380, %v1386
    %s1389 = scalar_lea.vmem %s13, 20
    %1390 = vst.msk [vmem:[%s1389] sm:$0xf] %vm889, %v1387
    // Predicated region
    $region102: #{conditional_denoiser_forward.2} parent=1 // pred_check
      _
    $region103: #{conditional_denoiser_forward.2} parent=1 // pred_check_branch
      %1392 = sbr.rel (0) target = $region105
    $region104: #{conditional_denoiser_forward.2} parent=1 // pred_region
      _
    $region105: #{conditional_denoiser_forward.2} parent=1 // pred_fallthru
      _
    // Predicated region
    $region106: #{conditional_denoiser_forward.2} parent=1 // pred_check
      _
    $region107: #{conditional_denoiser_forward.2} parent=1 // pred_check_branch
      %1394 = sbr.rel (0) target = $region109
    $region108: #{conditional_denoiser_forward.2} parent=1 // pred_region
      _
    $region109: #{conditional_denoiser_forward.2} parent=1 // pred_fallthru
      _
    %1395 = vsyncpa [#allocation3], 1
    %1396 = vsyncpa [#allocation5], 1
    %1397 = vsyncpa [#allocation8], 1
    %1398 = vsyncpa [#allocation11], 1
    %1399 = vsyncpa [#allocation14], 1
    %1400 = vsyncpa [#allocation17], 1
    %1401 = vsyncpa [#allocation20], 1

// kernel: conditional_denoiser_forward.3
$region0: #{conditional_denoiser_forward.3}
  #allocation0 [shape = 'u32[]', space=smem, size = 0x4, offset = 0x4, fixed_abs, tag = 'smem constant byte address 0x4 - core index']
  #allocation1 [shape = 'u32[144,128]{1,0:T(1,128)}', space=vmem, size = 0x12000, scoped, tag = 'internal scratch']
  #allocation2 [shape = 'f32[32,2,128]{2,1,0:T(2,128)}', space=vmem, size = 0x8000, scoped, tag = 'scratch operand']
  %s0 = inlined_call_operand.vmem [shape: f32[4,2,128], index: 0, kind: input, shape index: {}]
  %s1 = inlined_call_operand.hbm [shape: f32[32,4], index: 1, kind: input, shape index: {}]
  %s2 = inlined_call_operand.hbm [shape: f32[32,1], index: 2, kind: input, shape index: {}]
  %s3 = inlined_call_operand.vmem [shape: f32[6,32,2,6], index: 3, kind: input, shape index: {}]
  %s4 = inlined_call_operand.hbm [shape: f32[6,32,128,128], index: 4, kind: input, shape index: {}]
  %s5 = inlined_call_operand.hbm [shape: f32[6,32,1,1], index: 5, kind: input, shape index: {}]
  %s6 = inlined_call_operand.hbm [shape: f32[6,64,32], index: 6, kind: input, shape index: {}]
  %s7 = inlined_call_operand.hbm [shape: f32[6,64,1], index: 7, kind: input, shape index: {}]
  %s8 = inlined_call_operand.hbm [shape: f32[6,32,64], index: 8, kind: input, shape index: {}]
  %s9 = inlined_call_operand.hbm [shape: f32[6,32,1], index: 9, kind: input, shape index: {}]
  %s10 = inlined_call_operand.hbm [shape: f32[4,32], index: 10, kind: input, shape index: {}]
  %s11 = inlined_call_operand.hbm [shape: f32[4,1], index: 11, kind: input, shape index: {}]
  %s12 = inlined_call_operand.vmem [shape: f32[4,2,128], index: 12, kind: output, shape index: {}]
  %s13 = sld [smem:[#allocation0]]
  $region133: #{conditional_denoiser_forward.3} parent=0
    _
  %s15 = ssub.s32 1, %s13
  %s16 = scalar_select 0, %s15, %s13
  $region1: #{conditional_denoiser_forward.3} parent=0
    #allocation3 [shape = 'u8[16384]{0}', space=vmem, size = 0x4000, scoped, tag = 'input window, operand 1, single buffered']
    #allocation4 [shape = 's32[2]{0}', space=sflag, size = 0x8, scoped, tag = 'scoped memory for conditional_denoiser_forward.3']
    #allocation5 [shape = 'u8[16384]{0}', space=vmem, size = 0x4000, scoped, tag = 'input window, operand 2, single buffered']
    #allocation6 [shape = 's32[1]{0}', space=sflag, size = 0x4, scoped, tag = 'scoped memory for conditional_denoiser_forward.3']
    #allocation7 [shape = 'u8[4194304]{0}', space=vmem, size = 0x400000, scoped, tag = 'input window, operand 4']
    #allocation8 [shape = 'u8[32768]{0}', space=vmem, size = 0x8000, scoped, tag = 'input window, operand 5']
    #allocation9 [shape = 'u8[65536]{0}', space=vmem, size = 0x10000, scoped, tag = 'input window, operand 6']
    #allocation10 [shape = 'u8[65536]{0}', space=vmem, size = 0x10000, scoped, tag = 'input window, operand 7']
    #allocation11 [shape = 'u8[32768]{0}', space=vmem, size = 0x8000, scoped, tag = 'input window, operand 8']
    #allocation12 [shape = 'u8[32768]{0}', space=vmem, size = 0x8000, scoped, tag = 'input window, operand 9']
    #allocation13 [shape = 'u8[2048]{0}', space=vmem, size = 0x800, scoped, tag = 'input window, operand 10, single buffered']
    #allocation14 [shape = 'u8[2048]{0}', space=vmem, size = 0x800, scoped, tag = 'input window, operand 11, single buffered']
    #allocation15 [shape = 's32[1]{0}', space=sflag, size = 0x4, scoped, tag = 'scoped memory for conditional_denoiser_forward.3']
    %17 = vsyncpa [#allocation4], 0
    %18 = vsyncpa [#allocation6], 0
    %19 = vsyncpa [#allocation15], 0
    loop: start=0, step=1, limit=8
    $region2: #{conditional_denoiser_forward.3} parent=1 // loop_pre_header
      _
    $region3: #{conditional_denoiser_forward.3} parent=1 // loop_header
      %s21 = sphi 0, %s25
      %p22 = scmp.ge.s32.totalorder %s21, 8
      %s28 = sphi 0, %s40
      %s29 = sphi 0, %s36
      %s30 = sphi 0, %s28
      %s31 = sphi 0, %s29
      %s32 = sphi 0, %s30
      %s33 = sphi 0, %s31
      %s41 = sphi 0, %s41
      %s43 = sphi 0, %s41
      %s44 = sphi 0, %s43
      %s58 = sphi 0, %s44
      %s62 = sphi 0, %s62
      %s64 = sphi 0, %s62
      %s65 = sphi 0, %s64
      %s79 = sphi 0, %s65
      %s83 = sphi 0, %s83
      %s85 = sphi 0, %s83
      %s86 = sphi 0, %s85
      %s100 = sphi 0, %s86
      %s106 = sphi 0, %s108
      %s109 = sphi 0, %s106
      %s110 = sphi 0, %s109
      %s126 = sphi 0, %s110
      %s134 = sphi 0, %s136
      %s137 = sphi 0, %s134
      %s138 = sphi 0, %s137
      %s154 = sphi 0, %s138
      %s162 = sphi 0, %s164
      %s165 = sphi 0, %s162
      %s166 = sphi 0, %s165
      %s182 = sphi 0, %s166
      %s188 = sphi 0, %s190
      %s191 = sphi 0, %s188
      %s192 = sphi 0, %s191
      %s208 = sphi 0, %s192
      %s214 = sphi 0, %s216
      %s217 = sphi 0, %s214
      %s218 = sphi 0, %s217
      %s234 = sphi 0, %s218
      %s240 = sphi 0, %s242
      %s243 = sphi 0, %s240
      %s244 = sphi 0, %s243
      %s260 = sphi 0, %s244
      %s266 = sphi 0, %s268
      %s269 = sphi 0, %s266
      %s270 = sphi 0, %s269
      %s286 = sphi 0, %s270
      %s290 = sphi 0, %s290
      %s292 = sphi 0, %s290
      %s293 = sphi 0, %s292
      %s307 = sphi 0, %s293
      %s311 = sphi 0, %s311
      %s313 = sphi 0, %s311
      %s314 = sphi 0, %s313
      %s328 = sphi 0, %s314
      %s332 = sphi 0, %s332
      %s334 = sphi 0, %s332
      %s335 = sphi 0, %s334
      %s349 = sphi 0, %s335
    $region4: #{conditional_denoiser_forward.3} parent=1 // loop_header_branch
      %24 = sbr.rel (%p22) target = $region8
    $region5: #{conditional_denoiser_forward.3} parent=1 // loop_body
      %s26 = ssub.s32 %s21, 1
      %s27 = ssub.s32 %s21, 2
      %s34 = sadd.s32 1, %s29
      %p35 = scmp.ge.s32.totalorder %s34, 1
      %s36 = scalar_select %p35, 0, %s34
      %s37 = sadd.s32 1, %s28
      %s38 = scalar_select %p35, %s37, %s28
      %p39 = scmp.ge.s32.totalorder %s38, 6
      %s40 = scalar_select %p39, 0, %s38
      %s42 = sadd.s32 %s41, 1
      %p45 = scmp.eq.s32.totalorder %s21, 5
      %p46 = scmp.ne.s32.totalorder %s41, %s43
      %p47 = scmp.eq.s32.totalorder %s21, 0
      %p48 = por %p46, %p47
      %p49 = scmp.ne.s32.totalorder %s41, %s43
      %p50 = scmp.eq.s32.totalorder %s26, 5
      %p51 = por %p49, %p50
      %p52 = scmp.ne.s32.totalorder %s43, %s44
      %p53 = scmp.eq.s32.totalorder %s26, 0
      %p54 = por %p52, %p53
      %p55 = scmp.ne.s32.totalorder %s43, %s44
      %p56 = scmp.eq.s32.totalorder %s27, 5
      %p57 = por %p55, %p56
      %p59 = scmp.ne.s32.totalorder %s44, %s58
      %p60 = scmp.eq.s32.totalorder %s27, 0
      %p61 = por %p59, %p60
      %s63 = sadd.s32 %s62, 1
      %p66 = scmp.eq.s32.totalorder %s21, 5
      %p67 = scmp.ne.s32.totalorder %s62, %s64
      %p68 = scmp.eq.s32.totalorder %s21, 0
      %p69 = por %p67, %p68
      %p70 = scmp.ne.s32.totalorder %s62, %s64
      %p71 = scmp.eq.s32.totalorder %s26, 5
      %p72 = por %p70, %p71
      %p73 = scmp.ne.s32.totalorder %s64, %s65
      %p74 = scmp.eq.s32.totalorder %s26, 0
      %p75 = por %p73, %p74
      %p76 = scmp.ne.s32.totalorder %s64, %s65
      %p77 = scmp.eq.s32.totalorder %s27, 5
      %p78 = por %p76, %p77
      %p80 = scmp.ne.s32.totalorder %s65, %s79
      %p81 = scmp.eq.s32.totalorder %s27, 0
      %p82 = por %p80, %p81
      %s84 = sadd.s32 %s83, 1
      %p87 = scmp.eq.s32.totalorder %s21, 5
      %p88 = scmp.ne.s32.totalorder %s83, %s85
      %p89 = scmp.eq.s32.totalorder %s21, 0
      %p90 = por %p88, %p89
      %p91 = scmp.ne.s32.totalorder %s83, %s85
      %p92 = scmp.eq.s32.totalorder %s26, 5
      %p93 = por %p91, %p92
      %p94 = scmp.ne.s32.totalorder %s85, %s86
      %p95 = scmp.eq.s32.totalorder %s26, 0
      %p96 = por %p94, %p95
      %p97 = scmp.ne.s32.totalorder %s85, %s86
      %p98 = scmp.eq.s32.totalorder %s27, 5
      %p99 = por %p97, %p98
      %p101 = scmp.ne.s32.totalorder %s86, %s100
      %p102 = scmp.eq.s32.totalorder %s27, 0
      %p103 = por %p101, %p102
      %s104 = ssub.s32 %s28, %s40
      %p105 = scmp.eq.s32.totalorder %s104, 0
      %s107 = sadd.s32 %s106, 1
      %s108 = scalar_select %p105, %s106, %s107
      %p111 = pneg %p105
      %p112 = scmp.eq.s32.totalorder %s21, 5
      %p113 = por %p111, %p112
      %p114 = scmp.ne.s32.totalorder %s106, %s109
      %p115 = scmp.eq.s32.totalorder %s21, 0
      %p116 = por %p114, %p115
      %p117 = scmp.ne.s32.totalorder %s106, %s109
      %p118 = scmp.eq.s32.totalorder %s26, 5
      %p119 = por %p117, %p118
      %p120 = scmp.ne.s32.totalorder %s109, %s110
      %p121 = scmp.eq.s32.totalorder %s26, 0
      %p122 = por %p120, %p121
      %p123 = scmp.ne.s32.totalorder %s109, %s110
      %p124 = scmp.eq.s32.totalorder %s27, 5
      %p125 = por %p123, %p124
      %p127 = scmp.ne.s32.totalorder %s110, %s126
      %p128 = scmp.eq.s32.totalorder %s27, 0
      %p129 = por %p127, %p128
      %s130 = ssub.s32 %s28, %s40
      %s131 = ssub.s32 %s29, %s36
      %s132 = sor.u32 %s130, %s131
      %p133 = scmp.eq.s32.totalorder %s132, 0
      %s135 = sadd.s32 %s134, 1
      %s136 = scalar_select %p133, %s134, %s135
      %p139 = pneg %p133
      %p140 = scmp.eq.s32.totalorder %s21, 5
      %p141 = por %p139, %p140
      %p142 = scmp.ne.s32.totalorder %s134, %s137
      %p143 = scmp.eq.s32.totalorder %s21, 0
      %p144 = por %p142, %p143
      %p145 = scmp.ne.s32.totalorder %s134, %s137
      %p146 = scmp.eq.s32.totalorder %s26, 5
      %p147 = por %p145, %p146
      %p148 = scmp.ne.s32.totalorder %s137, %s138
      %p149 = scmp.eq.s32.totalorder %s26, 0
      %p150 = por %p148, %p149
      %p151 = scmp.ne.s32.totalorder %s137, %s138
      %p152 = scmp.eq.s32.totalorder %s27, 5
      %p153 = por %p151, %p152
      %p155 = scmp.ne.s32.totalorder %s138, %s154
      %p156 = scmp.eq.s32.totalorder %s27, 0
      %p157 = por %p155, %p156
      %s158 = ssub.s32 %s28, %s40
      %s159 = ssub.s32 %s29, %s36
      %s160 = sor.u32 %s158, %s159
      %p161 = scmp.eq.s32.totalorder %s160, 0
      %s163 = sadd.s32 %s162, 1
      %s164 = scalar_select %p161, %s162, %s163
      %p167 = pneg %p161
      %p168 = scmp.eq.s32.totalorder %s21, 5
      %p169 = por %p167, %p168
      %p170 = scmp.ne.s32.totalorder %s162, %s165
      %p171 = scmp.eq.s32.totalorder %s21, 0
      %p172 = por %p170, %p171
      %p173 = scmp.ne.s32.totalorder %s162, %s165
      %p174 = scmp.eq.s32.totalorder %s26, 5
      %p175 = por %p173, %p174
      %p176 = scmp.ne.s32.totalorder %s165, %s166
      %p177 = scmp.eq.s32.totalorder %s26, 0
      %p178 = por %p176, %p177
      %p179 = scmp.ne.s32.totalorder %s165, %s166
      %p180 = scmp.eq.s32.totalorder %s27, 5
      %p181 = por %p179, %p180
      %p183 = scmp.ne.s32.totalorder %s166, %s182
      %p184 = scmp.eq.s32.totalorder %s27, 0
      %p185 = por %p183, %p184
      %s186 = ssub.s32 %s28, %s40
      %p187 = scmp.eq.s32.totalorder %s186, 0
      %s189 = sadd.s32 %s188, 1
      %s190 = scalar_select %p187, %s188, %s189
      %p193 = pneg %p187
      %p194 = scmp.eq.s32.totalorder %s21, 5
      %p195 = por %p193, %p194
      %p196 = scmp.ne.s32.totalorder %s188, %s191
      %p197 = scmp.eq.s32.totalorder %s21, 0
      %p198 = por %p196, %p197
      %p199 = scmp.ne.s32.totalorder %s188, %s191
      %p200 = scmp.eq.s32.totalorder %s26, 5
      %p201 = por %p199, %p200
      %p202 = scmp.ne.s32.totalorder %s191, %s192
      %p203 = scmp.eq.s32.totalorder %s26, 0
      %p204 = por %p202, %p203
      %p205 = scmp.ne.s32.totalorder %s191, %s192
      %p206 = scmp.eq.s32.totalorder %s27, 5
      %p207 = por %p205, %p206
      %p209 = scmp.ne.s32.totalorder %s192, %s208
      %p210 = scmp.eq.s32.totalorder %s27, 0
      %p211 = por %p209, %p210
      %s212 = ssub.s32 %s28, %s40
      %p213 = scmp.eq.s32.totalorder %s212, 0
      %s215 = sadd.s32 %s214, 1
      %s216 = scalar_select %p213, %s214, %s215
      %p219 = pneg %p213
      %p220 = scmp.eq.s32.totalorder %s21, 5
      %p221 = por %p219, %p220
      %p222 = scmp.ne.s32.totalorder %s214, %s217
      %p223 = scmp.eq.s32.totalorder %s21, 0
      %p224 = por %p222, %p223
      %p225 = scmp.ne.s32.totalorder %s214, %s217
      %p226 = scmp.eq.s32.totalorder %s26, 5
      %p227 = por %p225, %p226
      %p228 = scmp.ne.s32.totalorder %s217, %s218
      %p229 = scmp.eq.s32.totalorder %s26, 0
      %p230 = por %p228, %p229
      %p231 = scmp.ne.s32.totalorder %s217, %s218
      %p232 = scmp.eq.s32.totalorder %s27, 5
      %p233 = por %p231, %p232
      %p235 = scmp.ne.s32.totalorder %s218, %s234
      %p236 = scmp.eq.s32.totalorder %s27, 0
      %p237 = por %p235, %p236
      %s238 = ssub.s32 %s28, %s40
      %p239 = scmp.eq.s32.totalorder %s238, 0
      %s241 = sadd.s32 %s240, 1
      %s242 = scalar_select %p239, %s240, %s241
      %p245 = pneg %p239
      %p246 = scmp.eq.s32.totalorder %s21, 5
      %p247 = por %p245, %p246
      %p248 = scmp.ne.s32.totalorder %s240, %s243
      %p249 = scmp.eq.s32.totalorder %s21, 0
      %p250 = por %p248, %p249
      %p251 = scmp.ne.s32.totalorder %s240, %s243
      %p252 = scmp.eq.s32.totalorder %s26, 5
      %p253 = por %p251, %p252
      %p254 = scmp.ne.s32.totalorder %s243, %s244
      %p255 = scmp.eq.s32.totalorder %s26, 0
      %p256 = por %p254, %p255
      %p257 = scmp.ne.s32.totalorder %s243, %s244
      %p258 = scmp.eq.s32.totalorder %s27, 5
      %p259 = por %p257, %p258
      %p261 = scmp.ne.s32.totalorder %s244, %s260
      %p262 = scmp.eq.s32.totalorder %s27, 0
      %p263 = por %p261, %p262
      %s264 = ssub.s32 %s28, %s40
      %p265 = scmp.eq.s32.totalorder %s264, 0
      %s267 = sadd.s32 %s266, 1
      %s268 = scalar_select %p265, %s266, %s267
      %p271 = pneg %p265
      %p272 = scmp.eq.s32.totalorder %s21, 5
      %p273 = por %p271, %p272
      %p274 = scmp.ne.s32.totalorder %s266, %s269
      %p275 = scmp.eq.s32.totalorder %s21, 0
      %p276 = por %p274, %p275
      %p277 = scmp.ne.s32.totalorder %s266, %s269
      %p278 = scmp.eq.s32.totalorder %s26, 5
      %p279 = por %p277, %p278
      %p280 = scmp.ne.s32.totalorder %s269, %s270
      %p281 = scmp.eq.s32.totalorder %s26, 0
      %p282 = por %p280, %p281
      %p283 = scmp.ne.s32.totalorder %s269, %s270
      %p284 = scmp.eq.s32.totalorder %s27, 5
      %p285 = por %p283, %p284
      %p287 = scmp.ne.s32.totalorder %s270, %s286
      %p288 = scmp.eq.s32.totalorder %s27, 0
      %p289 = por %p287, %p288
      %s291 = sadd.s32 %s290, 1
      %p294 = scmp.eq.s32.totalorder %s21, 5
      %p295 = scmp.ne.s32.totalorder %s290, %s292
      %p296 = scmp.eq.s32.totalorder %s21, 0
      %p297 = por %p295, %p296
      %p298 = scmp.ne.s32.totalorder %s290, %s292
      %p299 = scmp.eq.s32.totalorder %s26, 5
      %p300 = por %p298, %p299
      %p301 = scmp.ne.s32.totalorder %s292, %s293
      %p302 = scmp.eq.s32.totalorder %s26, 0
      %p303 = por %p301, %p302
      %p304 = scmp.ne.s32.totalorder %s292, %s293
      %p305 = scmp.eq.s32.totalorder %s27, 5
      %p306 = por %p304, %p305
      %p308 = scmp.ne.s32.totalorder %s293, %s307
      %p309 = scmp.eq.s32.totalorder %s27, 0
      %p310 = por %p308, %p309
      %s312 = sadd.s32 %s311, 1
      %p315 = scmp.eq.s32.totalorder %s21, 5
      %p316 = scmp.ne.s32.totalorder %s311, %s313
      %p317 = scmp.eq.s32.totalorder %s21, 0
      %p318 = por %p316, %p317
      %p319 = scmp.ne.s32.totalorder %s311, %s313
      %p320 = scmp.eq.s32.totalorder %s26, 5
      %p321 = por %p319, %p320
      %p322 = scmp.ne.s32.totalorder %s313, %s314
      %p323 = scmp.eq.s32.totalorder %s26, 0
      %p324 = por %p322, %p323
      %p325 = scmp.ne.s32.totalorder %s313, %s314
      %p326 = scmp.eq.s32.totalorder %s27, 5
      %p327 = por %p325, %p326
      %p329 = scmp.ne.s32.totalorder %s314, %s328
      %p330 = scmp.eq.s32.totalorder %s27, 0
      %p331 = por %p329, %p330
      %s333 = sadd.s32 %s332, 1
      %p336 = scmp.eq.s32.totalorder %s21, 5
      %p337 = scmp.ne.s32.totalorder %s332, %s334
      %p338 = scmp.eq.s32.totalorder %s21, 0
      %p339 = por %p337, %p338
      %p340 = scmp.ne.s32.totalorder %s332, %s334
      %p341 = scmp.eq.s32.totalorder %s26, 5
      %p342 = por %p340, %p341
      %p343 = scmp.ne.s32.totalorder %s334, %s335
      %p344 = scmp.eq.s32.totalorder %s26, 0
      %p345 = por %p343, %p344
      %p346 = scmp.ne.s32.totalorder %s334, %s335
      %p347 = scmp.eq.s32.totalorder %s27, 5
      %p348 = por %p346, %p347
      %p350 = scmp.ne.s32.totalorder %s335, %s349
      %p351 = scmp.eq.s32.totalorder %s27, 0
      %p352 = por %p350, %p351
      %p353 = scmp.le.s32.totalorder 1, %s21
      %p354 = scmp.lt.s32.totalorder %s21, 7
      %p355 = pnand %p353, %p354
      %p356 = pneg %p355
      // Predicated region
      $region9: #{conditional_denoiser_forward.3} parent=5 // pred_check
        _
      $region10: #{conditional_denoiser_forward.3} parent=5 // pred_check_branch
        %358 = sbr.rel (%p355) target = $region12
      $region11: #{conditional_denoiser_forward.3} parent=5 // pred_region
        %s359 = ssub.s32 %s21, 1
        // Predicated region
        $region13: #{conditional_denoiser_forward.3} parent=11 // pred_check
          %p360 = pneg %p54
        $region14: #{conditional_denoiser_forward.3} parent=11 // pred_check_branch
          %362 = sbr.rel (%p360) target = $region16
        $region15: #{conditional_denoiser_forward.3} parent=11 // pred_region
          _
        $region16: #{conditional_denoiser_forward.3} parent=11 // pred_fallthru
          _
        // Predicated region
        $region17: #{conditional_denoiser_forward.3} parent=11 // pred_check
          %p363 = pneg %p75
        $region18: #{conditional_denoiser_forward.3} parent=11 // pred_check_branch
          %365 = sbr.rel (%p363) target = $region20
        $region19: #{conditional_denoiser_forward.3} parent=11 // pred_region
          %s367 = ssub.s32 512, 512
          %368 = vsyncadd [#allocation4], %s367
          %s369 = sshll.u32 [#allocation3], 4
          %s370 = int_to_ptr.vmem [resolvable:$true] %s369
          %375 = dma.hbm_to_vmem [thread:$0]  %s1, 512, %s370, [#allocation4], 128, 128, 8
        $region20: #{conditional_denoiser_forward.3} parent=11 // pred_fallthru
          _
        // Predicated region
        $region21: #{conditional_denoiser_forward.3} parent=11 // pred_check
          %p376 = pneg %p96
        $region22: #{conditional_denoiser_forward.3} parent=11 // pred_check_branch
          %378 = sbr.rel (%p376) target = $region24
        $region23: #{conditional_denoiser_forward.3} parent=11 // pred_region
          %s380 = ssub.s32 512, 512
          %381 = vsyncadd [#allocation6], %s380
          %s382 = sshll.u32 [#allocation5], 4
          %s383 = int_to_ptr.vmem [resolvable:$true] %s382
          %388 = dma.hbm_to_vmem [thread:$0]  %s2, 512, %s383, [#allocation6], 128, 128, 8
        $region24: #{conditional_denoiser_forward.3} parent=11 // pred_fallthru
          _
        // Predicated region
        $region25: #{conditional_denoiser_forward.3} parent=11 // pred_check
          %p389 = pneg %p303
        $region26: #{conditional_denoiser_forward.3} parent=11 // pred_check_branch
          %391 = sbr.rel (%p389) target = $region28
        $region27: #{conditional_denoiser_forward.3} parent=11 // pred_region
          %s393 = ssub.s32 64, 64
          %394 = vsyncadd [#allocation6], %s393
          %s396 = sshll.u32 [#allocation13], 4
          %s397 = int_to_ptr.vmem [resolvable:$true] %s396
          %399 = dma.hbm_to_vmem [thread:$0]  %s10, 64, %s397, [#allocation6]
        $region28: #{conditional_denoiser_forward.3} parent=11 // pred_fallthru
          _
        // Predicated region
        $region29: #{conditional_denoiser_forward.3} parent=11 // pred_check
          %p400 = pneg %p324
        $region30: #{conditional_denoiser_forward.3} parent=11 // pred_check_branch
          %402 = sbr.rel (%p400) target = $region32
        $region31: #{conditional_denoiser_forward.3} parent=11 // pred_region
          %s404 = ssub.s32 64, 64
          %405 = vsyncadd [#allocation15], %s404
          %s407 = sshll.u32 [#allocation14], 4
          %s408 = int_to_ptr.vmem [resolvable:$true] %s407
          %410 = dma.hbm_to_vmem [thread:$0]  %s11, 64, %s408, [#allocation15]
        $region32: #{conditional_denoiser_forward.3} parent=11 // pred_fallthru
          _
      $region12: #{conditional_denoiser_forward.3} parent=5 // pred_fallthru
        _
      %p411 = scmp.lt.s32.totalorder %s21, 6
      // Predicated region
      $region33: #{conditional_denoiser_forward.3} parent=5 // pred_check
        %p412 = pneg %p411
      $region34: #{conditional_denoiser_forward.3} parent=5 // pred_check_branch
        %414 = sbr.rel (%p412) target = $region36
      $region35: #{conditional_denoiser_forward.3} parent=5 // pred_region
        // Predicated region
        $region37: #{conditional_denoiser_forward.3} parent=35 // pred_check
          %p415 = pneg %p116
        $region38: #{conditional_denoiser_forward.3} parent=35 // pred_check_branch
          %417 = sbr.rel (%p415) target = $region40
        $region39: #{conditional_denoiser_forward.3} parent=35 // pred_region
          %p418 = scmp.lt.s32.totalorder %s28, 5
          %s419 = scalar_select %p418, %s28, 5
          %s420 = smul.addr %s419, 32
          %s421 = smul.addr %s420, 2
          %s422 = scalar_lea.vmem %s3, %s421
        $region40: #{conditional_denoiser_forward.3} parent=35 // pred_fallthru
          _
        // Predicated region
        $region41: #{conditional_denoiser_forward.3} parent=35 // pred_check
          %p423 = pneg %p144
        $region42: #{conditional_denoiser_forward.3} parent=35 // pred_check_branch
          %425 = sbr.rel (%p423) target = $region44
        $region43: #{conditional_denoiser_forward.3} parent=35 // pred_region
          %s426 = sand.u32 %s21, 1
          %s427 = scalar_lea.sflag [#allocation4], %s426
          %s428 = sand.u32 %s134, 1
          %s429 = smul.addr %s428, 4096
          %s430 = scalar_lea.vmem [#allocation7], %s429
          %s431 = smul.u32 32, %s29
          %s433 = ssub.s32 65536, 65536
          %434 = vsyncadd %s427, %s433
          %s435 = smul.addr %s431, 16
          %s436 = smul.addr %s28, 512
          %s437 = sadd.s32 %s435, %s436
          %s438 = smul.addr %s437, 128
          %s439 = scalar_lea.hbm %s4, %s438
          %s440 = sshll.u32 %s430, 4
          %s441 = int_to_ptr.vmem [resolvable:$true] %s440
          %446 = dma.hbm_to_vmem [thread:$0]  %s439, 65536, %s441, %s427, 128, 128, 8
        $region44: #{conditional_denoiser_forward.3} parent=35 // pred_fallthru
          _
        // Predicated region
        $region45: #{conditional_denoiser_forward.3} parent=35 // pred_check
          %p447 = pneg %p172
        $region46: #{conditional_denoiser_forward.3} parent=35 // pred_check_branch
          %449 = sbr.rel (%p447) target = $region48
        $region47: #{conditional_denoiser_forward.3} parent=35 // pred_region
          %s450 = sand.u32 %s21, 1
          %s451 = scalar_lea.sflag [#allocation4], %s450
          %s452 = sand.u32 %s162, 1
          %s453 = smul.addr %s452, 32
          %s454 = scalar_lea.vmem [#allocation8], %s453
          %s455 = smul.u32 32, %s29
          %s457 = ssub.s32 512, 512
          %458 = vsyncadd %s451, %s457
          %s459 = smul.addr %s28, 32
          %s460 = sadd.s32 %s455, %s459
          %s461 = smul.addr %s460, 16
          %s462 = scalar_lea.hbm %s5, %s461
          %s463 = sshll.u32 %s454, 4
          %s464 = int_to_ptr.vmem [resolvable:$true] %s463
          %469 = dma.hbm_to_vmem [thread:$0]  %s462, 512, %s464, %s451, 16, 16, 1
        $region48: #{conditional_denoiser_forward.3} parent=35 // pred_fallthru
          _
        // Predicated region
        $region49: #{conditional_denoiser_forward.3} parent=35 // pred_check
          %p470 = pneg %p198
        $region50: #{conditional_denoiser_forward.3} parent=35 // pred_check_branch
          %472 = sbr.rel (%p470) target = $region52
        $region51: #{conditional_denoiser_forward.3} parent=35 // pred_region
          %s473 = sand.u32 %s21, 1
          %s474 = scalar_lea.sflag [#allocation4], %s473
          %s475 = sand.u32 %s188, 1
          %s476 = smul.addr %s475, 64
          %s477 = scalar_lea.vmem [#allocation9], %s476
          %s479 = ssub.s32 1024, 1024
          %480 = vsyncadd %s474, %s479
          %s481 = smul.addr %s28, 8
          %s482 = smul.addr %s481, 128
          %s483 = scalar_lea.hbm %s6, %s482
          %s484 = sshll.u32 %s477, 4
          %s485 = int_to_ptr.vmem [resolvable:$true] %s484
          %490 = dma.hbm_to_vmem [thread:$0]  %s483, 1024, %s485, %s474, 128, 128, 8
        $region52: #{conditional_denoiser_forward.3} parent=35 // pred_fallthru
          _
        // Predicated region
        $region53: #{conditional_denoiser_forward.3} parent=35 // pred_check
          %p491 = pneg %p224
        $region54: #{conditional_denoiser_forward.3} parent=35 // pred_check_branch
          %493 = sbr.rel (%p491) target = $region56
        $region55: #{conditional_denoiser_forward.3} parent=35 // pred_region
          %s494 = sand.u32 %s21, 1
          %s495 = scalar_lea.sflag [#allocation4], %s494
          %s496 = sand.u32 %s214, 1
          %s497 = smul.addr %s496, 64
          %s498 = scalar_lea.vmem [#allocation10], %s497
          %s500 = ssub.s32 1024, 1024
          %501 = vsyncadd %s495, %s500
          %s502 = smul.addr %s28, 8
          %s503 = smul.addr %s502, 128
          %s504 = scalar_lea.hbm %s7, %s503
          %s505 = sshll.u32 %s498, 4
          %s506 = int_to_ptr.vmem [resolvable:$true] %s505
          %511 = dma.hbm_to_vmem [thread:$0]  %s504, 1024, %s506, %s495, 128, 128, 8
        $region56: #{conditional_denoiser_forward.3} parent=35 // pred_fallthru
          _
        // Predicated region
        $region57: #{conditional_denoiser_forward.3} parent=35 // pred_check
          %p512 = pneg %p250
        $region58: #{conditional_denoiser_forward.3} parent=35 // pred_check_branch
          %514 = sbr.rel (%p512) target = $region60
        $region59: #{conditional_denoiser_forward.3} parent=35 // pred_region
          %s515 = sand.u32 %s21, 1
          %s516 = scalar_lea.sflag [#allocation4], %s515
          %s517 = sand.u32 %s240, 1
          %s518 = smul.addr %s517, 32
          %s519 = scalar_lea.vmem [#allocation11], %s518
          %s521 = ssub.s32 512, 512
          %522 = vsyncadd %s516, %s521
          %s523 = smul.addr %s28, 4
          %s524 = smul.addr %s523, 128
          %s525 = scalar_lea.hbm %s8, %s524
          %s526 = sshll.u32 %s519, 4
          %s527 = int_to_ptr.vmem [resolvable:$true] %s526
          %532 = dma.hbm_to_vmem [thread:$0]  %s525, 512, %s527, %s516, 128, 128, 8
        $region60: #{conditional_denoiser_forward.3} parent=35 // pred_fallthru
          _
        // Predicated region
        $region61: #{conditional_denoiser_forward.3} parent=35 // pred_check
          %p533 = pneg %p276
        $region62: #{conditional_denoiser_forward.3} parent=35 // pred_check_branch
          %535 = sbr.rel (%p533) target = $region64
        $region63: #{conditional_denoiser_forward.3} parent=35 // pred_region
          %s536 = sand.u32 %s21, 1
          %s537 = scalar_lea.sflag [#allocation4], %s536
          %s538 = sand.u32 %s266, 1
          %s539 = smul.addr %s538, 32
          %s540 = scalar_lea.vmem [#allocation12], %s539
          %s542 = ssub.s32 512, 512
          %543 = vsyncadd %s537, %s542
          %s544 = smul.addr %s28, 4
          %s545 = smul.addr %s544, 128
          %s546 = scalar_lea.hbm %s9, %s545
          %s547 = sshll.u32 %s540, 4
          %s548 = int_to_ptr.vmem [resolvable:$true] %s547
          %553 = dma.hbm_to_vmem [thread:$0]  %s546, 512, %s548, %s537, 128, 128, 8
        $region64: #{conditional_denoiser_forward.3} parent=35 // pred_fallthru
          _
      $region36: #{conditional_denoiser_forward.3} parent=5 // pred_fallthru
        _
      %p554 = scmp.le.s32.totalorder 1, %s21
      %p555 = scmp.lt.s32.totalorder %s21, 7
      %p556 = pnand %p554, %p555
      %p557 = pneg %p556
      // Predicated region
      $region65: #{conditional_denoiser_forward.3} parent=5 // pred_check
        _
      $region66: #{conditional_denoiser_forward.3} parent=5 // pred_check_branch
        %559 = sbr.rel (%p556) target = $region68
      $region67: #{conditional_denoiser_forward.3} parent=5 // pred_region
        %s560 = ssub.s32 %s21, 1
        // Predicated region
        $region69: #{conditional_denoiser_forward.3} parent=67 // pred_check
          %p561 = pneg %p75
        $region70: #{conditional_denoiser_forward.3} parent=67 // pred_check_branch
          %563 = sbr.rel (%p561) target = $region72
        $region71: #{conditional_denoiser_forward.3} parent=67 // pred_region
          %564 = dma.done [#allocation4], 512
        $region72: #{conditional_denoiser_forward.3} parent=67 // pred_fallthru
          _
        // Predicated region
        $region73: #{conditional_denoiser_forward.3} parent=67 // pred_check
          %p565 = pneg %p96
        $region74: #{conditional_denoiser_forward.3} parent=67 // pred_check_branch
          %567 = sbr.rel (%p565) target = $region76
        $region75: #{conditional_denoiser_forward.3} parent=67 // pred_region
          %568 = dma.done [#allocation6], 512
        $region76: #{conditional_denoiser_forward.3} parent=67 // pred_fallthru
          _
        %s569 = sand.u32 %s26, 1
        %s570 = scalar_lea.sflag [#allocation4], %s569
        %s571 = sand.u32 %s137, 1
        %s572 = smul.addr %s571, 4096
        %s573 = scalar_lea.vmem [#allocation7], %s572
        // Predicated region
        $region77: #{conditional_denoiser_forward.3} parent=67 // pred_check
          %p574 = pneg %p150
        $region78: #{conditional_denoiser_forward.3} parent=67 // pred_check_branch
          %576 = sbr.rel (%p574) target = $region80
        $region79: #{conditional_denoiser_forward.3} parent=67 // pred_region
          %577 = dma.done %s570, 65536
        $region80: #{conditional_denoiser_forward.3} parent=67 // pred_fallthru
          _
        %s578 = sand.u32 %s26, 1
        %s579 = scalar_lea.sflag [#allocation4], %s578
        %s580 = sand.u32 %s165, 1
        %s581 = smul.addr %s580, 32
        %s582 = scalar_lea.vmem [#allocation8], %s581
        // Predicated region
        $region81: #{conditional_denoiser_forward.3} parent=67 // pred_check
          %p583 = pneg %p178
        $region82: #{conditional_denoiser_forward.3} parent=67 // pred_check_branch
          %585 = sbr.rel (%p583) target = $region84
        $region83: #{conditional_denoiser_forward.3} parent=67 // pred_region
          %586 = dma.done %s579, 512
        $region84: #{conditional_denoiser_forward.3} parent=67 // pred_fallthru
          _
        %s587 = sand.u32 %s26, 1
        %s588 = scalar_lea.sflag [#allocation4], %s587
        %s589 = sand.u32 %s191, 1
        %s590 = smul.addr %s589, 64
        %s591 = scalar_lea.vmem [#allocation9], %s590
        // Predicated region
        $region85: #{conditional_denoiser_forward.3} parent=67 // pred_check
          %p592 = pneg %p204
        $region86: #{conditional_denoiser_forward.3} parent=67 // pred_check_branch
          %594 = sbr.rel (%p592) target = $region88
        $region87: #{conditional_denoiser_forward.3} parent=67 // pred_region
          %595 = dma.done %s588, 1024
        $region88: #{conditional_denoiser_forward.3} parent=67 // pred_fallthru
          _
        %s596 = sand.u32 %s26, 1
        %s597 = scalar_lea.sflag [#allocation4], %s596
        %s598 = sand.u32 %s217, 1
        %s599 = smul.addr %s598, 64
        %s600 = scalar_lea.vmem [#allocation10], %s599
        // Predicated region
        $region89: #{conditional_denoiser_forward.3} parent=67 // pred_check
          %p601 = pneg %p230
        $region90: #{conditional_denoiser_forward.3} parent=67 // pred_check_branch
          %603 = sbr.rel (%p601) target = $region92
        $region91: #{conditional_denoiser_forward.3} parent=67 // pred_region
          %604 = dma.done %s597, 1024
        $region92: #{conditional_denoiser_forward.3} parent=67 // pred_fallthru
          _
        %s605 = sand.u32 %s26, 1
        %s606 = scalar_lea.sflag [#allocation4], %s605
        %s607 = sand.u32 %s243, 1
        %s608 = smul.addr %s607, 32
        %s609 = scalar_lea.vmem [#allocation11], %s608
        // Predicated region
        $region93: #{conditional_denoiser_forward.3} parent=67 // pred_check
          %p610 = pneg %p256
        $region94: #{conditional_denoiser_forward.3} parent=67 // pred_check_branch
          %612 = sbr.rel (%p610) target = $region96
        $region95: #{conditional_denoiser_forward.3} parent=67 // pred_region
          %613 = dma.done %s606, 512
        $region96: #{conditional_denoiser_forward.3} parent=67 // pred_fallthru
          _
        %s614 = sand.u32 %s26, 1
        %s615 = scalar_lea.sflag [#allocation4], %s614
        %s616 = sand.u32 %s269, 1
        %s617 = smul.addr %s616, 32
        %s618 = scalar_lea.vmem [#allocation12], %s617
        // Predicated region
        $region97: #{conditional_denoiser_forward.3} parent=67 // pred_check
          %p619 = pneg %p282
        $region98: #{conditional_denoiser_forward.3} parent=67 // pred_check_branch
          %621 = sbr.rel (%p619) target = $region100
        $region99: #{conditional_denoiser_forward.3} parent=67 // pred_region
          %622 = dma.done %s615, 512
        $region100: #{conditional_denoiser_forward.3} parent=67 // pred_fallthru
          _
        // Predicated region
        $region101: #{conditional_denoiser_forward.3} parent=67 // pred_check
          %p623 = pneg %p303
        $region102: #{conditional_denoiser_forward.3} parent=67 // pred_check_branch
          %625 = sbr.rel (%p623) target = $region104
        $region103: #{conditional_denoiser_forward.3} parent=67 // pred_region
          %626 = dma.done [#allocation6], 64
        $region104: #{conditional_denoiser_forward.3} parent=67 // pred_fallthru
          _
        // Predicated region
        $region105: #{conditional_denoiser_forward.3} parent=67 // pred_check
          %p627 = pneg %p324
        $region106: #{conditional_denoiser_forward.3} parent=67 // pred_check_branch
          %629 = sbr.rel (%p627) target = $region108
        $region107: #{conditional_denoiser_forward.3} parent=67 // pred_region
          %630 = dma.done [#allocation15], 64
        $region108: #{conditional_denoiser_forward.3} parent=67 // pred_fallthru
          _
        %p631 = pneg %p54
        %p632 = pneg %p51
        %p633 = pneg %p75
        %p634 = pneg %p72
        %p635 = pneg %p96
        %p636 = pneg %p93
        %p637 = scmp.lt.s32.totalorder %s30, 5
        %s638 = scalar_select %p637, %s30, 5
        %s639 = smul.addr %s638, 32
        %s640 = smul.addr %s639, 2
        %s641 = scalar_lea.vmem %s3, %s640
        %p642 = pneg %p122
        %p643 = pneg %p119
        %s644 = sand.u32 %s26, 1
        %s645 = scalar_lea.sflag [#allocation4], %s644
        %s646 = sand.u32 %s137, 1
        %s647 = smul.addr %s646, 4096
        %s648 = scalar_lea.vmem [#allocation7], %s647
        %p649 = pneg %p150
        %p650 = pneg %p147
        %s651 = sand.u32 %s26, 1
        %s652 = scalar_lea.sflag [#allocation4], %s651
        %s653 = sand.u32 %s165, 1
        %s654 = smul.addr %s653, 32
        %s655 = scalar_lea.vmem [#allocation8], %s654
        %p656 = pneg %p178
        %p657 = pneg %p175
        %s658 = sand.u32 %s26, 1
        %s659 = scalar_lea.sflag [#allocation4], %s658
        %s660 = sand.u32 %s191, 1
        %s661 = smul.addr %s660, 64
        %s662 = scalar_lea.vmem [#allocation9], %s661
        %p663 = pneg %p204
        %p664 = pneg %p201
        %s665 = sand.u32 %s26, 1
        %s666 = scalar_lea.sflag [#allocation4], %s665
        %s667 = sand.u32 %s217, 1
        %s668 = smul.addr %s667, 64
        %s669 = scalar_lea.vmem [#allocation10], %s668
        %p670 = pneg %p230
        %p671 = pneg %p227
        %s672 = sand.u32 %s26, 1
        %s673 = scalar_lea.sflag [#allocation4], %s672
        %s674 = sand.u32 %s243, 1
        %s675 = smul.addr %s674, 32
        %s676 = scalar_lea.vmem [#allocation11], %s675
        %p677 = pneg %p256
        %p678 = pneg %p253
        %s679 = sand.u32 %s26, 1
        %s680 = scalar_lea.sflag [#allocation4], %s679
        %s681 = sand.u32 %s269, 1
        %s682 = smul.addr %s681, 32
        %s683 = scalar_lea.vmem [#allocation12], %s682
        %p684 = pneg %p282
        %p685 = pneg %p279
        %p686 = pneg %p303
        %p687 = pneg %p300
        %p688 = pneg %p324
        %p689 = pneg %p321
        %p690 = pneg %p345
        %p691 = pneg %p342
        %p692 = scmp.lt.s32.totalorder %s30, 5
        %s693 = scalar_select %p692, %s30, 5
        %s694 = smul.addr %s693, 32
        %s695 = smul.addr %s694, 2
        %s696 = scalar_lea.vmem %s3, %s695
        %s697 = smul.u32 32, %s31
        %s698 = smul.u32 32, %s31
        %p699 = scmp.eq.s32.totalorder %s30, 0
        %p700 = scmp.eq.s32.totalorder %s31, 0
        %p701 = pnand %p699, %p700
        %p702 = pneg %p701
        // Predicated region
        $region109: #{conditional_denoiser_forward.3} parent=67 // pred_check
          _
        $region110: #{conditional_denoiser_forward.3} parent=67 // pred_check_branch
          %704 = sbr.rel (%p701) target = $region112
        $region111: #{conditional_denoiser_forward.3} parent=67 // pred_region
          %v705 = vld [vmem:[#allocation3] sm:$0xff]
          %v706 = vld [vmem:[#allocation3 + $0x8] sm:$0xff]
          %v707 = vld [vmem:[#allocation3 + $0x10] sm:$0xff]
          %v708 = vld [vmem:[#allocation3 + $0x18] sm:$0xff]
          %v709 = vld [vmem:[%s0] sm:$0x1]
          %v710 = vld [vmem:[%s0 + $0x2] sm:$0x1]
          %v711 = vld [vmem:[%s0 + $0x4] sm:$0x1]
          %v712 = vld [vmem:[%s0 + $0x6] sm:$0x1]
          %v713 = vld [vmem:[#allocation5] sm:$0xff]
          %v714 = vld [vmem:[#allocation5 + $0x8] sm:$0xff]
          %v715 = vld [vmem:[#allocation5 + $0x10] sm:$0xff]
          %v716 = vld [vmem:[#allocation5 + $0x18] sm:$0xff]
          %718 = vset.pattern.permute.xlu0 0
          %719 = vperm.xlu0 %718, %v713
          %v720 = vpop.permute.xlu0 %719
          %723 = vset.pattern.permute.xlu0 0
          %724 = vperm.xlu0 %723, %v714
          %v725 = vpop.permute.xlu0 %724
          %728 = vset.pattern.permute.xlu0 0
          %729 = vperm.xlu0 %728, %v715
          %v730 = vpop.permute.xlu0 %729
          %733 = vset.pattern.permute.xlu0 0
          %734 = vperm.xlu0 %733, %v716
          %v735 = vpop.permute.xlu0 %734
          %v741 = vrot.slane %v710, 7
          %vm742 = vcmask 1041409
          %v743 = vsel %vm742, %v741, %v709
          %v744 = vrot.slane %v711, 6
          %vm745 = vcmask 1042434
          %v746 = vsel %vm745, %v744, %v743
          %v747 = vrot.slane %v712, 5
          %vm748 = vcmask 1043459
          %v749 = vsel %vm748, %v747, %v746
          %vm750 = vcmask 31744
          %v752 = vsel %vm750, %v705, 0
          %v755 = vsel %vm750, %v706, 0
          %v758 = vsel %vm750, %v707, 0
          %v761 = vsel %vm750, %v708, 0
          %vm763 = vcmask 1043456
          %v764 = vsel %vm763, %v749, 0
          %766 = vmatprep.subr.mxu0 0.0
          %767 = vmatpush1.msra.mxu0 0.0
          %768 = vmatprep.subr.mxu0 0.0
          %769 = vmatpush1.msra.mxu0 0.0
          %770 = vmatprep.subr.mxu0 0.0
          %771 = vmatpush1.msra.mxu0 0.0
          %772 = vmatprep.subr.mxu0 0.0
          %773 = vmatpush1.msra.mxu0 0.0
          %774 = vmatprep.subr.mxu0 0.0
          %775 = vmatpush1.msra.mxu0 0.0
          %776 = vmatprep.subr.mxu0 0.0
          %777 = vmatpush1.msra.mxu0 0.0
          %778 = vmatprep.subr.mxu0 0.0
          %779 = vmatpush1.msra.mxu0 0.0
          %780 = vmatprep.subr.mxu0 0.0
          %781 = vmatpush1.msra.mxu0 0.0
          %782 = vmatprep.subr.mxu0 0.0
          %783 = vmatpush1.msra.mxu0 0.0
          %784 = vmatprep.subr.mxu0 0.0
          %785 = vmatpush1.msra.mxu0 0.0
          %786 = vmatprep.subr.mxu0 0.0
          %787 = vmatpush1.msra.mxu0 0.0
          %788 = vmatprep.subr.mxu0 0.0
          %789 = vmatpush1.msra.mxu0 0.0
          %790 = vmatprep.subr.mxu0 0.0
          %791 = vmatpush1.msra.mxu0 0.0
          %792 = vmatprep.subr.mxu0 0.0
          %793 = vmatpush1.msra.mxu0 0.0
          %794 = vmatprep.subr.mxu0 0.0
          %795 = vmatpush1.msra.mxu0 0.0
          %796 = vmatprep.subr.mxu0 0.0
          %797 = vmatpush1.msra.mxu0 %v764
          %798 = vmatprep.subr.mxu0 0.0
          %799 = vmatpush2.msra.mxu0 0.0
          %800 = vmatprep.subr.mxu0 0.0
          %801 = vmatpush2.msra.mxu0 0.0
          %802 = vmatprep.subr.mxu0 0.0
          %803 = vmatpush2.msra.mxu0 0.0
          %804 = vmatprep.subr.mxu0 0.0
          %805 = vmatpush2.msra.mxu0 0.0
          %806 = vmatprep.subr.mxu0 0.0
          %807 = vmatpush2.msra.mxu0 0.0
          %808 = vmatprep.subr.mxu0 0.0
          %809 = vmatpush2.msra.mxu0 0.0
          %810 = vmatprep.subr.mxu0 0.0
          %811 = vmatpush2.msra.mxu0 0.0
          %812 = vmatprep.subr.mxu0 0.0
          %813 = vmatpush2.msra.mxu0 0.0
          %814 = vmatprep.subr.mxu0 0.0
          %815 = vmatpush2.msra.mxu0 0.0
          %816 = vmatprep.subr.mxu0 0.0
          %817 = vmatpush2.msra.mxu0 0.0
          %818 = vmatprep.subr.mxu0 0.0
          %819 = vmatpush2.msra.mxu0 0.0
          %820 = vmatprep.subr.mxu0 0.0
          %821 = vmatpush2.msra.mxu0 0.0
          %822 = vmatprep.subr.mxu0 0.0
          %823 = vmatpush2.msra.mxu0 0.0
          %824 = vmatprep.subr.mxu0 0.0
          %825 = vmatpush2.msra.mxu0 0.0
          %826 = vmatprep.subr.mxu0 0.0
          %827 = vmatpush2.msra.mxu0 0.0
          %828 = vmatprep.subr.mxu0 0.0
          %829 = vmatpush2.msra.mxu0 0.0
          %830 = vmatprep.mubr.f32.mxu0 0.0
          %831 = vmatmul.mubr.f32.gmra.mxu0 %v752
          %v832 = vpop.f32.mrf.mxu0
          %v833 = vadd.f32 %v720, %v832
          %v834 = vpop.f32.mrf.mxu0
          %835 = vmatprep.mubr.f32.mxu0 0.0
          %836 = vmatmul.mubr.f32.gmra.mxu0 %v755
          %v837 = vpop.f32.mrf.mxu0
          %v838 = vadd.f32 %v725, %v837
          %v839 = vpop.f32.mrf.mxu0
          %840 = vmatprep.mubr.f32.mxu0 0.0
          %841 = vmatmul.mubr.f32.gmra.mxu0 %v758
          %v842 = vpop.f32.mrf.mxu0
          %v843 = vadd.f32 %v730, %v842
          %v844 = vpop.f32.mrf.mxu0
          %845 = vmatprep.mubr.f32.mxu0 0.0
          %846 = vmatmul.mubr.f32.gmra.mxu0 %v761
          %v847 = vpop.f32.mrf.mxu0
          %v848 = vadd.f32 %v735, %v847
          %v849 = vpop.f32.mrf.mxu0
          %850 = vdwg.mxu0
          %v855 = vcombine.high %v833, %v833
          %v857 = vunpack.c.l.s4 1966171168
          %v858 = vunpack.c.0.s8 %v857
          %v859 = vlaneseq
          %v860 = vshrl.u32 %v859, 7
          %v861 = vsub.s32 %v858, %v860
          %v862 = vrot.slane %v833, %v861
          %v864 = vunpack.c.l.s4 1966171168
          %v865 = vunpack.c.0.s8 %v864
          %v866 = vlaneseq
          %v867 = vshrl.u32 %v866, 7
          %v868 = vsub.s32 %v865, %v867
          %v869 = vrot.slane %v855, %v868
          %v870 = vcombine.high %v862, %v862
          %v871 = vcombine.high %v869, %v869
          %v873 = vunpack.c.l.s4 1966171168
          %v874 = vunpack.c.0.s8 %v873
          %v875 = vlaneseq
          %v876 = vshrl.u32 %v875, 7
          %v877 = vsub.s32 %v874, %v876
          %v878 = vrot.slane %v862, %v877
          %v880 = vunpack.c.l.s4 1966171168
          %v881 = vunpack.c.0.s8 %v880
          %v882 = vlaneseq
          %v883 = vshrl.u32 %v882, 7
          %v884 = vsub.s32 %v881, %v883
          %v885 = vrot.slane %v869, %v884
          %v887 = vunpack.c.l.s4 1966171168
          %v888 = vunpack.c.0.s8 %v887
          %v889 = vlaneseq
          %v890 = vshrl.u32 %v889, 7
          %v891 = vsub.s32 %v888, %v890
          %v892 = vrot.slane %v870, %v891
          %v894 = vunpack.c.l.s4 1966171168
          %v895 = vunpack.c.0.s8 %v894
          %v896 = vlaneseq
          %v897 = vshrl.u32 %v896, 7
          %v898 = vsub.s32 %v895, %v897
          %v899 = vrot.slane %v871, %v898
          %v900 = vcombine.high %v878, %v878
          %v901 = vcombine.high %v885, %v885
          %v902 = vcombine.high %v892, %v892
          %v903 = vcombine.high %v899, %v899
          %v904 = vcombine.high %v838, %v838
          %v906 = vunpack.c.l.s4 1966171168
          %v907 = vunpack.c.0.s8 %v906
          %v908 = vlaneseq
          %v909 = vshrl.u32 %v908, 7
          %v910 = vsub.s32 %v907, %v909
          %v911 = vrot.slane %v838, %v910
          %v913 = vunpack.c.l.s4 1966171168
          %v914 = vunpack.c.0.s8 %v913
          %v915 = vlaneseq
          %v916 = vshrl.u32 %v915, 7
          %v917 = vsub.s32 %v914, %v916
          %v918 = vrot.slane %v904, %v917
          %v919 = vcombine.high %v911, %v911
          %v920 = vcombine.high %v918, %v918
          %v922 = vunpack.c.l.s4 1966171168
          %v923 = vunpack.c.0.s8 %v922
          %v924 = vlaneseq
          %v925 = vshrl.u32 %v924, 7
          %v926 = vsub.s32 %v923, %v925
          %v927 = vrot.slane %v911, %v926
          %v929 = vunpack.c.l.s4 1966171168
          %v930 = vunpack.c.0.s8 %v929
          %v931 = vlaneseq
          %v932 = vshrl.u32 %v931, 7
          %v933 = vsub.s32 %v930, %v932
          %v934 = vrot.slane %v918, %v933
          %v936 = vunpack.c.l.s4 1966171168
          %v937 = vunpack.c.0.s8 %v936
          %v938 = vlaneseq
          %v939 = vshrl.u32 %v938, 7
          %v940 = vsub.s32 %v937, %v939
          %v941 = vrot.slane %v919, %v940
          %v943 = vunpack.c.l.s4 1966171168
          %v944 = vunpack.c.0.s8 %v943
          %v945 = vlaneseq
          %v946 = vshrl.u32 %v945, 7
          %v947 = vsub.s32 %v944, %v946
          %v948 = vrot.slane %v920, %v947
          %v949 = vcombine.high %v927, %v927
          %v950 = vcombine.high %v934, %v934
          %v951 = vcombine.high %v941, %v941
          %v952 = vcombine.high %v948, %v948
          %v953 = vcombine.high %v843, %v843
          %v955 = vunpack.c.l.s4 1966171168
          %v956 = vunpack.c.0.s8 %v955
          %v957 = vlaneseq
          %v958 = vshrl.u32 %v957, 7
          %v959 = vsub.s32 %v956, %v958
          %v960 = vrot.slane %v843, %v959
          %v962 = vunpack.c.l.s4 1966171168
          %v963 = vunpack.c.0.s8 %v962
          %v964 = vlaneseq
          %v965 = vshrl.u32 %v964, 7
          %v966 = vsub.s32 %v963, %v965
          %v967 = vrot.slane %v953, %v966
          %v968 = vcombine.high %v960, %v960
          %v969 = vcombine.high %v967, %v967
          %v971 = vunpack.c.l.s4 1966171168
          %v972 = vunpack.c.0.s8 %v971
          %v973 = vlaneseq
          %v974 = vshrl.u32 %v973, 7
          %v975 = vsub.s32 %v972, %v974
          %v976 = vrot.slane %v960, %v975
          %v978 = vunpack.c.l.s4 1966171168
          %v979 = vunpack.c.0.s8 %v978
          %v980 = vlaneseq
          %v981 = vshrl.u32 %v980, 7
          %v982 = vsub.s32 %v979, %v981
          %v983 = vrot.slane %v967, %v982
          %v985 = vunpack.c.l.s4 1966171168
          %v986 = vunpack.c.0.s8 %v985
          %v987 = vlaneseq
          %v988 = vshrl.u32 %v987, 7
          %v989 = vsub.s32 %v986, %v988
          %v990 = vrot.slane %v968, %v989
          %v992 = vunpack.c.l.s4 1966171168
          %v993 = vunpack.c.0.s8 %v992
          %v994 = vlaneseq
          %v995 = vshrl.u32 %v994, 7
          %v996 = vsub.s32 %v993, %v995
          %v997 = vrot.slane %v969, %v996
          %v998 = vcombine.high %v976, %v976
          %v999 = vcombine.high %v983, %v983
          %v1000 = vcombine.high %v990, %v990
          %v1001 = vcombine.high %v997, %v997
          %v1002 = vcombine.high %v848, %v848
          %v1004 = vunpack.c.l.s4 1966171168
          %v1005 = vunpack.c.0.s8 %v1004
          %v1006 = vlaneseq
          %v1007 = vshrl.u32 %v1006, 7
          %v1008 = vsub.s32 %v1005, %v1007
          %v1009 = vrot.slane %v848, %v1008
          %v1011 = vunpack.c.l.s4 1966171168
          %v1012 = vunpack.c.0.s8 %v1011
          %v1013 = vlaneseq
          %v1014 = vshrl.u32 %v1013, 7
          %v1015 = vsub.s32 %v1012, %v1014
          %v1016 = vrot.slane %v1002, %v1015
          %v1017 = vcombine.high %v1009, %v1009
          %v1018 = vcombine.high %v1016, %v1016
          %v1020 = vunpack.c.l.s4 1966171168
          %v1021 = vunpack.c.0.s8 %v1020
          %v1022 = vlaneseq
          %v1023 = vshrl.u32 %v1022, 7
          %v1024 = vsub.s32 %v1021, %v1023
          %v1025 = vrot.slane %v1009, %v1024
          %v1027 = vunpack.c.l.s4 1966171168
          %v1028 = vunpack.c.0.s8 %v1027
          %v1029 = vlaneseq
          %v1030 = vshrl.u32 %v1029, 7
          %v1031 = vsub.s32 %v1028, %v1030
          %v1032 = vrot.slane %v1016, %v1031
          %v1034 = vunpack.c.l.s4 1966171168
          %v1035 = vunpack.c.0.s8 %v1034
          %v1036 = vlaneseq
          %v1037 = vshrl.u32 %v1036, 7
          %v1038 = vsub.s32 %v1035, %v1037
          %v1039 = vrot.slane %v1017, %v1038
          %v1041 = vunpack.c.l.s4 1966171168
          %v1042 = vunpack.c.0.s8 %v1041
          %v1043 = vlaneseq
          %v1044 = vshrl.u32 %v1043, 7
          %v1045 = vsub.s32 %v1042, %v1044
          %v1046 = vrot.slane %v1018, %v1045
          %v1047 = vcombine.high %v1025, %v1025
          %v1048 = vcombine.high %v1032, %v1032
          %v1049 = vcombine.high %v1039, %v1039
          %v1050 = vcombine.high %v1046, %v1046
          %1083 = vst [vmem:[#allocation2] sm:$0x1] %v878
          %1084 = vst [vmem:[#allocation2 + $0x2] sm:$0x1] %v892
          %1085 = vst [vmem:[#allocation2 + $0x4] sm:$0x1] %v900
          %1086 = vst [vmem:[#allocation2 + $0x6] sm:$0x1] %v902
          %1087 = vst [vmem:[#allocation2 + $0x8] sm:$0x1] %v885
          %1088 = vst [vmem:[#allocation2 + $0xa] sm:$0x1] %v899
          %1089 = vst [vmem:[#allocation2 + $0xc] sm:$0x1] %v901
          %1090 = vst [vmem:[#allocation2 + $0xe] sm:$0x1] %v903
          %1091 = vst [vmem:[#allocation2 + $0x10] sm:$0x1] %v927
          %1092 = vst [vmem:[#allocation2 + $0x12] sm:$0x1] %v941
          %1093 = vst [vmem:[#allocation2 + $0x14] sm:$0x1] %v949
          %1094 = vst [vmem:[#allocation2 + $0x16] sm:$0x1] %v951
          %1095 = vst [vmem:[#allocation2 + $0x18] sm:$0x1] %v934
          %1096 = vst [vmem:[#allocation2 + $0x1a] sm:$0x1] %v948
          %1097 = vst [vmem:[#allocation2 + $0x1c] sm:$0x1] %v950
          %1098 = vst [vmem:[#allocation2 + $0x1e] sm:$0x1] %v952
          %1099 = vst [vmem:[#allocation2 + $0x20] sm:$0x1] %v976
          %1100 = vst [vmem:[#allocation2 + $0x22] sm:$0x1] %v990
          %1101 = vst [vmem:[#allocation2 + $0x24] sm:$0x1] %v998
          %1102 = vst [vmem:[#allocation2 + $0x26] sm:$0x1] %v1000
          %1103 = vst [vmem:[#allocation2 + $0x28] sm:$0x1] %v983
          %1104 = vst [vmem:[#allocation2 + $0x2a] sm:$0x1] %v997
          %1105 = vst [vmem:[#allocation2 + $0x2c] sm:$0x1] %v999
          %1106 = vst [vmem:[#allocation2 + $0x2e] sm:$0x1] %v1001
          %1107 = vst [vmem:[#allocation2 + $0x30] sm:$0x1] %v1025
          %1108 = vst [vmem:[#allocation2 + $0x32] sm:$0x1] %v1039
          %1109 = vst [vmem:[#allocation2 + $0x34] sm:$0x1] %v1047
          %1110 = vst [vmem:[#allocation2 + $0x36] sm:$0x1] %v1049
          %1111 = vst [vmem:[#allocation2 + $0x38] sm:$0x1] %v1032
          %1112 = vst [vmem:[#allocation2 + $0x3a] sm:$0x1] %v1046
          %1113 = vst [vmem:[#allocation2 + $0x3c] sm:$0x1] %v1048
          %1114 = vst [vmem:[#allocation2 + $0x3e] sm:$0x1] %v1050
          %v1115 = vld [vmem:[#allocation3] sm:$0xff]
          %v1116 = vld [vmem:[#allocation3 + $0x8] sm:$0xff]
          %v1117 = vld [vmem:[#allocation3 + $0x10] sm:$0xff]
          %v1118 = vld [vmem:[#allocation3 + $0x18] sm:$0xff]
          %v1119 = vld [vmem:[%s0 + $0x1] sm:$0x1]
          %v1120 = vld [vmem:[%s0 + $0x3] sm:$0x1]
          %v1121 = vld [vmem:[%s0 + $0x5] sm:$0x1]
          %v1122 = vld [vmem:[%s0 + $0x7] sm:$0x1]
          %v1123 = vld [vmem:[#allocation5] sm:$0xff]
          %v1124 = vld [vmem:[#allocation5 + $0x8] sm:$0xff]
          %v1125 = vld [vmem:[#allocation5 + $0x10] sm:$0xff]
          %v1126 = vld [vmem:[#allocation5 + $0x18] sm:$0xff]
          %1128 = vset.pattern.permute.xlu0 0
          %1129 = vperm.xlu0 %1128, %v1123
          %v1130 = vpop.permute.xlu0 %1129
          %1133 = vset.pattern.permute.xlu0 0
          %1134 = vperm.xlu0 %1133, %v1124
          %v1135 = vpop.permute.xlu0 %1134
          %1138 = vset.pattern.permute.xlu0 0
          %1139 = vperm.xlu0 %1138, %v1125
          %v1140 = vpop.permute.xlu0 %1139
          %1143 = vset.pattern.permute.xlu0 0
          %1144 = vperm.xlu0 %1143, %v1126
          %v1145 = vpop.permute.xlu0 %1144
          %v1151 = vrot.slane %v1120, 7
          %v1152 = vsel %vm742, %v1151, %v1119
          %v1153 = vrot.slane %v1121, 6
          %v1154 = vsel %vm745, %v1153, %v1152
          %v1155 = vrot.slane %v1122, 5
          %v1156 = vsel %vm748, %v1155, %v1154
          %v1158 = vsel %vm750, %v1115, 0
          %v1161 = vsel %vm750, %v1116, 0
          %v1164 = vsel %vm750, %v1117, 0
          %v1167 = vsel %vm750, %v1118, 0
          %v1169 = vsel %vm763, %v1156, 0
          %1171 = vmatprep.subr.mxu0 0.0
          %1172 = vmatpush1.msra.mxu0 0.0
          %1173 = vmatprep.subr.mxu0 0.0
          %1174 = vmatpush1.msra.mxu0 0.0
          %1175 = vmatprep.subr.mxu0 0.0
          %1176 = vmatpush1.msra.mxu0 0.0
          %1177 = vmatprep.subr.mxu0 0.0
          %1178 = vmatpush1.msra.mxu0 0.0
          %1179 = vmatprep.subr.mxu0 0.0
          %1180 = vmatpush1.msra.mxu0 0.0
          %1181 = vmatprep.subr.mxu0 0.0
          %1182 = vmatpush1.msra.mxu0 0.0
          %1183 = vmatprep.subr.mxu0 0.0
          %1184 = vmatpush1.msra.mxu0 0.0
          %1185 = vmatprep.subr.mxu0 0.0
          %1186 = vmatpush1.msra.mxu0 0.0
          %1187 = vmatprep.subr.mxu0 0.0
          %1188 = vmatpush1.msra.mxu0 0.0
          %1189 = vmatprep.subr.mxu0 0.0
          %1190 = vmatpush1.msra.mxu0 0.0
          %1191 = vmatprep.subr.mxu0 0.0
          %1192 = vmatpush1.msra.mxu0 0.0
          %1193 = vmatprep.subr.mxu0 0.0
          %1194 = vmatpush1.msra.mxu0 0.0
          %1195 = vmatprep.subr.mxu0 0.0
          %1196 = vmatpush1.msra.mxu0 0.0
          %1197 = vmatprep.subr.mxu0 0.0
          %1198 = vmatpush1.msra.mxu0 0.0
          %1199 = vmatprep.subr.mxu0 0.0
          %1200 = vmatpush1.msra.mxu0 0.0
          %1201 = vmatprep.subr.mxu0 0.0
          %1202 = vmatpush1.msra.mxu0 %v1169
          %1203 = vmatprep.subr.mxu0 0.0
          %1204 = vmatpush2.msra.mxu0 0.0
          %1205 = vmatprep.subr.mxu0 0.0
          %1206 = vmatpush2.msra.mxu0 0.0
          %1207 = vmatprep.subr.mxu0 0.0
          %1208 = vmatpush2.msra.mxu0 0.0
          %1209 = vmatprep.subr.mxu0 0.0
          %1210 = vmatpush2.msra.mxu0 0.0
          %1211 = vmatprep.subr.mxu0 0.0
          %1212 = vmatpush2.msra.mxu0 0.0
          %1213 = vmatprep.subr.mxu0 0.0
          %1214 = vmatpush2.msra.mxu0 0.0
          %1215 = vmatprep.subr.mxu0 0.0
          %1216 = vmatpush2.msra.mxu0 0.0
          %1217 = vmatprep.subr.mxu0 0.0
          %1218 = vmatpush2.msra.mxu0 0.0
          %1219 = vmatprep.subr.mxu0 0.0
          %1220 = vmatpush2.msra.mxu0 0.0
          %1221 = vmatprep.subr.mxu0 0.0
          %1222 = vmatpush2.msra.mxu0 0.0
          %1223 = vmatprep.subr.mxu0 0.0
          %1224 = vmatpush2.msra.mxu0 0.0
          %1225 = vmatprep.subr.mxu0 0.0
          %1226 = vmatpush2.msra.mxu0 0.0
          %1227 = vmatprep.subr.mxu0 0.0
          %1228 = vmatpush2.msra.mxu0 0.0
          %1229 = vmatprep.subr.mxu0 0.0
          %1230 = vmatpush2.msra.mxu0 0.0
          %1231 = vmatprep.subr.mxu0 0.0
          %1232 = vmatpush2.msra.mxu0 0.0
          %1233 = vmatprep.subr.mxu0 0.0
          %1234 = vmatpush2.msra.mxu0 0.0
          %1235 = vmatprep.mubr.f32.mxu0 0.0
          %1236 = vmatmul.mubr.f32.gmra.mxu0 %v1158
          %v1237 = vpop.f32.mrf.mxu0
          %v1238 = vadd.f32 %v1130, %v1237
          %v1239 = vpop.f32.mrf.mxu0
          %1240 = vmatprep.mubr.f32.mxu0 0.0
          %1241 = vmatmul.mubr.f32.gmra.mxu0 %v1161
          %v1242 = vpop.f32.mrf.mxu0
          %v1243 = vadd.f32 %v1135, %v1242
          %v1244 = vpop.f32.mrf.mxu0
          %1245 = vmatprep.mubr.f32.mxu0 0.0
          %1246 = vmatmul.mubr.f32.gmra.mxu0 %v1164
          %v1247 = vpop.f32.mrf.mxu0
          %v1248 = vadd.f32 %v1140, %v1247
          %v1249 = vpop.f32.mrf.mxu0
          %1250 = vmatprep.mubr.f32.mxu0 0.0
          %1251 = vmatmul.mubr.f32.gmra.mxu0 %v1167
          %v1252 = vpop.f32.mrf.mxu0
          %v1253 = vadd.f32 %v1145, %v1252
          %v1254 = vpop.f32.mrf.mxu0
          %1255 = vdwg.mxu0
          %v1260 = vcombine.high %v1238, %v1238
          %v1262 = vunpack.c.l.s4 1966171168
          %v1263 = vunpack.c.0.s8 %v1262
          %v1264 = vlaneseq
          %v1265 = vshrl.u32 %v1264, 7
          %v1266 = vsub.s32 %v1263, %v1265
          %v1267 = vrot.slane %v1238, %v1266
          %v1269 = vunpack.c.l.s4 1966171168
          %v1270 = vunpack.c.0.s8 %v1269
          %v1271 = vlaneseq
          %v1272 = vshrl.u32 %v1271, 7
          %v1273 = vsub.s32 %v1270, %v1272
          %v1274 = vrot.slane %v1260, %v1273
          %v1275 = vcombine.high %v1267, %v1267
          %v1276 = vcombine.high %v1274, %v1274
          %v1278 = vunpack.c.l.s4 1966171168
          %v1279 = vunpack.c.0.s8 %v1278
          %v1280 = vlaneseq
          %v1281 = vshrl.u32 %v1280, 7
          %v1282 = vsub.s32 %v1279, %v1281
          %v1283 = vrot.slane %v1267, %v1282
          %v1285 = vunpack.c.l.s4 1966171168
          %v1286 = vunpack.c.0.s8 %v1285
          %v1287 = vlaneseq
          %v1288 = vshrl.u32 %v1287, 7
          %v1289 = vsub.s32 %v1286, %v1288
          %v1290 = vrot.slane %v1274, %v1289
          %v1292 = vunpack.c.l.s4 1966171168
          %v1293 = vunpack.c.0.s8 %v1292
          %v1294 = vlaneseq
          %v1295 = vshrl.u32 %v1294, 7
          %v1296 = vsub.s32 %v1293, %v1295
          %v1297 = vrot.slane %v1275, %v1296
          %v1299 = vunpack.c.l.s4 1966171168
          %v1300 = vunpack.c.0.s8 %v1299
          %v1301 = vlaneseq
          %v1302 = vshrl.u32 %v1301, 7
          %v1303 = vsub.s32 %v1300, %v1302
          %v1304 = vrot.slane %v1276, %v1303
          %v1305 = vcombine.high %v1283, %v1283
          %v1306 = vcombine.high %v1290, %v1290
          %v1307 = vcombine.high %v1297, %v1297
          %v1308 = vcombine.high %v1304, %v1304
          %v1309 = vcombine.high %v1243, %v1243
          %v1311 = vunpack.c.l.s4 1966171168
          %v1312 = vunpack.c.0.s8 %v1311
          %v1313 = vlaneseq
          %v1314 = vshrl.u32 %v1313, 7
          %v1315 = vsub.s32 %v1312, %v1314
          %v1316 = vrot.slane %v1243, %v1315
          %v1318 = vunpack.c.l.s4 1966171168
          %v1319 = vunpack.c.0.s8 %v1318
          %v1320 = vlaneseq
          %v1321 = vshrl.u32 %v1320, 7
          %v1322 = vsub.s32 %v1319, %v1321
          %v1323 = vrot.slane %v1309, %v1322
          %v1324 = vcombine.high %v1316, %v1316
          %v1325 = vcombine.high %v1323, %v1323
          %v1327 = vunpack.c.l.s4 1966171168
          %v1328 = vunpack.c.0.s8 %v1327
          %v1329 = vlaneseq
          %v1330 = vshrl.u32 %v1329, 7
          %v1331 = vsub.s32 %v1328, %v1330
          %v1332 = vrot.slane %v1316, %v1331
          %v1334 = vunpack.c.l.s4 1966171168
          %v1335 = vunpack.c.0.s8 %v1334
          %v1336 = vlaneseq
          %v1337 = vshrl.u32 %v1336, 7
          %v1338 = vsub.s32 %v1335, %v1337
          %v1339 = vrot.slane %v1323, %v1338
          %v1341 = vunpack.c.l.s4 1966171168
          %v1342 = vunpack.c.0.s8 %v1341
          %v1343 = vlaneseq
          %v1344 = vshrl.u32 %v1343, 7
          %v1345 = vsub.s32 %v1342, %v1344
          %v1346 = vrot.slane %v1324, %v1345
          %v1348 = vunpack.c.l.s4 1966171168
          %v1349 = vunpack.c.0.s8 %v1348
          %v1350 = vlaneseq
          %v1351 = vshrl.u32 %v1350, 7
          %v1352 = vsub.s32 %v1349, %v1351
          %v1353 = vrot.slane %v1325, %v1352
          %v1354 = vcombine.high %v1332, %v1332
          %v1355 = vcombine.high %v1339, %v1339
          %v1356 = vcombine.high %v1346, %v1346
          %v1357 = vcombine.high %v1353, %v1353
          %v1358 = vcombine.high %v1248, %v1248
          %v1360 = vunpack.c.l.s4 1966171168
          %v1361 = vunpack.c.0.s8 %v1360
          %v1362 = vlaneseq
          %v1363 = vshrl.u32 %v1362, 7
          %v1364 = vsub.s32 %v1361, %v1363
          %v1365 = vrot.slane %v1248, %v1364
          %v1367 = vunpack.c.l.s4 1966171168
          %v1368 = vunpack.c.0.s8 %v1367
          %v1369 = vlaneseq
          %v1370 = vshrl.u32 %v1369, 7
          %v1371 = vsub.s32 %v1368, %v1370
          %v1372 = vrot.slane %v1358, %v1371
          %v1373 = vcombine.high %v1365, %v1365
          %v1374 = vcombine.high %v1372, %v1372
          %v1376 = vunpack.c.l.s4 1966171168
          %v1377 = vunpack.c.0.s8 %v1376
          %v1378 = vlaneseq
          %v1379 = vshrl.u32 %v1378, 7
          %v1380 = vsub.s32 %v1377, %v1379
          %v1381 = vrot.slane %v1365, %v1380
          %v1383 = vunpack.c.l.s4 1966171168
          %v1384 = vunpack.c.0.s8 %v1383
          %v1385 = vlaneseq
          %v1386 = vshrl.u32 %v1385, 7
          %v1387 = vsub.s32 %v1384, %v1386
          %v1388 = vrot.slane %v1372, %v1387
          %v1390 = vunpack.c.l.s4 1966171168
          %v1391 = vunpack.c.0.s8 %v1390
          %v1392 = vlaneseq
          %v1393 = vshrl.u32 %v1392, 7
          %v1394 = vsub.s32 %v1391, %v1393
          %v1395 = vrot.slane %v1373, %v1394
          %v1397 = vunpack.c.l.s4 1966171168
          %v1398 = vunpack.c.0.s8 %v1397
          %v1399 = vlaneseq
          %v1400 = vshrl.u32 %v1399, 7
          %v1401 = vsub.s32 %v1398, %v1400
          %v1402 = vrot.slane %v1374, %v1401
          %v1403 = vcombine.high %v1381, %v1381
          %v1404 = vcombine.high %v1388, %v1388
          %v1405 = vcombine.high %v1395, %v1395
          %v1406 = vcombine.high %v1402, %v1402
          %v1407 = vcombine.high %v1253, %v1253
          %v1409 = vunpack.c.l.s4 1966171168
          %v1410 = vunpack.c.0.s8 %v1409
          %v1411 = vlaneseq
          %v1412 = vshrl.u32 %v1411, 7
          %v1413 = vsub.s32 %v1410, %v1412
          %v1414 = vrot.slane %v1253, %v1413
          %v1416 = vunpack.c.l.s4 1966171168
          %v1417 = vunpack.c.0.s8 %v1416
          %v1418 = vlaneseq
          %v1419 = vshrl.u32 %v1418, 7
          %v1420 = vsub.s32 %v1417, %v1419
          %v1421 = vrot.slane %v1407, %v1420
          %v1422 = vcombine.high %v1414, %v1414
          %v1423 = vcombine.high %v1421, %v1421
          %v1425 = vunpack.c.l.s4 1966171168
          %v1426 = vunpack.c.0.s8 %v1425
          %v1427 = vlaneseq
          %v1428 = vshrl.u32 %v1427, 7
          %v1429 = vsub.s32 %v1426, %v1428
          %v1430 = vrot.slane %v1414, %v1429
          %v1432 = vunpack.c.l.s4 1966171168
          %v1433 = vunpack.c.0.s8 %v1432
          %v1434 = vlaneseq
          %v1435 = vshrl.u32 %v1434, 7
          %v1436 = vsub.s32 %v1433, %v1435
          %v1437 = vrot.slane %v1421, %v1436
          %v1439 = vunpack.c.l.s4 1966171168
          %v1440 = vunpack.c.0.s8 %v1439
          %v1441 = vlaneseq
          %v1442 = vshrl.u32 %v1441, 7
          %v1443 = vsub.s32 %v1440, %v1442
          %v1444 = vrot.slane %v1422, %v1443
          %v1446 = vunpack.c.l.s4 1966171168
          %v1447 = vunpack.c.0.s8 %v1446
          %v1448 = vlaneseq
          %v1449 = vshrl.u32 %v1448, 7
          %v1450 = vsub.s32 %v1447, %v1449
          %v1451 = vrot.slane %v1423, %v1450
          %v1452 = vcombine.high %v1430, %v1430
          %v1453 = vcombine.high %v1437, %v1437
          %v1454 = vcombine.high %v1444, %v1444
          %v1455 = vcombine.high %v1451, %v1451
          %1488 = vst [vmem:[#allocation2 + $0x1] sm:$0x1] %v1283
          %1489 = vst [vmem:[#allocation2 + $0x3] sm:$0x1] %v1297
          %1490 = vst [vmem:[#allocation2 + $0x5] sm:$0x1] %v1305
          %1491 = vst [vmem:[#allocation2 + $0x7] sm:$0x1] %v1307
          %1492 = vst [vmem:[#allocation2 + $0x9] sm:$0x1] %v1290
          %1493 = vst [vmem:[#allocation2 + $0xb] sm:$0x1] %v1304
          %1494 = vst [vmem:[#allocation2 + $0xd] sm:$0x1] %v1306
          %1495 = vst [vmem:[#allocation2 + $0xf] sm:$0x1] %v1308
          %1496 = vst [vmem:[#allocation2 + $0x11] sm:$0x1] %v1332
          %1497 = vst [vmem:[#allocation2 + $0x13] sm:$0x1] %v1346
          %1498 = vst [vmem:[#allocation2 + $0x15] sm:$0x1] %v1354
          %1499 = vst [vmem:[#allocation2 + $0x17] sm:$0x1] %v1356
          %1500 = vst [vmem:[#allocation2 + $0x19] sm:$0x1] %v1339
          %1501 = vst [vmem:[#allocation2 + $0x1b] sm:$0x1] %v1353
          %1502 = vst [vmem:[#allocation2 + $0x1d] sm:$0x1] %v1355
          %1503 = vst [vmem:[#allocation2 + $0x1f] sm:$0x1] %v1357
          %1504 = vst [vmem:[#allocation2 + $0x21] sm:$0x1] %v1381
          %1505 = vst [vmem:[#allocation2 + $0x23] sm:$0x1] %v1395
          %1506 = vst [vmem:[#allocation2 + $0x25] sm:$0x1] %v1403
          %1507 = vst [vmem:[#allocation2 + $0x27] sm:$0x1] %v1405
          %1508 = vst [vmem:[#allocation2 + $0x29] sm:$0x1] %v1388
          %1509 = vst [vmem:[#allocation2 + $0x2b] sm:$0x1] %v1402
          %1510 = vst [vmem:[#allocation2 + $0x2d] sm:$0x1] %v1404
          %1511 = vst [vmem:[#allocation2 + $0x2f] sm:$0x1] %v1406
          %1512 = vst [vmem:[#allocation2 + $0x31] sm:$0x1] %v1430
          %1513 = vst [vmem:[#allocation2 + $0x33] sm:$0x1] %v1444
          %1514 = vst [vmem:[#allocation2 + $0x35] sm:$0x1] %v1452
          %1515 = vst [vmem:[#allocation2 + $0x37] sm:$0x1] %v1454
          %1516 = vst [vmem:[#allocation2 + $0x39] sm:$0x1] %v1437
          %1517 = vst [vmem:[#allocation2 + $0x3b] sm:$0x1] %v1451
          %1518 = vst [vmem:[#allocation2 + $0x3d] sm:$0x1] %v1453
          %1519 = vst [vmem:[#allocation2 + $0x3f] sm:$0x1] %v1455
        $region112: #{conditional_denoiser_forward.3} parent=67 // pred_fallthru
          _
        %s1520 = smul.u32 %s31, 32
        %s1521 = smul.u32 %s1520, 2
        %s1522 = scalar_lea.vmem [#allocation2], %s1521
        %v1523 = vld [vmem:[%s1522] sm:$0x3]
        %v1524 = vld [vmem:[%s1522 + $0x2] sm:$0x3]
        %v1525 = vld [vmem:[%s1522 + $0x4] sm:$0x3]
        %v1526 = vld [vmem:[%s1522 + $0x6] sm:$0x3]
        %v1527 = vld [vmem:[%s1522 + $0x8] sm:$0x3]
        %v1528 = vld [vmem:[%s1522 + $0xa] sm:$0x3]
        %v1529 = vld [vmem:[%s1522 + $0xc] sm:$0x3]
        %v1530 = vld [vmem:[%s1522 + $0xe] sm:$0x3]
        %v1531 = vld [vmem:[%s1522 + $0x10] sm:$0x3]
        %v1532 = vld [vmem:[%s1522 + $0x12] sm:$0x3]
        %v1533 = vld [vmem:[%s1522 + $0x14] sm:$0x3]
        %v1534 = vld [vmem:[%s1522 + $0x16] sm:$0x3]
        %v1535 = vld [vmem:[%s1522 + $0x18] sm:$0x3]
        %v1536 = vld [vmem:[%s1522 + $0x1a] sm:$0x3]
        %v1537 = vld [vmem:[%s1522 + $0x1c] sm:$0x3]
        %v1538 = vld [vmem:[%s1522 + $0x1e] sm:$0x3]
        %v1539 = vld [vmem:[%s1522 + $0x20] sm:$0x3]
        %v1540 = vld [vmem:[%s1522 + $0x22] sm:$0x3]
        %v1541 = vld [vmem:[%s1522 + $0x24] sm:$0x3]
        %v1542 = vld [vmem:[%s1522 + $0x26] sm:$0x3]
        %v1543 = vld [vmem:[%s1522 + $0x28] sm:$0x3]
        %v1544 = vld [vmem:[%s1522 + $0x2a] sm:$0x3]
        %v1545 = vld [vmem:[%s1522 + $0x2c] sm:$0x3]
        %v1546 = vld [vmem:[%s1522 + $0x2e] sm:$0x3]
        %v1547 = vld [vmem:[%s1522 + $0x30] sm:$0x3]
        %v1548 = vld [vmem:[%s1522 + $0x32] sm:$0x3]
        %v1549 = vld [vmem:[%s1522 + $0x34] sm:$0x3]
        %v1550 = vld [vmem:[%s1522 + $0x36] sm:$0x3]
        %v1551 = vld [vmem:[%s1522 + $0x38] sm:$0x3]
        %v1552 = vld [vmem:[%s1522 + $0x3a] sm:$0x3]
        %v1553 = vld [vmem:[%s1522 + $0x3c] sm:$0x3]
        %v1554 = vld [vmem:[%s1522 + $0x3e] sm:$0x3]
        %vm1555 = vcmask 1041408
        %v1556 = vsel %vm1555, %v1523, 0.0
        %1557 = vadd.xlane.f32.xlu0 %v1556
        %v1558 = vpop.xlane.xlu0 %1557
        %v1559 = vsel %vm1555, %v1524, 0.0
        %1560 = vadd.xlane.f32.xlu0 %v1559
        %v1561 = vpop.xlane.xlu0 %1560
        %v1562 = vsel %vm1555, %v1525, 0.0
        %1563 = vadd.xlane.f32.xlu0 %v1562
        %v1564 = vpop.xlane.xlu0 %1563
        %v1565 = vsel %vm1555, %v1526, 0.0
        %1566 = vadd.xlane.f32.xlu0 %v1565
        %v1567 = vpop.xlane.xlu0 %1566
        %v1568 = vsel %vm1555, %v1527, 0.0
        %1569 = vadd.xlane.f32.xlu0 %v1568
        %v1570 = vpop.xlane.xlu0 %1569
        %v1571 = vsel %vm1555, %v1528, 0.0
        %1572 = vadd.xlane.f32.xlu0 %v1571
        %v1573 = vpop.xlane.xlu0 %1572
        %v1574 = vsel %vm1555, %v1529, 0.0
        %1575 = vadd.xlane.f32.xlu0 %v1574
        %v1576 = vpop.xlane.xlu0 %1575
        %v1577 = vsel %vm1555, %v1530, 0.0
        %1578 = vadd.xlane.f32.xlu0 %v1577
        %v1579 = vpop.xlane.xlu0 %1578
        %v1580 = vsel %vm1555, %v1531, 0.0
        %1581 = vadd.xlane.f32.xlu0 %v1580
        %v1582 = vpop.xlane.xlu0 %1581
        %v1583 = vsel %vm1555, %v1532, 0.0
        %1584 = vadd.xlane.f32.xlu0 %v1583
        %v1585 = vpop.xlane.xlu0 %1584
        %v1586 = vsel %vm1555, %v1533, 0.0
        %1587 = vadd.xlane.f32.xlu0 %v1586
        %v1588 = vpop.xlane.xlu0 %1587
        %v1589 = vsel %vm1555, %v1534, 0.0
        %1590 = vadd.xlane.f32.xlu0 %v1589
        %v1591 = vpop.xlane.xlu0 %1590
        %v1592 = vsel %vm1555, %v1535, 0.0
        %1593 = vadd.xlane.f32.xlu0 %v1592
        %v1594 = vpop.xlane.xlu0 %1593
        %v1595 = vsel %vm1555, %v1536, 0.0
        %1596 = vadd.xlane.f32.xlu0 %v1595
        %v1597 = vpop.xlane.xlu0 %1596
        %v1598 = vsel %vm1555, %v1537, 0.0
        %1599 = vadd.xlane.f32.xlu0 %v1598
        %v1600 = vpop.xlane.xlu0 %1599
        %v1601 = vsel %vm1555, %v1538, 0.0
        %1602 = vadd.xlane.f32.xlu0 %v1601
        %v1603 = vpop.xlane.xlu0 %1602
        %v1604 = vsel %vm1555, %v1539, 0.0
        %1605 = vadd.xlane.f32.xlu0 %v1604
        %v1606 = vpop.xlane.xlu0 %1605
        %v1607 = vsel %vm1555, %v1540, 0.0
        %1608 = vadd.xlane.f32.xlu0 %v1607
        %v1609 = vpop.xlane.xlu0 %1608
        %v1610 = vsel %vm1555, %v1541, 0.0
        %1611 = vadd.xlane.f32.xlu0 %v1610
        %v1612 = vpop.xlane.xlu0 %1611
        %v1613 = vsel %vm1555, %v1542, 0.0
        %1614 = vadd.xlane.f32.xlu0 %v1613
        %v1615 = vpop.xlane.xlu0 %1614
        %v1616 = vsel %vm1555, %v1543, 0.0
        %1617 = vadd.xlane.f32.xlu0 %v1616
        %v1618 = vpop.xlane.xlu0 %1617
        %v1619 = vsel %vm1555, %v1544, 0.0
        %1620 = vadd.xlane.f32.xlu0 %v1619
        %v1621 = vpop.xlane.xlu0 %1620
        %v1622 = vsel %vm1555, %v1545, 0.0
        %1623 = vadd.xlane.f32.xlu0 %v1622
        %v1624 = vpop.xlane.xlu0 %1623
        %v1625 = vsel %vm1555, %v1546, 0.0
        %1626 = vadd.xlane.f32.xlu0 %v1625
        %v1627 = vpop.xlane.xlu0 %1626
        %v1628 = vsel %vm1555, %v1547, 0.0
        %1629 = vadd.xlane.f32.xlu0 %v1628
        %v1630 = vpop.xlane.xlu0 %1629
        %v1631 = vsel %vm1555, %v1548, 0.0
        %1632 = vadd.xlane.f32.xlu0 %v1631
        %v1633 = vpop.xlane.xlu0 %1632
        %v1634 = vsel %vm1555, %v1549, 0.0
        %1635 = vadd.xlane.f32.xlu0 %v1634
        %v1636 = vpop.xlane.xlu0 %1635
        %v1637 = vsel %vm1555, %v1550, 0.0
        %1638 = vadd.xlane.f32.xlu0 %v1637
        %v1639 = vpop.xlane.xlu0 %1638
        %v1640 = vsel %vm1555, %v1551, 0.0
        %1641 = vadd.xlane.f32.xlu0 %v1640
        %v1642 = vpop.xlane.xlu0 %1641
        %v1643 = vsel %vm1555, %v1552, 0.0
        %1644 = vadd.xlane.f32.xlu0 %v1643
        %v1645 = vpop.xlane.xlu0 %1644
        %v1646 = vsel %vm1555, %v1553, 0.0
        %1647 = vadd.xlane.f32.xlu0 %v1646
        %v1648 = vpop.xlane.xlu0 %1647
        %v1649 = vsel %vm1555, %v1554, 0.0
        %1650 = vadd.xlane.f32.xlu0 %v1649
        %v1651 = vpop.xlane.xlu0 %1650
        %v1652 = vrcp.pop 128.0
        %v1653 = vmul.f32 %v1558, %v1652
        %v1654 = vmul.f32 %v1561, %v1652
        %v1655 = vmul.f32 %v1564, %v1652
        %v1656 = vmul.f32 %v1567, %v1652
        %v1657 = vmul.f32 %v1570, %v1652
        %v1658 = vmul.f32 %v1573, %v1652
        %v1659 = vmul.f32 %v1576, %v1652
        %v1660 = vmul.f32 %v1579, %v1652
        %v1661 = vmul.f32 %v1582, %v1652
        %v1662 = vmul.f32 %v1585, %v1652
        %v1663 = vmul.f32 %v1588, %v1652
        %v1664 = vmul.f32 %v1591, %v1652
        %v1665 = vmul.f32 %v1594, %v1652
        %v1666 = vmul.f32 %v1597, %v1652
        %v1667 = vmul.f32 %v1600, %v1652
        %v1668 = vmul.f32 %v1603, %v1652
        %v1669 = vmul.f32 %v1606, %v1652
        %v1670 = vmul.f32 %v1609, %v1652
        %v1671 = vmul.f32 %v1612, %v1652
        %v1672 = vmul.f32 %v1615, %v1652
        %v1673 = vmul.f32 %v1618, %v1652
        %v1674 = vmul.f32 %v1621, %v1652
        %v1675 = vmul.f32 %v1624, %v1652
        %v1676 = vmul.f32 %v1627, %v1652
        %v1677 = vmul.f32 %v1630, %v1652
        %v1678 = vmul.f32 %v1633, %v1652
        %v1679 = vmul.f32 %v1636, %v1652
        %v1680 = vmul.f32 %v1639, %v1652
        %v1681 = vmul.f32 %v1642, %v1652
        %v1682 = vmul.f32 %v1645, %v1652
        %v1683 = vmul.f32 %v1648, %v1652
        %v1684 = vmul.f32 %v1651, %v1652
        %v1685 = vsub.f32 %v1523, %v1653
        %v1686 = vsub.f32 %v1524, %v1654
        %v1687 = vsub.f32 %v1525, %v1655
        %v1688 = vsub.f32 %v1526, %v1656
        %v1689 = vsub.f32 %v1527, %v1657
        %v1690 = vsub.f32 %v1528, %v1658
        %v1691 = vsub.f32 %v1529, %v1659
        %v1692 = vsub.f32 %v1530, %v1660
        %v1693 = vsub.f32 %v1531, %v1661
        %v1694 = vsub.f32 %v1532, %v1662
        %v1695 = vsub.f32 %v1533, %v1663
        %v1696 = vsub.f32 %v1534, %v1664
        %v1697 = vsub.f32 %v1535, %v1665
        %v1698 = vsub.f32 %v1536, %v1666
        %v1699 = vsub.f32 %v1537, %v1667
        %v1700 = vsub.f32 %v1538, %v1668
        %v1701 = vsub.f32 %v1539, %v1669
        %v1702 = vsub.f32 %v1540, %v1670
        %v1703 = vsub.f32 %v1541, %v1671
        %v1704 = vsub.f32 %v1542, %v1672
        %v1705 = vsub.f32 %v1543, %v1673
        %v1706 = vsub.f32 %v1544, %v1674
        %v1707 = vsub.f32 %v1545, %v1675
        %v1708 = vsub.f32 %v1546, %v1676
        %v1709 = vsub.f32 %v1547, %v1677
        %v1710 = vsub.f32 %v1548, %v1678
        %v1711 = vsub.f32 %v1549, %v1679
        %v1712 = vsub.f32 %v1550, %v1680
        %v1713 = vsub.f32 %v1551, %v1681
        %v1714 = vsub.f32 %v1552, %v1682
        %v1715 = vsub.f32 %v1553, %v1683
        %v1716 = vsub.f32 %v1554, %v1684
        %v1717 = vmul.f32 %v1685, %v1685
        %v1718 = vmul.f32 %v1686, %v1686
        %v1719 = vmul.f32 %v1687, %v1687
        %v1720 = vmul.f32 %v1688, %v1688
        %v1721 = vmul.f32 %v1689, %v1689
        %v1722 = vmul.f32 %v1690, %v1690
        %v1723 = vmul.f32 %v1691, %v1691
        %v1724 = vmul.f32 %v1692, %v1692
        %v1725 = vmul.f32 %v1693, %v1693
        %v1726 = vmul.f32 %v1694, %v1694
        %v1727 = vmul.f32 %v1695, %v1695
        %v1728 = vmul.f32 %v1696, %v1696
        %v1729 = vmul.f32 %v1697, %v1697
        %v1730 = vmul.f32 %v1698, %v1698
        %v1731 = vmul.f32 %v1699, %v1699
        %v1732 = vmul.f32 %v1700, %v1700
        %v1733 = vmul.f32 %v1701, %v1701
        %v1734 = vmul.f32 %v1702, %v1702
        %v1735 = vmul.f32 %v1703, %v1703
        %v1736 = vmul.f32 %v1704, %v1704
        %v1737 = vmul.f32 %v1705, %v1705
        %v1738 = vmul.f32 %v1706, %v1706
        %v1739 = vmul.f32 %v1707, %v1707
        %v1740 = vmul.f32 %v1708, %v1708
        %v1741 = vmul.f32 %v1709, %v1709
        %v1742 = vmul.f32 %v1710, %v1710
        %v1743 = vmul.f32 %v1711, %v1711
        %v1744 = vmul.f32 %v1712, %v1712
        %v1745 = vmul.f32 %v1713, %v1713
        %v1746 = vmul.f32 %v1714, %v1714
        %v1747 = vmul.f32 %v1715, %v1715
        %v1748 = vmul.f32 %v1716, %v1716
        %v1749 = vsel %vm1555, %v1717, 0.0
        %1750 = vadd.xlane.f32.xlu0 %v1749
        %v1751 = vpop.xlane.xlu0 %1750
        %v1752 = vsel %vm1555, %v1718, 0.0
        %1753 = vadd.xlane.f32.xlu0 %v1752
        %v1754 = vpop.xlane.xlu0 %1753
        %v1755 = vsel %vm1555, %v1719, 0.0
        %1756 = vadd.xlane.f32.xlu0 %v1755
        %v1757 = vpop.xlane.xlu0 %1756
        %v1758 = vsel %vm1555, %v1720, 0.0
        %1759 = vadd.xlane.f32.xlu0 %v1758
        %v1760 = vpop.xlane.xlu0 %1759
        %v1761 = vsel %vm1555, %v1721, 0.0
        %1762 = vadd.xlane.f32.xlu0 %v1761
        %v1763 = vpop.xlane.xlu0 %1762
        %v1764 = vsel %vm1555, %v1722, 0.0
        %1765 = vadd.xlane.f32.xlu0 %v1764
        %v1766 = vpop.xlane.xlu0 %1765
        %v1767 = vsel %vm1555, %v1723, 0.0
        %1768 = vadd.xlane.f32.xlu0 %v1767
        %v1769 = vpop.xlane.xlu0 %1768
        %v1770 = vsel %vm1555, %v1724, 0.0
        %1771 = vadd.xlane.f32.xlu0 %v1770
        %v1772 = vpop.xlane.xlu0 %1771
        %v1773 = vsel %vm1555, %v1725, 0.0
        %1774 = vadd.xlane.f32.xlu0 %v1773
        %v1775 = vpop.xlane.xlu0 %1774
        %v1776 = vsel %vm1555, %v1726, 0.0
        %1777 = vadd.xlane.f32.xlu0 %v1776
        %v1778 = vpop.xlane.xlu0 %1777
        %v1779 = vsel %vm1555, %v1727, 0.0
        %1780 = vadd.xlane.f32.xlu0 %v1779
        %v1781 = vpop.xlane.xlu0 %1780
        %v1782 = vsel %vm1555, %v1728, 0.0
        %1783 = vadd.xlane.f32.xlu0 %v1782
        %v1784 = vpop.xlane.xlu0 %1783
        %v1785 = vsel %vm1555, %v1729, 0.0
        %1786 = vadd.xlane.f32.xlu0 %v1785
        %v1787 = vpop.xlane.xlu0 %1786
        %v1788 = vsel %vm1555, %v1730, 0.0
        %1789 = vadd.xlane.f32.xlu0 %v1788
        %v1790 = vpop.xlane.xlu0 %1789
        %v1791 = vsel %vm1555, %v1731, 0.0
        %1792 = vadd.xlane.f32.xlu0 %v1791
        %v1793 = vpop.xlane.xlu0 %1792
        %v1794 = vsel %vm1555, %v1732, 0.0
        %1795 = vadd.xlane.f32.xlu0 %v1794
        %v1796 = vpop.xlane.xlu0 %1795
        %v1797 = vsel %vm1555, %v1733, 0.0
        %1798 = vadd.xlane.f32.xlu0 %v1797
        %v1799 = vpop.xlane.xlu0 %1798
        %v1800 = vsel %vm1555, %v1734, 0.0
        %1801 = vadd.xlane.f32.xlu0 %v1800
        %v1802 = vpop.xlane.xlu0 %1801
        %v1803 = vsel %vm1555, %v1735, 0.0
        %1804 = vadd.xlane.f32.xlu0 %v1803
        %v1805 = vpop.xlane.xlu0 %1804
        %v1806 = vsel %vm1555, %v1736, 0.0
        %1807 = vadd.xlane.f32.xlu0 %v1806
        %v1808 = vpop.xlane.xlu0 %1807
        %v1809 = vsel %vm1555, %v1737, 0.0
        %1810 = vadd.xlane.f32.xlu0 %v1809
        %v1811 = vpop.xlane.xlu0 %1810
        %v1812 = vsel %vm1555, %v1738, 0.0
        %1813 = vadd.xlane.f32.xlu0 %v1812
        %v1814 = vpop.xlane.xlu0 %1813
        %v1815 = vsel %vm1555, %v1739, 0.0
        %1816 = vadd.xlane.f32.xlu0 %v1815
        %v1817 = vpop.xlane.xlu0 %1816
        %v1818 = vsel %vm1555, %v1740, 0.0
        %1819 = vadd.xlane.f32.xlu0 %v1818
        %v1820 = vpop.xlane.xlu0 %1819
        %v1821 = vsel %vm1555, %v1741, 0.0
        %1822 = vadd.xlane.f32.xlu0 %v1821
        %v1823 = vpop.xlane.xlu0 %1822
        %v1824 = vsel %vm1555, %v1742, 0.0
        %1825 = vadd.xlane.f32.xlu0 %v1824
        %v1826 = vpop.xlane.xlu0 %1825
        %v1827 = vsel %vm1555, %v1743, 0.0
        %1828 = vadd.xlane.f32.xlu0 %v1827
        %v1829 = vpop.xlane.xlu0 %1828
        %v1830 = vsel %vm1555, %v1744, 0.0
        %1831 = vadd.xlane.f32.xlu0 %v1830
        %v1832 = vpop.xlane.xlu0 %1831
        %v1833 = vsel %vm1555, %v1745, 0.0
        %1834 = vadd.xlane.f32.xlu0 %v1833
        %v1835 = vpop.xlane.xlu0 %1834
        %v1836 = vsel %vm1555, %v1746, 0.0
        %1837 = vadd.xlane.f32.xlu0 %v1836
        %v1838 = vpop.xlane.xlu0 %1837
        %v1839 = vsel %vm1555, %v1747, 0.0
        %1840 = vadd.xlane.f32.xlu0 %v1839
        %v1841 = vpop.xlane.xlu0 %1840
        %v1842 = vsel %vm1555, %v1748, 0.0
        %1843 = vadd.xlane.f32.xlu0 %v1842
        %v1844 = vpop.xlane.xlu0 %1843
        %v1845 = vmul.f32 %v1751, %v1652
        %v1846 = vmul.f32 %v1754, %v1652
        %v1847 = vmul.f32 %v1757, %v1652
        %v1848 = vmul.f32 %v1760, %v1652
        %v1849 = vmul.f32 %v1763, %v1652
        %v1850 = vmul.f32 %v1766, %v1652
        %v1851 = vmul.f32 %v1769, %v1652
        %v1852 = vmul.f32 %v1772, %v1652
        %v1853 = vmul.f32 %v1775, %v1652
        %v1854 = vmul.f32 %v1778, %v1652
        %v1855 = vmul.f32 %v1781, %v1652
        %v1856 = vmul.f32 %v1784, %v1652
        %v1857 = vmul.f32 %v1787, %v1652
        %v1858 = vmul.f32 %v1790, %v1652
        %v1859 = vmul.f32 %v1793, %v1652
        %v1860 = vmul.f32 %v1796, %v1652
        %v1861 = vmul.f32 %v1799, %v1652
        %v1862 = vmul.f32 %v1802, %v1652
        %v1863 = vmul.f32 %v1805, %v1652
        %v1864 = vmul.f32 %v1808, %v1652
        %v1865 = vmul.f32 %v1811, %v1652
        %v1866 = vmul.f32 %v1814, %v1652
        %v1867 = vmul.f32 %v1817, %v1652
        %v1868 = vmul.f32 %v1820, %v1652
        %v1869 = vmul.f32 %v1823, %v1652
        %v1870 = vmul.f32 %v1826, %v1652
        %v1871 = vmul.f32 %v1829, %v1652
        %v1872 = vmul.f32 %v1832, %v1652
        %v1873 = vmul.f32 %v1835, %v1652
        %v1874 = vmul.f32 %v1838, %v1652
        %v1875 = vmul.f32 %v1841, %v1652
        %v1876 = vmul.f32 %v1844, %v1652
        %v1877 = vadd.f32 %v1845, 1e-05
        %v1878 = vadd.f32 %v1846, 1e-05
        %v1879 = vadd.f32 %v1847, 1e-05
        %v1880 = vadd.f32 %v1848, 1e-05
        %v1881 = vadd.f32 %v1849, 1e-05
        %v1882 = vadd.f32 %v1850, 1e-05
        %v1883 = vadd.f32 %v1851, 1e-05
        %v1884 = vadd.f32 %v1852, 1e-05
        %v1885 = vadd.f32 %v1853, 1e-05
        %v1886 = vadd.f32 %v1854, 1e-05
        %v1887 = vadd.f32 %v1855, 1e-05
        %v1888 = vadd.f32 %v1856, 1e-05
        %v1889 = vadd.f32 %v1857, 1e-05
        %v1890 = vadd.f32 %v1858, 1e-05
        %v1891 = vadd.f32 %v1859, 1e-05
        %v1892 = vadd.f32 %v1860, 1e-05
        %v1893 = vadd.f32 %v1861, 1e-05
        %v1894 = vadd.f32 %v1862, 1e-05
        %v1895 = vadd.f32 %v1863, 1e-05
        %v1896 = vadd.f32 %v1864, 1e-05
        %v1897 = vadd.f32 %v1865, 1e-05
        %v1898 = vadd.f32 %v1866, 1e-05
        %v1899 = vadd.f32 %v1867, 1e-05
        %v1900 = vadd.f32 %v1868, 1e-05
        %v1901 = vadd.f32 %v1869, 1e-05
        %v1902 = vadd.f32 %v1870, 1e-05
        %v1903 = vadd.f32 %v1871, 1e-05
        %v1904 = vadd.f32 %v1872, 1e-05
        %v1905 = vadd.f32 %v1873, 1e-05
        %v1906 = vadd.f32 %v1874, 1e-05
        %v1907 = vadd.f32 %v1875, 1e-05
        %v1908 = vadd.f32 %v1876, 1e-05
        %v1909 = vrsqrt.pop %v1877
        %v1910 = vrsqrt.pop %v1878
        %v1911 = vrsqrt.pop %v1879
        %v1912 = vrsqrt.pop %v1880
        %v1913 = vrsqrt.pop %v1881
        %v1914 = vrsqrt.pop %v1882
        %v1915 = vrsqrt.pop %v1883
        %v1916 = vrsqrt.pop %v1884
        %v1917 = vrsqrt.pop %v1885
        %v1918 = vrsqrt.pop %v1886
        %v1919 = vrsqrt.pop %v1887
        %v1920 = vrsqrt.pop %v1888
        %v1921 = vrsqrt.pop %v1889
        %v1922 = vrsqrt.pop %v1890
        %v1923 = vrsqrt.pop %v1891
        %v1924 = vrsqrt.pop %v1892
        %v1925 = vrsqrt.pop %v1893
        %v1926 = vrsqrt.pop %v1894
        %v1927 = vrsqrt.pop %v1895
        %v1928 = vrsqrt.pop %v1896
        %v1929 = vrsqrt.pop %v1897
        %v1930 = vrsqrt.pop %v1898
        %v1931 = vrsqrt.pop %v1899
        %v1932 = vrsqrt.pop %v1900
        %v1933 = vrsqrt.pop %v1901
        %v1934 = vrsqrt.pop %v1902
        %v1935 = vrsqrt.pop %v1903
        %v1936 = vrsqrt.pop %v1904
        %v1937 = vrsqrt.pop %v1905
        %v1938 = vrsqrt.pop %v1906
        %v1939 = vrsqrt.pop %v1907
        %v1940 = vrsqrt.pop %v1908
        %v1941 = vmul.f32 %v1685, %v1909
        %v1942 = vmul.f32 %v1686, %v1910
        %v1943 = vmul.f32 %v1687, %v1911
        %v1944 = vmul.f32 %v1688, %v1912
        %v1945 = vmul.f32 %v1689, %v1913
        %v1946 = vmul.f32 %v1690, %v1914
        %v1947 = vmul.f32 %v1691, %v1915
        %v1948 = vmul.f32 %v1692, %v1916
        %v1949 = vmul.f32 %v1693, %v1917
        %v1950 = vmul.f32 %v1694, %v1918
        %v1951 = vmul.f32 %v1695, %v1919
        %v1952 = vmul.f32 %v1696, %v1920
        %v1953 = vmul.f32 %v1697, %v1921
        %v1954 = vmul.f32 %v1698, %v1922
        %v1955 = vmul.f32 %v1699, %v1923
        %v1956 = vmul.f32 %v1700, %v1924
        %v1957 = vmul.f32 %v1701, %v1925
        %v1958 = vmul.f32 %v1702, %v1926
        %v1959 = vmul.f32 %v1703, %v1927
        %v1960 = vmul.f32 %v1704, %v1928
        %v1961 = vmul.f32 %v1705, %v1929
        %v1962 = vmul.f32 %v1706, %v1930
        %v1963 = vmul.f32 %v1707, %v1931
        %v1964 = vmul.f32 %v1708, %v1932
        %v1965 = vmul.f32 %v1709, %v1933
        %v1966 = vmul.f32 %v1710, %v1934
        %v1967 = vmul.f32 %v1711, %v1935
        %v1968 = vmul.f32 %v1712, %v1936
        %v1969 = vmul.f32 %v1713, %v1937
        %v1970 = vmul.f32 %v1714, %v1938
        %v1971 = vmul.f32 %v1715, %v1939
        %v1972 = vmul.f32 %v1716, %v1940
        %s1973 = scalar_lea.vmem %s696, %s1521
        %v1974 = vld [vmem:[%s1973] sm:$0x3]
        %v1975 = vld [vmem:[%s1973 + $0x2] sm:$0x3]
        %v1976 = vld [vmem:[%s1973 + $0x4] sm:$0x3]
        %v1977 = vld [vmem:[%s1973 + $0x6] sm:$0x3]
        %v1978 = vld [vmem:[%s1973 + $0x8] sm:$0x3]
        %v1979 = vld [vmem:[%s1973 + $0xa] sm:$0x3]
        %v1980 = vld [vmem:[%s1973 + $0xc] sm:$0x3]
        %v1981 = vld [vmem:[%s1973 + $0xe] sm:$0x3]
        %v1982 = vld [vmem:[%s1973 + $0x10] sm:$0x3]
        %v1983 = vld [vmem:[%s1973 + $0x12] sm:$0x3]
        %v1984 = vld [vmem:[%s1973 + $0x14] sm:$0x3]
        %v1985 = vld [vmem:[%s1973 + $0x16] sm:$0x3]
        %v1986 = vld [vmem:[%s1973 + $0x18] sm:$0x3]
        %v1987 = vld [vmem:[%s1973 + $0x1a] sm:$0x3]
        %v1988 = vld [vmem:[%s1973 + $0x1c] sm:$0x3]
        %v1989 = vld [vmem:[%s1973 + $0x1e] sm:$0x3]
        %v1990 = vld [vmem:[%s1973 + $0x20] sm:$0x3]
        %v1991 = vld [vmem:[%s1973 + $0x22] sm:$0x3]
        %v1992 = vld [vmem:[%s1973 + $0x24] sm:$0x3]
        %v1993 = vld [vmem:[%s1973 + $0x26] sm:$0x3]
        %v1994 = vld [vmem:[%s1973 + $0x28] sm:$0x3]
        %v1995 = vld [vmem:[%s1973 + $0x2a] sm:$0x3]
        %v1996 = vld [vmem:[%s1973 + $0x2c] sm:$0x3]
        %v1997 = vld [vmem:[%s1973 + $0x2e] sm:$0x3]
        %v1998 = vld [vmem:[%s1973 + $0x30] sm:$0x3]
        %v1999 = vld [vmem:[%s1973 + $0x32] sm:$0x3]
        %v2000 = vld [vmem:[%s1973 + $0x34] sm:$0x3]
        %v2001 = vld [vmem:[%s1973 + $0x36] sm:$0x3]
        %v2002 = vld [vmem:[%s1973 + $0x38] sm:$0x3]
        %v2003 = vld [vmem:[%s1973 + $0x3a] sm:$0x3]
        %v2004 = vld [vmem:[%s1973 + $0x3c] sm:$0x3]
        %v2005 = vld [vmem:[%s1973 + $0x3e] sm:$0x3]
        %v2006 = vadd.f32 %v1974, 1.0
        %v2007 = vadd.f32 %v1975, 1.0
        %v2008 = vadd.f32 %v1976, 1.0
        %v2009 = vadd.f32 %v1977, 1.0
        %v2010 = vadd.f32 %v1978, 1.0
        %v2011 = vadd.f32 %v1979, 1.0
        %v2012 = vadd.f32 %v1980, 1.0
        %v2013 = vadd.f32 %v1981, 1.0
        %v2014 = vadd.f32 %v1982, 1.0
        %v2015 = vadd.f32 %v1983, 1.0
        %v2016 = vadd.f32 %v1984, 1.0
        %v2017 = vadd.f32 %v1985, 1.0
        %v2018 = vadd.f32 %v1986, 1.0
        %v2019 = vadd.f32 %v1987, 1.0
        %v2020 = vadd.f32 %v1988, 1.0
        %v2021 = vadd.f32 %v1989, 1.0
        %v2022 = vadd.f32 %v1990, 1.0
        %v2023 = vadd.f32 %v1991, 1.0
        %v2024 = vadd.f32 %v1992, 1.0
        %v2025 = vadd.f32 %v1993, 1.0
        %v2026 = vadd.f32 %v1994, 1.0
        %v2027 = vadd.f32 %v1995, 1.0
        %v2028 = vadd.f32 %v1996, 1.0
        %v2029 = vadd.f32 %v1997, 1.0
        %v2030 = vadd.f32 %v1998, 1.0
        %v2031 = vadd.f32 %v1999, 1.0
        %v2032 = vadd.f32 %v2000, 1.0
        %v2033 = vadd.f32 %v2001, 1.0
        %v2034 = vadd.f32 %v2002, 1.0
        %v2035 = vadd.f32 %v2003, 1.0
        %v2036 = vadd.f32 %v2004, 1.0
        %v2037 = vadd.f32 %v2005, 1.0
        %2039 = vset.pattern.permute.xlu0 1
        %2040 = vperm.xlu0 %2039, %v2006
        %v2041 = vpop.permute.xlu0 %2040
        %2044 = vset.pattern.permute.xlu0 1
        %2045 = vperm.xlu0 %2044, %v2007
        %v2046 = vpop.permute.xlu0 %2045
        %2049 = vset.pattern.permute.xlu0 1
        %2050 = vperm.xlu0 %2049, %v2008
        %v2051 = vpop.permute.xlu0 %2050
        %2054 = vset.pattern.permute.xlu0 1
        %2055 = vperm.xlu0 %2054, %v2009
        %v2056 = vpop.permute.xlu0 %2055
        %2059 = vset.pattern.permute.xlu0 1
        %2060 = vperm.xlu0 %2059, %v2010
        %v2061 = vpop.permute.xlu0 %2060
        %2064 = vset.pattern.permute.xlu0 1
        %2065 = vperm.xlu0 %2064, %v2011
        %v2066 = vpop.permute.xlu0 %2065
        %2069 = vset.pattern.permute.xlu0 1
        %2070 = vperm.xlu0 %2069, %v2012
        %v2071 = vpop.permute.xlu0 %2070
        %2074 = vset.pattern.permute.xlu0 1
        %2075 = vperm.xlu0 %2074, %v2013
        %v2076 = vpop.permute.xlu0 %2075
        %2079 = vset.pattern.permute.xlu0 1
        %2080 = vperm.xlu0 %2079, %v2014
        %v2081 = vpop.permute.xlu0 %2080
        %2084 = vset.pattern.permute.xlu0 1
        %2085 = vperm.xlu0 %2084, %v2015
        %v2086 = vpop.permute.xlu0 %2085
        %2089 = vset.pattern.permute.xlu0 1
        %2090 = vperm.xlu0 %2089, %v2016
        %v2091 = vpop.permute.xlu0 %2090
        %2094 = vset.pattern.permute.xlu0 1
        %2095 = vperm.xlu0 %2094, %v2017
        %v2096 = vpop.permute.xlu0 %2095
        %2099 = vset.pattern.permute.xlu0 1
        %2100 = vperm.xlu0 %2099, %v2018
        %v2101 = vpop.permute.xlu0 %2100
        %2104 = vset.pattern.permute.xlu0 1
        %2105 = vperm.xlu0 %2104, %v2019
        %v2106 = vpop.permute.xlu0 %2105
        %2109 = vset.pattern.permute.xlu0 1
        %2110 = vperm.xlu0 %2109, %v2020
        %v2111 = vpop.permute.xlu0 %2110
        %2114 = vset.pattern.permute.xlu0 1
        %2115 = vperm.xlu0 %2114, %v2021
        %v2116 = vpop.permute.xlu0 %2115
        %2119 = vset.pattern.permute.xlu0 1
        %2120 = vperm.xlu0 %2119, %v2022
        %v2121 = vpop.permute.xlu0 %2120
        %2124 = vset.pattern.permute.xlu0 1
        %2125 = vperm.xlu0 %2124, %v2023
        %v2126 = vpop.permute.xlu0 %2125
        %2129 = vset.pattern.permute.xlu0 1
        %2130 = vperm.xlu0 %2129, %v2024
        %v2131 = vpop.permute.xlu0 %2130
        %2134 = vset.pattern.permute.xlu0 1
        %2135 = vperm.xlu0 %2134, %v2025
        %v2136 = vpop.permute.xlu0 %2135
        %2139 = vset.pattern.permute.xlu0 1
        %2140 = vperm.xlu0 %2139, %v2026
        %v2141 = vpop.permute.xlu0 %2140
        %2144 = vset.pattern.permute.xlu0 1
        %2145 = vperm.xlu0 %2144, %v2027
        %v2146 = vpop.permute.xlu0 %2145
        %2149 = vset.pattern.permute.xlu0 1
        %2150 = vperm.xlu0 %2149, %v2028
        %v2151 = vpop.permute.xlu0 %2150
        %2154 = vset.pattern.permute.xlu0 1
        %2155 = vperm.xlu0 %2154, %v2029
        %v2156 = vpop.permute.xlu0 %2155
        %2159 = vset.pattern.permute.xlu0 1
        %2160 = vperm.xlu0 %2159, %v2030
        %v2161 = vpop.permute.xlu0 %2160
        %2164 = vset.pattern.permute.xlu0 1
        %2165 = vperm.xlu0 %2164, %v2031
        %v2166 = vpop.permute.xlu0 %2165
        %2169 = vset.pattern.permute.xlu0 1
        %2170 = vperm.xlu0 %2169, %v2032
        %v2171 = vpop.permute.xlu0 %2170
        %2174 = vset.pattern.permute.xlu0 1
        %2175 = vperm.xlu0 %2174, %v2033
        %v2176 = vpop.permute.xlu0 %2175
        %2179 = vset.pattern.permute.xlu0 1
        %2180 = vperm.xlu0 %2179, %v2034
        %v2181 = vpop.permute.xlu0 %2180
        %2184 = vset.pattern.permute.xlu0 1
        %2185 = vperm.xlu0 %2184, %v2035
        %v2186 = vpop.permute.xlu0 %2185
        %2189 = vset.pattern.permute.xlu0 1
        %2190 = vperm.xlu0 %2189, %v2036
        %v2191 = vpop.permute.xlu0 %2190
        %2194 = vset.pattern.permute.xlu0 1
        %2195 = vperm.xlu0 %2194, %v2037
        %v2196 = vpop.permute.xlu0 %2195
        %v2198 = vmul.f32 %v1941, %v2041
        %v2199 = vmul.f32 %v1942, %v2046
        %v2200 = vmul.f32 %v1943, %v2051
        %v2201 = vmul.f32 %v1944, %v2056
        %v2202 = vmul.f32 %v1945, %v2061
        %v2203 = vmul.f32 %v1946, %v2066
        %v2204 = vmul.f32 %v1947, %v2071
        %v2205 = vmul.f32 %v1948, %v2076
        %v2206 = vmul.f32 %v1949, %v2081
        %v2207 = vmul.f32 %v1950, %v2086
        %v2208 = vmul.f32 %v1951, %v2091
        %v2209 = vmul.f32 %v1952, %v2096
        %v2210 = vmul.f32 %v1953, %v2101
        %v2211 = vmul.f32 %v1954, %v2106
        %v2212 = vmul.f32 %v1955, %v2111
        %v2213 = vmul.f32 %v1956, %v2116
        %v2214 = vmul.f32 %v1957, %v2121
        %v2215 = vmul.f32 %v1958, %v2126
        %v2216 = vmul.f32 %v1959, %v2131
        %v2217 = vmul.f32 %v1960, %v2136
        %v2218 = vmul.f32 %v1961, %v2141
        %v2219 = vmul.f32 %v1962, %v2146
        %v2220 = vmul.f32 %v1963, %v2151
        %v2221 = vmul.f32 %v1964, %v2156
        %v2222 = vmul.f32 %v1965, %v2161
        %v2223 = vmul.f32 %v1966, %v2166
        %v2224 = vmul.f32 %v1967, %v2171
        %v2225 = vmul.f32 %v1968, %v2176
        %v2226 = vmul.f32 %v1969, %v2181
        %v2227 = vmul.f32 %v1970, %v2186
        %v2228 = vmul.f32 %v1971, %v2191
        %v2229 = vmul.f32 %v1972, %v2196
        %2231 = vset.pattern.permute.xlu0 0
        %2232 = vperm.xlu0 %2231, %v1974
        %v2233 = vpop.permute.xlu0 %2232
        %2236 = vset.pattern.permute.xlu0 0
        %2237 = vperm.xlu0 %2236, %v1975
        %v2238 = vpop.permute.xlu0 %2237
        %2241 = vset.pattern.permute.xlu0 0
        %2242 = vperm.xlu0 %2241, %v1976
        %v2243 = vpop.permute.xlu0 %2242
        %2246 = vset.pattern.permute.xlu0 0
        %2247 = vperm.xlu0 %2246, %v1977
        %v2248 = vpop.permute.xlu0 %2247
        %2251 = vset.pattern.permute.xlu0 0
        %2252 = vperm.xlu0 %2251, %v1978
        %v2253 = vpop.permute.xlu0 %2252
        %2256 = vset.pattern.permute.xlu0 0
        %2257 = vperm.xlu0 %2256, %v1979
        %v2258 = vpop.permute.xlu0 %2257
        %2261 = vset.pattern.permute.xlu0 0
        %2262 = vperm.xlu0 %2261, %v1980
        %v2263 = vpop.permute.xlu0 %2262
        %2266 = vset.pattern.permute.xlu0 0
        %2267 = vperm.xlu0 %2266, %v1981
        %v2268 = vpop.permute.xlu0 %2267
        %2271 = vset.pattern.permute.xlu0 0
        %2272 = vperm.xlu0 %2271, %v1982
        %v2273 = vpop.permute.xlu0 %2272
        %2276 = vset.pattern.permute.xlu0 0
        %2277 = vperm.xlu0 %2276, %v1983
        %v2278 = vpop.permute.xlu0 %2277
        %2281 = vset.pattern.permute.xlu0 0
        %2282 = vperm.xlu0 %2281, %v1984
        %v2283 = vpop.permute.xlu0 %2282
        %2286 = vset.pattern.permute.xlu0 0
        %2287 = vperm.xlu0 %2286, %v1985
        %v2288 = vpop.permute.xlu0 %2287
        %2291 = vset.pattern.permute.xlu0 0
        %2292 = vperm.xlu0 %2291, %v1986
        %v2293 = vpop.permute.xlu0 %2292
        %2296 = vset.pattern.permute.xlu0 0
        %2297 = vperm.xlu0 %2296, %v1987
        %v2298 = vpop.permute.xlu0 %2297
        %2301 = vset.pattern.permute.xlu0 0
        %2302 = vperm.xlu0 %2301, %v1988
        %v2303 = vpop.permute.xlu0 %2302
        %2306 = vset.pattern.permute.xlu0 0
        %2307 = vperm.xlu0 %2306, %v1989
        %v2308 = vpop.permute.xlu0 %2307
        %2311 = vset.pattern.permute.xlu0 0
        %2312 = vperm.xlu0 %2311, %v1990
        %v2313 = vpop.permute.xlu0 %2312
        %2316 = vset.pattern.permute.xlu0 0
        %2317 = vperm.xlu0 %2316, %v1991
        %v2318 = vpop.permute.xlu0 %2317
        %2321 = vset.pattern.permute.xlu0 0
        %2322 = vperm.xlu0 %2321, %v1992
        %v2323 = vpop.permute.xlu0 %2322
        %2326 = vset.pattern.permute.xlu0 0
        %2327 = vperm.xlu0 %2326, %v1993
        %v2328 = vpop.permute.xlu0 %2327
        %2331 = vset.pattern.permute.xlu0 0
        %2332 = vperm.xlu0 %2331, %v1994
        %v2333 = vpop.permute.xlu0 %2332
        %2336 = vset.pattern.permute.xlu0 0
        %2337 = vperm.xlu0 %2336, %v1995
        %v2338 = vpop.permute.xlu0 %2337
        %2341 = vset.pattern.permute.xlu0 0
        %2342 = vperm.xlu0 %2341, %v1996
        %v2343 = vpop.permute.xlu0 %2342
        %2346 = vset.pattern.permute.xlu0 0
        %2347 = vperm.xlu0 %2346, %v1997
        %v2348 = vpop.permute.xlu0 %2347
        %2351 = vset.pattern.permute.xlu0 0
        %2352 = vperm.xlu0 %2351, %v1998
        %v2353 = vpop.permute.xlu0 %2352
        %2356 = vset.pattern.permute.xlu0 0
        %2357 = vperm.xlu0 %2356, %v1999
        %v2358 = vpop.permute.xlu0 %2357
        %2361 = vset.pattern.permute.xlu0 0
        %2362 = vperm.xlu0 %2361, %v2000
        %v2363 = vpop.permute.xlu0 %2362
        %2366 = vset.pattern.permute.xlu0 0
        %2367 = vperm.xlu0 %2366, %v2001
        %v2368 = vpop.permute.xlu0 %2367
        %2371 = vset.pattern.permute.xlu0 0
        %2372 = vperm.xlu0 %2371, %v2002
        %v2373 = vpop.permute.xlu0 %2372
        %2376 = vset.pattern.permute.xlu0 0
        %2377 = vperm.xlu0 %2376, %v2003
        %v2378 = vpop.permute.xlu0 %2377
        %2381 = vset.pattern.permute.xlu0 0
        %2382 = vperm.xlu0 %2381, %v2004
        %v2383 = vpop.permute.xlu0 %2382
        %2386 = vset.pattern.permute.xlu0 0
        %2387 = vperm.xlu0 %2386, %v2005
        %v2388 = vpop.permute.xlu0 %2387
        %v2390 = vadd.f32 %v2198, %v2233
        %v2391 = vadd.f32 %v2199, %v2238
        %v2392 = vadd.f32 %v2200, %v2243
        %v2393 = vadd.f32 %v2201, %v2248
        %v2394 = vadd.f32 %v2202, %v2253
        %v2395 = vadd.f32 %v2203, %v2258
        %v2396 = vadd.f32 %v2204, %v2263
        %v2397 = vadd.f32 %v2205, %v2268
        %v2398 = vadd.f32 %v2206, %v2273
        %v2399 = vadd.f32 %v2207, %v2278
        %v2400 = vadd.f32 %v2208, %v2283
        %v2401 = vadd.f32 %v2209, %v2288
        %v2402 = vadd.f32 %v2210, %v2293
        %v2403 = vadd.f32 %v2211, %v2298
        %v2404 = vadd.f32 %v2212, %v2303
        %v2405 = vadd.f32 %v2213, %v2308
        %v2406 = vadd.f32 %v2214, %v2313
        %v2407 = vadd.f32 %v2215, %v2318
        %v2408 = vadd.f32 %v2216, %v2323
        %v2409 = vadd.f32 %v2217, %v2328
        %v2410 = vadd.f32 %v2218, %v2333
        %v2411 = vadd.f32 %v2219, %v2338
        %v2412 = vadd.f32 %v2220, %v2343
        %v2413 = vadd.f32 %v2221, %v2348
        %v2414 = vadd.f32 %v2222, %v2353
        %v2415 = vadd.f32 %v2223, %v2358
        %v2416 = vadd.f32 %v2224, %v2363
        %v2417 = vadd.f32 %v2225, %v2368
        %v2418 = vadd.f32 %v2226, %v2373
        %v2419 = vadd.f32 %v2227, %v2378
        %v2420 = vadd.f32 %v2228, %v2383
        %v2421 = vadd.f32 %v2229, %v2388
        %v2422 = vld [vmem:[%s573] sm:$0xff]
        %v2423 = vld [vmem:[%s573 + $0x8] sm:$0xff]
        %v2424 = vld [vmem:[%s573 + $0x10] sm:$0xff]
        %v2425 = vld [vmem:[%s573 + $0x18] sm:$0xff]
        %v2426 = vld [vmem:[%s573 + $0x20] sm:$0xff]
        %v2427 = vld [vmem:[%s573 + $0x28] sm:$0xff]
        %v2428 = vld [vmem:[%s573 + $0x30] sm:$0xff]
        %v2429 = vld [vmem:[%s573 + $0x38] sm:$0xff]
        %v2430 = vld [vmem:[%s573 + $0x40] sm:$0xff]
        %v2431 = vld [vmem:[%s573 + $0x48] sm:$0xff]
        %v2432 = vld [vmem:[%s573 + $0x50] sm:$0xff]
        %v2433 = vld [vmem:[%s573 + $0x58] sm:$0xff]
        %v2434 = vld [vmem:[%s573 + $0x60] sm:$0xff]
        %v2435 = vld [vmem:[%s573 + $0x68] sm:$0xff]
        %v2436 = vld [vmem:[%s573 + $0x70] sm:$0xff]
        %v2437 = vld [vmem:[%s573 + $0x78] sm:$0xff]
        %v2438 = vld [vmem:[%s573 + $0x80] sm:$0xff]
        %v2439 = vld [vmem:[%s573 + $0x88] sm:$0xff]
        %v2440 = vld [vmem:[%s573 + $0x90] sm:$0xff]
        %v2441 = vld [vmem:[%s573 + $0x98] sm:$0xff]
        %v2442 = vld [vmem:[%s573 + $0xa0] sm:$0xff]
        %v2443 = vld [vmem:[%s573 + $0xa8] sm:$0xff]
        %v2444 = vld [vmem:[%s573 + $0xb0] sm:$0xff]
        %v2445 = vld [vmem:[%s573 + $0xb8] sm:$0xff]
        %v2446 = vld [vmem:[%s573 + $0xc0] sm:$0xff]
        %v2447 = vld [vmem:[%s573 + $0xc8] sm:$0xff]
        %v2448 = vld [vmem:[%s573 + $0xd0] sm:$0xff]
        %v2449 = vld [vmem:[%s573 + $0xd8] sm:$0xff]
        %v2450 = vld [vmem:[%s573 + $0xe0] sm:$0xff]
        %v2451 = vld [vmem:[%s573 + $0xe8] sm:$0xff]
        %v2452 = vld [vmem:[%s573 + $0xf0] sm:$0xff]
        %v2453 = vld [vmem:[%s573 + $0xf8] sm:$0xff]
        %v2454 = vld [vmem:[%s573 + $0x100] sm:$0xff]
        %v2455 = vld [vmem:[%s573 + $0x108] sm:$0xff]
        %v2456 = vld [vmem:[%s573 + $0x110] sm:$0xff]
        %v2457 = vld [vmem:[%s573 + $0x118] sm:$0xff]
        %v2458 = vld [vmem:[%s573 + $0x120] sm:$0xff]
        %v2459 = vld [vmem:[%s573 + $0x128] sm:$0xff]
        %v2460 = vld [vmem:[%s573 + $0x130] sm:$0xff]
        %v2461 = vld [vmem:[%s573 + $0x138] sm:$0xff]
        %v2462 = vld [vmem:[%s573 + $0x140] sm:$0xff]
        %v2463 = vld [vmem:[%s573 + $0x148] sm:$0xff]
        %v2464 = vld [vmem:[%s573 + $0x150] sm:$0xff]
        %v2465 = vld [vmem:[%s573 + $0x158] sm:$0xff]
        %v2466 = vld [vmem:[%s573 + $0x160] sm:$0xff]
        %v2467 = vld [vmem:[%s573 + $0x168] sm:$0xff]
        %v2468 = vld [vmem:[%s573 + $0x170] sm:$0xff]
        %v2469 = vld [vmem:[%s573 + $0x178] sm:$0xff]
        %v2470 = vld [vmem:[%s573 + $0x180] sm:$0xff]
        %v2471 = vld [vmem:[%s573 + $0x188] sm:$0xff]
        %v2472 = vld [vmem:[%s573 + $0x190] sm:$0xff]
        %v2473 = vld [vmem:[%s573 + $0x198] sm:$0xff]
        %v2474 = vld [vmem:[%s573 + $0x1a0] sm:$0xff]
        %v2475 = vld [vmem:[%s573 + $0x1a8] sm:$0xff]
        %v2476 = vld [vmem:[%s573 + $0x1b0] sm:$0xff]
        %v2477 = vld [vmem:[%s573 + $0x1b8] sm:$0xff]
        %v2478 = vld [vmem:[%s573 + $0x1c0] sm:$0xff]
        %v2479 = vld [vmem:[%s573 + $0x1c8] sm:$0xff]
        %v2480 = vld [vmem:[%s573 + $0x1d0] sm:$0xff]
        %v2481 = vld [vmem:[%s573 + $0x1d8] sm:$0xff]
        %v2482 = vld [vmem:[%s573 + $0x1e0] sm:$0xff]
        %v2483 = vld [vmem:[%s573 + $0x1e8] sm:$0xff]
        %v2484 = vld [vmem:[%s573 + $0x1f0] sm:$0xff]
        %v2485 = vld [vmem:[%s573 + $0x1f8] sm:$0xff]
        %v2486 = vld [vmem:[%s573 + $0x200] sm:$0xff]
        %v2487 = vld [vmem:[%s573 + $0x208] sm:$0xff]
        %v2488 = vld [vmem:[%s573 + $0x210] sm:$0xff]
        %v2489 = vld [vmem:[%s573 + $0x218] sm:$0xff]
        %v2490 = vld [vmem:[%s573 + $0x220] sm:$0xff]
        %v2491 = vld [vmem:[%s573 + $0x228] sm:$0xff]
        %v2492 = vld [vmem:[%s573 + $0x230] sm:$0xff]
        %v2493 = vld [vmem:[%s573 + $0x238] sm:$0xff]
        %v2494 = vld [vmem:[%s573 + $0x240] sm:$0xff]
        %v2495 = vld [vmem:[%s573 + $0x248] sm:$0xff]
        %v2496 = vld [vmem:[%s573 + $0x250] sm:$0xff]
        %v2497 = vld [vmem:[%s573 + $0x258] sm:$0xff]
        %v2498 = vld [vmem:[%s573 + $0x260] sm:$0xff]
        %v2499 = vld [vmem:[%s573 + $0x268] sm:$0xff]
        %v2500 = vld [vmem:[%s573 + $0x270] sm:$0xff]
        %v2501 = vld [vmem:[%s573 + $0x278] sm:$0xff]
        %v2502 = vld [vmem:[%s573 + $0x280] sm:$0xff]
        %v2503 = vld [vmem:[%s573 + $0x288] sm:$0xff]
        %v2504 = vld [vmem:[%s573 + $0x290] sm:$0xff]
        %v2505 = vld [vmem:[%s573 + $0x298] sm:$0xff]
        %v2506 = vld [vmem:[%s573 + $0x2a0] sm:$0xff]
        %v2507 = vld [vmem:[%s573 + $0x2a8] sm:$0xff]
        %v2508 = vld [vmem:[%s573 + $0x2b0] sm:$0xff]
        %v2509 = vld [vmem:[%s573 + $0x2b8] sm:$0xff]
        %v2510 = vld [vmem:[%s573 + $0x2c0] sm:$0xff]
        %v2511 = vld [vmem:[%s573 + $0x2c8] sm:$0xff]
        %v2512 = vld [vmem:[%s573 + $0x2d0] sm:$0xff]
        %v2513 = vld [vmem:[%s573 + $0x2d8] sm:$0xff]
        %v2514 = vld [vmem:[%s573 + $0x2e0] sm:$0xff]
        %v2515 = vld [vmem:[%s573 + $0x2e8] sm:$0xff]
        %v2516 = vld [vmem:[%s573 + $0x2f0] sm:$0xff]
        %v2517 = vld [vmem:[%s573 + $0x2f8] sm:$0xff]
        %v2518 = vld [vmem:[%s573 + $0x300] sm:$0xff]
        %v2519 = vld [vmem:[%s573 + $0x308] sm:$0xff]
        %v2520 = vld [vmem:[%s573 + $0x310] sm:$0xff]
        %v2521 = vld [vmem:[%s573 + $0x318] sm:$0xff]
        %v2522 = vld [vmem:[%s573 + $0x320] sm:$0xff]
        %v2523 = vld [vmem:[%s573 + $0x328] sm:$0xff]
        %v2524 = vld [vmem:[%s573 + $0x330] sm:$0xff]
        %v2525 = vld [vmem:[%s573 + $0x338] sm:$0xff]
        %v2526 = vld [vmem:[%s573 + $0x340] sm:$0xff]
        %v2527 = vld [vmem:[%s573 + $0x348] sm:$0xff]
        %v2528 = vld [vmem:[%s573 + $0x350] sm:$0xff]
        %v2529 = vld [vmem:[%s573 + $0x358] sm:$0xff]
        %v2530 = vld [vmem:[%s573 + $0x360] sm:$0xff]
        %v2531 = vld [vmem:[%s573 + $0x368] sm:$0xff]
        %v2532 = vld [vmem:[%s573 + $0x370] sm:$0xff]
        %v2533 = vld [vmem:[%s573 + $0x378] sm:$0xff]
        %v2534 = vld [vmem:[%s573 + $0x380] sm:$0xff]
        %v2535 = vld [vmem:[%s573 + $0x388] sm:$0xff]
        %v2536 = vld [vmem:[%s573 + $0x390] sm:$0xff]
        %v2537 = vld [vmem:[%s573 + $0x398] sm:$0xff]
        %v2538 = vld [vmem:[%s573 + $0x3a0] sm:$0xff]
        %v2539 = vld [vmem:[%s573 + $0x3a8] sm:$0xff]
        %v2540 = vld [vmem:[%s573 + $0x3b0] sm:$0xff]
        %v2541 = vld [vmem:[%s573 + $0x3b8] sm:$0xff]
        %v2542 = vld [vmem:[%s573 + $0x3c0] sm:$0xff]
        %v2543 = vld [vmem:[%s573 + $0x3c8] sm:$0xff]
        %v2544 = vld [vmem:[%s573 + $0x3d0] sm:$0xff]
        %v2545 = vld [vmem:[%s573 + $0x3d8] sm:$0xff]
        %v2546 = vld [vmem:[%s573 + $0x3e0] sm:$0xff]
        %v2547 = vld [vmem:[%s573 + $0x3e8] sm:$0xff]
        %v2548 = vld [vmem:[%s573 + $0x3f0] sm:$0xff]
        %v2549 = vld [vmem:[%s573 + $0x3f8] sm:$0xff]
        %v2550 = vld [vmem:[%s573 + $0x400] sm:$0xff]
        %v2551 = vld [vmem:[%s573 + $0x408] sm:$0xff]
        %v2552 = vld [vmem:[%s573 + $0x410] sm:$0xff]
        %v2553 = vld [vmem:[%s573 + $0x418] sm:$0xff]
        %v2554 = vld [vmem:[%s573 + $0x420] sm:$0xff]
        %v2555 = vld [vmem:[%s573 + $0x428] sm:$0xff]
        %v2556 = vld [vmem:[%s573 + $0x430] sm:$0xff]
        %v2557 = vld [vmem:[%s573 + $0x438] sm:$0xff]
        %v2558 = vld [vmem:[%s573 + $0x440] sm:$0xff]
        %v2559 = vld [vmem:[%s573 + $0x448] sm:$0xff]
        %v2560 = vld [vmem:[%s573 + $0x450] sm:$0xff]
        %v2561 = vld [vmem:[%s573 + $0x458] sm:$0xff]
        %v2562 = vld [vmem:[%s573 + $0x460] sm:$0xff]
        %v2563 = vld [vmem:[%s573 + $0x468] sm:$0xff]
        %v2564 = vld [vmem:[%s573 + $0x470] sm:$0xff]
        %v2565 = vld [vmem:[%s573 + $0x478] sm:$0xff]
        %v2566 = vld [vmem:[%s573 + $0x480] sm:$0xff]
        %v2567 = vld [vmem:[%s573 + $0x488] sm:$0xff]
        %v2568 = vld [vmem:[%s573 + $0x490] sm:$0xff]
        %v2569 = vld [vmem:[%s573 + $0x498] sm:$0xff]
        %v2570 = vld [vmem:[%s573 + $0x4a0] sm:$0xff]
        %v2571 = vld [vmem:[%s573 + $0x4a8] sm:$0xff]
        %v2572 = vld [vmem:[%s573 + $0x4b0] sm:$0xff]
        %v2573 = vld [vmem:[%s573 + $0x4b8] sm:$0xff]
        %v2574 = vld [vmem:[%s573 + $0x4c0] sm:$0xff]
        %v2575 = vld [vmem:[%s573 + $0x4c8] sm:$0xff]
        %v2576 = vld [vmem:[%s573 + $0x4d0] sm:$0xff]
        %v2577 = vld [vmem:[%s573 + $0x4d8] sm:$0xff]
        %v2578 = vld [vmem:[%s573 + $0x4e0] sm:$0xff]
        %v2579 = vld [vmem:[%s573 + $0x4e8] sm:$0xff]
        %v2580 = vld [vmem:[%s573 + $0x4f0] sm:$0xff]
        %v2581 = vld [vmem:[%s573 + $0x4f8] sm:$0xff]
        %v2582 = vld [vmem:[%s573 + $0x500] sm:$0xff]
        %v2583 = vld [vmem:[%s573 + $0x508] sm:$0xff]
        %v2584 = vld [vmem:[%s573 + $0x510] sm:$0xff]
        %v2585 = vld [vmem:[%s573 + $0x518] sm:$0xff]
        %v2586 = vld [vmem:[%s573 + $0x520] sm:$0xff]
        %v2587 = vld [vmem:[%s573 + $0x528] sm:$0xff]
        %v2588 = vld [vmem:[%s573 + $0x530] sm:$0xff]
        %v2589 = vld [vmem:[%s573 + $0x538] sm:$0xff]
        %v2590 = vld [vmem:[%s573 + $0x540] sm:$0xff]
        %v2591 = vld [vmem:[%s573 + $0x548] sm:$0xff]
        %v2592 = vld [vmem:[%s573 + $0x550] sm:$0xff]
        %v2593 = vld [vmem:[%s573 + $0x558] sm:$0xff]
        %v2594 = vld [vmem:[%s573 + $0x560] sm:$0xff]
        %v2595 = vld [vmem:[%s573 + $0x568] sm:$0xff]
        %v2596 = vld [vmem:[%s573 + $0x570] sm:$0xff]
        %v2597 = vld [vmem:[%s573 + $0x578] sm:$0xff]
        %v2598 = vld [vmem:[%s573 + $0x580] sm:$0xff]
        %v2599 = vld [vmem:[%s573 + $0x588] sm:$0xff]
        %v2600 = vld [vmem:[%s573 + $0x590] sm:$0xff]
        %v2601 = vld [vmem:[%s573 + $0x598] sm:$0xff]
        %v2602 = vld [vmem:[%s573 + $0x5a0] sm:$0xff]
        %v2603 = vld [vmem:[%s573 + $0x5a8] sm:$0xff]
        %v2604 = vld [vmem:[%s573 + $0x5b0] sm:$0xff]
        %v2605 = vld [vmem:[%s573 + $0x5b8] sm:$0xff]
        %v2606 = vld [vmem:[%s573 + $0x5c0] sm:$0xff]
        %v2607 = vld [vmem:[%s573 + $0x5c8] sm:$0xff]
        %v2608 = vld [vmem:[%s573 + $0x5d0] sm:$0xff]
        %v2609 = vld [vmem:[%s573 + $0x5d8] sm:$0xff]
        %v2610 = vld [vmem:[%s573 + $0x5e0] sm:$0xff]
        %v2611 = vld [vmem:[%s573 + $0x5e8] sm:$0xff]
        %v2612 = vld [vmem:[%s573 + $0x5f0] sm:$0xff]
        %v2613 = vld [vmem:[%s573 + $0x5f8] sm:$0xff]
        %v2614 = vld [vmem:[%s573 + $0x600] sm:$0xff]
        %v2615 = vld [vmem:[%s573 + $0x608] sm:$0xff]
        %v2616 = vld [vmem:[%s573 + $0x610] sm:$0xff]
        %v2617 = vld [vmem:[%s573 + $0x618] sm:$0xff]
        %v2618 = vld [vmem:[%s573 + $0x620] sm:$0xff]
        %v2619 = vld [vmem:[%s573 + $0x628] sm:$0xff]
        %v2620 = vld [vmem:[%s573 + $0x630] sm:$0xff]
        %v2621 = vld [vmem:[%s573 + $0x638] sm:$0xff]
        %v2622 = vld [vmem:[%s573 + $0x640] sm:$0xff]
        %v2623 = vld [vmem:[%s573 + $0x648] sm:$0xff]
        %v2624 = vld [vmem:[%s573 + $0x650] sm:$0xff]
        %v2625 = vld [vmem:[%s573 + $0x658] sm:$0xff]
        %v2626 = vld [vmem:[%s573 + $0x660] sm:$0xff]
        %v2627 = vld [vmem:[%s573 + $0x668] sm:$0xff]
        %v2628 = vld [vmem:[%s573 + $0x670] sm:$0xff]
        %v2629 = vld [vmem:[%s573 + $0x678] sm:$0xff]
        %v2630 = vld [vmem:[%s573 + $0x680] sm:$0xff]
        %v2631 = vld [vmem:[%s573 + $0x688] sm:$0xff]
        %v2632 = vld [vmem:[%s573 + $0x690] sm:$0xff]
        %v2633 = vld [vmem:[%s573 + $0x698] sm:$0xff]
        %v2634 = vld [vmem:[%s573 + $0x6a0] sm:$0xff]
        %v2635 = vld [vmem:[%s573 + $0x6a8] sm:$0xff]
        %v2636 = vld [vmem:[%s573 + $0x6b0] sm:$0xff]
        %v2637 = vld [vmem:[%s573 + $0x6b8] sm:$0xff]
        %v2638 = vld [vmem:[%s573 + $0x6c0] sm:$0xff]
        %v2639 = vld [vmem:[%s573 + $0x6c8] sm:$0xff]
        %v2640 = vld [vmem:[%s573 + $0x6d0] sm:$0xff]
        %v2641 = vld [vmem:[%s573 + $0x6d8] sm:$0xff]
        %v2642 = vld [vmem:[%s573 + $0x6e0] sm:$0xff]
        %v2643 = vld [vmem:[%s573 + $0x6e8] sm:$0xff]
        %v2644 = vld [vmem:[%s573 + $0x6f0] sm:$0xff]
        %v2645 = vld [vmem:[%s573 + $0x6f8] sm:$0xff]
        %v2646 = vld [vmem:[%s573 + $0x700] sm:$0xff]
        %v2647 = vld [vmem:[%s573 + $0x708] sm:$0xff]
        %v2648 = vld [vmem:[%s573 + $0x710] sm:$0xff]
        %v2649 = vld [vmem:[%s573 + $0x718] sm:$0xff]
        %v2650 = vld [vmem:[%s573 + $0x720] sm:$0xff]
        %v2651 = vld [vmem:[%s573 + $0x728] sm:$0xff]
        %v2652 = vld [vmem:[%s573 + $0x730] sm:$0xff]
        %v2653 = vld [vmem:[%s573 + $0x738] sm:$0xff]
        %v2654 = vld [vmem:[%s573 + $0x740] sm:$0xff]
        %v2655 = vld [vmem:[%s573 + $0x748] sm:$0xff]
        %v2656 = vld [vmem:[%s573 + $0x750] sm:$0xff]
        %v2657 = vld [vmem:[%s573 + $0x758] sm:$0xff]
        %v2658 = vld [vmem:[%s573 + $0x760] sm:$0xff]
        %v2659 = vld [vmem:[%s573 + $0x768] sm:$0xff]
        %v2660 = vld [vmem:[%s573 + $0x770] sm:$0xff]
        %v2661 = vld [vmem:[%s573 + $0x778] sm:$0xff]
        %v2662 = vld [vmem:[%s573 + $0x780] sm:$0xff]
        %v2663 = vld [vmem:[%s573 + $0x788] sm:$0xff]
        %v2664 = vld [vmem:[%s573 + $0x790] sm:$0xff]
        %v2665 = vld [vmem:[%s573 + $0x798] sm:$0xff]
        %v2666 = vld [vmem:[%s573 + $0x7a0] sm:$0xff]
        %v2667 = vld [vmem:[%s573 + $0x7a8] sm:$0xff]
        %v2668 = vld [vmem:[%s573 + $0x7b0] sm:$0xff]
        %v2669 = vld [vmem:[%s573 + $0x7b8] sm:$0xff]
        %v2670 = vld [vmem:[%s573 + $0x7c0] sm:$0xff]
        %v2671 = vld [vmem:[%s573 + $0x7c8] sm:$0xff]
        %v2672 = vld [vmem:[%s573 + $0x7d0] sm:$0xff]
        %v2673 = vld [vmem:[%s573 + $0x7d8] sm:$0xff]
        %v2674 = vld [vmem:[%s573 + $0x7e0] sm:$0xff]
        %v2675 = vld [vmem:[%s573 + $0x7e8] sm:$0xff]
        %v2676 = vld [vmem:[%s573 + $0x7f0] sm:$0xff]
        %v2677 = vld [vmem:[%s573 + $0x7f8] sm:$0xff]
        %v2678 = vld [vmem:[%s573 + $0x800] sm:$0xff]
        %v2679 = vld [vmem:[%s573 + $0x808] sm:$0xff]
        %v2680 = vld [vmem:[%s573 + $0x810] sm:$0xff]
        %v2681 = vld [vmem:[%s573 + $0x818] sm:$0xff]
        %v2682 = vld [vmem:[%s573 + $0x820] sm:$0xff]
        %v2683 = vld [vmem:[%s573 + $0x828] sm:$0xff]
        %v2684 = vld [vmem:[%s573 + $0x830] sm:$0xff]
        %v2685 = vld [vmem:[%s573 + $0x838] sm:$0xff]
        %v2686 = vld [vmem:[%s573 + $0x840] sm:$0xff]
        %v2687 = vld [vmem:[%s573 + $0x848] sm:$0xff]
        %v2688 = vld [vmem:[%s573 + $0x850] sm:$0xff]
        %v2689 = vld [vmem:[%s573 + $0x858] sm:$0xff]
        %v2690 = vld [vmem:[%s573 + $0x860] sm:$0xff]
        %v2691 = vld [vmem:[%s573 + $0x868] sm:$0xff]
        %v2692 = vld [vmem:[%s573 + $0x870] sm:$0xff]
        %v2693 = vld [vmem:[%s573 + $0x878] sm:$0xff]
        %v2694 = vld [vmem:[%s573 + $0x880] sm:$0xff]
        %v2695 = vld [vmem:[%s573 + $0x888] sm:$0xff]
        %v2696 = vld [vmem:[%s573 + $0x890] sm:$0xff]
        %v2697 = vld [vmem:[%s573 + $0x898] sm:$0xff]
        %v2698 = vld [vmem:[%s573 + $0x8a0] sm:$0xff]
        %v2699 = vld [vmem:[%s573 + $0x8a8] sm:$0xff]
        %v2700 = vld [vmem:[%s573 + $0x8b0] sm:$0xff]
        %v2701 = vld [vmem:[%s573 + $0x8b8] sm:$0xff]
        %v2702 = vld [vmem:[%s573 + $0x8c0] sm:$0xff]
        %v2703 = vld [vmem:[%s573 + $0x8c8] sm:$0xff]
        %v2704 = vld [vmem:[%s573 + $0x8d0] sm:$0xff]
        %v2705 = vld [vmem:[%s573 + $0x8d8] sm:$0xff]
        %v2706 = vld [vmem:[%s573 + $0x8e0] sm:$0xff]
        %v2707 = vld [vmem:[%s573 + $0x8e8] sm:$0xff]
        %v2708 = vld [vmem:[%s573 + $0x8f0] sm:$0xff]
        %v2709 = vld [vmem:[%s573 + $0x8f8] sm:$0xff]
        %v2710 = vld [vmem:[%s573 + $0x900] sm:$0xff]
        %v2711 = vld [vmem:[%s573 + $0x908] sm:$0xff]
        %v2712 = vld [vmem:[%s573 + $0x910] sm:$0xff]
        %v2713 = vld [vmem:[%s573 + $0x918] sm:$0xff]
        %v2714 = vld [vmem:[%s573 + $0x920] sm:$0xff]
        %v2715 = vld [vmem:[%s573 + $0x928] sm:$0xff]
        %v2716 = vld [vmem:[%s573 + $0x930] sm:$0xff]
        %v2717 = vld [vmem:[%s573 + $0x938] sm:$0xff]
        %v2718 = vld [vmem:[%s573 + $0x940] sm:$0xff]
        %v2719 = vld [vmem:[%s573 + $0x948] sm:$0xff]
        %v2720 = vld [vmem:[%s573 + $0x950] sm:$0xff]
        %v2721 = vld [vmem:[%s573 + $0x958] sm:$0xff]
        %v2722 = vld [vmem:[%s573 + $0x960] sm:$0xff]
        %v2723 = vld [vmem:[%s573 + $0x968] sm:$0xff]
        %v2724 = vld [vmem:[%s573 + $0x970] sm:$0xff]
        %v2725 = vld [vmem:[%s573 + $0x978] sm:$0xff]
        %v2726 = vld [vmem:[%s573 + $0x980] sm:$0xff]
        %v2727 = vld [vmem:[%s573 + $0x988] sm:$0xff]
        %v2728 = vld [vmem:[%s573 + $0x990] sm:$0xff]
        %v2729 = vld [vmem:[%s573 + $0x998] sm:$0xff]
        %v2730 = vld [vmem:[%s573 + $0x9a0] sm:$0xff]
        %v2731 = vld [vmem:[%s573 + $0x9a8] sm:$0xff]
        %v2732 = vld [vmem:[%s573 + $0x9b0] sm:$0xff]
        %v2733 = vld [vmem:[%s573 + $0x9b8] sm:$0xff]
        %v2734 = vld [vmem:[%s573 + $0x9c0] sm:$0xff]
        %v2735 = vld [vmem:[%s573 + $0x9c8] sm:$0xff]
        %v2736 = vld [vmem:[%s573 + $0x9d0] sm:$0xff]
        %v2737 = vld [vmem:[%s573 + $0x9d8] sm:$0xff]
        %v2738 = vld [vmem:[%s573 + $0x9e0] sm:$0xff]
        %v2739 = vld [vmem:[%s573 + $0x9e8] sm:$0xff]
        %v2740 = vld [vmem:[%s573 + $0x9f0] sm:$0xff]
        %v2741 = vld [vmem:[%s573 + $0x9f8] sm:$0xff]
        %v2742 = vld [vmem:[%s573 + $0xa00] sm:$0xff]
        %v2743 = vld [vmem:[%s573 + $0xa08] sm:$0xff]
        %v2744 = vld [vmem:[%s573 + $0xa10] sm:$0xff]
        %v2745 = vld [vmem:[%s573 + $0xa18] sm:$0xff]
        %v2746 = vld [vmem:[%s573 + $0xa20] sm:$0xff]
        %v2747 = vld [vmem:[%s573 + $0xa28] sm:$0xff]
        %v2748 = vld [vmem:[%s573 + $0xa30] sm:$0xff]
        %v2749 = vld [vmem:[%s573 + $0xa38] sm:$0xff]
        %v2750 = vld [vmem:[%s573 + $0xa40] sm:$0xff]
        %v2751 = vld [vmem:[%s573 + $0xa48] sm:$0xff]
        %v2752 = vld [vmem:[%s573 + $0xa50] sm:$0xff]
        %v2753 = vld [vmem:[%s573 + $0xa58] sm:$0xff]
        %v2754 = vld [vmem:[%s573 + $0xa60] sm:$0xff]
        %v2755 = vld [vmem:[%s573 + $0xa68] sm:$0xff]
        %v2756 = vld [vmem:[%s573 + $0xa70] sm:$0xff]
        %v2757 = vld [vmem:[%s573 + $0xa78] sm:$0xff]
        %v2758 = vld [vmem:[%s573 + $0xa80] sm:$0xff]
        %v2759 = vld [vmem:[%s573 + $0xa88] sm:$0xff]
        %v2760 = vld [vmem:[%s573 + $0xa90] sm:$0xff]
        %v2761 = vld [vmem:[%s573 + $0xa98] sm:$0xff]
        %v2762 = vld [vmem:[%s573 + $0xaa0] sm:$0xff]
        %v2763 = vld [vmem:[%s573 + $0xaa8] sm:$0xff]
        %v2764 = vld [vmem:[%s573 + $0xab0] sm:$0xff]
        %v2765 = vld [vmem:[%s573 + $0xab8] sm:$0xff]
        %v2766 = vld [vmem:[%s573 + $0xac0] sm:$0xff]
        %v2767 = vld [vmem:[%s573 + $0xac8] sm:$0xff]
        %v2768 = vld [vmem:[%s573 + $0xad0] sm:$0xff]
        %v2769 = vld [vmem:[%s573 + $0xad8] sm:$0xff]
        %v2770 = vld [vmem:[%s573 + $0xae0] sm:$0xff]
        %v2771 = vld [vmem:[%s573 + $0xae8] sm:$0xff]
        %v2772 = vld [vmem:[%s573 + $0xaf0] sm:$0xff]
        %v2773 = vld [vmem:[%s573 + $0xaf8] sm:$0xff]
        %v2774 = vld [vmem:[%s573 + $0xb00] sm:$0xff]
        %v2775 = vld [vmem:[%s573 + $0xb08] sm:$0xff]
        %v2776 = vld [vmem:[%s573 + $0xb10] sm:$0xff]
        %v2777 = vld [vmem:[%s573 + $0xb18] sm:$0xff]
        %v2778 = vld [vmem:[%s573 + $0xb20] sm:$0xff]
        %v2779 = vld [vmem:[%s573 + $0xb28] sm:$0xff]
        %v2780 = vld [vmem:[%s573 + $0xb30] sm:$0xff]
        %v2781 = vld [vmem:[%s573 + $0xb38] sm:$0xff]
        %v2782 = vld [vmem:[%s573 + $0xb40] sm:$0xff]
        %v2783 = vld [vmem:[%s573 + $0xb48] sm:$0xff]
        %v2784 = vld [vmem:[%s573 + $0xb50] sm:$0xff]
        %v2785 = vld [vmem:[%s573 + $0xb58] sm:$0xff]
        %v2786 = vld [vmem:[%s573 + $0xb60] sm:$0xff]
        %v2787 = vld [vmem:[%s573 + $0xb68] sm:$0xff]
        %v2788 = vld [vmem:[%s573 + $0xb70] sm:$0xff]
        %v2789 = vld [vmem:[%s573 + $0xb78] sm:$0xff]
        %v2790 = vld [vmem:[%s573 + $0xb80] sm:$0xff]
        %v2791 = vld [vmem:[%s573 + $0xb88] sm:$0xff]
        %v2792 = vld [vmem:[%s573 + $0xb90] sm:$0xff]
        %v2793 = vld [vmem:[%s573 + $0xb98] sm:$0xff]
        %v2794 = vld [vmem:[%s573 + $0xba0] sm:$0xff]
        %v2795 = vld [vmem:[%s573 + $0xba8] sm:$0xff]
        %v2796 = vld [vmem:[%s573 + $0xbb0] sm:$0xff]
        %v2797 = vld [vmem:[%s573 + $0xbb8] sm:$0xff]
        %v2798 = vld [vmem:[%s573 + $0xbc0] sm:$0xff]
        %v2799 = vld [vmem:[%s573 + $0xbc8] sm:$0xff]
        %v2800 = vld [vmem:[%s573 + $0xbd0] sm:$0xff]
        %v2801 = vld [vmem:[%s573 + $0xbd8] sm:$0xff]
        %v2802 = vld [vmem:[%s573 + $0xbe0] sm:$0xff]
        %v2803 = vld [vmem:[%s573 + $0xbe8] sm:$0xff]
        %v2804 = vld [vmem:[%s573 + $0xbf0] sm:$0xff]
        %v2805 = vld [vmem:[%s573 + $0xbf8] sm:$0xff]
        %v2806 = vld [vmem:[%s573 + $0xc00] sm:$0xff]
        %v2807 = vld [vmem:[%s573 + $0xc08] sm:$0xff]
        %v2808 = vld [vmem:[%s573 + $0xc10] sm:$0xff]
        %v2809 = vld [vmem:[%s573 + $0xc18] sm:$0xff]
        %v2810 = vld [vmem:[%s573 + $0xc20] sm:$0xff]
        %v2811 = vld [vmem:[%s573 + $0xc28] sm:$0xff]
        %v2812 = vld [vmem:[%s573 + $0xc30] sm:$0xff]
        %v2813 = vld [vmem:[%s573 + $0xc38] sm:$0xff]
        %v2814 = vld [vmem:[%s573 + $0xc40] sm:$0xff]
        %v2815 = vld [vmem:[%s573 + $0xc48] sm:$0xff]
        %v2816 = vld [vmem:[%s573 + $0xc50] sm:$0xff]
        %v2817 = vld [vmem:[%s573 + $0xc58] sm:$0xff]
        %v2818 = vld [vmem:[%s573 + $0xc60] sm:$0xff]
        %v2819 = vld [vmem:[%s573 + $0xc68] sm:$0xff]
        %v2820 = vld [vmem:[%s573 + $0xc70] sm:$0xff]
        %v2821 = vld [vmem:[%s573 + $0xc78] sm:$0xff]
        %v2822 = vld [vmem:[%s573 + $0xc80] sm:$0xff]
        %v2823 = vld [vmem:[%s573 + $0xc88] sm:$0xff]
        %v2824 = vld [vmem:[%s573 + $0xc90] sm:$0xff]
        %v2825 = vld [vmem:[%s573 + $0xc98] sm:$0xff]
        %v2826 = vld [vmem:[%s573 + $0xca0] sm:$0xff]
        %v2827 = vld [vmem:[%s573 + $0xca8] sm:$0xff]
        %v2828 = vld [vmem:[%s573 + $0xcb0] sm:$0xff]
        %v2829 = vld [vmem:[%s573 + $0xcb8] sm:$0xff]
        %v2830 = vld [vmem:[%s573 + $0xcc0] sm:$0xff]
        %v2831 = vld [vmem:[%s573 + $0xcc8] sm:$0xff]
        %v2832 = vld [vmem:[%s573 + $0xcd0] sm:$0xff]
        %v2833 = vld [vmem:[%s573 + $0xcd8] sm:$0xff]
        %v2834 = vld [vmem:[%s573 + $0xce0] sm:$0xff]
        %v2835 = vld [vmem:[%s573 + $0xce8] sm:$0xff]
        %v2836 = vld [vmem:[%s573 + $0xcf0] sm:$0xff]
        %v2837 = vld [vmem:[%s573 + $0xcf8] sm:$0xff]
        %v2838 = vld [vmem:[%s573 + $0xd00] sm:$0xff]
        %v2839 = vld [vmem:[%s573 + $0xd08] sm:$0xff]
        %v2840 = vld [vmem:[%s573 + $0xd10] sm:$0xff]
        %v2841 = vld [vmem:[%s573 + $0xd18] sm:$0xff]
        %v2842 = vld [vmem:[%s573 + $0xd20] sm:$0xff]
        %v2843 = vld [vmem:[%s573 + $0xd28] sm:$0xff]
        %v2844 = vld [vmem:[%s573 + $0xd30] sm:$0xff]
        %v2845 = vld [vmem:[%s573 + $0xd38] sm:$0xff]
        %v2846 = vld [vmem:[%s573 + $0xd40] sm:$0xff]
        %v2847 = vld [vmem:[%s573 + $0xd48] sm:$0xff]
        %v2848 = vld [vmem:[%s573 + $0xd50] sm:$0xff]
        %v2849 = vld [vmem:[%s573 + $0xd58] sm:$0xff]
        %v2850 = vld [vmem:[%s573 + $0xd60] sm:$0xff]
        %v2851 = vld [vmem:[%s573 + $0xd68] sm:$0xff]
        %v2852 = vld [vmem:[%s573 + $0xd70] sm:$0xff]
        %v2853 = vld [vmem:[%s573 + $0xd78] sm:$0xff]
        %v2854 = vld [vmem:[%s573 + $0xd80] sm:$0xff]
        %v2855 = vld [vmem:[%s573 + $0xd88] sm:$0xff]
        %v2856 = vld [vmem:[%s573 + $0xd90] sm:$0xff]
        %v2857 = vld [vmem:[%s573 + $0xd98] sm:$0xff]
        %v2858 = vld [vmem:[%s573 + $0xda0] sm:$0xff]
        %v2859 = vld [vmem:[%s573 + $0xda8] sm:$0xff]
        %v2860 = vld [vmem:[%s573 + $0xdb0] sm:$0xff]
        %v2861 = vld [vmem:[%s573 + $0xdb8] sm:$0xff]
        %v2862 = vld [vmem:[%s573 + $0xdc0] sm:$0xff]
        %v2863 = vld [vmem:[%s573 + $0xdc8] sm:$0xff]
        %v2864 = vld [vmem:[%s573 + $0xdd0] sm:$0xff]
        %v2865 = vld [vmem:[%s573 + $0xdd8] sm:$0xff]
        %v2866 = vld [vmem:[%s573 + $0xde0] sm:$0xff]
        %v2867 = vld [vmem:[%s573 + $0xde8] sm:$0xff]
        %v2868 = vld [vmem:[%s573 + $0xdf0] sm:$0xff]
        %v2869 = vld [vmem:[%s573 + $0xdf8] sm:$0xff]
        %v2870 = vld [vmem:[%s573 + $0xe00] sm:$0xff]
        %v2871 = vld [vmem:[%s573 + $0xe08] sm:$0xff]
        %v2872 = vld [vmem:[%s573 + $0xe10] sm:$0xff]
        %v2873 = vld [vmem:[%s573 + $0xe18] sm:$0xff]
        %v2874 = vld [vmem:[%s573 + $0xe20] sm:$0xff]
        %v2875 = vld [vmem:[%s573 + $0xe28] sm:$0xff]
        %v2876 = vld [vmem:[%s573 + $0xe30] sm:$0xff]
        %v2877 = vld [vmem:[%s573 + $0xe38] sm:$0xff]
        %v2878 = vld [vmem:[%s573 + $0xe40] sm:$0xff]
        %v2879 = vld [vmem:[%s573 + $0xe48] sm:$0xff]
        %v2880 = vld [vmem:[%s573 + $0xe50] sm:$0xff]
        %v2881 = vld [vmem:[%s573 + $0xe58] sm:$0xff]
        %v2882 = vld [vmem:[%s573 + $0xe60] sm:$0xff]
        %v2883 = vld [vmem:[%s573 + $0xe68] sm:$0xff]
        %v2884 = vld [vmem:[%s573 + $0xe70] sm:$0xff]
        %v2885 = vld [vmem:[%s573 + $0xe78] sm:$0xff]
        %v2886 = vld [vmem:[%s573 + $0xe80] sm:$0xff]
        %v2887 = vld [vmem:[%s573 + $0xe88] sm:$0xff]
        %v2888 = vld [vmem:[%s573 + $0xe90] sm:$0xff]
        %v2889 = vld [vmem:[%s573 + $0xe98] sm:$0xff]
        %v2890 = vld [vmem:[%s573 + $0xea0] sm:$0xff]
        %v2891 = vld [vmem:[%s573 + $0xea8] sm:$0xff]
        %v2892 = vld [vmem:[%s573 + $0xeb0] sm:$0xff]
        %v2893 = vld [vmem:[%s573 + $0xeb8] sm:$0xff]
        %v2894 = vld [vmem:[%s573 + $0xec0] sm:$0xff]
        %v2895 = vld [vmem:[%s573 + $0xec8] sm:$0xff]
        %v2896 = vld [vmem:[%s573 + $0xed0] sm:$0xff]
        %v2897 = vld [vmem:[%s573 + $0xed8] sm:$0xff]
        %v2898 = vld [vmem:[%s573 + $0xee0] sm:$0xff]
        %v2899 = vld [vmem:[%s573 + $0xee8] sm:$0xff]
        %v2900 = vld [vmem:[%s573 + $0xef0] sm:$0xff]
        %v2901 = vld [vmem:[%s573 + $0xef8] sm:$0xff]
        %v2902 = vld [vmem:[%s573 + $0xf00] sm:$0xff]
        %v2903 = vld [vmem:[%s573 + $0xf08] sm:$0xff]
        %v2904 = vld [vmem:[%s573 + $0xf10] sm:$0xff]
        %v2905 = vld [vmem:[%s573 + $0xf18] sm:$0xff]
        %v2906 = vld [vmem:[%s573 + $0xf20] sm:$0xff]
        %v2907 = vld [vmem:[%s573 + $0xf28] sm:$0xff]
        %v2908 = vld [vmem:[%s573 + $0xf30] sm:$0xff]
        %v2909 = vld [vmem:[%s573 + $0xf38] sm:$0xff]
        %v2910 = vld [vmem:[%s573 + $0xf40] sm:$0xff]
        %v2911 = vld [vmem:[%s573 + $0xf48] sm:$0xff]
        %v2912 = vld [vmem:[%s573 + $0xf50] sm:$0xff]
        %v2913 = vld [vmem:[%s573 + $0xf58] sm:$0xff]
        %v2914 = vld [vmem:[%s573 + $0xf60] sm:$0xff]
        %v2915 = vld [vmem:[%s573 + $0xf68] sm:$0xff]
        %v2916 = vld [vmem:[%s573 + $0xf70] sm:$0xff]
        %v2917 = vld [vmem:[%s573 + $0xf78] sm:$0xff]
        %v2918 = vld [vmem:[%s573 + $0xf80] sm:$0xff]
        %v2919 = vld [vmem:[%s573 + $0xf88] sm:$0xff]
        %v2920 = vld [vmem:[%s573 + $0xf90] sm:$0xff]
        %v2921 = vld [vmem:[%s573 + $0xf98] sm:$0xff]
        %v2922 = vld [vmem:[%s573 + $0xfa0] sm:$0xff]
        %v2923 = vld [vmem:[%s573 + $0xfa8] sm:$0xff]
        %v2924 = vld [vmem:[%s573 + $0xfb0] sm:$0xff]
        %v2925 = vld [vmem:[%s573 + $0xfb8] sm:$0xff]
        %v2926 = vld [vmem:[%s573 + $0xfc0] sm:$0xff]
        %v2927 = vld [vmem:[%s573 + $0xfc8] sm:$0xff]
        %v2928 = vld [vmem:[%s573 + $0xfd0] sm:$0xff]
        %v2929 = vld [vmem:[%s573 + $0xfd8] sm:$0xff]
        %v2930 = vld [vmem:[%s573 + $0xfe0] sm:$0xff]
        %v2931 = vld [vmem:[%s573 + $0xfe8] sm:$0xff]
        %v2932 = vld [vmem:[%s573 + $0xff0] sm:$0xff]
        %v2933 = vld [vmem:[%s573 + $0xff8] sm:$0xff]
        %v2934 = vld [vmem:[%s582] sm:$0x1]
        %v2935 = vld [vmem:[%s582 + $0x1] sm:$0x1]
        %v2936 = vld [vmem:[%s582 + $0x2] sm:$0x1]
        %v2937 = vld [vmem:[%s582 + $0x3] sm:$0x1]
        %v2938 = vld [vmem:[%s582 + $0x4] sm:$0x1]
        %v2939 = vld [vmem:[%s582 + $0x5] sm:$0x1]
        %v2940 = vld [vmem:[%s582 + $0x6] sm:$0x1]
        %v2941 = vld [vmem:[%s582 + $0x7] sm:$0x1]
        %v2942 = vld [vmem:[%s582 + $0x8] sm:$0x1]
        %v2943 = vld [vmem:[%s582 + $0x9] sm:$0x1]
        %v2944 = vld [vmem:[%s582 + $0xa] sm:$0x1]
        %v2945 = vld [vmem:[%s582 + $0xb] sm:$0x1]
        %v2946 = vld [vmem:[%s582 + $0xc] sm:$0x1]
        %v2947 = vld [vmem:[%s582 + $0xd] sm:$0x1]
        %v2948 = vld [vmem:[%s582 + $0xe] sm:$0x1]
        %v2949 = vld [vmem:[%s582 + $0xf] sm:$0x1]
        %v2950 = vld [vmem:[%s582 + $0x10] sm:$0x1]
        %v2951 = vld [vmem:[%s582 + $0x11] sm:$0x1]
        %v2952 = vld [vmem:[%s582 + $0x12] sm:$0x1]
        %v2953 = vld [vmem:[%s582 + $0x13] sm:$0x1]
        %v2954 = vld [vmem:[%s582 + $0x14] sm:$0x1]
        %v2955 = vld [vmem:[%s582 + $0x15] sm:$0x1]
        %v2956 = vld [vmem:[%s582 + $0x16] sm:$0x1]
        %v2957 = vld [vmem:[%s582 + $0x17] sm:$0x1]
        %v2958 = vld [vmem:[%s582 + $0x18] sm:$0x1]
        %v2959 = vld [vmem:[%s582 + $0x19] sm:$0x1]
        %v2960 = vld [vmem:[%s582 + $0x1a] sm:$0x1]
        %v2961 = vld [vmem:[%s582 + $0x1b] sm:$0x1]
        %v2962 = vld [vmem:[%s582 + $0x1c] sm:$0x1]
        %v2963 = vld [vmem:[%s582 + $0x1d] sm:$0x1]
        %v2964 = vld [vmem:[%s582 + $0x1e] sm:$0x1]
        %v2965 = vld [vmem:[%s582 + $0x1f] sm:$0x1]
        %v2998 = vlaneseq
        %v2999 = vshrl.u32 %v2998, 7
        %v3000 = vsub.s32 0, %v2999
        %v3001 = vrot.slane %v2934, %v3000
        %v3002 = vlaneseq
        %v3003 = vshrl.u32 %v3002, 7
        %v3004 = vsub.s32 0, %v3003
        %v3005 = vrot.slane %v2935, %v3004
        %v3006 = vlaneseq
        %v3007 = vshrl.u32 %v3006, 7
        %v3008 = vsub.s32 0, %v3007
        %v3009 = vrot.slane %v2936, %v3008
        %v3010 = vlaneseq
        %v3011 = vshrl.u32 %v3010, 7
        %v3012 = vsub.s32 0, %v3011
        %v3013 = vrot.slane %v2937, %v3012
        %v3014 = vlaneseq
        %v3015 = vshrl.u32 %v3014, 7
        %v3016 = vsub.s32 0, %v3015
        %v3017 = vrot.slane %v2938, %v3016
        %v3018 = vlaneseq
        %v3019 = vshrl.u32 %v3018, 7
        %v3020 = vsub.s32 0, %v3019
        %v3021 = vrot.slane %v2939, %v3020
        %v3022 = vlaneseq
        %v3023 = vshrl.u32 %v3022, 7
        %v3024 = vsub.s32 0, %v3023
        %v3025 = vrot.slane %v2940, %v3024
        %v3026 = vlaneseq
        %v3027 = vshrl.u32 %v3026, 7
        %v3028 = vsub.s32 0, %v3027
        %v3029 = vrot.slane %v2941, %v3028
        %v3030 = vlaneseq
        %v3031 = vshrl.u32 %v3030, 7
        %v3032 = vsub.s32 0, %v3031
        %v3033 = vrot.slane %v2942, %v3032
        %v3034 = vlaneseq
        %v3035 = vshrl.u32 %v3034, 7
        %v3036 = vsub.s32 0, %v3035
        %v3037 = vrot.slane %v2943, %v3036
        %v3038 = vlaneseq
        %v3039 = vshrl.u32 %v3038, 7
        %v3040 = vsub.s32 0, %v3039
        %v3041 = vrot.slane %v2944, %v3040
        %v3042 = vlaneseq
        %v3043 = vshrl.u32 %v3042, 7
        %v3044 = vsub.s32 0, %v3043
        %v3045 = vrot.slane %v2945, %v3044
        %v3046 = vlaneseq
        %v3047 = vshrl.u32 %v3046, 7
        %v3048 = vsub.s32 0, %v3047
        %v3049 = vrot.slane %v2946, %v3048
        %v3050 = vlaneseq
        %v3051 = vshrl.u32 %v3050, 7
        %v3052 = vsub.s32 0, %v3051
        %v3053 = vrot.slane %v2947, %v3052
        %v3054 = vlaneseq
        %v3055 = vshrl.u32 %v3054, 7
        %v3056 = vsub.s32 0, %v3055
        %v3057 = vrot.slane %v2948, %v3056
        %v3058 = vlaneseq
        %v3059 = vshrl.u32 %v3058, 7
        %v3060 = vsub.s32 0, %v3059
        %v3061 = vrot.slane %v2949, %v3060
        %v3062 = vlaneseq
        %v3063 = vshrl.u32 %v3062, 7
        %v3064 = vsub.s32 0, %v3063
        %v3065 = vrot.slane %v2950, %v3064
        %v3066 = vlaneseq
        %v3067 = vshrl.u32 %v3066, 7
        %v3068 = vsub.s32 0, %v3067
        %v3069 = vrot.slane %v2951, %v3068
        %v3070 = vlaneseq
        %v3071 = vshrl.u32 %v3070, 7
        %v3072 = vsub.s32 0, %v3071
        %v3073 = vrot.slane %v2952, %v3072
        %v3074 = vlaneseq
        %v3075 = vshrl.u32 %v3074, 7
        %v3076 = vsub.s32 0, %v3075
        %v3077 = vrot.slane %v2953, %v3076
        %v3078 = vlaneseq
        %v3079 = vshrl.u32 %v3078, 7
        %v3080 = vsub.s32 0, %v3079
        %v3081 = vrot.slane %v2954, %v3080
        %v3082 = vlaneseq
        %v3083 = vshrl.u32 %v3082, 7
        %v3084 = vsub.s32 0, %v3083
        %v3085 = vrot.slane %v2955, %v3084
        %v3086 = vlaneseq
        %v3087 = vshrl.u32 %v3086, 7
        %v3088 = vsub.s32 0, %v3087
        %v3089 = vrot.slane %v2956, %v3088
        %v3090 = vlaneseq
        %v3091 = vshrl.u32 %v3090, 7
        %v3092 = vsub.s32 0, %v3091
        %v3093 = vrot.slane %v2957, %v3092
        %v3094 = vlaneseq
        %v3095 = vshrl.u32 %v3094, 7
        %v3096 = vsub.s32 0, %v3095
        %v3097 = vrot.slane %v2958, %v3096
        %v3098 = vlaneseq
        %v3099 = vshrl.u32 %v3098, 7
        %v3100 = vsub.s32 0, %v3099
        %v3101 = vrot.slane %v2959, %v3100
        %v3102 = vlaneseq
        %v3103 = vshrl.u32 %v3102, 7
        %v3104 = vsub.s32 0, %v3103
        %v3105 = vrot.slane %v2960, %v3104
        %v3106 = vlaneseq
        %v3107 = vshrl.u32 %v3106, 7
        %v3108 = vsub.s32 0, %v3107
        %v3109 = vrot.slane %v2961, %v3108
        %v3110 = vlaneseq
        %v3111 = vshrl.u32 %v3110, 7
        %v3112 = vsub.s32 0, %v3111
        %v3113 = vrot.slane %v2962, %v3112
        %v3114 = vlaneseq
        %v3115 = vshrl.u32 %v3114, 7
        %v3116 = vsub.s32 0, %v3115
        %v3117 = vrot.slane %v2963, %v3116
        %v3118 = vlaneseq
        %v3119 = vshrl.u32 %v3118, 7
        %v3120 = vsub.s32 0, %v3119
        %v3121 = vrot.slane %v2964, %v3120
        %v3122 = vlaneseq
        %v3123 = vshrl.u32 %v3122, 7
        %v3124 = vsub.s32 0, %v3123
        %v3125 = vrot.slane %v2965, %v3124
        %3126 = vset.pattern.permute.xlu0 0
        %3127 = vperm.xlu0 %3126, %v3001
        %v3128 = vpop.permute.xlu0 %3127
        %3130 = vset.pattern.permute.xlu0 0
        %3131 = vperm.xlu0 %3130, %v3005
        %v3132 = vpop.permute.xlu0 %3131
        %3134 = vset.pattern.permute.xlu0 0
        %3135 = vperm.xlu0 %3134, %v3009
        %v3136 = vpop.permute.xlu0 %3135
        %3138 = vset.pattern.permute.xlu0 0
        %3139 = vperm.xlu0 %3138, %v3013
        %v3140 = vpop.permute.xlu0 %3139
        %3142 = vset.pattern.permute.xlu0 0
        %3143 = vperm.xlu0 %3142, %v3017
        %v3144 = vpop.permute.xlu0 %3143
        %3146 = vset.pattern.permute.xlu0 0
        %3147 = vperm.xlu0 %3146, %v3021
        %v3148 = vpop.permute.xlu0 %3147
        %3150 = vset.pattern.permute.xlu0 0
        %3151 = vperm.xlu0 %3150, %v3025
        %v3152 = vpop.permute.xlu0 %3151
        %3154 = vset.pattern.permute.xlu0 0
        %3155 = vperm.xlu0 %3154, %v3029
        %v3156 = vpop.permute.xlu0 %3155
        %3158 = vset.pattern.permute.xlu0 0
        %3159 = vperm.xlu0 %3158, %v3033
        %v3160 = vpop.permute.xlu0 %3159
        %3162 = vset.pattern.permute.xlu0 0
        %3163 = vperm.xlu0 %3162, %v3037
        %v3164 = vpop.permute.xlu0 %3163
        %3166 = vset.pattern.permute.xlu0 0
        %3167 = vperm.xlu0 %3166, %v3041
        %v3168 = vpop.permute.xlu0 %3167
        %3170 = vset.pattern.permute.xlu0 0
        %3171 = vperm.xlu0 %3170, %v3045
        %v3172 = vpop.permute.xlu0 %3171
        %3174 = vset.pattern.permute.xlu0 0
        %3175 = vperm.xlu0 %3174, %v3049
        %v3176 = vpop.permute.xlu0 %3175
        %3178 = vset.pattern.permute.xlu0 0
        %3179 = vperm.xlu0 %3178, %v3053
        %v3180 = vpop.permute.xlu0 %3179
        %3182 = vset.pattern.permute.xlu0 0
        %3183 = vperm.xlu0 %3182, %v3057
        %v3184 = vpop.permute.xlu0 %3183
        %3186 = vset.pattern.permute.xlu0 0
        %3187 = vperm.xlu0 %3186, %v3061
        %v3188 = vpop.permute.xlu0 %3187
        %3190 = vset.pattern.permute.xlu0 0
        %3191 = vperm.xlu0 %3190, %v3065
        %v3192 = vpop.permute.xlu0 %3191
        %3194 = vset.pattern.permute.xlu0 0
        %3195 = vperm.xlu0 %3194, %v3069
        %v3196 = vpop.permute.xlu0 %3195
        %3198 = vset.pattern.permute.xlu0 0
        %3199 = vperm.xlu0 %3198, %v3073
        %v3200 = vpop.permute.xlu0 %3199
        %3202 = vset.pattern.permute.xlu0 0
        %3203 = vperm.xlu0 %3202, %v3077
        %v3204 = vpop.permute.xlu0 %3203
        %3206 = vset.pattern.permute.xlu0 0
        %3207 = vperm.xlu0 %3206, %v3081
        %v3208 = vpop.permute.xlu0 %3207
        %3210 = vset.pattern.permute.xlu0 0
        %3211 = vperm.xlu0 %3210, %v3085
        %v3212 = vpop.permute.xlu0 %3211
        %3214 = vset.pattern.permute.xlu0 0
        %3215 = vperm.xlu0 %3214, %v3089
        %v3216 = vpop.permute.xlu0 %3215
        %3218 = vset.pattern.permute.xlu0 0
        %3219 = vperm.xlu0 %3218, %v3093
        %v3220 = vpop.permute.xlu0 %3219
        %3222 = vset.pattern.permute.xlu0 0
        %3223 = vperm.xlu0 %3222, %v3097
        %v3224 = vpop.permute.xlu0 %3223
        %3226 = vset.pattern.permute.xlu0 0
        %3227 = vperm.xlu0 %3226, %v3101
        %v3228 = vpop.permute.xlu0 %3227
        %3230 = vset.pattern.permute.xlu0 0
        %3231 = vperm.xlu0 %3230, %v3105
        %v3232 = vpop.permute.xlu0 %3231
        %3234 = vset.pattern.permute.xlu0 0
        %3235 = vperm.xlu0 %3234, %v3109
        %v3236 = vpop.permute.xlu0 %3235
        %3238 = vset.pattern.permute.xlu0 0
        %3239 = vperm.xlu0 %3238, %v3113
        %v3240 = vpop.permute.xlu0 %3239
        %3242 = vset.pattern.permute.xlu0 0
        %3243 = vperm.xlu0 %3242, %v3117
        %v3244 = vpop.permute.xlu0 %3243
        %3246 = vset.pattern.permute.xlu0 0
        %3247 = vperm.xlu0 %3246, %v3121
        %v3248 = vpop.permute.xlu0 %3247
        %3250 = vset.pattern.permute.xlu0 0
        %3251 = vperm.xlu0 %3250, %v3125
        %v3252 = vpop.permute.xlu0 %3251
        %v3254 = vmul.f32 %v3128, %v2390
        %v3255 = vmul.f32 %v3132, %v2391
        %v3256 = vmul.f32 %v3136, %v2392
        %v3257 = vmul.f32 %v3140, %v2393
        %v3258 = vmul.f32 %v3144, %v2394
        %v3259 = vmul.f32 %v3148, %v2395
        %v3260 = vmul.f32 %v3152, %v2396
        %v3261 = vmul.f32 %v3156, %v2397
        %v3262 = vmul.f32 %v3160, %v2398
        %v3263 = vmul.f32 %v3164, %v2399
        %v3264 = vmul.f32 %v3168, %v2400
        %v3265 = vmul.f32 %v3172, %v2401
        %v3266 = vmul.f32 %v3176, %v2402
        %v3267 = vmul.f32 %v3180, %v2403
        %v3268 = vmul.f32 %v3184, %v2404
        %v3269 = vmul.f32 %v3188, %v2405
        %v3270 = vmul.f32 %v3192, %v2406
        %v3271 = vmul.f32 %v3196, %v2407
        %v3272 = vmul.f32 %v3200, %v2408
        %v3273 = vmul.f32 %v3204, %v2409
        %v3274 = vmul.f32 %v3208, %v2410
        %v3275 = vmul.f32 %v3212, %v2411
        %v3276 = vmul.f32 %v3216, %v2412
        %v3277 = vmul.f32 %v3220, %v2413
        %v3278 = vmul.f32 %v3224, %v2414
        %v3279 = vmul.f32 %v3228, %v2415
        %v3280 = vmul.f32 %v3232, %v2416
        %v3281 = vmul.f32 %v3236, %v2417
        %v3282 = vmul.f32 %v3240, %v2418
        %v3283 = vmul.f32 %v3244, %v2419
        %v3284 = vmul.f32 %v3248, %v2420
        %v3285 = vmul.f32 %v3252, %v2421
        %3286 = vmatprep.subr.mxu0 0.0
        %3287 = vmatpush1.xpose.msra.mxu0 %v2437
        %3288 = vmatprep.subr.mxu0 0.0
        %3289 = vmatpush1.xpose.msra.mxu0 %v2436
        %3290 = vmatprep.subr.mxu0 0.0
        %3291 = vmatpush1.xpose.msra.mxu0 %v2435
        %3292 = vmatprep.subr.mxu0 0.0
        %3293 = vmatpush1.xpose.msra.mxu0 %v2434
        %3294 = vmatprep.subr.mxu0 0.0
        %3295 = vmatpush1.xpose.msra.mxu0 %v2433
        %3296 = vmatprep.subr.mxu0 0.0
        %3297 = vmatpush1.xpose.msra.mxu0 %v2432
        %3298 = vmatprep.subr.mxu0 0.0
        %3299 = vmatpush1.xpose.msra.mxu0 %v2431
        %3300 = vmatprep.subr.mxu0 0.0
        %3301 = vmatpush1.xpose.msra.mxu0 %v2430
        %3302 = vmatprep.subr.mxu0 0.0
        %3303 = vmatpush1.xpose.msra.mxu0 %v2429
        %3304 = vmatprep.subr.mxu0 0.0
        %3305 = vmatpush1.xpose.msra.mxu0 %v2428
        %3306 = vmatprep.subr.mxu0 0.0
        %3307 = vmatpush1.xpose.msra.mxu0 %v2427
        %3308 = vmatprep.subr.mxu0 0.0
        %3309 = vmatpush1.xpose.msra.mxu0 %v2426
        %3310 = vmatprep.subr.mxu0 0.0
        %3311 = vmatpush1.xpose.msra.mxu0 %v2425
        %3312 = vmatprep.subr.mxu0 0.0
        %3313 = vmatpush1.xpose.msra.mxu0 %v2424
        %3314 = vmatprep.subr.mxu0 0.0
        %3315 = vmatpush1.xpose.msra.mxu0 %v2423
        %3316 = vmatprep.subr.mxu0 0.0
        %3317 = vmatpush1.xpose.msra.mxu0 %v2422
        %3318 = vmatprep.subr.mxu0 0.0
        %3319 = vmatpush2.xpose.msra.mxu0 0.0
        %3320 = vmatprep.subr.mxu0 0.0
        %3321 = vmatpush2.xpose.msra.mxu0 0.0
        %3322 = vmatprep.subr.mxu0 0.0
        %3323 = vmatpush2.xpose.msra.mxu0 0.0
        %3324 = vmatprep.subr.mxu0 0.0
        %3325 = vmatpush2.xpose.msra.mxu0 0.0
        %3326 = vmatprep.subr.mxu0 0.0
        %3327 = vmatpush2.xpose.msra.mxu0 0.0
        %3328 = vmatprep.subr.mxu0 0.0
        %3329 = vmatpush2.xpose.msra.mxu0 0.0
        %3330 = vmatprep.subr.mxu0 0.0
        %3331 = vmatpush2.xpose.msra.mxu0 0.0
        %3332 = vmatprep.subr.mxu0 0.0
        %3333 = vmatpush2.xpose.msra.mxu0 0.0
        %3334 = vmatprep.subr.mxu0 0.0
        %3335 = vmatpush2.xpose.msra.mxu0 0.0
        %3336 = vmatprep.subr.mxu0 0.0
        %3337 = vmatpush2.xpose.msra.mxu0 0.0
        %3338 = vmatprep.subr.mxu0 0.0
        %3339 = vmatpush2.xpose.msra.mxu0 0.0
        %3340 = vmatprep.subr.mxu0 0.0
        %3341 = vmatpush2.xpose.msra.mxu0 0.0
        %3342 = vmatprep.subr.mxu0 0.0
        %3343 = vmatpush2.xpose.msra.mxu0 0.0
        %3344 = vmatprep.subr.mxu0 0.0
        %3345 = vmatpush2.xpose.msra.mxu0 0.0
        %3346 = vmatprep.subr.mxu0 0.0
        %3347 = vmatpush2.xpose.msra.mxu0 0.0
        %3348 = vmatprep.subr.mxu0 0.0
        %3349 = vmatpush2.xpose.msra.mxu0 0.0
        %3350 = vmatprep.mubr.f32.mxu0 0.0
        %3351 = vmatmul.mubr.f32.gmra.mxu0 %v2390
        %v3352 = vpop.f32.mrf.mxu0
        %v3353 = vadd.f32 %v3254, %v3352
        %v3354 = vpop.f32.mrf.mxu0
        %3355 = vdwg.mxu0
        %3356 = vmatprep.subr.mxu0 0.0
        %3357 = vmatpush1.xpose.msra.mxu0 %v2453
        %3358 = vmatprep.subr.mxu0 0.0
        %3359 = vmatpush1.xpose.msra.mxu0 %v2452
        %3360 = vmatprep.subr.mxu0 0.0
        %3361 = vmatpush1.xpose.msra.mxu0 %v2451
        %3362 = vmatprep.subr.mxu0 0.0
        %3363 = vmatpush1.xpose.msra.mxu0 %v2450
        %3364 = vmatprep.subr.mxu0 0.0
        %3365 = vmatpush1.xpose.msra.mxu0 %v2449
        %3366 = vmatprep.subr.mxu0 0.0
        %3367 = vmatpush1.xpose.msra.mxu0 %v2448
        %3368 = vmatprep.subr.mxu0 0.0
        %3369 = vmatpush1.xpose.msra.mxu0 %v2447
        %3370 = vmatprep.subr.mxu0 0.0
        %3371 = vmatpush1.xpose.msra.mxu0 %v2446
        %3372 = vmatprep.subr.mxu0 0.0
        %3373 = vmatpush1.xpose.msra.mxu0 %v2445
        %3374 = vmatprep.subr.mxu0 0.0
        %3375 = vmatpush1.xpose.msra.mxu0 %v2444
        %3376 = vmatprep.subr.mxu0 0.0
        %3377 = vmatpush1.xpose.msra.mxu0 %v2443
        %3378 = vmatprep.subr.mxu0 0.0
        %3379 = vmatpush1.xpose.msra.mxu0 %v2442
        %3380 = vmatprep.subr.mxu0 0.0
        %3381 = vmatpush1.xpose.msra.mxu0 %v2441
        %3382 = vmatprep.subr.mxu0 0.0
        %3383 = vmatpush1.xpose.msra.mxu0 %v2440
        %3384 = vmatprep.subr.mxu0 0.0
        %3385 = vmatpush1.xpose.msra.mxu0 %v2439
        %3386 = vmatprep.subr.mxu0 0.0
        %3387 = vmatpush1.xpose.msra.mxu0 %v2438
        %3388 = vmatprep.subr.mxu0 0.0
        %3389 = vmatpush2.xpose.msra.mxu0 0.0
        %3390 = vmatprep.subr.mxu0 0.0
        %3391 = vmatpush2.xpose.msra.mxu0 0.0
        %3392 = vmatprep.subr.mxu0 0.0
        %3393 = vmatpush2.xpose.msra.mxu0 0.0
        %3394 = vmatprep.subr.mxu0 0.0
        %3395 = vmatpush2.xpose.msra.mxu0 0.0
        %3396 = vmatprep.subr.mxu0 0.0
        %3397 = vmatpush2.xpose.msra.mxu0 0.0
        %3398 = vmatprep.subr.mxu0 0.0
        %3399 = vmatpush2.xpose.msra.mxu0 0.0
        %3400 = vmatprep.subr.mxu0 0.0
        %3401 = vmatpush2.xpose.msra.mxu0 0.0
        %3402 = vmatprep.subr.mxu0 0.0
        %3403 = vmatpush2.xpose.msra.mxu0 0.0
        %3404 = vmatprep.subr.mxu0 0.0
        %3405 = vmatpush2.xpose.msra.mxu0 0.0
        %3406 = vmatprep.subr.mxu0 0.0
        %3407 = vmatpush2.xpose.msra.mxu0 0.0
        %3408 = vmatprep.subr.mxu0 0.0
        %3409 = vmatpush2.xpose.msra.mxu0 0.0
        %3410 = vmatprep.subr.mxu0 0.0
        %3411 = vmatpush2.xpose.msra.mxu0 0.0
        %3412 = vmatprep.subr.mxu0 0.0
        %3413 = vmatpush2.xpose.msra.mxu0 0.0
        %3414 = vmatprep.subr.mxu0 0.0
        %3415 = vmatpush2.xpose.msra.mxu0 0.0
        %3416 = vmatprep.subr.mxu0 0.0
        %3417 = vmatpush2.xpose.msra.mxu0 0.0
        %3418 = vmatprep.subr.mxu0 0.0
        %3419 = vmatpush2.xpose.msra.mxu0 0.0
        %3420 = vmatprep.mubr.f32.mxu0 0.0
        %3421 = vmatmul.mubr.f32.gmra.mxu0 %v2391
        %v3422 = vpop.f32.mrf.mxu0
        %v3423 = vadd.f32 %v3255, %v3422
        %v3424 = vpop.f32.mrf.mxu0
        %3425 = vdwg.mxu0
        %3426 = vmatprep.subr.mxu0 0.0
        %3427 = vmatpush1.xpose.msra.mxu0 %v2469
        %3428 = vmatprep.subr.mxu0 0.0
        %3429 = vmatpush1.xpose.msra.mxu0 %v2468
        %3430 = vmatprep.subr.mxu0 0.0
        %3431 = vmatpush1.xpose.msra.mxu0 %v2467
        %3432 = vmatprep.subr.mxu0 0.0
        %3433 = vmatpush1.xpose.msra.mxu0 %v2466
        %3434 = vmatprep.subr.mxu0 0.0
        %3435 = vmatpush1.xpose.msra.mxu0 %v2465
        %3436 = vmatprep.subr.mxu0 0.0
        %3437 = vmatpush1.xpose.msra.mxu0 %v2464
        %3438 = vmatprep.subr.mxu0 0.0
        %3439 = vmatpush1.xpose.msra.mxu0 %v2463
        %3440 = vmatprep.subr.mxu0 0.0
        %3441 = vmatpush1.xpose.msra.mxu0 %v2462
        %3442 = vmatprep.subr.mxu0 0.0
        %3443 = vmatpush1.xpose.msra.mxu0 %v2461
        %3444 = vmatprep.subr.mxu0 0.0
        %3445 = vmatpush1.xpose.msra.mxu0 %v2460
        %3446 = vmatprep.subr.mxu0 0.0
        %3447 = vmatpush1.xpose.msra.mxu0 %v2459
        %3448 = vmatprep.subr.mxu0 0.0
        %3449 = vmatpush1.xpose.msra.mxu0 %v2458
        %3450 = vmatprep.subr.mxu0 0.0
        %3451 = vmatpush1.xpose.msra.mxu0 %v2457
        %3452 = vmatprep.subr.mxu0 0.0
        %3453 = vmatpush1.xpose.msra.mxu0 %v2456
        %3454 = vmatprep.subr.mxu0 0.0
        %3455 = vmatpush1.xpose.msra.mxu0 %v2455
        %3456 = vmatprep.subr.mxu0 0.0
        %3457 = vmatpush1.xpose.msra.mxu0 %v2454
        %3458 = vmatprep.subr.mxu0 0.0
        %3459 = vmatpush2.xpose.msra.mxu0 0.0
        %3460 = vmatprep.subr.mxu0 0.0
        %3461 = vmatpush2.xpose.msra.mxu0 0.0
        %3462 = vmatprep.subr.mxu0 0.0
        %3463 = vmatpush2.xpose.msra.mxu0 0.0
        %3464 = vmatprep.subr.mxu0 0.0
        %3465 = vmatpush2.xpose.msra.mxu0 0.0
        %3466 = vmatprep.subr.mxu0 0.0
        %3467 = vmatpush2.xpose.msra.mxu0 0.0
        %3468 = vmatprep.subr.mxu0 0.0
        %3469 = vmatpush2.xpose.msra.mxu0 0.0
        %3470 = vmatprep.subr.mxu0 0.0
        %3471 = vmatpush2.xpose.msra.mxu0 0.0
        %3472 = vmatprep.subr.mxu0 0.0
        %3473 = vmatpush2.xpose.msra.mxu0 0.0
        %3474 = vmatprep.subr.mxu0 0.0
        %3475 = vmatpush2.xpose.msra.mxu0 0.0
        %3476 = vmatprep.subr.mxu0 0.0
        %3477 = vmatpush2.xpose.msra.mxu0 0.0
        %3478 = vmatprep.subr.mxu0 0.0
        %3479 = vmatpush2.xpose.msra.mxu0 0.0
        %3480 = vmatprep.subr.mxu0 0.0
        %3481 = vmatpush2.xpose.msra.mxu0 0.0
        %3482 = vmatprep.subr.mxu0 0.0
        %3483 = vmatpush2.xpose.msra.mxu0 0.0
        %3484 = vmatprep.subr.mxu0 0.0
        %3485 = vmatpush2.xpose.msra.mxu0 0.0
        %3486 = vmatprep.subr.mxu0 0.0
        %3487 = vmatpush2.xpose.msra.mxu0 0.0
        %3488 = vmatprep.subr.mxu0 0.0
        %3489 = vmatpush2.xpose.msra.mxu0 0.0
        %3490 = vmatprep.mubr.f32.mxu0 0.0
        %3491 = vmatmul.mubr.f32.gmra.mxu0 %v2392
        %v3492 = vpop.f32.mrf.mxu0
        %v3493 = vadd.f32 %v3256, %v3492
        %v3494 = vpop.f32.mrf.mxu0
        %3495 = vdwg.mxu0
        %3496 = vmatprep.subr.mxu0 0.0
        %3497 = vmatpush1.xpose.msra.mxu0 %v2485
        %3498 = vmatprep.subr.mxu0 0.0
        %3499 = vmatpush1.xpose.msra.mxu0 %v2484
        %3500 = vmatprep.subr.mxu0 0.0
        %3501 = vmatpush1.xpose.msra.mxu0 %v2483
        %3502 = vmatprep.subr.mxu0 0.0
        %3503 = vmatpush1.xpose.msra.mxu0 %v2482
        %3504 = vmatprep.subr.mxu0 0.0
        %3505 = vmatpush1.xpose.msra.mxu0 %v2481
        %3506 = vmatprep.subr.mxu0 0.0
        %3507 = vmatpush1.xpose.msra.mxu0 %v2480
        %3508 = vmatprep.subr.mxu0 0.0
        %3509 = vmatpush1.xpose.msra.mxu0 %v2479
        %3510 = vmatprep.subr.mxu0 0.0
        %3511 = vmatpush1.xpose.msra.mxu0 %v2478
        %3512 = vmatprep.subr.mxu0 0.0
        %3513 = vmatpush1.xpose.msra.mxu0 %v2477
        %3514 = vmatprep.subr.mxu0 0.0
        %3515 = vmatpush1.xpose.msra.mxu0 %v2476
        %3516 = vmatprep.subr.mxu0 0.0
        %3517 = vmatpush1.xpose.msra.mxu0 %v2475
        %3518 = vmatprep.subr.mxu0 0.0
        %3519 = vmatpush1.xpose.msra.mxu0 %v2474
        %3520 = vmatprep.subr.mxu0 0.0
        %3521 = vmatpush1.xpose.msra.mxu0 %v2473
        %3522 = vmatprep.subr.mxu0 0.0
        %3523 = vmatpush1.xpose.msra.mxu0 %v2472
        %3524 = vmatprep.subr.mxu0 0.0
        %3525 = vmatpush1.xpose.msra.mxu0 %v2471
        %3526 = vmatprep.subr.mxu0 0.0
        %3527 = vmatpush1.xpose.msra.mxu0 %v2470
        %3528 = vmatprep.subr.mxu0 0.0
        %3529 = vmatpush2.xpose.msra.mxu0 0.0
        %3530 = vmatprep.subr.mxu0 0.0
        %3531 = vmatpush2.xpose.msra.mxu0 0.0
        %3532 = vmatprep.subr.mxu0 0.0
        %3533 = vmatpush2.xpose.msra.mxu0 0.0
        %3534 = vmatprep.subr.mxu0 0.0
        %3535 = vmatpush2.xpose.msra.mxu0 0.0
        %3536 = vmatprep.subr.mxu0 0.0
        %3537 = vmatpush2.xpose.msra.mxu0 0.0
        %3538 = vmatprep.subr.mxu0 0.0
        %3539 = vmatpush2.xpose.msra.mxu0 0.0
        %3540 = vmatprep.subr.mxu0 0.0
        %3541 = vmatpush2.xpose.msra.mxu0 0.0
        %3542 = vmatprep.subr.mxu0 0.0
        %3543 = vmatpush2.xpose.msra.mxu0 0.0
        %3544 = vmatprep.subr.mxu0 0.0
        %3545 = vmatpush2.xpose.msra.mxu0 0.0
        %3546 = vmatprep.subr.mxu0 0.0
        %3547 = vmatpush2.xpose.msra.mxu0 0.0
        %3548 = vmatprep.subr.mxu0 0.0
        %3549 = vmatpush2.xpose.msra.mxu0 0.0
        %3550 = vmatprep.subr.mxu0 0.0
        %3551 = vmatpush2.xpose.msra.mxu0 0.0
        %3552 = vmatprep.subr.mxu0 0.0
        %3553 = vmatpush2.xpose.msra.mxu0 0.0
        %3554 = vmatprep.subr.mxu0 0.0
        %3555 = vmatpush2.xpose.msra.mxu0 0.0
        %3556 = vmatprep.subr.mxu0 0.0
        %3557 = vmatpush2.xpose.msra.mxu0 0.0
        %3558 = vmatprep.subr.mxu0 0.0
        %3559 = vmatpush2.xpose.msra.mxu0 0.0
        %3560 = vmatprep.mubr.f32.mxu0 0.0
        %3561 = vmatmul.mubr.f32.gmra.mxu0 %v2393
        %v3562 = vpop.f32.mrf.mxu0
        %v3563 = vadd.f32 %v3257, %v3562
        %v3564 = vpop.f32.mrf.mxu0
        %3565 = vdwg.mxu0
        %3566 = vmatprep.subr.mxu0 0.0
        %3567 = vmatpush1.xpose.msra.mxu0 %v2501
        %3568 = vmatprep.subr.mxu0 0.0
        %3569 = vmatpush1.xpose.msra.mxu0 %v2500
        %3570 = vmatprep.subr.mxu0 0.0
        %3571 = vmatpush1.xpose.msra.mxu0 %v2499
        %3572 = vmatprep.subr.mxu0 0.0
        %3573 = vmatpush1.xpose.msra.mxu0 %v2498
        %3574 = vmatprep.subr.mxu0 0.0
        %3575 = vmatpush1.xpose.msra.mxu0 %v2497
        %3576 = vmatprep.subr.mxu0 0.0
        %3577 = vmatpush1.xpose.msra.mxu0 %v2496
        %3578 = vmatprep.subr.mxu0 0.0
        %3579 = vmatpush1.xpose.msra.mxu0 %v2495
        %3580 = vmatprep.subr.mxu0 0.0
        %3581 = vmatpush1.xpose.msra.mxu0 %v2494
        %3582 = vmatprep.subr.mxu0 0.0
        %3583 = vmatpush1.xpose.msra.mxu0 %v2493
        %3584 = vmatprep.subr.mxu0 0.0
        %3585 = vmatpush1.xpose.msra.mxu0 %v2492
        %3586 = vmatprep.subr.mxu0 0.0
        %3587 = vmatpush1.xpose.msra.mxu0 %v2491
        %3588 = vmatprep.subr.mxu0 0.0
        %3589 = vmatpush1.xpose.msra.mxu0 %v2490
        %3590 = vmatprep.subr.mxu0 0.0
        %3591 = vmatpush1.xpose.msra.mxu0 %v2489
        %3592 = vmatprep.subr.mxu0 0.0
        %3593 = vmatpush1.xpose.msra.mxu0 %v2488
        %3594 = vmatprep.subr.mxu0 0.0
        %3595 = vmatpush1.xpose.msra.mxu0 %v2487
        %3596 = vmatprep.subr.mxu0 0.0
        %3597 = vmatpush1.xpose.msra.mxu0 %v2486
        %3598 = vmatprep.subr.mxu0 0.0
        %3599 = vmatpush2.xpose.msra.mxu0 0.0
        %3600 = vmatprep.subr.mxu0 0.0
        %3601 = vmatpush2.xpose.msra.mxu0 0.0
        %3602 = vmatprep.subr.mxu0 0.0
        %3603 = vmatpush2.xpose.msra.mxu0 0.0
        %3604 = vmatprep.subr.mxu0 0.0
        %3605 = vmatpush2.xpose.msra.mxu0 0.0
        %3606 = vmatprep.subr.mxu0 0.0
        %3607 = vmatpush2.xpose.msra.mxu0 0.0
        %3608 = vmatprep.subr.mxu0 0.0
        %3609 = vmatpush2.xpose.msra.mxu0 0.0
        %3610 = vmatprep.subr.mxu0 0.0
        %3611 = vmatpush2.xpose.msra.mxu0 0.0
        %3612 = vmatprep.subr.mxu0 0.0
        %3613 = vmatpush2.xpose.msra.mxu0 0.0
        %3614 = vmatprep.subr.mxu0 0.0
        %3615 = vmatpush2.xpose.msra.mxu0 0.0
        %3616 = vmatprep.subr.mxu0 0.0
        %3617 = vmatpush2.xpose.msra.mxu0 0.0
        %3618 = vmatprep.subr.mxu0 0.0
        %3619 = vmatpush2.xpose.msra.mxu0 0.0
        %3620 = vmatprep.subr.mxu0 0.0
        %3621 = vmatpush2.xpose.msra.mxu0 0.0
        %3622 = vmatprep.subr.mxu0 0.0
        %3623 = vmatpush2.xpose.msra.mxu0 0.0
        %3624 = vmatprep.subr.mxu0 0.0
        %3625 = vmatpush2.xpose.msra.mxu0 0.0
        %3626 = vmatprep.subr.mxu0 0.0
        %3627 = vmatpush2.xpose.msra.mxu0 0.0
        %3628 = vmatprep.subr.mxu0 0.0
        %3629 = vmatpush2.xpose.msra.mxu0 0.0
        %3630 = vmatprep.mubr.f32.mxu0 0.0
        %3631 = vmatmul.mubr.f32.gmra.mxu0 %v2394
        %v3632 = vpop.f32.mrf.mxu0
        %v3633 = vadd.f32 %v3258, %v3632
        %v3634 = vpop.f32.mrf.mxu0
        %3635 = vdwg.mxu0
        %3636 = vmatprep.subr.mxu0 0.0
        %3637 = vmatpush1.xpose.msra.mxu0 %v2517
        %3638 = vmatprep.subr.mxu0 0.0
        %3639 = vmatpush1.xpose.msra.mxu0 %v2516
        %3640 = vmatprep.subr.mxu0 0.0
        %3641 = vmatpush1.xpose.msra.mxu0 %v2515
        %3642 = vmatprep.subr.mxu0 0.0
        %3643 = vmatpush1.xpose.msra.mxu0 %v2514
        %3644 = vmatprep.subr.mxu0 0.0
        %3645 = vmatpush1.xpose.msra.mxu0 %v2513
        %3646 = vmatprep.subr.mxu0 0.0
        %3647 = vmatpush1.xpose.msra.mxu0 %v2512
        %3648 = vmatprep.subr.mxu0 0.0
        %3649 = vmatpush1.xpose.msra.mxu0 %v2511
        %3650 = vmatprep.subr.mxu0 0.0
        %3651 = vmatpush1.xpose.msra.mxu0 %v2510
        %3652 = vmatprep.subr.mxu0 0.0
        %3653 = vmatpush1.xpose.msra.mxu0 %v2509
        %3654 = vmatprep.subr.mxu0 0.0
        %3655 = vmatpush1.xpose.msra.mxu0 %v2508
        %3656 = vmatprep.subr.mxu0 0.0
        %3657 = vmatpush1.xpose.msra.mxu0 %v2507
        %3658 = vmatprep.subr.mxu0 0.0
        %3659 = vmatpush1.xpose.msra.mxu0 %v2506
        %3660 = vmatprep.subr.mxu0 0.0
        %3661 = vmatpush1.xpose.msra.mxu0 %v2505
        %3662 = vmatprep.subr.mxu0 0.0
        %3663 = vmatpush1.xpose.msra.mxu0 %v2504
        %3664 = vmatprep.subr.mxu0 0.0
        %3665 = vmatpush1.xpose.msra.mxu0 %v2503
        %3666 = vmatprep.subr.mxu0 0.0
        %3667 = vmatpush1.xpose.msra.mxu0 %v2502
        %3668 = vmatprep.subr.mxu0 0.0
        %3669 = vmatpush2.xpose.msra.mxu0 0.0
        %3670 = vmatprep.subr.mxu0 0.0
        %3671 = vmatpush2.xpose.msra.mxu0 0.0
        %3672 = vmatprep.subr.mxu0 0.0
        %3673 = vmatpush2.xpose.msra.mxu0 0.0
        %3674 = vmatprep.subr.mxu0 0.0
        %3675 = vmatpush2.xpose.msra.mxu0 0.0
        %3676 = vmatprep.subr.mxu0 0.0
        %3677 = vmatpush2.xpose.msra.mxu0 0.0
        %3678 = vmatprep.subr.mxu0 0.0
        %3679 = vmatpush2.xpose.msra.mxu0 0.0
        %3680 = vmatprep.subr.mxu0 0.0
        %3681 = vmatpush2.xpose.msra.mxu0 0.0
        %3682 = vmatprep.subr.mxu0 0.0
        %3683 = vmatpush2.xpose.msra.mxu0 0.0
        %3684 = vmatprep.subr.mxu0 0.0
        %3685 = vmatpush2.xpose.msra.mxu0 0.0
        %3686 = vmatprep.subr.mxu0 0.0
        %3687 = vmatpush2.xpose.msra.mxu0 0.0
        %3688 = vmatprep.subr.mxu0 0.0
        %3689 = vmatpush2.xpose.msra.mxu0 0.0
        %3690 = vmatprep.subr.mxu0 0.0
        %3691 = vmatpush2.xpose.msra.mxu0 0.0
        %3692 = vmatprep.subr.mxu0 0.0
        %3693 = vmatpush2.xpose.msra.mxu0 0.0
        %3694 = vmatprep.subr.mxu0 0.0
        %3695 = vmatpush2.xpose.msra.mxu0 0.0
        %3696 = vmatprep.subr.mxu0 0.0
        %3697 = vmatpush2.xpose.msra.mxu0 0.0
        %3698 = vmatprep.subr.mxu0 0.0
        %3699 = vmatpush2.xpose.msra.mxu0 0.0
        %3700 = vmatprep.mubr.f32.mxu0 0.0
        %3701 = vmatmul.mubr.f32.gmra.mxu0 %v2395
        %v3702 = vpop.f32.mrf.mxu0
        %v3703 = vadd.f32 %v3259, %v3702
        %v3704 = vpop.f32.mrf.mxu0
        %3705 = vdwg.mxu0
        %3706 = vmatprep.subr.mxu0 0.0
        %3707 = vmatpush1.xpose.msra.mxu0 %v2533
        %3708 = vmatprep.subr.mxu0 0.0
        %3709 = vmatpush1.xpose.msra.mxu0 %v2532
        %3710 = vmatprep.subr.mxu0 0.0
        %3711 = vmatpush1.xpose.msra.mxu0 %v2531
        %3712 = vmatprep.subr.mxu0 0.0
        %3713 = vmatpush1.xpose.msra.mxu0 %v2530
        %3714 = vmatprep.subr.mxu0 0.0
        %3715 = vmatpush1.xpose.msra.mxu0 %v2529
        %3716 = vmatprep.subr.mxu0 0.0
        %3717 = vmatpush1.xpose.msra.mxu0 %v2528
        %3718 = vmatprep.subr.mxu0 0.0
        %3719 = vmatpush1.xpose.msra.mxu0 %v2527
        %3720 = vmatprep.subr.mxu0 0.0
        %3721 = vmatpush1.xpose.msra.mxu0 %v2526
        %3722 = vmatprep.subr.mxu0 0.0
        %3723 = vmatpush1.xpose.msra.mxu0 %v2525
        %3724 = vmatprep.subr.mxu0 0.0
        %3725 = vmatpush1.xpose.msra.mxu0 %v2524
        %3726 = vmatprep.subr.mxu0 0.0
        %3727 = vmatpush1.xpose.msra.mxu0 %v2523
        %3728 = vmatprep.subr.mxu0 0.0
        %3729 = vmatpush1.xpose.msra.mxu0 %v2522
        %3730 = vmatprep.subr.mxu0 0.0
        %3731 = vmatpush1.xpose.msra.mxu0 %v2521
        %3732 = vmatprep.subr.mxu0 0.0
        %3733 = vmatpush1.xpose.msra.mxu0 %v2520
        %3734 = vmatprep.subr.mxu0 0.0
        %3735 = vmatpush1.xpose.msra.mxu0 %v2519
        %3736 = vmatprep.subr.mxu0 0.0
        %3737 = vmatpush1.xpose.msra.mxu0 %v2518
        %3738 = vmatprep.subr.mxu0 0.0
        %3739 = vmatpush2.xpose.msra.mxu0 0.0
        %3740 = vmatprep.subr.mxu0 0.0
        %3741 = vmatpush2.xpose.msra.mxu0 0.0
        %3742 = vmatprep.subr.mxu0 0.0
        %3743 = vmatpush2.xpose.msra.mxu0 0.0
        %3744 = vmatprep.subr.mxu0 0.0
        %3745 = vmatpush2.xpose.msra.mxu0 0.0
        %3746 = vmatprep.subr.mxu0 0.0
        %3747 = vmatpush2.xpose.msra.mxu0 0.0
        %3748 = vmatprep.subr.mxu0 0.0
        %3749 = vmatpush2.xpose.msra.mxu0 0.0
        %3750 = vmatprep.subr.mxu0 0.0
        %3751 = vmatpush2.xpose.msra.mxu0 0.0
        %3752 = vmatprep.subr.mxu0 0.0
        %3753 = vmatpush2.xpose.msra.mxu0 0.0
        %3754 = vmatprep.subr.mxu0 0.0
        %3755 = vmatpush2.xpose.msra.mxu0 0.0
        %3756 = vmatprep.subr.mxu0 0.0
        %3757 = vmatpush2.xpose.msra.mxu0 0.0
        %3758 = vmatprep.subr.mxu0 0.0
        %3759 = vmatpush2.xpose.msra.mxu0 0.0
        %3760 = vmatprep.subr.mxu0 0.0
        %3761 = vmatpush2.xpose.msra.mxu0 0.0
        %3762 = vmatprep.subr.mxu0 0.0
        %3763 = vmatpush2.xpose.msra.mxu0 0.0
        %3764 = vmatprep.subr.mxu0 0.0
        %3765 = vmatpush2.xpose.msra.mxu0 0.0
        %3766 = vmatprep.subr.mxu0 0.0
        %3767 = vmatpush2.xpose.msra.mxu0 0.0
        %3768 = vmatprep.subr.mxu0 0.0
        %3769 = vmatpush2.xpose.msra.mxu0 0.0
        %3770 = vmatprep.mubr.f32.mxu0 0.0
        %3771 = vmatmul.mubr.f32.gmra.mxu0 %v2396
        %v3772 = vpop.f32.mrf.mxu0
        %v3773 = vadd.f32 %v3260, %v3772
        %v3774 = vpop.f32.mrf.mxu0
        %3775 = vdwg.mxu0
        %3776 = vmatprep.subr.mxu0 0.0
        %3777 = vmatpush1.xpose.msra.mxu0 %v2549
        %3778 = vmatprep.subr.mxu0 0.0
        %3779 = vmatpush1.xpose.msra.mxu0 %v2548
        %3780 = vmatprep.subr.mxu0 0.0
        %3781 = vmatpush1.xpose.msra.mxu0 %v2547
        %3782 = vmatprep.subr.mxu0 0.0
        %3783 = vmatpush1.xpose.msra.mxu0 %v2546
        %3784 = vmatprep.subr.mxu0 0.0
        %3785 = vmatpush1.xpose.msra.mxu0 %v2545
        %3786 = vmatprep.subr.mxu0 0.0
        %3787 = vmatpush1.xpose.msra.mxu0 %v2544
        %3788 = vmatprep.subr.mxu0 0.0
        %3789 = vmatpush1.xpose.msra.mxu0 %v2543
        %3790 = vmatprep.subr.mxu0 0.0
        %3791 = vmatpush1.xpose.msra.mxu0 %v2542
        %3792 = vmatprep.subr.mxu0 0.0
        %3793 = vmatpush1.xpose.msra.mxu0 %v2541
        %3794 = vmatprep.subr.mxu0 0.0
        %3795 = vmatpush1.xpose.msra.mxu0 %v2540
        %3796 = vmatprep.subr.mxu0 0.0
        %3797 = vmatpush1.xpose.msra.mxu0 %v2539
        %3798 = vmatprep.subr.mxu0 0.0
        %3799 = vmatpush1.xpose.msra.mxu0 %v2538
        %3800 = vmatprep.subr.mxu0 0.0
        %3801 = vmatpush1.xpose.msra.mxu0 %v2537
        %3802 = vmatprep.subr.mxu0 0.0
        %3803 = vmatpush1.xpose.msra.mxu0 %v2536
        %3804 = vmatprep.subr.mxu0 0.0
        %3805 = vmatpush1.xpose.msra.mxu0 %v2535
        %3806 = vmatprep.subr.mxu0 0.0
        %3807 = vmatpush1.xpose.msra.mxu0 %v2534
        %3808 = vmatprep.subr.mxu0 0.0
        %3809 = vmatpush2.xpose.msra.mxu0 0.0
        %3810 = vmatprep.subr.mxu0 0.0
        %3811 = vmatpush2.xpose.msra.mxu0 0.0
        %3812 = vmatprep.subr.mxu0 0.0
        %3813 = vmatpush2.xpose.msra.mxu0 0.0
        %3814 = vmatprep.subr.mxu0 0.0
        %3815 = vmatpush2.xpose.msra.mxu0 0.0
        %3816 = vmatprep.subr.mxu0 0.0
        %3817 = vmatpush2.xpose.msra.mxu0 0.0
        %3818 = vmatprep.subr.mxu0 0.0
        %3819 = vmatpush2.xpose.msra.mxu0 0.0
        %3820 = vmatprep.subr.mxu0 0.0
        %3821 = vmatpush2.xpose.msra.mxu0 0.0
        %3822 = vmatprep.subr.mxu0 0.0
        %3823 = vmatpush2.xpose.msra.mxu0 0.0
        %3824 = vmatprep.subr.mxu0 0.0
        %3825 = vmatpush2.xpose.msra.mxu0 0.0
        %3826 = vmatprep.subr.mxu0 0.0
        %3827 = vmatpush2.xpose.msra.mxu0 0.0
        %3828 = vmatprep.subr.mxu0 0.0
        %3829 = vmatpush2.xpose.msra.mxu0 0.0
        %3830 = vmatprep.subr.mxu0 0.0
        %3831 = vmatpush2.xpose.msra.mxu0 0.0
        %3832 = vmatprep.subr.mxu0 0.0
        %3833 = vmatpush2.xpose.msra.mxu0 0.0
        %3834 = vmatprep.subr.mxu0 0.0
        %3835 = vmatpush2.xpose.msra.mxu0 0.0
        %3836 = vmatprep.subr.mxu0 0.0
        %3837 = vmatpush2.xpose.msra.mxu0 0.0
        %3838 = vmatprep.subr.mxu0 0.0
        %3839 = vmatpush2.xpose.msra.mxu0 0.0
        %3840 = vmatprep.mubr.f32.mxu0 0.0
        %3841 = vmatmul.mubr.f32.gmra.mxu0 %v2397
        %v3842 = vpop.f32.mrf.mxu0
        %v3843 = vadd.f32 %v3261, %v3842
        %v3844 = vpop.f32.mrf.mxu0
        %3845 = vdwg.mxu0
        %3846 = vmatprep.subr.mxu0 0.0
        %3847 = vmatpush1.xpose.msra.mxu0 %v2565
        %3848 = vmatprep.subr.mxu0 0.0
        %3849 = vmatpush1.xpose.msra.mxu0 %v2564
        %3850 = vmatprep.subr.mxu0 0.0
        %3851 = vmatpush1.xpose.msra.mxu0 %v2563
        %3852 = vmatprep.subr.mxu0 0.0
        %3853 = vmatpush1.xpose.msra.mxu0 %v2562
        %3854 = vmatprep.subr.mxu0 0.0
        %3855 = vmatpush1.xpose.msra.mxu0 %v2561
        %3856 = vmatprep.subr.mxu0 0.0
        %3857 = vmatpush1.xpose.msra.mxu0 %v2560
        %3858 = vmatprep.subr.mxu0 0.0
        %3859 = vmatpush1.xpose.msra.mxu0 %v2559
        %3860 = vmatprep.subr.mxu0 0.0
        %3861 = vmatpush1.xpose.msra.mxu0 %v2558
        %3862 = vmatprep.subr.mxu0 0.0
        %3863 = vmatpush1.xpose.msra.mxu0 %v2557
        %3864 = vmatprep.subr.mxu0 0.0
        %3865 = vmatpush1.xpose.msra.mxu0 %v2556
        %3866 = vmatprep.subr.mxu0 0.0
        %3867 = vmatpush1.xpose.msra.mxu0 %v2555
        %3868 = vmatprep.subr.mxu0 0.0
        %3869 = vmatpush1.xpose.msra.mxu0 %v2554
        %3870 = vmatprep.subr.mxu0 0.0
        %3871 = vmatpush1.xpose.msra.mxu0 %v2553
        %3872 = vmatprep.subr.mxu0 0.0
        %3873 = vmatpush1.xpose.msra.mxu0 %v2552
        %3874 = vmatprep.subr.mxu0 0.0
        %3875 = vmatpush1.xpose.msra.mxu0 %v2551
        %3876 = vmatprep.subr.mxu0 0.0
        %3877 = vmatpush1.xpose.msra.mxu0 %v2550
        %3878 = vmatprep.subr.mxu0 0.0
        %3879 = vmatpush2.xpose.msra.mxu0 0.0
        %3880 = vmatprep.subr.mxu0 0.0
        %3881 = vmatpush2.xpose.msra.mxu0 0.0
        %3882 = vmatprep.subr.mxu0 0.0
        %3883 = vmatpush2.xpose.msra.mxu0 0.0
        %3884 = vmatprep.subr.mxu0 0.0
        %3885 = vmatpush2.xpose.msra.mxu0 0.0
        %3886 = vmatprep.subr.mxu0 0.0
        %3887 = vmatpush2.xpose.msra.mxu0 0.0
        %3888 = vmatprep.subr.mxu0 0.0
        %3889 = vmatpush2.xpose.msra.mxu0 0.0
        %3890 = vmatprep.subr.mxu0 0.0
        %3891 = vmatpush2.xpose.msra.mxu0 0.0
        %3892 = vmatprep.subr.mxu0 0.0
        %3893 = vmatpush2.xpose.msra.mxu0 0.0
        %3894 = vmatprep.subr.mxu0 0.0
        %3895 = vmatpush2.xpose.msra.mxu0 0.0
        %3896 = vmatprep.subr.mxu0 0.0
        %3897 = vmatpush2.xpose.msra.mxu0 0.0
        %3898 = vmatprep.subr.mxu0 0.0
        %3899 = vmatpush2.xpose.msra.mxu0 0.0
        %3900 = vmatprep.subr.mxu0 0.0
        %3901 = vmatpush2.xpose.msra.mxu0 0.0
        %3902 = vmatprep.subr.mxu0 0.0
        %3903 = vmatpush2.xpose.msra.mxu0 0.0
        %3904 = vmatprep.subr.mxu0 0.0
        %3905 = vmatpush2.xpose.msra.mxu0 0.0
        %3906 = vmatprep.subr.mxu0 0.0
        %3907 = vmatpush2.xpose.msra.mxu0 0.0
        %3908 = vmatprep.subr.mxu0 0.0
        %3909 = vmatpush2.xpose.msra.mxu0 0.0
        %3910 = vmatprep.mubr.f32.mxu0 0.0
        %3911 = vmatmul.mubr.f32.gmra.mxu0 %v2398
        %v3912 = vpop.f32.mrf.mxu0
        %v3913 = vadd.f32 %v3262, %v3912
        %v3914 = vpop.f32.mrf.mxu0
        %3915 = vdwg.mxu0
        %3916 = vmatprep.subr.mxu0 0.0
        %3917 = vmatpush1.xpose.msra.mxu0 %v2581
        %3918 = vmatprep.subr.mxu0 0.0
        %3919 = vmatpush1.xpose.msra.mxu0 %v2580
        %3920 = vmatprep.subr.mxu0 0.0
        %3921 = vmatpush1.xpose.msra.mxu0 %v2579
        %3922 = vmatprep.subr.mxu0 0.0
        %3923 = vmatpush1.xpose.msra.mxu0 %v2578
        %3924 = vmatprep.subr.mxu0 0.0
        %3925 = vmatpush1.xpose.msra.mxu0 %v2577
        %3926 = vmatprep.subr.mxu0 0.0
        %3927 = vmatpush1.xpose.msra.mxu0 %v2576
        %3928 = vmatprep.subr.mxu0 0.0
        %3929 = vmatpush1.xpose.msra.mxu0 %v2575
        %3930 = vmatprep.subr.mxu0 0.0
        %3931 = vmatpush1.xpose.msra.mxu0 %v2574
        %3932 = vmatprep.subr.mxu0 0.0
        %3933 = vmatpush1.xpose.msra.mxu0 %v2573
        %3934 = vmatprep.subr.mxu0 0.0
        %3935 = vmatpush1.xpose.msra.mxu0 %v2572
        %3936 = vmatprep.subr.mxu0 0.0
        %3937 = vmatpush1.xpose.msra.mxu0 %v2571
        %3938 = vmatprep.subr.mxu0 0.0
        %3939 = vmatpush1.xpose.msra.mxu0 %v2570
        %3940 = vmatprep.subr.mxu0 0.0
        %3941 = vmatpush1.xpose.msra.mxu0 %v2569
        %3942 = vmatprep.subr.mxu0 0.0
        %3943 = vmatpush1.xpose.msra.mxu0 %v2568
        %3944 = vmatprep.subr.mxu0 0.0
        %3945 = vmatpush1.xpose.msra.mxu0 %v2567
        %3946 = vmatprep.subr.mxu0 0.0
        %3947 = vmatpush1.xpose.msra.mxu0 %v2566
        %3948 = vmatprep.subr.mxu0 0.0
        %3949 = vmatpush2.xpose.msra.mxu0 0.0
        %3950 = vmatprep.subr.mxu0 0.0
        %3951 = vmatpush2.xpose.msra.mxu0 0.0
        %3952 = vmatprep.subr.mxu0 0.0
        %3953 = vmatpush2.xpose.msra.mxu0 0.0
        %3954 = vmatprep.subr.mxu0 0.0
        %3955 = vmatpush2.xpose.msra.mxu0 0.0
        %3956 = vmatprep.subr.mxu0 0.0
        %3957 = vmatpush2.xpose.msra.mxu0 0.0
        %3958 = vmatprep.subr.mxu0 0.0
        %3959 = vmatpush2.xpose.msra.mxu0 0.0
        %3960 = vmatprep.subr.mxu0 0.0
        %3961 = vmatpush2.xpose.msra.mxu0 0.0
        %3962 = vmatprep.subr.mxu0 0.0
        %3963 = vmatpush2.xpose.msra.mxu0 0.0
        %3964 = vmatprep.subr.mxu0 0.0
        %3965 = vmatpush2.xpose.msra.mxu0 0.0
        %3966 = vmatprep.subr.mxu0 0.0
        %3967 = vmatpush2.xpose.msra.mxu0 0.0
        %3968 = vmatprep.subr.mxu0 0.0
        %3969 = vmatpush2.xpose.msra.mxu0 0.0
        %3970 = vmatprep.subr.mxu0 0.0
        %3971 = vmatpush2.xpose.msra.mxu0 0.0
        %3972 = vmatprep.subr.mxu0 0.0
        %3973 = vmatpush2.xpose.msra.mxu0 0.0
        %3974 = vmatprep.subr.mxu0 0.0
        %3975 = vmatpush2.xpose.msra.mxu0 0.0
        %3976 = vmatprep.subr.mxu0 0.0
        %3977 = vmatpush2.xpose.msra.mxu0 0.0
        %3978 = vmatprep.subr.mxu0 0.0
        %3979 = vmatpush2.xpose.msra.mxu0 0.0
        %3980 = vmatprep.mubr.f32.mxu0 0.0
        %3981 = vmatmul.mubr.f32.gmra.mxu0 %v2399
        %v3982 = vpop.f32.mrf.mxu0
        %v3983 = vadd.f32 %v3263, %v3982
        %v3984 = vpop.f32.mrf.mxu0
        %3985 = vdwg.mxu0
        %3986 = vmatprep.subr.mxu0 0.0
        %3987 = vmatpush1.xpose.msra.mxu0 %v2597
        %3988 = vmatprep.subr.mxu0 0.0
        %3989 = vmatpush1.xpose.msra.mxu0 %v2596
        %3990 = vmatprep.subr.mxu0 0.0
        %3991 = vmatpush1.xpose.msra.mxu0 %v2595
        %3992 = vmatprep.subr.mxu0 0.0
        %3993 = vmatpush1.xpose.msra.mxu0 %v2594
        %3994 = vmatprep.subr.mxu0 0.0
        %3995 = vmatpush1.xpose.msra.mxu0 %v2593
        %3996 = vmatprep.subr.mxu0 0.0
        %3997 = vmatpush1.xpose.msra.mxu0 %v2592
        %3998 = vmatprep.subr.mxu0 0.0
        %3999 = vmatpush1.xpose.msra.mxu0 %v2591
        %4000 = vmatprep.subr.mxu0 0.0
        %4001 = vmatpush1.xpose.msra.mxu0 %v2590
        %4002 = vmatprep.subr.mxu0 0.0
        %4003 = vmatpush1.xpose.msra.mxu0 %v2589
        %4004 = vmatprep.subr.mxu0 0.0
        %4005 = vmatpush1.xpose.msra.mxu0 %v2588
        %4006 = vmatprep.subr.mxu0 0.0
        %4007 = vmatpush1.xpose.msra.mxu0 %v2587
        %4008 = vmatprep.subr.mxu0 0.0
        %4009 = vmatpush1.xpose.msra.mxu0 %v2586
        %4010 = vmatprep.subr.mxu0 0.0
        %4011 = vmatpush1.xpose.msra.mxu0 %v2585
        %4012 = vmatprep.subr.mxu0 0.0
        %4013 = vmatpush1.xpose.msra.mxu0 %v2584
        %4014 = vmatprep.subr.mxu0 0.0
        %4015 = vmatpush1.xpose.msra.mxu0 %v2583
        %4016 = vmatprep.subr.mxu0 0.0
        %4017 = vmatpush1.xpose.msra.mxu0 %v2582
        %4018 = vmatprep.subr.mxu0 0.0
        %4019 = vmatpush2.xpose.msra.mxu0 0.0
        %4020 = vmatprep.subr.mxu0 0.0
        %4021 = vmatpush2.xpose.msra.mxu0 0.0
        %4022 = vmatprep.subr.mxu0 0.0
        %4023 = vmatpush2.xpose.msra.mxu0 0.0
        %4024 = vmatprep.subr.mxu0 0.0
        %4025 = vmatpush2.xpose.msra.mxu0 0.0
        %4026 = vmatprep.subr.mxu0 0.0
        %4027 = vmatpush2.xpose.msra.mxu0 0.0
        %4028 = vmatprep.subr.mxu0 0.0
        %4029 = vmatpush2.xpose.msra.mxu0 0.0
        %4030 = vmatprep.subr.mxu0 0.0
        %4031 = vmatpush2.xpose.msra.mxu0 0.0
        %4032 = vmatprep.subr.mxu0 0.0
        %4033 = vmatpush2.xpose.msra.mxu0 0.0
        %4034 = vmatprep.subr.mxu0 0.0
        %4035 = vmatpush2.xpose.msra.mxu0 0.0
        %4036 = vmatprep.subr.mxu0 0.0
        %4037 = vmatpush2.xpose.msra.mxu0 0.0
        %4038 = vmatprep.subr.mxu0 0.0
        %4039 = vmatpush2.xpose.msra.mxu0 0.0
        %4040 = vmatprep.subr.mxu0 0.0
        %4041 = vmatpush2.xpose.msra.mxu0 0.0
        %4042 = vmatprep.subr.mxu0 0.0
        %4043 = vmatpush2.xpose.msra.mxu0 0.0
        %4044 = vmatprep.subr.mxu0 0.0
        %4045 = vmatpush2.xpose.msra.mxu0 0.0
        %4046 = vmatprep.subr.mxu0 0.0
        %4047 = vmatpush2.xpose.msra.mxu0 0.0
        %4048 = vmatprep.subr.mxu0 0.0
        %4049 = vmatpush2.xpose.msra.mxu0 0.0
        %4050 = vmatprep.mubr.f32.mxu0 0.0
        %4051 = vmatmul.mubr.f32.gmra.mxu0 %v2400
        %v4052 = vpop.f32.mrf.mxu0
        %v4053 = vadd.f32 %v3264, %v4052
        %v4054 = vpop.f32.mrf.mxu0
        %4055 = vdwg.mxu0
        %4056 = vmatprep.subr.mxu0 0.0
        %4057 = vmatpush1.xpose.msra.mxu0 %v2613
        %4058 = vmatprep.subr.mxu0 0.0
        %4059 = vmatpush1.xpose.msra.mxu0 %v2612
        %4060 = vmatprep.subr.mxu0 0.0
        %4061 = vmatpush1.xpose.msra.mxu0 %v2611
        %4062 = vmatprep.subr.mxu0 0.0
        %4063 = vmatpush1.xpose.msra.mxu0 %v2610
        %4064 = vmatprep.subr.mxu0 0.0
        %4065 = vmatpush1.xpose.msra.mxu0 %v2609
        %4066 = vmatprep.subr.mxu0 0.0
        %4067 = vmatpush1.xpose.msra.mxu0 %v2608
        %4068 = vmatprep.subr.mxu0 0.0
        %4069 = vmatpush1.xpose.msra.mxu0 %v2607
        %4070 = vmatprep.subr.mxu0 0.0
        %4071 = vmatpush1.xpose.msra.mxu0 %v2606
        %4072 = vmatprep.subr.mxu0 0.0
        %4073 = vmatpush1.xpose.msra.mxu0 %v2605
        %4074 = vmatprep.subr.mxu0 0.0
        %4075 = vmatpush1.xpose.msra.mxu0 %v2604
        %4076 = vmatprep.subr.mxu0 0.0
        %4077 = vmatpush1.xpose.msra.mxu0 %v2603
        %4078 = vmatprep.subr.mxu0 0.0
        %4079 = vmatpush1.xpose.msra.mxu0 %v2602
        %4080 = vmatprep.subr.mxu0 0.0
        %4081 = vmatpush1.xpose.msra.mxu0 %v2601
        %4082 = vmatprep.subr.mxu0 0.0
        %4083 = vmatpush1.xpose.msra.mxu0 %v2600
        %4084 = vmatprep.subr.mxu0 0.0
        %4085 = vmatpush1.xpose.msra.mxu0 %v2599
        %4086 = vmatprep.subr.mxu0 0.0
        %4087 = vmatpush1.xpose.msra.mxu0 %v2598
        %4088 = vmatprep.subr.mxu0 0.0
        %4089 = vmatpush2.xpose.msra.mxu0 0.0
        %4090 = vmatprep.subr.mxu0 0.0
        %4091 = vmatpush2.xpose.msra.mxu0 0.0
        %4092 = vmatprep.subr.mxu0 0.0
        %4093 = vmatpush2.xpose.msra.mxu0 0.0
        %4094 = vmatprep.subr.mxu0 0.0
        %4095 = vmatpush2.xpose.msra.mxu0 0.0
        %4096 = vmatprep.subr.mxu0 0.0
        %4097 = vmatpush2.xpose.msra.mxu0 0.0
        %4098 = vmatprep.subr.mxu0 0.0
        %4099 = vmatpush2.xpose.msra.mxu0 0.0
        %4100 = vmatprep.subr.mxu0 0.0
        %4101 = vmatpush2.xpose.msra.mxu0 0.0
        %4102 = vmatprep.subr.mxu0 0.0
        %4103 = vmatpush2.xpose.msra.mxu0 0.0
        %4104 = vmatprep.subr.mxu0 0.0
        %4105 = vmatpush2.xpose.msra.mxu0 0.0
        %4106 = vmatprep.subr.mxu0 0.0
        %4107 = vmatpush2.xpose.msra.mxu0 0.0
        %4108 = vmatprep.subr.mxu0 0.0
        %4109 = vmatpush2.xpose.msra.mxu0 0.0
        %4110 = vmatprep.subr.mxu0 0.0
        %4111 = vmatpush2.xpose.msra.mxu0 0.0
        %4112 = vmatprep.subr.mxu0 0.0
        %4113 = vmatpush2.xpose.msra.mxu0 0.0
        %4114 = vmatprep.subr.mxu0 0.0
        %4115 = vmatpush2.xpose.msra.mxu0 0.0
        %4116 = vmatprep.subr.mxu0 0.0
        %4117 = vmatpush2.xpose.msra.mxu0 0.0
        %4118 = vmatprep.subr.mxu0 0.0
        %4119 = vmatpush2.xpose.msra.mxu0 0.0
        %4120 = vmatprep.mubr.f32.mxu0 0.0
        %4121 = vmatmul.mubr.f32.gmra.mxu0 %v2401
        %v4122 = vpop.f32.mrf.mxu0
        %v4123 = vadd.f32 %v3265, %v4122
        %v4124 = vpop.f32.mrf.mxu0
        %4125 = vdwg.mxu0
        %4126 = vmatprep.subr.mxu0 0.0
        %4127 = vmatpush1.xpose.msra.mxu0 %v2629
        %4128 = vmatprep.subr.mxu0 0.0
        %4129 = vmatpush1.xpose.msra.mxu0 %v2628
        %4130 = vmatprep.subr.mxu0 0.0
        %4131 = vmatpush1.xpose.msra.mxu0 %v2627
        %4132 = vmatprep.subr.mxu0 0.0
        %4133 = vmatpush1.xpose.msra.mxu0 %v2626
        %4134 = vmatprep.subr.mxu0 0.0
        %4135 = vmatpush1.xpose.msra.mxu0 %v2625
        %4136 = vmatprep.subr.mxu0 0.0
        %4137 = vmatpush1.xpose.msra.mxu0 %v2624
        %4138 = vmatprep.subr.mxu0 0.0
        %4139 = vmatpush1.xpose.msra.mxu0 %v2623
        %4140 = vmatprep.subr.mxu0 0.0
        %4141 = vmatpush1.xpose.msra.mxu0 %v2622
        %4142 = vmatprep.subr.mxu0 0.0
        %4143 = vmatpush1.xpose.msra.mxu0 %v2621
        %4144 = vmatprep.subr.mxu0 0.0
        %4145 = vmatpush1.xpose.msra.mxu0 %v2620
        %4146 = vmatprep.subr.mxu0 0.0
        %4147 = vmatpush1.xpose.msra.mxu0 %v2619
        %4148 = vmatprep.subr.mxu0 0.0
        %4149 = vmatpush1.xpose.msra.mxu0 %v2618
        %4150 = vmatprep.subr.mxu0 0.0
        %4151 = vmatpush1.xpose.msra.mxu0 %v2617
        %4152 = vmatprep.subr.mxu0 0.0
        %4153 = vmatpush1.xpose.msra.mxu0 %v2616
        %4154 = vmatprep.subr.mxu0 0.0
        %4155 = vmatpush1.xpose.msra.mxu0 %v2615
        %4156 = vmatprep.subr.mxu0 0.0
        %4157 = vmatpush1.xpose.msra.mxu0 %v2614
        %4158 = vmatprep.subr.mxu0 0.0
        %4159 = vmatpush2.xpose.msra.mxu0 0.0
        %4160 = vmatprep.subr.mxu0 0.0
        %4161 = vmatpush2.xpose.msra.mxu0 0.0
        %4162 = vmatprep.subr.mxu0 0.0
        %4163 = vmatpush2.xpose.msra.mxu0 0.0
        %4164 = vmatprep.subr.mxu0 0.0
        %4165 = vmatpush2.xpose.msra.mxu0 0.0
        %4166 = vmatprep.subr.mxu0 0.0
        %4167 = vmatpush2.xpose.msra.mxu0 0.0
        %4168 = vmatprep.subr.mxu0 0.0
        %4169 = vmatpush2.xpose.msra.mxu0 0.0
        %4170 = vmatprep.subr.mxu0 0.0
        %4171 = vmatpush2.xpose.msra.mxu0 0.0
        %4172 = vmatprep.subr.mxu0 0.0
        %4173 = vmatpush2.xpose.msra.mxu0 0.0
        %4174 = vmatprep.subr.mxu0 0.0
        %4175 = vmatpush2.xpose.msra.mxu0 0.0
        %4176 = vmatprep.subr.mxu0 0.0
        %4177 = vmatpush2.xpose.msra.mxu0 0.0
        %4178 = vmatprep.subr.mxu0 0.0
        %4179 = vmatpush2.xpose.msra.mxu0 0.0
        %4180 = vmatprep.subr.mxu0 0.0
        %4181 = vmatpush2.xpose.msra.mxu0 0.0
        %4182 = vmatprep.subr.mxu0 0.0
        %4183 = vmatpush2.xpose.msra.mxu0 0.0
        %4184 = vmatprep.subr.mxu0 0.0
        %4185 = vmatpush2.xpose.msra.mxu0 0.0
        %4186 = vmatprep.subr.mxu0 0.0
        %4187 = vmatpush2.xpose.msra.mxu0 0.0
        %4188 = vmatprep.subr.mxu0 0.0
        %4189 = vmatpush2.xpose.msra.mxu0 0.0
        %4190 = vmatprep.mubr.f32.mxu0 0.0
        %4191 = vmatmul.mubr.f32.gmra.mxu0 %v2402
        %v4192 = vpop.f32.mrf.mxu0
        %v4193 = vadd.f32 %v3266, %v4192
        %v4194 = vpop.f32.mrf.mxu0
        %4195 = vdwg.mxu0
        %4196 = vmatprep.subr.mxu0 0.0
        %4197 = vmatpush1.xpose.msra.mxu0 %v2645
        %4198 = vmatprep.subr.mxu0 0.0
        %4199 = vmatpush1.xpose.msra.mxu0 %v2644
        %4200 = vmatprep.subr.mxu0 0.0
        %4201 = vmatpush1.xpose.msra.mxu0 %v2643
        %4202 = vmatprep.subr.mxu0 0.0
        %4203 = vmatpush1.xpose.msra.mxu0 %v2642
        %4204 = vmatprep.subr.mxu0 0.0
        %4205 = vmatpush1.xpose.msra.mxu0 %v2641
        %4206 = vmatprep.subr.mxu0 0.0
        %4207 = vmatpush1.xpose.msra.mxu0 %v2640
        %4208 = vmatprep.subr.mxu0 0.0
        %4209 = vmatpush1.xpose.msra.mxu0 %v2639
        %4210 = vmatprep.subr.mxu0 0.0
        %4211 = vmatpush1.xpose.msra.mxu0 %v2638
        %4212 = vmatprep.subr.mxu0 0.0
        %4213 = vmatpush1.xpose.msra.mxu0 %v2637
        %4214 = vmatprep.subr.mxu0 0.0
        %4215 = vmatpush1.xpose.msra.mxu0 %v2636
        %4216 = vmatprep.subr.mxu0 0.0
        %4217 = vmatpush1.xpose.msra.mxu0 %v2635
        %4218 = vmatprep.subr.mxu0 0.0
        %4219 = vmatpush1.xpose.msra.mxu0 %v2634
        %4220 = vmatprep.subr.mxu0 0.0
        %4221 = vmatpush1.xpose.msra.mxu0 %v2633
        %4222 = vmatprep.subr.mxu0 0.0
        %4223 = vmatpush1.xpose.msra.mxu0 %v2632
        %4224 = vmatprep.subr.mxu0 0.0
        %4225 = vmatpush1.xpose.msra.mxu0 %v2631
        %4226 = vmatprep.subr.mxu0 0.0
        %4227 = vmatpush1.xpose.msra.mxu0 %v2630
        %4228 = vmatprep.subr.mxu0 0.0
        %4229 = vmatpush2.xpose.msra.mxu0 0.0
        %4230 = vmatprep.subr.mxu0 0.0
        %4231 = vmatpush2.xpose.msra.mxu0 0.0
        %4232 = vmatprep.subr.mxu0 0.0
        %4233 = vmatpush2.xpose.msra.mxu0 0.0
        %4234 = vmatprep.subr.mxu0 0.0
        %4235 = vmatpush2.xpose.msra.mxu0 0.0
        %4236 = vmatprep.subr.mxu0 0.0
        %4237 = vmatpush2.xpose.msra.mxu0 0.0
        %4238 = vmatprep.subr.mxu0 0.0
        %4239 = vmatpush2.xpose.msra.mxu0 0.0
        %4240 = vmatprep.subr.mxu0 0.0
        %4241 = vmatpush2.xpose.msra.mxu0 0.0
        %4242 = vmatprep.subr.mxu0 0.0
        %4243 = vmatpush2.xpose.msra.mxu0 0.0
        %4244 = vmatprep.subr.mxu0 0.0
        %4245 = vmatpush2.xpose.msra.mxu0 0.0
        %4246 = vmatprep.subr.mxu0 0.0
        %4247 = vmatpush2.xpose.msra.mxu0 0.0
        %4248 = vmatprep.subr.mxu0 0.0
        %4249 = vmatpush2.xpose.msra.mxu0 0.0
        %4250 = vmatprep.subr.mxu0 0.0
        %4251 = vmatpush2.xpose.msra.mxu0 0.0
        %4252 = vmatprep.subr.mxu0 0.0
        %4253 = vmatpush2.xpose.msra.mxu0 0.0
        %4254 = vmatprep.subr.mxu0 0.0
        %4255 = vmatpush2.xpose.msra.mxu0 0.0
        %4256 = vmatprep.subr.mxu0 0.0
        %4257 = vmatpush2.xpose.msra.mxu0 0.0
        %4258 = vmatprep.subr.mxu0 0.0
        %4259 = vmatpush2.xpose.msra.mxu0 0.0
        %4260 = vmatprep.mubr.f32.mxu0 0.0
        %4261 = vmatmul.mubr.f32.gmra.mxu0 %v2403
        %v4262 = vpop.f32.mrf.mxu0
        %v4263 = vadd.f32 %v3267, %v4262
        %v4264 = vpop.f32.mrf.mxu0
        %4265 = vdwg.mxu0
        %4266 = vmatprep.subr.mxu0 0.0
        %4267 = vmatpush1.xpose.msra.mxu0 %v2661
        %4268 = vmatprep.subr.mxu0 0.0
        %4269 = vmatpush1.xpose.msra.mxu0 %v2660
        %4270 = vmatprep.subr.mxu0 0.0
        %4271 = vmatpush1.xpose.msra.mxu0 %v2659
        %4272 = vmatprep.subr.mxu0 0.0
        %4273 = vmatpush1.xpose.msra.mxu0 %v2658
        %4274 = vmatprep.subr.mxu0 0.0
        %4275 = vmatpush1.xpose.msra.mxu0 %v2657
        %4276 = vmatprep.subr.mxu0 0.0
        %4277 = vmatpush1.xpose.msra.mxu0 %v2656
        %4278 = vmatprep.subr.mxu0 0.0
        %4279 = vmatpush1.xpose.msra.mxu0 %v2655
        %4280 = vmatprep.subr.mxu0 0.0
        %4281 = vmatpush1.xpose.msra.mxu0 %v2654
        %4282 = vmatprep.subr.mxu0 0.0
        %4283 = vmatpush1.xpose.msra.mxu0 %v2653
        %4284 = vmatprep.subr.mxu0 0.0
        %4285 = vmatpush1.xpose.msra.mxu0 %v2652
        %4286 = vmatprep.subr.mxu0 0.0
        %4287 = vmatpush1.xpose.msra.mxu0 %v2651
        %4288 = vmatprep.subr.mxu0 0.0
        %4289 = vmatpush1.xpose.msra.mxu0 %v2650
        %4290 = vmatprep.subr.mxu0 0.0
        %4291 = vmatpush1.xpose.msra.mxu0 %v2649
        %4292 = vmatprep.subr.mxu0 0.0
        %4293 = vmatpush1.xpose.msra.mxu0 %v2648
        %4294 = vmatprep.subr.mxu0 0.0
        %4295 = vmatpush1.xpose.msra.mxu0 %v2647
        %4296 = vmatprep.subr.mxu0 0.0
        %4297 = vmatpush1.xpose.msra.mxu0 %v2646
        %4298 = vmatprep.subr.mxu0 0.0
        %4299 = vmatpush2.xpose.msra.mxu0 0.0
        %4300 = vmatprep.subr.mxu0 0.0
        %4301 = vmatpush2.xpose.msra.mxu0 0.0
        %4302 = vmatprep.subr.mxu0 0.0
        %4303 = vmatpush2.xpose.msra.mxu0 0.0
        %4304 = vmatprep.subr.mxu0 0.0
        %4305 = vmatpush2.xpose.msra.mxu0 0.0
        %4306 = vmatprep.subr.mxu0 0.0
        %4307 = vmatpush2.xpose.msra.mxu0 0.0
        %4308 = vmatprep.subr.mxu0 0.0
        %4309 = vmatpush2.xpose.msra.mxu0 0.0
        %4310 = vmatprep.subr.mxu0 0.0
        %4311 = vmatpush2.xpose.msra.mxu0 0.0
        %4312 = vmatprep.subr.mxu0 0.0
        %4313 = vmatpush2.xpose.msra.mxu0 0.0
        %4314 = vmatprep.subr.mxu0 0.0
        %4315 = vmatpush2.xpose.msra.mxu0 0.0
        %4316 = vmatprep.subr.mxu0 0.0
        %4317 = vmatpush2.xpose.msra.mxu0 0.0
        %4318 = vmatprep.subr.mxu0 0.0
        %4319 = vmatpush2.xpose.msra.mxu0 0.0
        %4320 = vmatprep.subr.mxu0 0.0
        %4321 = vmatpush2.xpose.msra.mxu0 0.0
        %4322 = vmatprep.subr.mxu0 0.0
        %4323 = vmatpush2.xpose.msra.mxu0 0.0
        %4324 = vmatprep.subr.mxu0 0.0
        %4325 = vmatpush2.xpose.msra.mxu0 0.0
        %4326 = vmatprep.subr.mxu0 0.0
        %4327 = vmatpush2.xpose.msra.mxu0 0.0
        %4328 = vmatprep.subr.mxu0 0.0
        %4329 = vmatpush2.xpose.msra.mxu0 0.0
        %4330 = vmatprep.mubr.f32.mxu0 0.0
        %4331 = vmatmul.mubr.f32.gmra.mxu0 %v2404
        %v4332 = vpop.f32.mrf.mxu0
        %v4333 = vadd.f32 %v3268, %v4332
        %v4334 = vpop.f32.mrf.mxu0
        %4335 = vdwg.mxu0
        %4336 = vmatprep.subr.mxu0 0.0
        %4337 = vmatpush1.xpose.msra.mxu0 %v2677
        %4338 = vmatprep.subr.mxu0 0.0
        %4339 = vmatpush1.xpose.msra.mxu0 %v2676
        %4340 = vmatprep.subr.mxu0 0.0
        %4341 = vmatpush1.xpose.msra.mxu0 %v2675
        %4342 = vmatprep.subr.mxu0 0.0
        %4343 = vmatpush1.xpose.msra.mxu0 %v2674
        %4344 = vmatprep.subr.mxu0 0.0
        %4345 = vmatpush1.xpose.msra.mxu0 %v2673
        %4346 = vmatprep.subr.mxu0 0.0
        %4347 = vmatpush1.xpose.msra.mxu0 %v2672
        %4348 = vmatprep.subr.mxu0 0.0
        %4349 = vmatpush1.xpose.msra.mxu0 %v2671
        %4350 = vmatprep.subr.mxu0 0.0
        %4351 = vmatpush1.xpose.msra.mxu0 %v2670
        %4352 = vmatprep.subr.mxu0 0.0
        %4353 = vmatpush1.xpose.msra.mxu0 %v2669
        %4354 = vmatprep.subr.mxu0 0.0
        %4355 = vmatpush1.xpose.msra.mxu0 %v2668
        %4356 = vmatprep.subr.mxu0 0.0
        %4357 = vmatpush1.xpose.msra.mxu0 %v2667
        %4358 = vmatprep.subr.mxu0 0.0
        %4359 = vmatpush1.xpose.msra.mxu0 %v2666
        %4360 = vmatprep.subr.mxu0 0.0
        %4361 = vmatpush1.xpose.msra.mxu0 %v2665
        %4362 = vmatprep.subr.mxu0 0.0
        %4363 = vmatpush1.xpose.msra.mxu0 %v2664
        %4364 = vmatprep.subr.mxu0 0.0
        %4365 = vmatpush1.xpose.msra.mxu0 %v2663
        %4366 = vmatprep.subr.mxu0 0.0
        %4367 = vmatpush1.xpose.msra.mxu0 %v2662
        %4368 = vmatprep.subr.mxu0 0.0
        %4369 = vmatpush2.xpose.msra.mxu0 0.0
        %4370 = vmatprep.subr.mxu0 0.0
        %4371 = vmatpush2.xpose.msra.mxu0 0.0
        %4372 = vmatprep.subr.mxu0 0.0
        %4373 = vmatpush2.xpose.msra.mxu0 0.0
        %4374 = vmatprep.subr.mxu0 0.0
        %4375 = vmatpush2.xpose.msra.mxu0 0.0
        %4376 = vmatprep.subr.mxu0 0.0
        %4377 = vmatpush2.xpose.msra.mxu0 0.0
        %4378 = vmatprep.subr.mxu0 0.0
        %4379 = vmatpush2.xpose.msra.mxu0 0.0
        %4380 = vmatprep.subr.mxu0 0.0
        %4381 = vmatpush2.xpose.msra.mxu0 0.0
        %4382 = vmatprep.subr.mxu0 0.0
        %4383 = vmatpush2.xpose.msra.mxu0 0.0
        %4384 = vmatprep.subr.mxu0 0.0
        %4385 = vmatpush2.xpose.msra.mxu0 0.0
        %4386 = vmatprep.subr.mxu0 0.0
        %4387 = vmatpush2.xpose.msra.mxu0 0.0
        %4388 = vmatprep.subr.mxu0 0.0
        %4389 = vmatpush2.xpose.msra.mxu0 0.0
        %4390 = vmatprep.subr.mxu0 0.0
        %4391 = vmatpush2.xpose.msra.mxu0 0.0
        %4392 = vmatprep.subr.mxu0 0.0
        %4393 = vmatpush2.xpose.msra.mxu0 0.0
        %4394 = vmatprep.subr.mxu0 0.0
        %4395 = vmatpush2.xpose.msra.mxu0 0.0
        %4396 = vmatprep.subr.mxu0 0.0
        %4397 = vmatpush2.xpose.msra.mxu0 0.0
        %4398 = vmatprep.subr.mxu0 0.0
        %4399 = vmatpush2.xpose.msra.mxu0 0.0
        %4400 = vmatprep.mubr.f32.mxu0 0.0
        %4401 = vmatmul.mubr.f32.gmra.mxu0 %v2405
        %v4402 = vpop.f32.mrf.mxu0
        %v4403 = vadd.f32 %v3269, %v4402
        %v4404 = vpop.f32.mrf.mxu0
        %4405 = vdwg.mxu0
        %4406 = vmatprep.subr.mxu0 0.0
        %4407 = vmatpush1.xpose.msra.mxu0 %v2693
        %4408 = vmatprep.subr.mxu0 0.0
        %4409 = vmatpush1.xpose.msra.mxu0 %v2692
        %4410 = vmatprep.subr.mxu0 0.0
        %4411 = vmatpush1.xpose.msra.mxu0 %v2691
        %4412 = vmatprep.subr.mxu0 0.0
        %4413 = vmatpush1.xpose.msra.mxu0 %v2690
        %4414 = vmatprep.subr.mxu0 0.0
        %4415 = vmatpush1.xpose.msra.mxu0 %v2689
        %4416 = vmatprep.subr.mxu0 0.0
        %4417 = vmatpush1.xpose.msra.mxu0 %v2688
        %4418 = vmatprep.subr.mxu0 0.0
        %4419 = vmatpush1.xpose.msra.mxu0 %v2687
        %4420 = vmatprep.subr.mxu0 0.0
        %4421 = vmatpush1.xpose.msra.mxu0 %v2686
        %4422 = vmatprep.subr.mxu0 0.0
        %4423 = vmatpush1.xpose.msra.mxu0 %v2685
        %4424 = vmatprep.subr.mxu0 0.0
        %4425 = vmatpush1.xpose.msra.mxu0 %v2684
        %4426 = vmatprep.subr.mxu0 0.0
        %4427 = vmatpush1.xpose.msra.mxu0 %v2683
        %4428 = vmatprep.subr.mxu0 0.0
        %4429 = vmatpush1.xpose.msra.mxu0 %v2682
        %4430 = vmatprep.subr.mxu0 0.0
        %4431 = vmatpush1.xpose.msra.mxu0 %v2681
        %4432 = vmatprep.subr.mxu0 0.0
        %4433 = vmatpush1.xpose.msra.mxu0 %v2680
        %4434 = vmatprep.subr.mxu0 0.0
        %4435 = vmatpush1.xpose.msra.mxu0 %v2679
        %4436 = vmatprep.subr.mxu0 0.0
        %4437 = vmatpush1.xpose.msra.mxu0 %v2678
        %4438 = vmatprep.subr.mxu0 0.0
        %4439 = vmatpush2.xpose.msra.mxu0 0.0
        %4440 = vmatprep.subr.mxu0 0.0
        %4441 = vmatpush2.xpose.msra.mxu0 0.0
        %4442 = vmatprep.subr.mxu0 0.0
        %4443 = vmatpush2.xpose.msra.mxu0 0.0
        %4444 = vmatprep.subr.mxu0 0.0
        %4445 = vmatpush2.xpose.msra.mxu0 0.0
        %4446 = vmatprep.subr.mxu0 0.0
        %4447 = vmatpush2.xpose.msra.mxu0 0.0
        %4448 = vmatprep.subr.mxu0 0.0
        %4449 = vmatpush2.xpose.msra.mxu0 0.0
        %4450 = vmatprep.subr.mxu0 0.0
        %4451 = vmatpush2.xpose.msra.mxu0 0.0
        %4452 = vmatprep.subr.mxu0 0.0
        %4453 = vmatpush2.xpose.msra.mxu0 0.0
        %4454 = vmatprep.subr.mxu0 0.0
        %4455 = vmatpush2.xpose.msra.mxu0 0.0
        %4456 = vmatprep.subr.mxu0 0.0
        %4457 = vmatpush2.xpose.msra.mxu0 0.0
        %4458 = vmatprep.subr.mxu0 0.0
        %4459 = vmatpush2.xpose.msra.mxu0 0.0
        %4460 = vmatprep.subr.mxu0 0.0
        %4461 = vmatpush2.xpose.msra.mxu0 0.0
        %4462 = vmatprep.subr.mxu0 0.0
        %4463 = vmatpush2.xpose.msra.mxu0 0.0
        %4464 = vmatprep.subr.mxu0 0.0
        %4465 = vmatpush2.xpose.msra.mxu0 0.0
        %4466 = vmatprep.subr.mxu0 0.0
        %4467 = vmatpush2.xpose.msra.mxu0 0.0
        %4468 = vmatprep.subr.mxu0 0.0
        %4469 = vmatpush2.xpose.msra.mxu0 0.0
        %4470 = vmatprep.mubr.f32.mxu0 0.0
        %4471 = vmatmul.mubr.f32.gmra.mxu0 %v2406
        %v4472 = vpop.f32.mrf.mxu0
        %v4473 = vadd.f32 %v3270, %v4472
        %v4474 = vpop.f32.mrf.mxu0
        %4475 = vdwg.mxu0
        %4476 = vmatprep.subr.mxu0 0.0
        %4477 = vmatpush1.xpose.msra.mxu0 %v2709
        %4478 = vmatprep.subr.mxu0 0.0
        %4479 = vmatpush1.xpose.msra.mxu0 %v2708
        %4480 = vmatprep.subr.mxu0 0.0
        %4481 = vmatpush1.xpose.msra.mxu0 %v2707
        %4482 = vmatprep.subr.mxu0 0.0
        %4483 = vmatpush1.xpose.msra.mxu0 %v2706
        %4484 = vmatprep.subr.mxu0 0.0
        %4485 = vmatpush1.xpose.msra.mxu0 %v2705
        %4486 = vmatprep.subr.mxu0 0.0
        %4487 = vmatpush1.xpose.msra.mxu0 %v2704
        %4488 = vmatprep.subr.mxu0 0.0
        %4489 = vmatpush1.xpose.msra.mxu0 %v2703
        %4490 = vmatprep.subr.mxu0 0.0
        %4491 = vmatpush1.xpose.msra.mxu0 %v2702
        %4492 = vmatprep.subr.mxu0 0.0
        %4493 = vmatpush1.xpose.msra.mxu0 %v2701
        %4494 = vmatprep.subr.mxu0 0.0
        %4495 = vmatpush1.xpose.msra.mxu0 %v2700
        %4496 = vmatprep.subr.mxu0 0.0
        %4497 = vmatpush1.xpose.msra.mxu0 %v2699
        %4498 = vmatprep.subr.mxu0 0.0
        %4499 = vmatpush1.xpose.msra.mxu0 %v2698
        %4500 = vmatprep.subr.mxu0 0.0
        %4501 = vmatpush1.xpose.msra.mxu0 %v2697
        %4502 = vmatprep.subr.mxu0 0.0
        %4503 = vmatpush1.xpose.msra.mxu0 %v2696
        %4504 = vmatprep.subr.mxu0 0.0
        %4505 = vmatpush1.xpose.msra.mxu0 %v2695
        %4506 = vmatprep.subr.mxu0 0.0
        %4507 = vmatpush1.xpose.msra.mxu0 %v2694
        %4508 = vmatprep.subr.mxu0 0.0
        %4509 = vmatpush2.xpose.msra.mxu0 0.0
        %4510 = vmatprep.subr.mxu0 0.0
        %4511 = vmatpush2.xpose.msra.mxu0 0.0
        %4512 = vmatprep.subr.mxu0 0.0
        %4513 = vmatpush2.xpose.msra.mxu0 0.0
        %4514 = vmatprep.subr.mxu0 0.0
        %4515 = vmatpush2.xpose.msra.mxu0 0.0
        %4516 = vmatprep.subr.mxu0 0.0
        %4517 = vmatpush2.xpose.msra.mxu0 0.0
        %4518 = vmatprep.subr.mxu0 0.0
        %4519 = vmatpush2.xpose.msra.mxu0 0.0
        %4520 = vmatprep.subr.mxu0 0.0
        %4521 = vmatpush2.xpose.msra.mxu0 0.0
        %4522 = vmatprep.subr.mxu0 0.0
        %4523 = vmatpush2.xpose.msra.mxu0 0.0
        %4524 = vmatprep.subr.mxu0 0.0
        %4525 = vmatpush2.xpose.msra.mxu0 0.0
        %4526 = vmatprep.subr.mxu0 0.0
        %4527 = vmatpush2.xpose.msra.mxu0 0.0
        %4528 = vmatprep.subr.mxu0 0.0
        %4529 = vmatpush2.xpose.msra.mxu0 0.0
        %4530 = vmatprep.subr.mxu0 0.0
        %4531 = vmatpush2.xpose.msra.mxu0 0.0
        %4532 = vmatprep.subr.mxu0 0.0
        %4533 = vmatpush2.xpose.msra.mxu0 0.0
        %4534 = vmatprep.subr.mxu0 0.0
        %4535 = vmatpush2.xpose.msra.mxu0 0.0
        %4536 = vmatprep.subr.mxu0 0.0
        %4537 = vmatpush2.xpose.msra.mxu0 0.0
        %4538 = vmatprep.subr.mxu0 0.0
        %4539 = vmatpush2.xpose.msra.mxu0 0.0
        %4540 = vmatprep.mubr.f32.mxu0 0.0
        %4541 = vmatmul.mubr.f32.gmra.mxu0 %v2407
        %v4542 = vpop.f32.mrf.mxu0
        %v4543 = vadd.f32 %v3271, %v4542
        %v4544 = vpop.f32.mrf.mxu0
        %4545 = vdwg.mxu0
        %4546 = vmatprep.subr.mxu0 0.0
        %4547 = vmatpush1.xpose.msra.mxu0 %v2725
        %4548 = vmatprep.subr.mxu0 0.0
        %4549 = vmatpush1.xpose.msra.mxu0 %v2724
        %4550 = vmatprep.subr.mxu0 0.0
        %4551 = vmatpush1.xpose.msra.mxu0 %v2723
        %4552 = vmatprep.subr.mxu0 0.0
        %4553 = vmatpush1.xpose.msra.mxu0 %v2722
        %4554 = vmatprep.subr.mxu0 0.0
        %4555 = vmatpush1.xpose.msra.mxu0 %v2721
        %4556 = vmatprep.subr.mxu0 0.0
        %4557 = vmatpush1.xpose.msra.mxu0 %v2720
        %4558 = vmatprep.subr.mxu0 0.0
        %4559 = vmatpush1.xpose.msra.mxu0 %v2719
        %4560 = vmatprep.subr.mxu0 0.0
        %4561 = vmatpush1.xpose.msra.mxu0 %v2718
        %4562 = vmatprep.subr.mxu0 0.0
        %4563 = vmatpush1.xpose.msra.mxu0 %v2717
        %4564 = vmatprep.subr.mxu0 0.0
        %4565 = vmatpush1.xpose.msra.mxu0 %v2716
        %4566 = vmatprep.subr.mxu0 0.0
        %4567 = vmatpush1.xpose.msra.mxu0 %v2715
        %4568 = vmatprep.subr.mxu0 0.0
        %4569 = vmatpush1.xpose.msra.mxu0 %v2714
        %4570 = vmatprep.subr.mxu0 0.0
        %4571 = vmatpush1.xpose.msra.mxu0 %v2713
        %4572 = vmatprep.subr.mxu0 0.0
        %4573 = vmatpush1.xpose.msra.mxu0 %v2712
        %4574 = vmatprep.subr.mxu0 0.0
        %4575 = vmatpush1.xpose.msra.mxu0 %v2711
        %4576 = vmatprep.subr.mxu0 0.0
        %4577 = vmatpush1.xpose.msra.mxu0 %v2710
        %4578 = vmatprep.subr.mxu0 0.0
        %4579 = vmatpush2.xpose.msra.mxu0 0.0
        %4580 = vmatprep.subr.mxu0 0.0
        %4581 = vmatpush2.xpose.msra.mxu0 0.0
        %4582 = vmatprep.subr.mxu0 0.0
        %4583 = vmatpush2.xpose.msra.mxu0 0.0
        %4584 = vmatprep.subr.mxu0 0.0
        %4585 = vmatpush2.xpose.msra.mxu0 0.0
        %4586 = vmatprep.subr.mxu0 0.0
        %4587 = vmatpush2.xpose.msra.mxu0 0.0
        %4588 = vmatprep.subr.mxu0 0.0
        %4589 = vmatpush2.xpose.msra.mxu0 0.0
        %4590 = vmatprep.subr.mxu0 0.0
        %4591 = vmatpush2.xpose.msra.mxu0 0.0
        %4592 = vmatprep.subr.mxu0 0.0
        %4593 = vmatpush2.xpose.msra.mxu0 0.0
        %4594 = vmatprep.subr.mxu0 0.0
        %4595 = vmatpush2.xpose.msra.mxu0 0.0
        %4596 = vmatprep.subr.mxu0 0.0
        %4597 = vmatpush2.xpose.msra.mxu0 0.0
        %4598 = vmatprep.subr.mxu0 0.0
        %4599 = vmatpush2.xpose.msra.mxu0 0.0
        %4600 = vmatprep.subr.mxu0 0.0
        %4601 = vmatpush2.xpose.msra.mxu0 0.0
        %4602 = vmatprep.subr.mxu0 0.0
        %4603 = vmatpush2.xpose.msra.mxu0 0.0
        %4604 = vmatprep.subr.mxu0 0.0
        %4605 = vmatpush2.xpose.msra.mxu0 0.0
        %4606 = vmatprep.subr.mxu0 0.0
        %4607 = vmatpush2.xpose.msra.mxu0 0.0
        %4608 = vmatprep.subr.mxu0 0.0
        %4609 = vmatpush2.xpose.msra.mxu0 0.0
        %4610 = vmatprep.mubr.f32.mxu0 0.0
        %4611 = vmatmul.mubr.f32.gmra.mxu0 %v2408
        %v4612 = vpop.f32.mrf.mxu0
        %v4613 = vadd.f32 %v3272, %v4612
        %v4614 = vpop.f32.mrf.mxu0
        %4615 = vdwg.mxu0
        %4616 = vmatprep.subr.mxu0 0.0
        %4617 = vmatpush1.xpose.msra.mxu0 %v2741
        %4618 = vmatprep.subr.mxu0 0.0
        %4619 = vmatpush1.xpose.msra.mxu0 %v2740
        %4620 = vmatprep.subr.mxu0 0.0
        %4621 = vmatpush1.xpose.msra.mxu0 %v2739
        %4622 = vmatprep.subr.mxu0 0.0
        %4623 = vmatpush1.xpose.msra.mxu0 %v2738
        %4624 = vmatprep.subr.mxu0 0.0
        %4625 = vmatpush1.xpose.msra.mxu0 %v2737
        %4626 = vmatprep.subr.mxu0 0.0
        %4627 = vmatpush1.xpose.msra.mxu0 %v2736
        %4628 = vmatprep.subr.mxu0 0.0
        %4629 = vmatpush1.xpose.msra.mxu0 %v2735
        %4630 = vmatprep.subr.mxu0 0.0
        %4631 = vmatpush1.xpose.msra.mxu0 %v2734
        %4632 = vmatprep.subr.mxu0 0.0
        %4633 = vmatpush1.xpose.msra.mxu0 %v2733
        %4634 = vmatprep.subr.mxu0 0.0
        %4635 = vmatpush1.xpose.msra.mxu0 %v2732
        %4636 = vmatprep.subr.mxu0 0.0
        %4637 = vmatpush1.xpose.msra.mxu0 %v2731
        %4638 = vmatprep.subr.mxu0 0.0
        %4639 = vmatpush1.xpose.msra.mxu0 %v2730
        %4640 = vmatprep.subr.mxu0 0.0
        %4641 = vmatpush1.xpose.msra.mxu0 %v2729
        %4642 = vmatprep.subr.mxu0 0.0
        %4643 = vmatpush1.xpose.msra.mxu0 %v2728
        %4644 = vmatprep.subr.mxu0 0.0
        %4645 = vmatpush1.xpose.msra.mxu0 %v2727
        %4646 = vmatprep.subr.mxu0 0.0
        %4647 = vmatpush1.xpose.msra.mxu0 %v2726
        %4648 = vmatprep.subr.mxu0 0.0
        %4649 = vmatpush2.xpose.msra.mxu0 0.0
        %4650 = vmatprep.subr.mxu0 0.0
        %4651 = vmatpush2.xpose.msra.mxu0 0.0
        %4652 = vmatprep.subr.mxu0 0.0
        %4653 = vmatpush2.xpose.msra.mxu0 0.0
        %4654 = vmatprep.subr.mxu0 0.0
        %4655 = vmatpush2.xpose.msra.mxu0 0.0
        %4656 = vmatprep.subr.mxu0 0.0
        %4657 = vmatpush2.xpose.msra.mxu0 0.0
        %4658 = vmatprep.subr.mxu0 0.0
        %4659 = vmatpush2.xpose.msra.mxu0 0.0
        %4660 = vmatprep.subr.mxu0 0.0
        %4661 = vmatpush2.xpose.msra.mxu0 0.0
        %4662 = vmatprep.subr.mxu0 0.0
        %4663 = vmatpush2.xpose.msra.mxu0 0.0
        %4664 = vmatprep.subr.mxu0 0.0
        %4665 = vmatpush2.xpose.msra.mxu0 0.0
        %4666 = vmatprep.subr.mxu0 0.0
        %4667 = vmatpush2.xpose.msra.mxu0 0.0
        %4668 = vmatprep.subr.mxu0 0.0
        %4669 = vmatpush2.xpose.msra.mxu0 0.0
        %4670 = vmatprep.subr.mxu0 0.0
        %4671 = vmatpush2.xpose.msra.mxu0 0.0
        %4672 = vmatprep.subr.mxu0 0.0
        %4673 = vmatpush2.xpose.msra.mxu0 0.0
        %4674 = vmatprep.subr.mxu0 0.0
        %4675 = vmatpush2.xpose.msra.mxu0 0.0
        %4676 = vmatprep.subr.mxu0 0.0
        %4677 = vmatpush2.xpose.msra.mxu0 0.0
        %4678 = vmatprep.subr.mxu0 0.0
        %4679 = vmatpush2.xpose.msra.mxu0 0.0
        %4680 = vmatprep.mubr.f32.mxu0 0.0
        %4681 = vmatmul.mubr.f32.gmra.mxu0 %v2409
        %v4682 = vpop.f32.mrf.mxu0
        %v4683 = vadd.f32 %v3273, %v4682
        %v4684 = vpop.f32.mrf.mxu0
        %4685 = vdwg.mxu0
        %4686 = vmatprep.subr.mxu0 0.0
        %4687 = vmatpush1.xpose.msra.mxu0 %v2757
        %4688 = vmatprep.subr.mxu0 0.0
        %4689 = vmatpush1.xpose.msra.mxu0 %v2756
        %4690 = vmatprep.subr.mxu0 0.0
        %4691 = vmatpush1.xpose.msra.mxu0 %v2755
        %4692 = vmatprep.subr.mxu0 0.0
        %4693 = vmatpush1.xpose.msra.mxu0 %v2754
        %4694 = vmatprep.subr.mxu0 0.0
        %4695 = vmatpush1.xpose.msra.mxu0 %v2753
        %4696 = vmatprep.subr.mxu0 0.0
        %4697 = vmatpush1.xpose.msra.mxu0 %v2752
        %4698 = vmatprep.subr.mxu0 0.0
        %4699 = vmatpush1.xpose.msra.mxu0 %v2751
        %4700 = vmatprep.subr.mxu0 0.0
        %4701 = vmatpush1.xpose.msra.mxu0 %v2750
        %4702 = vmatprep.subr.mxu0 0.0
        %4703 = vmatpush1.xpose.msra.mxu0 %v2749
        %4704 = vmatprep.subr.mxu0 0.0
        %4705 = vmatpush1.xpose.msra.mxu0 %v2748
        %4706 = vmatprep.subr.mxu0 0.0
        %4707 = vmatpush1.xpose.msra.mxu0 %v2747
        %4708 = vmatprep.subr.mxu0 0.0
        %4709 = vmatpush1.xpose.msra.mxu0 %v2746
        %4710 = vmatprep.subr.mxu0 0.0
        %4711 = vmatpush1.xpose.msra.mxu0 %v2745
        %4712 = vmatprep.subr.mxu0 0.0
        %4713 = vmatpush1.xpose.msra.mxu0 %v2744
        %4714 = vmatprep.subr.mxu0 0.0
        %4715 = vmatpush1.xpose.msra.mxu0 %v2743
        %4716 = vmatprep.subr.mxu0 0.0
        %4717 = vmatpush1.xpose.msra.mxu0 %v2742
        %4718 = vmatprep.subr.mxu0 0.0
        %4719 = vmatpush2.xpose.msra.mxu0 0.0
        %4720 = vmatprep.subr.mxu0 0.0
        %4721 = vmatpush2.xpose.msra.mxu0 0.0
        %4722 = vmatprep.subr.mxu0 0.0
        %4723 = vmatpush2.xpose.msra.mxu0 0.0
        %4724 = vmatprep.subr.mxu0 0.0
        %4725 = vmatpush2.xpose.msra.mxu0 0.0
        %4726 = vmatprep.subr.mxu0 0.0
        %4727 = vmatpush2.xpose.msra.mxu0 0.0
        %4728 = vmatprep.subr.mxu0 0.0
        %4729 = vmatpush2.xpose.msra.mxu0 0.0
        %4730 = vmatprep.subr.mxu0 0.0
        %4731 = vmatpush2.xpose.msra.mxu0 0.0
        %4732 = vmatprep.subr.mxu0 0.0
        %4733 = vmatpush2.xpose.msra.mxu0 0.0
        %4734 = vmatprep.subr.mxu0 0.0
        %4735 = vmatpush2.xpose.msra.mxu0 0.0
        %4736 = vmatprep.subr.mxu0 0.0
        %4737 = vmatpush2.xpose.msra.mxu0 0.0
        %4738 = vmatprep.subr.mxu0 0.0
        %4739 = vmatpush2.xpose.msra.mxu0 0.0
        %4740 = vmatprep.subr.mxu0 0.0
        %4741 = vmatpush2.xpose.msra.mxu0 0.0
        %4742 = vmatprep.subr.mxu0 0.0
        %4743 = vmatpush2.xpose.msra.mxu0 0.0
        %4744 = vmatprep.subr.mxu0 0.0
        %4745 = vmatpush2.xpose.msra.mxu0 0.0
        %4746 = vmatprep.subr.mxu0 0.0
        %4747 = vmatpush2.xpose.msra.mxu0 0.0
        %4748 = vmatprep.subr.mxu0 0.0
        %4749 = vmatpush2.xpose.msra.mxu0 0.0
        %4750 = vmatprep.mubr.f32.mxu0 0.0
        %4751 = vmatmul.mubr.f32.gmra.mxu0 %v2410
        %v4752 = vpop.f32.mrf.mxu0
        %v4753 = vadd.f32 %v3274, %v4752
        %v4754 = vpop.f32.mrf.mxu0
        %4755 = vdwg.mxu0
        %4756 = vmatprep.subr.mxu0 0.0
        %4757 = vmatpush1.xpose.msra.mxu0 %v2773
        %4758 = vmatprep.subr.mxu0 0.0
        %4759 = vmatpush1.xpose.msra.mxu0 %v2772
        %4760 = vmatprep.subr.mxu0 0.0
        %4761 = vmatpush1.xpose.msra.mxu0 %v2771
        %4762 = vmatprep.subr.mxu0 0.0
        %4763 = vmatpush1.xpose.msra.mxu0 %v2770
        %4764 = vmatprep.subr.mxu0 0.0
        %4765 = vmatpush1.xpose.msra.mxu0 %v2769
        %4766 = vmatprep.subr.mxu0 0.0
        %4767 = vmatpush1.xpose.msra.mxu0 %v2768
        %4768 = vmatprep.subr.mxu0 0.0
        %4769 = vmatpush1.xpose.msra.mxu0 %v2767
        %4770 = vmatprep.subr.mxu0 0.0
        %4771 = vmatpush1.xpose.msra.mxu0 %v2766
        %4772 = vmatprep.subr.mxu0 0.0
        %4773 = vmatpush1.xpose.msra.mxu0 %v2765
        %4774 = vmatprep.subr.mxu0 0.0
        %4775 = vmatpush1.xpose.msra.mxu0 %v2764
        %4776 = vmatprep.subr.mxu0 0.0
        %4777 = vmatpush1.xpose.msra.mxu0 %v2763
        %4778 = vmatprep.subr.mxu0 0.0
        %4779 = vmatpush1.xpose.msra.mxu0 %v2762
        %4780 = vmatprep.subr.mxu0 0.0
        %4781 = vmatpush1.xpose.msra.mxu0 %v2761
        %4782 = vmatprep.subr.mxu0 0.0
        %4783 = vmatpush1.xpose.msra.mxu0 %v2760
        %4784 = vmatprep.subr.mxu0 0.0
        %4785 = vmatpush1.xpose.msra.mxu0 %v2759
        %4786 = vmatprep.subr.mxu0 0.0
        %4787 = vmatpush1.xpose.msra.mxu0 %v2758
        %4788 = vmatprep.subr.mxu0 0.0
        %4789 = vmatpush2.xpose.msra.mxu0 0.0
        %4790 = vmatprep.subr.mxu0 0.0
        %4791 = vmatpush2.xpose.msra.mxu0 0.0
        %4792 = vmatprep.subr.mxu0 0.0
        %4793 = vmatpush2.xpose.msra.mxu0 0.0
        %4794 = vmatprep.subr.mxu0 0.0
        %4795 = vmatpush2.xpose.msra.mxu0 0.0
        %4796 = vmatprep.subr.mxu0 0.0
        %4797 = vmatpush2.xpose.msra.mxu0 0.0
        %4798 = vmatprep.subr.mxu0 0.0
        %4799 = vmatpush2.xpose.msra.mxu0 0.0
        %4800 = vmatprep.subr.mxu0 0.0
        %4801 = vmatpush2.xpose.msra.mxu0 0.0
        %4802 = vmatprep.subr.mxu0 0.0
        %4803 = vmatpush2.xpose.msra.mxu0 0.0
        %4804 = vmatprep.subr.mxu0 0.0
        %4805 = vmatpush2.xpose.msra.mxu0 0.0
        %4806 = vmatprep.subr.mxu0 0.0
        %4807 = vmatpush2.xpose.msra.mxu0 0.0
        %4808 = vmatprep.subr.mxu0 0.0
        %4809 = vmatpush2.xpose.msra.mxu0 0.0
        %4810 = vmatprep.subr.mxu0 0.0
        %4811 = vmatpush2.xpose.msra.mxu0 0.0
        %4812 = vmatprep.subr.mxu0 0.0
        %4813 = vmatpush2.xpose.msra.mxu0 0.0
        %4814 = vmatprep.subr.mxu0 0.0
        %4815 = vmatpush2.xpose.msra.mxu0 0.0
        %4816 = vmatprep.subr.mxu0 0.0
        %4817 = vmatpush2.xpose.msra.mxu0 0.0
        %4818 = vmatprep.subr.mxu0 0.0
        %4819 = vmatpush2.xpose.msra.mxu0 0.0
        %4820 = vmatprep.mubr.f32.mxu0 0.0
        %4821 = vmatmul.mubr.f32.gmra.mxu0 %v2411
        %v4822 = vpop.f32.mrf.mxu0
        %v4823 = vadd.f32 %v3275, %v4822
        %v4824 = vpop.f32.mrf.mxu0
        %4825 = vdwg.mxu0
        %4826 = vmatprep.subr.mxu0 0.0
        %4827 = vmatpush1.xpose.msra.mxu0 %v2789
        %4828 = vmatprep.subr.mxu0 0.0
        %4829 = vmatpush1.xpose.msra.mxu0 %v2788
        %4830 = vmatprep.subr.mxu0 0.0
        %4831 = vmatpush1.xpose.msra.mxu0 %v2787
        %4832 = vmatprep.subr.mxu0 0.0
        %4833 = vmatpush1.xpose.msra.mxu0 %v2786
        %4834 = vmatprep.subr.mxu0 0.0
        %4835 = vmatpush1.xpose.msra.mxu0 %v2785
        %4836 = vmatprep.subr.mxu0 0.0
        %4837 = vmatpush1.xpose.msra.mxu0 %v2784
        %4838 = vmatprep.subr.mxu0 0.0
        %4839 = vmatpush1.xpose.msra.mxu0 %v2783
        %4840 = vmatprep.subr.mxu0 0.0
        %4841 = vmatpush1.xpose.msra.mxu0 %v2782
        %4842 = vmatprep.subr.mxu0 0.0
        %4843 = vmatpush1.xpose.msra.mxu0 %v2781
        %4844 = vmatprep.subr.mxu0 0.0
        %4845 = vmatpush1.xpose.msra.mxu0 %v2780
        %4846 = vmatprep.subr.mxu0 0.0
        %4847 = vmatpush1.xpose.msra.mxu0 %v2779
        %4848 = vmatprep.subr.mxu0 0.0
        %4849 = vmatpush1.xpose.msra.mxu0 %v2778
        %4850 = vmatprep.subr.mxu0 0.0
        %4851 = vmatpush1.xpose.msra.mxu0 %v2777
        %4852 = vmatprep.subr.mxu0 0.0
        %4853 = vmatpush1.xpose.msra.mxu0 %v2776
        %4854 = vmatprep.subr.mxu0 0.0
        %4855 = vmatpush1.xpose.msra.mxu0 %v2775
        %4856 = vmatprep.subr.mxu0 0.0
        %4857 = vmatpush1.xpose.msra.mxu0 %v2774
        %4858 = vmatprep.subr.mxu0 0.0
        %4859 = vmatpush2.xpose.msra.mxu0 0.0
        %4860 = vmatprep.subr.mxu0 0.0
        %4861 = vmatpush2.xpose.msra.mxu0 0.0
        %4862 = vmatprep.subr.mxu0 0.0
        %4863 = vmatpush2.xpose.msra.mxu0 0.0
        %4864 = vmatprep.subr.mxu0 0.0
        %4865 = vmatpush2.xpose.msra.mxu0 0.0
        %4866 = vmatprep.subr.mxu0 0.0
        %4867 = vmatpush2.xpose.msra.mxu0 0.0
        %4868 = vmatprep.subr.mxu0 0.0
        %4869 = vmatpush2.xpose.msra.mxu0 0.0
        %4870 = vmatprep.subr.mxu0 0.0
        %4871 = vmatpush2.xpose.msra.mxu0 0.0
        %4872 = vmatprep.subr.mxu0 0.0
        %4873 = vmatpush2.xpose.msra.mxu0 0.0
        %4874 = vmatprep.subr.mxu0 0.0
        %4875 = vmatpush2.xpose.msra.mxu0 0.0
        %4876 = vmatprep.subr.mxu0 0.0
        %4877 = vmatpush2.xpose.msra.mxu0 0.0
        %4878 = vmatprep.subr.mxu0 0.0
        %4879 = vmatpush2.xpose.msra.mxu0 0.0
        %4880 = vmatprep.subr.mxu0 0.0
        %4881 = vmatpush2.xpose.msra.mxu0 0.0
        %4882 = vmatprep.subr.mxu0 0.0
        %4883 = vmatpush2.xpose.msra.mxu0 0.0
        %4884 = vmatprep.subr.mxu0 0.0
        %4885 = vmatpush2.xpose.msra.mxu0 0.0
        %4886 = vmatprep.subr.mxu0 0.0
        %4887 = vmatpush2.xpose.msra.mxu0 0.0
        %4888 = vmatprep.subr.mxu0 0.0
        %4889 = vmatpush2.xpose.msra.mxu0 0.0
        %4890 = vmatprep.mubr.f32.mxu0 0.0
        %4891 = vmatmul.mubr.f32.gmra.mxu0 %v2412
        %v4892 = vpop.f32.mrf.mxu0
        %v4893 = vadd.f32 %v3276, %v4892
        %v4894 = vpop.f32.mrf.mxu0
        %4895 = vdwg.mxu0
        %4896 = vmatprep.subr.mxu0 0.0
        %4897 = vmatpush1.xpose.msra.mxu0 %v2805
        %4898 = vmatprep.subr.mxu0 0.0
        %4899 = vmatpush1.xpose.msra.mxu0 %v2804
        %4900 = vmatprep.subr.mxu0 0.0
        %4901 = vmatpush1.xpose.msra.mxu0 %v2803
        %4902 = vmatprep.subr.mxu0 0.0
        %4903 = vmatpush1.xpose.msra.mxu0 %v2802
        %4904 = vmatprep.subr.mxu0 0.0
        %4905 = vmatpush1.xpose.msra.mxu0 %v2801
        %4906 = vmatprep.subr.mxu0 0.0
        %4907 = vmatpush1.xpose.msra.mxu0 %v2800
        %4908 = vmatprep.subr.mxu0 0.0
        %4909 = vmatpush1.xpose.msra.mxu0 %v2799
        %4910 = vmatprep.subr.mxu0 0.0
        %4911 = vmatpush1.xpose.msra.mxu0 %v2798
        %4912 = vmatprep.subr.mxu0 0.0
        %4913 = vmatpush1.xpose.msra.mxu0 %v2797
        %4914 = vmatprep.subr.mxu0 0.0
        %4915 = vmatpush1.xpose.msra.mxu0 %v2796
        %4916 = vmatprep.subr.mxu0 0.0
        %4917 = vmatpush1.xpose.msra.mxu0 %v2795
        %4918 = vmatprep.subr.mxu0 0.0
        %4919 = vmatpush1.xpose.msra.mxu0 %v2794
        %4920 = vmatprep.subr.mxu0 0.0
        %4921 = vmatpush1.xpose.msra.mxu0 %v2793
        %4922 = vmatprep.subr.mxu0 0.0
        %4923 = vmatpush1.xpose.msra.mxu0 %v2792
        %4924 = vmatprep.subr.mxu0 0.0
        %4925 = vmatpush1.xpose.msra.mxu0 %v2791
        %4926 = vmatprep.subr.mxu0 0.0
        %4927 = vmatpush1.xpose.msra.mxu0 %v2790
        %4928 = vmatprep.subr.mxu0 0.0
        %4929 = vmatpush2.xpose.msra.mxu0 0.0
        %4930 = vmatprep.subr.mxu0 0.0
        %4931 = vmatpush2.xpose.msra.mxu0 0.0
        %4932 = vmatprep.subr.mxu0 0.0
        %4933 = vmatpush2.xpose.msra.mxu0 0.0
        %4934 = vmatprep.subr.mxu0 0.0
        %4935 = vmatpush2.xpose.msra.mxu0 0.0
        %4936 = vmatprep.subr.mxu0 0.0
        %4937 = vmatpush2.xpose.msra.mxu0 0.0
        %4938 = vmatprep.subr.mxu0 0.0
        %4939 = vmatpush2.xpose.msra.mxu0 0.0
        %4940 = vmatprep.subr.mxu0 0.0
        %4941 = vmatpush2.xpose.msra.mxu0 0.0
        %4942 = vmatprep.subr.mxu0 0.0
        %4943 = vmatpush2.xpose.msra.mxu0 0.0
        %4944 = vmatprep.subr.mxu0 0.0
        %4945 = vmatpush2.xpose.msra.mxu0 0.0
        %4946 = vmatprep.subr.mxu0 0.0
        %4947 = vmatpush2.xpose.msra.mxu0 0.0
        %4948 = vmatprep.subr.mxu0 0.0
        %4949 = vmatpush2.xpose.msra.mxu0 0.0
        %4950 = vmatprep.subr.mxu0 0.0
        %4951 = vmatpush2.xpose.msra.mxu0 0.0
        %4952 = vmatprep.subr.mxu0 0.0
        %4953 = vmatpush2.xpose.msra.mxu0 0.0
        %4954 = vmatprep.subr.mxu0 0.0
        %4955 = vmatpush2.xpose.msra.mxu0 0.0
        %4956 = vmatprep.subr.mxu0 0.0
        %4957 = vmatpush2.xpose.msra.mxu0 0.0
        %4958 = vmatprep.subr.mxu0 0.0
        %4959 = vmatpush2.xpose.msra.mxu0 0.0
        %4960 = vmatprep.mubr.f32.mxu0 0.0
        %4961 = vmatmul.mubr.f32.gmra.mxu0 %v2413
        %v4962 = vpop.f32.mrf.mxu0
        %v4963 = vadd.f32 %v3277, %v4962
        %v4964 = vpop.f32.mrf.mxu0
        %4965 = vdwg.mxu0
        %4966 = vmatprep.subr.mxu0 0.0
        %4967 = vmatpush1.xpose.msra.mxu0 %v2821
        %4968 = vmatprep.subr.mxu0 0.0
        %4969 = vmatpush1.xpose.msra.mxu0 %v2820
        %4970 = vmatprep.subr.mxu0 0.0
        %4971 = vmatpush1.xpose.msra.mxu0 %v2819
        %4972 = vmatprep.subr.mxu0 0.0
        %4973 = vmatpush1.xpose.msra.mxu0 %v2818
        %4974 = vmatprep.subr.mxu0 0.0
        %4975 = vmatpush1.xpose.msra.mxu0 %v2817
        %4976 = vmatprep.subr.mxu0 0.0
        %4977 = vmatpush1.xpose.msra.mxu0 %v2816
        %4978 = vmatprep.subr.mxu0 0.0
        %4979 = vmatpush1.xpose.msra.mxu0 %v2815
        %4980 = vmatprep.subr.mxu0 0.0
        %4981 = vmatpush1.xpose.msra.mxu0 %v2814
        %4982 = vmatprep.subr.mxu0 0.0
        %4983 = vmatpush1.xpose.msra.mxu0 %v2813
        %4984 = vmatprep.subr.mxu0 0.0
        %4985 = vmatpush1.xpose.msra.mxu0 %v2812
        %4986 = vmatprep.subr.mxu0 0.0
        %4987 = vmatpush1.xpose.msra.mxu0 %v2811
        %4988 = vmatprep.subr.mxu0 0.0
        %4989 = vmatpush1.xpose.msra.mxu0 %v2810
        %4990 = vmatprep.subr.mxu0 0.0
        %4991 = vmatpush1.xpose.msra.mxu0 %v2809
        %4992 = vmatprep.subr.mxu0 0.0
        %4993 = vmatpush1.xpose.msra.mxu0 %v2808
        %4994 = vmatprep.subr.mxu0 0.0
        %4995 = vmatpush1.xpose.msra.mxu0 %v2807
        %4996 = vmatprep.subr.mxu0 0.0
        %4997 = vmatpush1.xpose.msra.mxu0 %v2806
        %4998 = vmatprep.subr.mxu0 0.0
        %4999 = vmatpush2.xpose.msra.mxu0 0.0
        %5000 = vmatprep.subr.mxu0 0.0
        %5001 = vmatpush2.xpose.msra.mxu0 0.0
        %5002 = vmatprep.subr.mxu0 0.0
        %5003 = vmatpush2.xpose.msra.mxu0 0.0
        %5004 = vmatprep.subr.mxu0 0.0
        %5005 = vmatpush2.xpose.msra.mxu0 0.0
        %5006 = vmatprep.subr.mxu0 0.0
        %5007 = vmatpush2.xpose.msra.mxu0 0.0
        %5008 = vmatprep.subr.mxu0 0.0
        %5009 = vmatpush2.xpose.msra.mxu0 0.0
        %5010 = vmatprep.subr.mxu0 0.0
        %5011 = vmatpush2.xpose.msra.mxu0 0.0
        %5012 = vmatprep.subr.mxu0 0.0
        %5013 = vmatpush2.xpose.msra.mxu0 0.0
        %5014 = vmatprep.subr.mxu0 0.0
        %5015 = vmatpush2.xpose.msra.mxu0 0.0
        %5016 = vmatprep.subr.mxu0 0.0
        %5017 = vmatpush2.xpose.msra.mxu0 0.0
        %5018 = vmatprep.subr.mxu0 0.0
        %5019 = vmatpush2.xpose.msra.mxu0 0.0
        %5020 = vmatprep.subr.mxu0 0.0
        %5021 = vmatpush2.xpose.msra.mxu0 0.0
        %5022 = vmatprep.subr.mxu0 0.0
        %5023 = vmatpush2.xpose.msra.mxu0 0.0
        %5024 = vmatprep.subr.mxu0 0.0
        %5025 = vmatpush2.xpose.msra.mxu0 0.0
        %5026 = vmatprep.subr.mxu0 0.0
        %5027 = vmatpush2.xpose.msra.mxu0 0.0
        %5028 = vmatprep.subr.mxu0 0.0
        %5029 = vmatpush2.xpose.msra.mxu0 0.0
        %5030 = vmatprep.mubr.f32.mxu0 0.0
        %5031 = vmatmul.mubr.f32.gmra.mxu0 %v2414
        %v5032 = vpop.f32.mrf.mxu0
        %v5033 = vadd.f32 %v3278, %v5032
        %v5034 = vpop.f32.mrf.mxu0
        %5035 = vdwg.mxu0
        %5036 = vmatprep.subr.mxu0 0.0
        %5037 = vmatpush1.xpose.msra.mxu0 %v2837
        %5038 = vmatprep.subr.mxu0 0.0
        %5039 = vmatpush1.xpose.msra.mxu0 %v2836
        %5040 = vmatprep.subr.mxu0 0.0
        %5041 = vmatpush1.xpose.msra.mxu0 %v2835
        %5042 = vmatprep.subr.mxu0 0.0
        %5043 = vmatpush1.xpose.msra.mxu0 %v2834
        %5044 = vmatprep.subr.mxu0 0.0
        %5045 = vmatpush1.xpose.msra.mxu0 %v2833
        %5046 = vmatprep.subr.mxu0 0.0
        %5047 = vmatpush1.xpose.msra.mxu0 %v2832
        %5048 = vmatprep.subr.mxu0 0.0
        %5049 = vmatpush1.xpose.msra.mxu0 %v2831
        %5050 = vmatprep.subr.mxu0 0.0
        %5051 = vmatpush1.xpose.msra.mxu0 %v2830
        %5052 = vmatprep.subr.mxu0 0.0
        %5053 = vmatpush1.xpose.msra.mxu0 %v2829
        %5054 = vmatprep.subr.mxu0 0.0
        %5055 = vmatpush1.xpose.msra.mxu0 %v2828
        %5056 = vmatprep.subr.mxu0 0.0
        %5057 = vmatpush1.xpose.msra.mxu0 %v2827
        %5058 = vmatprep.subr.mxu0 0.0
        %5059 = vmatpush1.xpose.msra.mxu0 %v2826
        %5060 = vmatprep.subr.mxu0 0.0
        %5061 = vmatpush1.xpose.msra.mxu0 %v2825
        %5062 = vmatprep.subr.mxu0 0.0
        %5063 = vmatpush1.xpose.msra.mxu0 %v2824
        %5064 = vmatprep.subr.mxu0 0.0
        %5065 = vmatpush1.xpose.msra.mxu0 %v2823
        %5066 = vmatprep.subr.mxu0 0.0
        %5067 = vmatpush1.xpose.msra.mxu0 %v2822
        %5068 = vmatprep.subr.mxu0 0.0
        %5069 = vmatpush2.xpose.msra.mxu0 0.0
        %5070 = vmatprep.subr.mxu0 0.0
        %5071 = vmatpush2.xpose.msra.mxu0 0.0
        %5072 = vmatprep.subr.mxu0 0.0
        %5073 = vmatpush2.xpose.msra.mxu0 0.0
        %5074 = vmatprep.subr.mxu0 0.0
        %5075 = vmatpush2.xpose.msra.mxu0 0.0
        %5076 = vmatprep.subr.mxu0 0.0
        %5077 = vmatpush2.xpose.msra.mxu0 0.0
        %5078 = vmatprep.subr.mxu0 0.0
        %5079 = vmatpush2.xpose.msra.mxu0 0.0
        %5080 = vmatprep.subr.mxu0 0.0
        %5081 = vmatpush2.xpose.msra.mxu0 0.0
        %5082 = vmatprep.subr.mxu0 0.0
        %5083 = vmatpush2.xpose.msra.mxu0 0.0
        %5084 = vmatprep.subr.mxu0 0.0
        %5085 = vmatpush2.xpose.msra.mxu0 0.0
        %5086 = vmatprep.subr.mxu0 0.0
        %5087 = vmatpush2.xpose.msra.mxu0 0.0
        %5088 = vmatprep.subr.mxu0 0.0
        %5089 = vmatpush2.xpose.msra.mxu0 0.0
        %5090 = vmatprep.subr.mxu0 0.0
        %5091 = vmatpush2.xpose.msra.mxu0 0.0
        %5092 = vmatprep.subr.mxu0 0.0
        %5093 = vmatpush2.xpose.msra.mxu0 0.0
        %5094 = vmatprep.subr.mxu0 0.0
        %5095 = vmatpush2.xpose.msra.mxu0 0.0
        %5096 = vmatprep.subr.mxu0 0.0
        %5097 = vmatpush2.xpose.msra.mxu0 0.0
        %5098 = vmatprep.subr.mxu0 0.0
        %5099 = vmatpush2.xpose.msra.mxu0 0.0
        %5100 = vmatprep.mubr.f32.mxu0 0.0
        %5101 = vmatmul.mubr.f32.gmra.mxu0 %v2415
        %v5102 = vpop.f32.mrf.mxu0
        %v5103 = vadd.f32 %v3279, %v5102
        %v5104 = vpop.f32.mrf.mxu0
        %5105 = vdwg.mxu0
        %5106 = vmatprep.subr.mxu0 0.0
        %5107 = vmatpush1.xpose.msra.mxu0 %v2853
        %5108 = vmatprep.subr.mxu0 0.0
        %5109 = vmatpush1.xpose.msra.mxu0 %v2852
        %5110 = vmatprep.subr.mxu0 0.0
        %5111 = vmatpush1.xpose.msra.mxu0 %v2851
        %5112 = vmatprep.subr.mxu0 0.0
        %5113 = vmatpush1.xpose.msra.mxu0 %v2850
        %5114 = vmatprep.subr.mxu0 0.0
        %5115 = vmatpush1.xpose.msra.mxu0 %v2849
        %5116 = vmatprep.subr.mxu0 0.0
        %5117 = vmatpush1.xpose.msra.mxu0 %v2848
        %5118 = vmatprep.subr.mxu0 0.0
        %5119 = vmatpush1.xpose.msra.mxu0 %v2847
        %5120 = vmatprep.subr.mxu0 0.0
        %5121 = vmatpush1.xpose.msra.mxu0 %v2846
        %5122 = vmatprep.subr.mxu0 0.0
        %5123 = vmatpush1.xpose.msra.mxu0 %v2845
        %5124 = vmatprep.subr.mxu0 0.0
        %5125 = vmatpush1.xpose.msra.mxu0 %v2844
        %5126 = vmatprep.subr.mxu0 0.0
        %5127 = vmatpush1.xpose.msra.mxu0 %v2843
        %5128 = vmatprep.subr.mxu0 0.0
        %5129 = vmatpush1.xpose.msra.mxu0 %v2842
        %5130 = vmatprep.subr.mxu0 0.0
        %5131 = vmatpush1.xpose.msra.mxu0 %v2841
        %5132 = vmatprep.subr.mxu0 0.0
        %5133 = vmatpush1.xpose.msra.mxu0 %v2840
        %5134 = vmatprep.subr.mxu0 0.0
        %5135 = vmatpush1.xpose.msra.mxu0 %v2839
        %5136 = vmatprep.subr.mxu0 0.0
        %5137 = vmatpush1.xpose.msra.mxu0 %v2838
        %5138 = vmatprep.subr.mxu0 0.0
        %5139 = vmatpush2.xpose.msra.mxu0 0.0
        %5140 = vmatprep.subr.mxu0 0.0
        %5141 = vmatpush2.xpose.msra.mxu0 0.0
        %5142 = vmatprep.subr.mxu0 0.0
        %5143 = vmatpush2.xpose.msra.mxu0 0.0
        %5144 = vmatprep.subr.mxu0 0.0
        %5145 = vmatpush2.xpose.msra.mxu0 0.0
        %5146 = vmatprep.subr.mxu0 0.0
        %5147 = vmatpush2.xpose.msra.mxu0 0.0
        %5148 = vmatprep.subr.mxu0 0.0
        %5149 = vmatpush2.xpose.msra.mxu0 0.0
        %5150 = vmatprep.subr.mxu0 0.0
        %5151 = vmatpush2.xpose.msra.mxu0 0.0
        %5152 = vmatprep.subr.mxu0 0.0
        %5153 = vmatpush2.xpose.msra.mxu0 0.0
        %5154 = vmatprep.subr.mxu0 0.0
        %5155 = vmatpush2.xpose.msra.mxu0 0.0
        %5156 = vmatprep.subr.mxu0 0.0
        %5157 = vmatpush2.xpose.msra.mxu0 0.0
        %5158 = vmatprep.subr.mxu0 0.0
        %5159 = vmatpush2.xpose.msra.mxu0 0.0
        %5160 = vmatprep.subr.mxu0 0.0
        %5161 = vmatpush2.xpose.msra.mxu0 0.0
        %5162 = vmatprep.subr.mxu0 0.0
        %5163 = vmatpush2.xpose.msra.mxu0 0.0
        %5164 = vmatprep.subr.mxu0 0.0
        %5165 = vmatpush2.xpose.msra.mxu0 0.0
        %5166 = vmatprep.subr.mxu0 0.0
        %5167 = vmatpush2.xpose.msra.mxu0 0.0
        %5168 = vmatprep.subr.mxu0 0.0
        %5169 = vmatpush2.xpose.msra.mxu0 0.0
        %5170 = vmatprep.mubr.f32.mxu0 0.0
        %5171 = vmatmul.mubr.f32.gmra.mxu0 %v2416
        %v5172 = vpop.f32.mrf.mxu0
        %v5173 = vadd.f32 %v3280, %v5172
        %v5174 = vpop.f32.mrf.mxu0
        %5175 = vdwg.mxu0
        %5176 = vmatprep.subr.mxu0 0.0
        %5177 = vmatpush1.xpose.msra.mxu0 %v2869
        %5178 = vmatprep.subr.mxu0 0.0
        %5179 = vmatpush1.xpose.msra.mxu0 %v2868
        %5180 = vmatprep.subr.mxu0 0.0
        %5181 = vmatpush1.xpose.msra.mxu0 %v2867
        %5182 = vmatprep.subr.mxu0 0.0
        %5183 = vmatpush1.xpose.msra.mxu0 %v2866
        %5184 = vmatprep.subr.mxu0 0.0
        %5185 = vmatpush1.xpose.msra.mxu0 %v2865
        %5186 = vmatprep.subr.mxu0 0.0
        %5187 = vmatpush1.xpose.msra.mxu0 %v2864
        %5188 = vmatprep.subr.mxu0 0.0
        %5189 = vmatpush1.xpose.msra.mxu0 %v2863
        %5190 = vmatprep.subr.mxu0 0.0
        %5191 = vmatpush1.xpose.msra.mxu0 %v2862
        %5192 = vmatprep.subr.mxu0 0.0
        %5193 = vmatpush1.xpose.msra.mxu0 %v2861
        %5194 = vmatprep.subr.mxu0 0.0
        %5195 = vmatpush1.xpose.msra.mxu0 %v2860
        %5196 = vmatprep.subr.mxu0 0.0
        %5197 = vmatpush1.xpose.msra.mxu0 %v2859
        %5198 = vmatprep.subr.mxu0 0.0
        %5199 = vmatpush1.xpose.msra.mxu0 %v2858
        %5200 = vmatprep.subr.mxu0 0.0
        %5201 = vmatpush1.xpose.msra.mxu0 %v2857
        %5202 = vmatprep.subr.mxu0 0.0
        %5203 = vmatpush1.xpose.msra.mxu0 %v2856
        %5204 = vmatprep.subr.mxu0 0.0
        %5205 = vmatpush1.xpose.msra.mxu0 %v2855
        %5206 = vmatprep.subr.mxu0 0.0
        %5207 = vmatpush1.xpose.msra.mxu0 %v2854
        %5208 = vmatprep.subr.mxu0 0.0
        %5209 = vmatpush2.xpose.msra.mxu0 0.0
        %5210 = vmatprep.subr.mxu0 0.0
        %5211 = vmatpush2.xpose.msra.mxu0 0.0
        %5212 = vmatprep.subr.mxu0 0.0
        %5213 = vmatpush2.xpose.msra.mxu0 0.0
        %5214 = vmatprep.subr.mxu0 0.0
        %5215 = vmatpush2.xpose.msra.mxu0 0.0
        %5216 = vmatprep.subr.mxu0 0.0
        %5217 = vmatpush2.xpose.msra.mxu0 0.0
        %5218 = vmatprep.subr.mxu0 0.0
        %5219 = vmatpush2.xpose.msra.mxu0 0.0
        %5220 = vmatprep.subr.mxu0 0.0
        %5221 = vmatpush2.xpose.msra.mxu0 0.0
        %5222 = vmatprep.subr.mxu0 0.0
        %5223 = vmatpush2.xpose.msra.mxu0 0.0
        %5224 = vmatprep.subr.mxu0 0.0
        %5225 = vmatpush2.xpose.msra.mxu0 0.0
        %5226 = vmatprep.subr.mxu0 0.0
        %5227 = vmatpush2.xpose.msra.mxu0 0.0
        %5228 = vmatprep.subr.mxu0 0.0
        %5229 = vmatpush2.xpose.msra.mxu0 0.0
        %5230 = vmatprep.subr.mxu0 0.0
        %5231 = vmatpush2.xpose.msra.mxu0 0.0
        %5232 = vmatprep.subr.mxu0 0.0
        %5233 = vmatpush2.xpose.msra.mxu0 0.0
        %5234 = vmatprep.subr.mxu0 0.0
        %5235 = vmatpush2.xpose.msra.mxu0 0.0
        %5236 = vmatprep.subr.mxu0 0.0
        %5237 = vmatpush2.xpose.msra.mxu0 0.0
        %5238 = vmatprep.subr.mxu0 0.0
        %5239 = vmatpush2.xpose.msra.mxu0 0.0
        %5240 = vmatprep.mubr.f32.mxu0 0.0
        %5241 = vmatmul.mubr.f32.gmra.mxu0 %v2417
        %v5242 = vpop.f32.mrf.mxu0
        %v5243 = vadd.f32 %v3281, %v5242
        %v5244 = vpop.f32.mrf.mxu0
        %5245 = vdwg.mxu0
        %5246 = vmatprep.subr.mxu0 0.0
        %5247 = vmatpush1.xpose.msra.mxu0 %v2885
        %5248 = vmatprep.subr.mxu0 0.0
        %5249 = vmatpush1.xpose.msra.mxu0 %v2884
        %5250 = vmatprep.subr.mxu0 0.0
        %5251 = vmatpush1.xpose.msra.mxu0 %v2883
        %5252 = vmatprep.subr.mxu0 0.0
        %5253 = vmatpush1.xpose.msra.mxu0 %v2882
        %5254 = vmatprep.subr.mxu0 0.0
        %5255 = vmatpush1.xpose.msra.mxu0 %v2881
        %5256 = vmatprep.subr.mxu0 0.0
        %5257 = vmatpush1.xpose.msra.mxu0 %v2880
        %5258 = vmatprep.subr.mxu0 0.0
        %5259 = vmatpush1.xpose.msra.mxu0 %v2879
        %5260 = vmatprep.subr.mxu0 0.0
        %5261 = vmatpush1.xpose.msra.mxu0 %v2878
        %5262 = vmatprep.subr.mxu0 0.0
        %5263 = vmatpush1.xpose.msra.mxu0 %v2877
        %5264 = vmatprep.subr.mxu0 0.0
        %5265 = vmatpush1.xpose.msra.mxu0 %v2876
        %5266 = vmatprep.subr.mxu0 0.0
        %5267 = vmatpush1.xpose.msra.mxu0 %v2875
        %5268 = vmatprep.subr.mxu0 0.0
        %5269 = vmatpush1.xpose.msra.mxu0 %v2874
        %5270 = vmatprep.subr.mxu0 0.0
        %5271 = vmatpush1.xpose.msra.mxu0 %v2873
        %5272 = vmatprep.subr.mxu0 0.0
        %5273 = vmatpush1.xpose.msra.mxu0 %v2872
        %5274 = vmatprep.subr.mxu0 0.0
        %5275 = vmatpush1.xpose.msra.mxu0 %v2871
        %5276 = vmatprep.subr.mxu0 0.0
        %5277 = vmatpush1.xpose.msra.mxu0 %v2870
        %5278 = vmatprep.subr.mxu0 0.0
        %5279 = vmatpush2.xpose.msra.mxu0 0.0
        %5280 = vmatprep.subr.mxu0 0.0
        %5281 = vmatpush2.xpose.msra.mxu0 0.0
        %5282 = vmatprep.subr.mxu0 0.0
        %5283 = vmatpush2.xpose.msra.mxu0 0.0
        %5284 = vmatprep.subr.mxu0 0.0
        %5285 = vmatpush2.xpose.msra.mxu0 0.0
        %5286 = vmatprep.subr.mxu0 0.0
        %5287 = vmatpush2.xpose.msra.mxu0 0.0
        %5288 = vmatprep.subr.mxu0 0.0
        %5289 = vmatpush2.xpose.msra.mxu0 0.0
        %5290 = vmatprep.subr.mxu0 0.0
        %5291 = vmatpush2.xpose.msra.mxu0 0.0
        %5292 = vmatprep.subr.mxu0 0.0
        %5293 = vmatpush2.xpose.msra.mxu0 0.0
        %5294 = vmatprep.subr.mxu0 0.0
        %5295 = vmatpush2.xpose.msra.mxu0 0.0
        %5296 = vmatprep.subr.mxu0 0.0
        %5297 = vmatpush2.xpose.msra.mxu0 0.0
        %5298 = vmatprep.subr.mxu0 0.0
        %5299 = vmatpush2.xpose.msra.mxu0 0.0
        %5300 = vmatprep.subr.mxu0 0.0
        %5301 = vmatpush2.xpose.msra.mxu0 0.0
        %5302 = vmatprep.subr.mxu0 0.0
        %5303 = vmatpush2.xpose.msra.mxu0 0.0
        %5304 = vmatprep.subr.mxu0 0.0
        %5305 = vmatpush2.xpose.msra.mxu0 0.0
        %5306 = vmatprep.subr.mxu0 0.0
        %5307 = vmatpush2.xpose.msra.mxu0 0.0
        %5308 = vmatprep.subr.mxu0 0.0
        %5309 = vmatpush2.xpose.msra.mxu0 0.0
        %5310 = vmatprep.mubr.f32.mxu0 0.0
        %5311 = vmatmul.mubr.f32.gmra.mxu0 %v2418
        %v5312 = vpop.f32.mrf.mxu0
        %v5313 = vadd.f32 %v3282, %v5312
        %v5314 = vpop.f32.mrf.mxu0
        %5315 = vdwg.mxu0
        %5316 = vmatprep.subr.mxu0 0.0
        %5317 = vmatpush1.xpose.msra.mxu0 %v2901
        %5318 = vmatprep.subr.mxu0 0.0
        %5319 = vmatpush1.xpose.msra.mxu0 %v2900
        %5320 = vmatprep.subr.mxu0 0.0
        %5321 = vmatpush1.xpose.msra.mxu0 %v2899
        %5322 = vmatprep.subr.mxu0 0.0
        %5323 = vmatpush1.xpose.msra.mxu0 %v2898
        %5324 = vmatprep.subr.mxu0 0.0
        %5325 = vmatpush1.xpose.msra.mxu0 %v2897
        %5326 = vmatprep.subr.mxu0 0.0
        %5327 = vmatpush1.xpose.msra.mxu0 %v2896
        %5328 = vmatprep.subr.mxu0 0.0
        %5329 = vmatpush1.xpose.msra.mxu0 %v2895
        %5330 = vmatprep.subr.mxu0 0.0
        %5331 = vmatpush1.xpose.msra.mxu0 %v2894
        %5332 = vmatprep.subr.mxu0 0.0
        %5333 = vmatpush1.xpose.msra.mxu0 %v2893
        %5334 = vmatprep.subr.mxu0 0.0
        %5335 = vmatpush1.xpose.msra.mxu0 %v2892
        %5336 = vmatprep.subr.mxu0 0.0
        %5337 = vmatpush1.xpose.msra.mxu0 %v2891
        %5338 = vmatprep.subr.mxu0 0.0
        %5339 = vmatpush1.xpose.msra.mxu0 %v2890
        %5340 = vmatprep.subr.mxu0 0.0
        %5341 = vmatpush1.xpose.msra.mxu0 %v2889
        %5342 = vmatprep.subr.mxu0 0.0
        %5343 = vmatpush1.xpose.msra.mxu0 %v2888
        %5344 = vmatprep.subr.mxu0 0.0
        %5345 = vmatpush1.xpose.msra.mxu0 %v2887
        %5346 = vmatprep.subr.mxu0 0.0
        %5347 = vmatpush1.xpose.msra.mxu0 %v2886
        %5348 = vmatprep.subr.mxu0 0.0
        %5349 = vmatpush2.xpose.msra.mxu0 0.0
        %5350 = vmatprep.subr.mxu0 0.0
        %5351 = vmatpush2.xpose.msra.mxu0 0.0
        %5352 = vmatprep.subr.mxu0 0.0
        %5353 = vmatpush2.xpose.msra.mxu0 0.0
        %5354 = vmatprep.subr.mxu0 0.0
        %5355 = vmatpush2.xpose.msra.mxu0 0.0
        %5356 = vmatprep.subr.mxu0 0.0
        %5357 = vmatpush2.xpose.msra.mxu0 0.0
        %5358 = vmatprep.subr.mxu0 0.0
        %5359 = vmatpush2.xpose.msra.mxu0 0.0
        %5360 = vmatprep.subr.mxu0 0.0
        %5361 = vmatpush2.xpose.msra.mxu0 0.0
        %5362 = vmatprep.subr.mxu0 0.0
        %5363 = vmatpush2.xpose.msra.mxu0 0.0
        %5364 = vmatprep.subr.mxu0 0.0
        %5365 = vmatpush2.xpose.msra.mxu0 0.0
        %5366 = vmatprep.subr.mxu0 0.0
        %5367 = vmatpush2.xpose.msra.mxu0 0.0
        %5368 = vmatprep.subr.mxu0 0.0
        %5369 = vmatpush2.xpose.msra.mxu0 0.0
        %5370 = vmatprep.subr.mxu0 0.0
        %5371 = vmatpush2.xpose.msra.mxu0 0.0
        %5372 = vmatprep.subr.mxu0 0.0
        %5373 = vmatpush2.xpose.msra.mxu0 0.0
        %5374 = vmatprep.subr.mxu0 0.0
        %5375 = vmatpush2.xpose.msra.mxu0 0.0
        %5376 = vmatprep.subr.mxu0 0.0
        %5377 = vmatpush2.xpose.msra.mxu0 0.0
        %5378 = vmatprep.subr.mxu0 0.0
        %5379 = vmatpush2.xpose.msra.mxu0 0.0
        %5380 = vmatprep.mubr.f32.mxu0 0.0
        %5381 = vmatmul.mubr.f32.gmra.mxu0 %v2419
        %v5382 = vpop.f32.mrf.mxu0
        %v5383 = vadd.f32 %v3283, %v5382
        %v5384 = vpop.f32.mrf.mxu0
        %5385 = vdwg.mxu0
        %5386 = vmatprep.subr.mxu0 0.0
        %5387 = vmatpush1.xpose.msra.mxu0 %v2917
        %5388 = vmatprep.subr.mxu0 0.0
        %5389 = vmatpush1.xpose.msra.mxu0 %v2916
        %5390 = vmatprep.subr.mxu0 0.0
        %5391 = vmatpush1.xpose.msra.mxu0 %v2915
        %5392 = vmatprep.subr.mxu0 0.0
        %5393 = vmatpush1.xpose.msra.mxu0 %v2914
        %5394 = vmatprep.subr.mxu0 0.0
        %5395 = vmatpush1.xpose.msra.mxu0 %v2913
        %5396 = vmatprep.subr.mxu0 0.0
        %5397 = vmatpush1.xpose.msra.mxu0 %v2912
        %5398 = vmatprep.subr.mxu0 0.0
        %5399 = vmatpush1.xpose.msra.mxu0 %v2911
        %5400 = vmatprep.subr.mxu0 0.0
        %5401 = vmatpush1.xpose.msra.mxu0 %v2910
        %5402 = vmatprep.subr.mxu0 0.0
        %5403 = vmatpush1.xpose.msra.mxu0 %v2909
        %5404 = vmatprep.subr.mxu0 0.0
        %5405 = vmatpush1.xpose.msra.mxu0 %v2908
        %5406 = vmatprep.subr.mxu0 0.0
        %5407 = vmatpush1.xpose.msra.mxu0 %v2907
        %5408 = vmatprep.subr.mxu0 0.0
        %5409 = vmatpush1.xpose.msra.mxu0 %v2906
        %5410 = vmatprep.subr.mxu0 0.0
        %5411 = vmatpush1.xpose.msra.mxu0 %v2905
        %5412 = vmatprep.subr.mxu0 0.0
        %5413 = vmatpush1.xpose.msra.mxu0 %v2904
        %5414 = vmatprep.subr.mxu0 0.0
        %5415 = vmatpush1.xpose.msra.mxu0 %v2903
        %5416 = vmatprep.subr.mxu0 0.0
        %5417 = vmatpush1.xpose.msra.mxu0 %v2902
        %5418 = vmatprep.subr.mxu0 0.0
        %5419 = vmatpush2.xpose.msra.mxu0 0.0
        %5420 = vmatprep.subr.mxu0 0.0
        %5421 = vmatpush2.xpose.msra.mxu0 0.0
        %5422 = vmatprep.subr.mxu0 0.0
        %5423 = vmatpush2.xpose.msra.mxu0 0.0
        %5424 = vmatprep.subr.mxu0 0.0
        %5425 = vmatpush2.xpose.msra.mxu0 0.0
        %5426 = vmatprep.subr.mxu0 0.0
        %5427 = vmatpush2.xpose.msra.mxu0 0.0
        %5428 = vmatprep.subr.mxu0 0.0
        %5429 = vmatpush2.xpose.msra.mxu0 0.0
        %5430 = vmatprep.subr.mxu0 0.0
        %5431 = vmatpush2.xpose.msra.mxu0 0.0
        %5432 = vmatprep.subr.mxu0 0.0
        %5433 = vmatpush2.xpose.msra.mxu0 0.0
        %5434 = vmatprep.subr.mxu0 0.0
        %5435 = vmatpush2.xpose.msra.mxu0 0.0
        %5436 = vmatprep.subr.mxu0 0.0
        %5437 = vmatpush2.xpose.msra.mxu0 0.0
        %5438 = vmatprep.subr.mxu0 0.0
        %5439 = vmatpush2.xpose.msra.mxu0 0.0
        %5440 = vmatprep.subr.mxu0 0.0
        %5441 = vmatpush2.xpose.msra.mxu0 0.0
        %5442 = vmatprep.subr.mxu0 0.0
        %5443 = vmatpush2.xpose.msra.mxu0 0.0
        %5444 = vmatprep.subr.mxu0 0.0
        %5445 = vmatpush2.xpose.msra.mxu0 0.0
        %5446 = vmatprep.subr.mxu0 0.0
        %5447 = vmatpush2.xpose.msra.mxu0 0.0
        %5448 = vmatprep.subr.mxu0 0.0
        %5449 = vmatpush2.xpose.msra.mxu0 0.0
        %5450 = vmatprep.mubr.f32.mxu0 0.0
        %5451 = vmatmul.mubr.f32.gmra.mxu0 %v2420
        %v5452 = vpop.f32.mrf.mxu0
        %v5453 = vadd.f32 %v3284, %v5452
        %v5454 = vpop.f32.mrf.mxu0
        %5455 = vdwg.mxu0
        %5456 = vmatprep.subr.mxu0 0.0
        %5457 = vmatpush1.xpose.msra.mxu0 %v2933
        %5458 = vmatprep.subr.mxu0 0.0
        %5459 = vmatpush1.xpose.msra.mxu0 %v2932
        %5460 = vmatprep.subr.mxu0 0.0
        %5461 = vmatpush1.xpose.msra.mxu0 %v2931
        %5462 = vmatprep.subr.mxu0 0.0
        %5463 = vmatpush1.xpose.msra.mxu0 %v2930
        %5464 = vmatprep.subr.mxu0 0.0
        %5465 = vmatpush1.xpose.msra.mxu0 %v2929
        %5466 = vmatprep.subr.mxu0 0.0
        %5467 = vmatpush1.xpose.msra.mxu0 %v2928
        %5468 = vmatprep.subr.mxu0 0.0
        %5469 = vmatpush1.xpose.msra.mxu0 %v2927
        %5470 = vmatprep.subr.mxu0 0.0
        %5471 = vmatpush1.xpose.msra.mxu0 %v2926
        %5472 = vmatprep.subr.mxu0 0.0
        %5473 = vmatpush1.xpose.msra.mxu0 %v2925
        %5474 = vmatprep.subr.mxu0 0.0
        %5475 = vmatpush1.xpose.msra.mxu0 %v2924
        %5476 = vmatprep.subr.mxu0 0.0
        %5477 = vmatpush1.xpose.msra.mxu0 %v2923
        %5478 = vmatprep.subr.mxu0 0.0
        %5479 = vmatpush1.xpose.msra.mxu0 %v2922
        %5480 = vmatprep.subr.mxu0 0.0
        %5481 = vmatpush1.xpose.msra.mxu0 %v2921
        %5482 = vmatprep.subr.mxu0 0.0
        %5483 = vmatpush1.xpose.msra.mxu0 %v2920
        %5484 = vmatprep.subr.mxu0 0.0
        %5485 = vmatpush1.xpose.msra.mxu0 %v2919
        %5486 = vmatprep.subr.mxu0 0.0
        %5487 = vmatpush1.xpose.msra.mxu0 %v2918
        %5488 = vmatprep.subr.mxu0 0.0
        %5489 = vmatpush2.xpose.msra.mxu0 0.0
        %5490 = vmatprep.subr.mxu0 0.0
        %5491 = vmatpush2.xpose.msra.mxu0 0.0
        %5492 = vmatprep.subr.mxu0 0.0
        %5493 = vmatpush2.xpose.msra.mxu0 0.0
        %5494 = vmatprep.subr.mxu0 0.0
        %5495 = vmatpush2.xpose.msra.mxu0 0.0
        %5496 = vmatprep.subr.mxu0 0.0
        %5497 = vmatpush2.xpose.msra.mxu0 0.0
        %5498 = vmatprep.subr.mxu0 0.0
        %5499 = vmatpush2.xpose.msra.mxu0 0.0
        %5500 = vmatprep.subr.mxu0 0.0
        %5501 = vmatpush2.xpose.msra.mxu0 0.0
        %5502 = vmatprep.subr.mxu0 0.0
        %5503 = vmatpush2.xpose.msra.mxu0 0.0
        %5504 = vmatprep.subr.mxu0 0.0
        %5505 = vmatpush2.xpose.msra.mxu0 0.0
        %5506 = vmatprep.subr.mxu0 0.0
        %5507 = vmatpush2.xpose.msra.mxu0 0.0
        %5508 = vmatprep.subr.mxu0 0.0
        %5509 = vmatpush2.xpose.msra.mxu0 0.0
        %5510 = vmatprep.subr.mxu0 0.0
        %5511 = vmatpush2.xpose.msra.mxu0 0.0
        %5512 = vmatprep.subr.mxu0 0.0
        %5513 = vmatpush2.xpose.msra.mxu0 0.0
        %5514 = vmatprep.subr.mxu0 0.0
        %5515 = vmatpush2.xpose.msra.mxu0 0.0
        %5516 = vmatprep.subr.mxu0 0.0
        %5517 = vmatpush2.xpose.msra.mxu0 0.0
        %5518 = vmatprep.subr.mxu0 0.0
        %5519 = vmatpush2.xpose.msra.mxu0 0.0
        %5520 = vmatprep.mubr.f32.mxu0 0.0
        %5521 = vmatmul.mubr.f32.gmra.mxu0 %v2421
        %v5522 = vpop.f32.mrf.mxu0
        %v5523 = vadd.f32 %v3285, %v5522
        %v5524 = vpop.f32.mrf.mxu0
        %5525 = vdwg.mxu0
        %v5526 = vmul.f32 %v3353, 0.5
        %v5527 = vmul.f32 %v3423, 0.5
        %v5528 = vmul.f32 %v3493, 0.5
        %v5529 = vmul.f32 %v3563, 0.5
        %v5530 = vmul.f32 %v3633, 0.5
        %v5531 = vmul.f32 %v3703, 0.5
        %v5532 = vmul.f32 %v3773, 0.5
        %v5533 = vmul.f32 %v3843, 0.5
        %v5534 = vmul.f32 %v3913, 0.5
        %v5535 = vmul.f32 %v3983, 0.5
        %v5536 = vmul.f32 %v4053, 0.5
        %v5537 = vmul.f32 %v4123, 0.5
        %v5538 = vmul.f32 %v4193, 0.5
        %v5539 = vmul.f32 %v4263, 0.5
        %v5540 = vmul.f32 %v4333, 0.5
        %v5541 = vmul.f32 %v4403, 0.5
        %v5542 = vmul.f32 %v4473, 0.5
        %v5543 = vmul.f32 %v4543, 0.5
        %v5544 = vmul.f32 %v4613, 0.5
        %v5545 = vmul.f32 %v4683, 0.5
        %v5546 = vmul.f32 %v4753, 0.5
        %v5547 = vmul.f32 %v4823, 0.5
        %v5548 = vmul.f32 %v4893, 0.5
        %v5549 = vmul.f32 %v4963, 0.5
        %v5550 = vmul.f32 %v5033, 0.5
        %v5551 = vmul.f32 %v5103, 0.5
        %v5552 = vmul.f32 %v5173, 0.5
        %v5553 = vmul.f32 %v5243, 0.5
        %v5554 = vmul.f32 %v5313, 0.5
        %v5555 = vmul.f32 %v5383, 0.5
        %v5556 = vmul.f32 %v5453, 0.5
        %v5557 = vmul.f32 %v5523, 0.5
        %v5558 = vmul.f32 %v3353, 0.70710677
        %v5559 = vmul.f32 %v3423, 0.70710677
        %v5560 = vmul.f32 %v3493, 0.70710677
        %v5561 = vmul.f32 %v3563, 0.70710677
        %v5562 = vmul.f32 %v3633, 0.70710677
        %v5563 = vmul.f32 %v3703, 0.70710677
        %v5564 = vmul.f32 %v3773, 0.70710677
        %v5565 = vmul.f32 %v3843, 0.70710677
        %v5566 = vmul.f32 %v3913, 0.70710677
        %v5567 = vmul.f32 %v3983, 0.70710677
        %v5568 = vmul.f32 %v4053, 0.70710677
        %v5569 = vmul.f32 %v4123, 0.70710677
        %v5570 = vmul.f32 %v4193, 0.70710677
        %v5571 = vmul.f32 %v4263, 0.70710677
        %v5572 = vmul.f32 %v4333, 0.70710677
        %v5573 = vmul.f32 %v4403, 0.70710677
        %v5574 = vmul.f32 %v4473, 0.70710677
        %v5575 = vmul.f32 %v4543, 0.70710677
        %v5576 = vmul.f32 %v4613, 0.70710677
        %v5577 = vmul.f32 %v4683, 0.70710677
        %v5578 = vmul.f32 %v4753, 0.70710677
        %v5579 = vmul.f32 %v4823, 0.70710677
        %v5580 = vmul.f32 %v4893, 0.70710677
        %v5581 = vmul.f32 %v4963, 0.70710677
        %v5582 = vmul.f32 %v5033, 0.70710677
        %v5583 = vmul.f32 %v5103, 0.70710677
        %v5584 = vmul.f32 %v5173, 0.70710677
        %v5585 = vmul.f32 %v5243, 0.70710677
        %v5586 = vmul.f32 %v5313, 0.70710677
        %v5587 = vmul.f32 %v5383, 0.70710677
        %v5588 = vmul.f32 %v5453, 0.70710677
        %v5589 = vmul.f32 %v5523, 0.70710677
        %v5590 = verf.f32.pop %v5558
        %v5591 = verf.f32.pop %v5559
        %v5592 = verf.f32.pop %v5560
        %v5593 = verf.f32.pop %v5561
        %v5594 = verf.f32.pop %v5562
        %v5595 = verf.f32.pop %v5563
        %v5596 = verf.f32.pop %v5564
        %v5597 = verf.f32.pop %v5565
        %v5598 = verf.f32.pop %v5566
        %v5599 = verf.f32.pop %v5567
        %v5600 = verf.f32.pop %v5568
        %v5601 = verf.f32.pop %v5569
        %v5602 = verf.f32.pop %v5570
        %v5603 = verf.f32.pop %v5571
        %v5604 = verf.f32.pop %v5572
        %v5605 = verf.f32.pop %v5573
        %v5606 = verf.f32.pop %v5574
        %v5607 = verf.f32.pop %v5575
        %v5608 = verf.f32.pop %v5576
        %v5609 = verf.f32.pop %v5577
        %v5610 = verf.f32.pop %v5578
        %v5611 = verf.f32.pop %v5579
        %v5612 = verf.f32.pop %v5580
        %v5613 = verf.f32.pop %v5581
        %v5614 = verf.f32.pop %v5582
        %v5615 = verf.f32.pop %v5583
        %v5616 = verf.f32.pop %v5584
        %v5617 = verf.f32.pop %v5585
        %v5618 = verf.f32.pop %v5586
        %v5619 = verf.f32.pop %v5587
        %v5620 = verf.f32.pop %v5588
        %v5621 = verf.f32.pop %v5589
        %v5622 = vadd.f32 %v5590, 1.0
        %v5623 = vadd.f32 %v5591, 1.0
        %v5624 = vadd.f32 %v5592, 1.0
        %v5625 = vadd.f32 %v5593, 1.0
        %v5626 = vadd.f32 %v5594, 1.0
        %v5627 = vadd.f32 %v5595, 1.0
        %v5628 = vadd.f32 %v5596, 1.0
        %v5629 = vadd.f32 %v5597, 1.0
        %v5630 = vadd.f32 %v5598, 1.0
        %v5631 = vadd.f32 %v5599, 1.0
        %v5632 = vadd.f32 %v5600, 1.0
        %v5633 = vadd.f32 %v5601, 1.0
        %v5634 = vadd.f32 %v5602, 1.0
        %v5635 = vadd.f32 %v5603, 1.0
        %v5636 = vadd.f32 %v5604, 1.0
        %v5637 = vadd.f32 %v5605, 1.0
        %v5638 = vadd.f32 %v5606, 1.0
        %v5639 = vadd.f32 %v5607, 1.0
        %v5640 = vadd.f32 %v5608, 1.0
        %v5641 = vadd.f32 %v5609, 1.0
        %v5642 = vadd.f32 %v5610, 1.0
        %v5643 = vadd.f32 %v5611, 1.0
        %v5644 = vadd.f32 %v5612, 1.0
        %v5645 = vadd.f32 %v5613, 1.0
        %v5646 = vadd.f32 %v5614, 1.0
        %v5647 = vadd.f32 %v5615, 1.0
        %v5648 = vadd.f32 %v5616, 1.0
        %v5649 = vadd.f32 %v5617, 1.0
        %v5650 = vadd.f32 %v5618, 1.0
        %v5651 = vadd.f32 %v5619, 1.0
        %v5652 = vadd.f32 %v5620, 1.0
        %v5653 = vadd.f32 %v5621, 1.0
        %v5654 = vmul.f32 %v5526, %v5622
        %v5655 = vmul.f32 %v5527, %v5623
        %v5656 = vmul.f32 %v5528, %v5624
        %v5657 = vmul.f32 %v5529, %v5625
        %v5658 = vmul.f32 %v5530, %v5626
        %v5659 = vmul.f32 %v5531, %v5627
        %v5660 = vmul.f32 %v5532, %v5628
        %v5661 = vmul.f32 %v5533, %v5629
        %v5662 = vmul.f32 %v5534, %v5630
        %v5663 = vmul.f32 %v5535, %v5631
        %v5664 = vmul.f32 %v5536, %v5632
        %v5665 = vmul.f32 %v5537, %v5633
        %v5666 = vmul.f32 %v5538, %v5634
        %v5667 = vmul.f32 %v5539, %v5635
        %v5668 = vmul.f32 %v5540, %v5636
        %v5669 = vmul.f32 %v5541, %v5637
        %v5670 = vmul.f32 %v5542, %v5638
        %v5671 = vmul.f32 %v5543, %v5639
        %v5672 = vmul.f32 %v5544, %v5640
        %v5673 = vmul.f32 %v5545, %v5641
        %v5674 = vmul.f32 %v5546, %v5642
        %v5675 = vmul.f32 %v5547, %v5643
        %v5676 = vmul.f32 %v5548, %v5644
        %v5677 = vmul.f32 %v5549, %v5645
        %v5678 = vmul.f32 %v5550, %v5646
        %v5679 = vmul.f32 %v5551, %v5647
        %v5680 = vmul.f32 %v5552, %v5648
        %v5681 = vmul.f32 %v5553, %v5649
        %v5682 = vmul.f32 %v5554, %v5650
        %v5683 = vmul.f32 %v5555, %v5651
        %v5684 = vmul.f32 %v5556, %v5652
        %v5685 = vmul.f32 %v5557, %v5653
        %5686 = vset.pattern.permute.xlu0 2
        %5687 = vperm.xlu0 %5686, %v1974
        %v5688 = vpop.permute.xlu0 %5687
        %5690 = vset.pattern.permute.xlu0 2
        %5691 = vperm.xlu0 %5690, %v1975
        %v5692 = vpop.permute.xlu0 %5691
        %5694 = vset.pattern.permute.xlu0 2
        %5695 = vperm.xlu0 %5694, %v1976
        %v5696 = vpop.permute.xlu0 %5695
        %5698 = vset.pattern.permute.xlu0 2
        %5699 = vperm.xlu0 %5698, %v1977
        %v5700 = vpop.permute.xlu0 %5699
        %5702 = vset.pattern.permute.xlu0 2
        %5703 = vperm.xlu0 %5702, %v1978
        %v5704 = vpop.permute.xlu0 %5703
        %5706 = vset.pattern.permute.xlu0 2
        %5707 = vperm.xlu0 %5706, %v1979
        %v5708 = vpop.permute.xlu0 %5707
        %5710 = vset.pattern.permute.xlu0 2
        %5711 = vperm.xlu0 %5710, %v1980
        %v5712 = vpop.permute.xlu0 %5711
        %5714 = vset.pattern.permute.xlu0 2
        %5715 = vperm.xlu0 %5714, %v1981
        %v5716 = vpop.permute.xlu0 %5715
        %5718 = vset.pattern.permute.xlu0 2
        %5719 = vperm.xlu0 %5718, %v1982
        %v5720 = vpop.permute.xlu0 %5719
        %5722 = vset.pattern.permute.xlu0 2
        %5723 = vperm.xlu0 %5722, %v1983
        %v5724 = vpop.permute.xlu0 %5723
        %5726 = vset.pattern.permute.xlu0 2
        %5727 = vperm.xlu0 %5726, %v1984
        %v5728 = vpop.permute.xlu0 %5727
        %5730 = vset.pattern.permute.xlu0 2
        %5731 = vperm.xlu0 %5730, %v1985
        %v5732 = vpop.permute.xlu0 %5731
        %5734 = vset.pattern.permute.xlu0 2
        %5735 = vperm.xlu0 %5734, %v1986
        %v5736 = vpop.permute.xlu0 %5735
        %5738 = vset.pattern.permute.xlu0 2
        %5739 = vperm.xlu0 %5738, %v1987
        %v5740 = vpop.permute.xlu0 %5739
        %5742 = vset.pattern.permute.xlu0 2
        %5743 = vperm.xlu0 %5742, %v1988
        %v5744 = vpop.permute.xlu0 %5743
        %5746 = vset.pattern.permute.xlu0 2
        %5747 = vperm.xlu0 %5746, %v1989
        %v5748 = vpop.permute.xlu0 %5747
        %5750 = vset.pattern.permute.xlu0 2
        %5751 = vperm.xlu0 %5750, %v1990
        %v5752 = vpop.permute.xlu0 %5751
        %5754 = vset.pattern.permute.xlu0 2
        %5755 = vperm.xlu0 %5754, %v1991
        %v5756 = vpop.permute.xlu0 %5755
        %5758 = vset.pattern.permute.xlu0 2
        %5759 = vperm.xlu0 %5758, %v1992
        %v5760 = vpop.permute.xlu0 %5759
        %5762 = vset.pattern.permute.xlu0 2
        %5763 = vperm.xlu0 %5762, %v1993
        %v5764 = vpop.permute.xlu0 %5763
        %5766 = vset.pattern.permute.xlu0 2
        %5767 = vperm.xlu0 %5766, %v1994
        %v5768 = vpop.permute.xlu0 %5767
        %5770 = vset.pattern.permute.xlu0 2
        %5771 = vperm.xlu0 %5770, %v1995
        %v5772 = vpop.permute.xlu0 %5771
        %5774 = vset.pattern.permute.xlu0 2
        %5775 = vperm.xlu0 %5774, %v1996
        %v5776 = vpop.permute.xlu0 %5775
        %5778 = vset.pattern.permute.xlu0 2
        %5779 = vperm.xlu0 %5778, %v1997
        %v5780 = vpop.permute.xlu0 %5779
        %5782 = vset.pattern.permute.xlu0 2
        %5783 = vperm.xlu0 %5782, %v1998
        %v5784 = vpop.permute.xlu0 %5783
        %5786 = vset.pattern.permute.xlu0 2
        %5787 = vperm.xlu0 %5786, %v1999
        %v5788 = vpop.permute.xlu0 %5787
        %5790 = vset.pattern.permute.xlu0 2
        %5791 = vperm.xlu0 %5790, %v2000
        %v5792 = vpop.permute.xlu0 %5791
        %5794 = vset.pattern.permute.xlu0 2
        %5795 = vperm.xlu0 %5794, %v2001
        %v5796 = vpop.permute.xlu0 %5795
        %5798 = vset.pattern.permute.xlu0 2
        %5799 = vperm.xlu0 %5798, %v2002
        %v5800 = vpop.permute.xlu0 %5799
        %5802 = vset.pattern.permute.xlu0 2
        %5803 = vperm.xlu0 %5802, %v2003
        %v5804 = vpop.permute.xlu0 %5803
        %5806 = vset.pattern.permute.xlu0 2
        %5807 = vperm.xlu0 %5806, %v2004
        %v5808 = vpop.permute.xlu0 %5807
        %5810 = vset.pattern.permute.xlu0 2
        %5811 = vperm.xlu0 %5810, %v2005
        %v5812 = vpop.permute.xlu0 %5811
        %v5814 = vmul.f32 %v5688, %v5654
        %v5815 = vmul.f32 %v5692, %v5655
        %v5816 = vmul.f32 %v5696, %v5656
        %v5817 = vmul.f32 %v5700, %v5657
        %v5818 = vmul.f32 %v5704, %v5658
        %v5819 = vmul.f32 %v5708, %v5659
        %v5820 = vmul.f32 %v5712, %v5660
        %v5821 = vmul.f32 %v5716, %v5661
        %v5822 = vmul.f32 %v5720, %v5662
        %v5823 = vmul.f32 %v5724, %v5663
        %v5824 = vmul.f32 %v5728, %v5664
        %v5825 = vmul.f32 %v5732, %v5665
        %v5826 = vmul.f32 %v5736, %v5666
        %v5827 = vmul.f32 %v5740, %v5667
        %v5828 = vmul.f32 %v5744, %v5668
        %v5829 = vmul.f32 %v5748, %v5669
        %v5830 = vmul.f32 %v5752, %v5670
        %v5831 = vmul.f32 %v5756, %v5671
        %v5832 = vmul.f32 %v5760, %v5672
        %v5833 = vmul.f32 %v5764, %v5673
        %v5834 = vmul.f32 %v5768, %v5674
        %v5835 = vmul.f32 %v5772, %v5675
        %v5836 = vmul.f32 %v5776, %v5676
        %v5837 = vmul.f32 %v5780, %v5677
        %v5838 = vmul.f32 %v5784, %v5678
        %v5839 = vmul.f32 %v5788, %v5679
        %v5840 = vmul.f32 %v5792, %v5680
        %v5841 = vmul.f32 %v5796, %v5681
        %v5842 = vmul.f32 %v5800, %v5682
        %v5843 = vmul.f32 %v5804, %v5683
        %v5844 = vmul.f32 %v5808, %v5684
        %v5845 = vmul.f32 %v5812, %v5685
        %v5846 = vadd.f32 %v1523, %v5814
        %v5847 = vadd.f32 %v1524, %v5815
        %v5848 = vadd.f32 %v1525, %v5816
        %v5849 = vadd.f32 %v1526, %v5817
        %v5850 = vadd.f32 %v1527, %v5818
        %v5851 = vadd.f32 %v1528, %v5819
        %v5852 = vadd.f32 %v1529, %v5820
        %v5853 = vadd.f32 %v1530, %v5821
        %v5854 = vadd.f32 %v1531, %v5822
        %v5855 = vadd.f32 %v1532, %v5823
        %v5856 = vadd.f32 %v1533, %v5824
        %v5857 = vadd.f32 %v1534, %v5825
        %v5858 = vadd.f32 %v1535, %v5826
        %v5859 = vadd.f32 %v1536, %v5827
        %v5860 = vadd.f32 %v1537, %v5828
        %v5861 = vadd.f32 %v1538, %v5829
        %v5862 = vadd.f32 %v1539, %v5830
        %v5863 = vadd.f32 %v1540, %v5831
        %v5864 = vadd.f32 %v1541, %v5832
        %v5865 = vadd.f32 %v1542, %v5833
        %v5866 = vadd.f32 %v1543, %v5834
        %v5867 = vadd.f32 %v1544, %v5835
        %v5868 = vadd.f32 %v1545, %v5836
        %v5869 = vadd.f32 %v1546, %v5837
        %v5870 = vadd.f32 %v1547, %v5838
        %v5871 = vadd.f32 %v1548, %v5839
        %v5872 = vadd.f32 %v1549, %v5840
        %v5873 = vadd.f32 %v1550, %v5841
        %v5874 = vadd.f32 %v1551, %v5842
        %v5875 = vadd.f32 %v1552, %v5843
        %v5876 = vadd.f32 %v1553, %v5844
        %v5877 = vadd.f32 %v1554, %v5845
        %5878 = vst [vmem:[%s1522] sm:$0x3] %v5846
        %5879 = vst [vmem:[%s1522 + $0x2] sm:$0x3] %v5847
        %5880 = vst [vmem:[%s1522 + $0x4] sm:$0x3] %v5848
        %5881 = vst [vmem:[%s1522 + $0x6] sm:$0x3] %v5849
        %5882 = vst [vmem:[%s1522 + $0x8] sm:$0x3] %v5850
        %5883 = vst [vmem:[%s1522 + $0xa] sm:$0x3] %v5851
        %5884 = vst [vmem:[%s1522 + $0xc] sm:$0x3] %v5852
        %5885 = vst [vmem:[%s1522 + $0xe] sm:$0x3] %v5853
        %5886 = vst [vmem:[%s1522 + $0x10] sm:$0x3] %v5854
        %5887 = vst [vmem:[%s1522 + $0x12] sm:$0x3] %v5855
        %5888 = vst [vmem:[%s1522 + $0x14] sm:$0x3] %v5856
        %5889 = vst [vmem:[%s1522 + $0x16] sm:$0x3] %v5857
        %5890 = vst [vmem:[%s1522 + $0x18] sm:$0x3] %v5858
        %5891 = vst [vmem:[%s1522 + $0x1a] sm:$0x3] %v5859
        %5892 = vst [vmem:[%s1522 + $0x1c] sm:$0x3] %v5860
        %5893 = vst [vmem:[%s1522 + $0x1e] sm:$0x3] %v5861
        %5894 = vst [vmem:[%s1522 + $0x20] sm:$0x3] %v5862
        %5895 = vst [vmem:[%s1522 + $0x22] sm:$0x3] %v5863
        %5896 = vst [vmem:[%s1522 + $0x24] sm:$0x3] %v5864
        %5897 = vst [vmem:[%s1522 + $0x26] sm:$0x3] %v5865
        %5898 = vst [vmem:[%s1522 + $0x28] sm:$0x3] %v5866
        %5899 = vst [vmem:[%s1522 + $0x2a] sm:$0x3] %v5867
        %5900 = vst [vmem:[%s1522 + $0x2c] sm:$0x3] %v5868
        %5901 = vst [vmem:[%s1522 + $0x2e] sm:$0x3] %v5869
        %5902 = vst [vmem:[%s1522 + $0x30] sm:$0x3] %v5870
        %5903 = vst [vmem:[%s1522 + $0x32] sm:$0x3] %v5871
        %5904 = vst [vmem:[%s1522 + $0x34] sm:$0x3] %v5872
        %5905 = vst [vmem:[%s1522 + $0x36] sm:$0x3] %v5873
        %5906 = vst [vmem:[%s1522 + $0x38] sm:$0x3] %v5874
        %5907 = vst [vmem:[%s1522 + $0x3a] sm:$0x3] %v5875
        %5908 = vst [vmem:[%s1522 + $0x3c] sm:$0x3] %v5876
        %5909 = vst [vmem:[%s1522 + $0x3e] sm:$0x3] %v5877
        // Predicated region
        $region113: #{conditional_denoiser_forward.3} parent=67 // pred_check
          %p5910 = pneg %p700
        $region114: #{conditional_denoiser_forward.3} parent=67 // pred_check_branch
          %5912 = sbr.rel (%p5910) target = $region116
        $region115: #{conditional_denoiser_forward.3} parent=67 // pred_region
          %v5913 = vld [vmem:[%s696] sm:$0x3]
          %v5914 = vld [vmem:[%s696 + $0x2] sm:$0x3]
          %v5915 = vld [vmem:[%s696 + $0x4] sm:$0x3]
          %v5916 = vld [vmem:[%s696 + $0x6] sm:$0x3]
          %v5917 = vld [vmem:[%s696 + $0x8] sm:$0x3]
          %v5918 = vld [vmem:[%s696 + $0xa] sm:$0x3]
          %v5919 = vld [vmem:[%s696 + $0xc] sm:$0x3]
          %v5920 = vld [vmem:[%s696 + $0xe] sm:$0x3]
          %v5921 = vld [vmem:[%s696 + $0x10] sm:$0x3]
          %v5922 = vld [vmem:[%s696 + $0x12] sm:$0x3]
          %v5923 = vld [vmem:[%s696 + $0x14] sm:$0x3]
          %v5924 = vld [vmem:[%s696 + $0x16] sm:$0x3]
          %v5925 = vld [vmem:[%s696 + $0x18] sm:$0x3]
          %v5926 = vld [vmem:[%s696 + $0x1a] sm:$0x3]
          %v5927 = vld [vmem:[%s696 + $0x1c] sm:$0x3]
          %v5928 = vld [vmem:[%s696 + $0x1e] sm:$0x3]
          %v5929 = vld [vmem:[%s696 + $0x20] sm:$0x3]
          %v5930 = vld [vmem:[%s696 + $0x22] sm:$0x3]
          %v5931 = vld [vmem:[%s696 + $0x24] sm:$0x3]
          %v5932 = vld [vmem:[%s696 + $0x26] sm:$0x3]
          %v5933 = vld [vmem:[%s696 + $0x28] sm:$0x3]
          %v5934 = vld [vmem:[%s696 + $0x2a] sm:$0x3]
          %v5935 = vld [vmem:[%s696 + $0x2c] sm:$0x3]
          %v5936 = vld [vmem:[%s696 + $0x2e] sm:$0x3]
          %v5937 = vld [vmem:[%s696 + $0x30] sm:$0x3]
          %v5938 = vld [vmem:[%s696 + $0x32] sm:$0x3]
          %v5939 = vld [vmem:[%s696 + $0x34] sm:$0x3]
          %v5940 = vld [vmem:[%s696 + $0x36] sm:$0x3]
          %v5941 = vld [vmem:[%s696 + $0x38] sm:$0x3]
          %v5942 = vld [vmem:[%s696 + $0x3a] sm:$0x3]
          %v5943 = vld [vmem:[%s696 + $0x3c] sm:$0x3]
          %v5944 = vld [vmem:[%s696 + $0x3e] sm:$0x3]
          %v5945 = vld [vmem:[#allocation2] sm:$0x1]
          %v5946 = vld [vmem:[#allocation2 + $0x2] sm:$0x1]
          %v5947 = vld [vmem:[#allocation2 + $0x4] sm:$0x1]
          %v5948 = vld [vmem:[#allocation2 + $0x6] sm:$0x1]
          %v5949 = vld [vmem:[#allocation2 + $0x8] sm:$0x1]
          %v5950 = vld [vmem:[#allocation2 + $0xa] sm:$0x1]
          %v5951 = vld [vmem:[#allocation2 + $0xc] sm:$0x1]
          %v5952 = vld [vmem:[#allocation2 + $0xe] sm:$0x1]
          %v5953 = vld [vmem:[#allocation2 + $0x10] sm:$0x1]
          %v5954 = vld [vmem:[#allocation2 + $0x12] sm:$0x1]
          %v5955 = vld [vmem:[#allocation2 + $0x14] sm:$0x1]
          %v5956 = vld [vmem:[#allocation2 + $0x16] sm:$0x1]
          %v5957 = vld [vmem:[#allocation2 + $0x18] sm:$0x1]
          %v5958 = vld [vmem:[#allocation2 + $0x1a] sm:$0x1]
          %v5959 = vld [vmem:[#allocation2 + $0x1c] sm:$0x1]
          %v5960 = vld [vmem:[#allocation2 + $0x1e] sm:$0x1]
          %v5961 = vld [vmem:[#allocation2 + $0x20] sm:$0x1]
          %v5962 = vld [vmem:[#allocation2 + $0x22] sm:$0x1]
          %v5963 = vld [vmem:[#allocation2 + $0x24] sm:$0x1]
          %v5964 = vld [vmem:[#allocation2 + $0x26] sm:$0x1]
          %v5965 = vld [vmem:[#allocation2 + $0x28] sm:$0x1]
          %v5966 = vld [vmem:[#allocation2 + $0x2a] sm:$0x1]
          %v5967 = vld [vmem:[#allocation2 + $0x2c] sm:$0x1]
          %v5968 = vld [vmem:[#allocation2 + $0x2e] sm:$0x1]
          %v5969 = vld [vmem:[#allocation2 + $0x30] sm:$0x1]
          %v5970 = vld [vmem:[#allocation2 + $0x32] sm:$0x1]
          %v5971 = vld [vmem:[#allocation2 + $0x34] sm:$0x1]
          %v5972 = vld [vmem:[#allocation2 + $0x36] sm:$0x1]
          %v5973 = vld [vmem:[#allocation2 + $0x38] sm:$0x1]
          %v5974 = vld [vmem:[#allocation2 + $0x3a] sm:$0x1]
          %v5975 = vld [vmem:[#allocation2 + $0x3c] sm:$0x1]
          %v5976 = vld [vmem:[#allocation2 + $0x3e] sm:$0x1]
          %v6009 = vrot.slane %v5946, 7
          %vm6010 = vcmask 1041409
          %v6011 = vsel %vm6010, %v6009, %v5945
          %v6012 = vrot.slane %v5947, 6
          %vm6013 = vcmask 1042434
          %v6014 = vsel %vm6013, %v6012, %v6011
          %v6015 = vrot.slane %v5948, 5
          %vm6016 = vcmask 1043459
          %v6017 = vsel %vm6016, %v6015, %v6014
          %v6018 = vrot.slane %v5949, 4
          %vm6019 = vcmask 1044484
          %v6020 = vsel %vm6019, %v6018, %v6017
          %v6021 = vrot.slane %v5950, 3
          %vm6022 = vcmask 1045509
          %v6023 = vsel %vm6022, %v6021, %v6020
          %v6024 = vrot.slane %v5951, 2
          %vm6025 = vcmask 1046534
          %v6026 = vsel %vm6025, %v6024, %v6023
          %v6027 = vrot.slane %v5952, 1
          %vm6028 = vcmask 1047559
          %v6029 = vsel %vm6028, %v6027, %v6026
          %v6030 = vrot.slane %v5954, 7
          %v6031 = vsel %vm6010, %v6030, %v5953
          %v6032 = vrot.slane %v5955, 6
          %v6033 = vsel %vm6013, %v6032, %v6031
          %v6034 = vrot.slane %v5956, 5
          %v6035 = vsel %vm6016, %v6034, %v6033
          %v6036 = vrot.slane %v5957, 4
          %v6037 = vsel %vm6019, %v6036, %v6035
          %v6038 = vrot.slane %v5958, 3
          %v6039 = vsel %vm6022, %v6038, %v6037
          %v6040 = vrot.slane %v5959, 2
          %v6041 = vsel %vm6025, %v6040, %v6039
          %v6042 = vrot.slane %v5960, 1
          %v6043 = vsel %vm6028, %v6042, %v6041
          %v6044 = vrot.slane %v5962, 7
          %v6045 = vsel %vm6010, %v6044, %v5961
          %v6046 = vrot.slane %v5963, 6
          %v6047 = vsel %vm6013, %v6046, %v6045
          %v6048 = vrot.slane %v5964, 5
          %v6049 = vsel %vm6016, %v6048, %v6047
          %v6050 = vrot.slane %v5965, 4
          %v6051 = vsel %vm6019, %v6050, %v6049
          %v6052 = vrot.slane %v5966, 3
          %v6053 = vsel %vm6022, %v6052, %v6051
          %v6054 = vrot.slane %v5967, 2
          %v6055 = vsel %vm6025, %v6054, %v6053
          %v6056 = vrot.slane %v5968, 1
          %v6057 = vsel %vm6028, %v6056, %v6055
          %v6058 = vrot.slane %v5970, 7
          %v6059 = vsel %vm6010, %v6058, %v5969
          %v6060 = vrot.slane %v5971, 6
          %v6061 = vsel %vm6013, %v6060, %v6059
          %v6062 = vrot.slane %v5972, 5
          %v6063 = vsel %vm6016, %v6062, %v6061
          %v6064 = vrot.slane %v5973, 4
          %v6065 = vsel %vm6019, %v6064, %v6063
          %v6066 = vrot.slane %v5974, 3
          %v6067 = vsel %vm6022, %v6066, %v6065
          %v6068 = vrot.slane %v5975, 2
          %v6069 = vsel %vm6025, %v6068, %v6067
          %v6070 = vrot.slane %v5976, 1
          %v6071 = vsel %vm6028, %v6070, %v6069
          %6076 = vadd.xlane.f32.xlu0 %v6029
          %v6077 = vpop.xlane.xlu0 %6076
          %6078 = vadd.xlane.f32.xlu0 %v6043
          %v6079 = vpop.xlane.xlu0 %6078
          %6080 = vadd.xlane.f32.xlu0 %v6057
          %v6081 = vpop.xlane.xlu0 %6080
          %6082 = vadd.xlane.f32.xlu0 %v6071
          %v6083 = vpop.xlane.xlu0 %6082
          %v6084 = vmul.f32 %v6077, %v1652
          %v6085 = vmul.f32 %v6079, %v1652
          %v6086 = vmul.f32 %v6081, %v1652
          %v6087 = vmul.f32 %v6083, %v1652
          %v6092 = vrot.slane %v6084, 1
          %v6093 = vrot.slane %v6084, 2
          %v6094 = vrot.slane %v6084, 3
          %v6095 = vrot.slane %v6084, 4
          %v6096 = vrot.slane %v6084, 5
          %v6097 = vrot.slane %v6084, 6
          %v6098 = vrot.slane %v6084, 7
          %v6099 = vrot.slane %v6085, 1
          %v6100 = vrot.slane %v6085, 2
          %v6101 = vrot.slane %v6085, 3
          %v6102 = vrot.slane %v6085, 4
          %v6103 = vrot.slane %v6085, 5
          %v6104 = vrot.slane %v6085, 6
          %v6105 = vrot.slane %v6085, 7
          %v6106 = vrot.slane %v6086, 1
          %v6107 = vrot.slane %v6086, 2
          %v6108 = vrot.slane %v6086, 3
          %v6109 = vrot.slane %v6086, 4
          %v6110 = vrot.slane %v6086, 5
          %v6111 = vrot.slane %v6086, 6
          %v6112 = vrot.slane %v6086, 7
          %v6113 = vrot.slane %v6087, 1
          %v6114 = vrot.slane %v6087, 2
          %v6115 = vrot.slane %v6087, 3
          %v6116 = vrot.slane %v6087, 4
          %v6117 = vrot.slane %v6087, 5
          %v6118 = vrot.slane %v6087, 6
          %v6119 = vrot.slane %v6087, 7
          %v6152 = vsub.f32 %v5945, %v6084
          %v6153 = vsub.f32 %v5946, %v6092
          %v6154 = vsub.f32 %v5947, %v6093
          %v6155 = vsub.f32 %v5948, %v6094
          %v6156 = vsub.f32 %v5949, %v6095
          %v6157 = vsub.f32 %v5950, %v6096
          %v6158 = vsub.f32 %v5951, %v6097
          %v6159 = vsub.f32 %v5952, %v6098
          %v6160 = vsub.f32 %v5953, %v6085
          %v6161 = vsub.f32 %v5954, %v6099
          %v6162 = vsub.f32 %v5955, %v6100
          %v6163 = vsub.f32 %v5956, %v6101
          %v6164 = vsub.f32 %v5957, %v6102
          %v6165 = vsub.f32 %v5958, %v6103
          %v6166 = vsub.f32 %v5959, %v6104
          %v6167 = vsub.f32 %v5960, %v6105
          %v6168 = vsub.f32 %v5961, %v6086
          %v6169 = vsub.f32 %v5962, %v6106
          %v6170 = vsub.f32 %v5963, %v6107
          %v6171 = vsub.f32 %v5964, %v6108
          %v6172 = vsub.f32 %v5965, %v6109
          %v6173 = vsub.f32 %v5966, %v6110
          %v6174 = vsub.f32 %v5967, %v6111
          %v6175 = vsub.f32 %v5968, %v6112
          %v6176 = vsub.f32 %v5969, %v6087
          %v6177 = vsub.f32 %v5970, %v6113
          %v6178 = vsub.f32 %v5971, %v6114
          %v6179 = vsub.f32 %v5972, %v6115
          %v6180 = vsub.f32 %v5973, %v6116
          %v6181 = vsub.f32 %v5974, %v6117
          %v6182 = vsub.f32 %v5975, %v6118
          %v6183 = vsub.f32 %v5976, %v6119
          %v6184 = vmul.f32 %v6152, %v6152
          %v6185 = vmul.f32 %v6153, %v6153
          %v6186 = vmul.f32 %v6154, %v6154
          %v6187 = vmul.f32 %v6155, %v6155
          %v6188 = vmul.f32 %v6156, %v6156
          %v6189 = vmul.f32 %v6157, %v6157
          %v6190 = vmul.f32 %v6158, %v6158
          %v6191 = vmul.f32 %v6159, %v6159
          %v6192 = vmul.f32 %v6160, %v6160
          %v6193 = vmul.f32 %v6161, %v6161
          %v6194 = vmul.f32 %v6162, %v6162
          %v6195 = vmul.f32 %v6163, %v6163
          %v6196 = vmul.f32 %v6164, %v6164
          %v6197 = vmul.f32 %v6165, %v6165
          %v6198 = vmul.f32 %v6166, %v6166
          %v6199 = vmul.f32 %v6167, %v6167
          %v6200 = vmul.f32 %v6168, %v6168
          %v6201 = vmul.f32 %v6169, %v6169
          %v6202 = vmul.f32 %v6170, %v6170
          %v6203 = vmul.f32 %v6171, %v6171
          %v6204 = vmul.f32 %v6172, %v6172
          %v6205 = vmul.f32 %v6173, %v6173
          %v6206 = vmul.f32 %v6174, %v6174
          %v6207 = vmul.f32 %v6175, %v6175
          %v6208 = vmul.f32 %v6176, %v6176
          %v6209 = vmul.f32 %v6177, %v6177
          %v6210 = vmul.f32 %v6178, %v6178
          %v6211 = vmul.f32 %v6179, %v6179
          %v6212 = vmul.f32 %v6180, %v6180
          %v6213 = vmul.f32 %v6181, %v6181
          %v6214 = vmul.f32 %v6182, %v6182
          %v6215 = vmul.f32 %v6183, %v6183
          %v6248 = vrot.slane %v6185, 7
          %v6249 = vsel %vm6010, %v6248, %v6184
          %v6250 = vrot.slane %v6186, 6
          %v6251 = vsel %vm6013, %v6250, %v6249
          %v6252 = vrot.slane %v6187, 5
          %v6253 = vsel %vm6016, %v6252, %v6251
          %v6254 = vrot.slane %v6188, 4
          %v6255 = vsel %vm6019, %v6254, %v6253
          %v6256 = vrot.slane %v6189, 3
          %v6257 = vsel %vm6022, %v6256, %v6255
          %v6258 = vrot.slane %v6190, 2
          %v6259 = vsel %vm6025, %v6258, %v6257
          %v6260 = vrot.slane %v6191, 1
          %v6261 = vsel %vm6028, %v6260, %v6259
          %v6262 = vrot.slane %v6193, 7
          %v6263 = vsel %vm6010, %v6262, %v6192
          %v6264 = vrot.slane %v6194, 6
          %v6265 = vsel %vm6013, %v6264, %v6263
          %v6266 = vrot.slane %v6195, 5
          %v6267 = vsel %vm6016, %v6266, %v6265
          %v6268 = vrot.slane %v6196, 4
          %v6269 = vsel %vm6019, %v6268, %v6267
          %v6270 = vrot.slane %v6197, 3
          %v6271 = vsel %vm6022, %v6270, %v6269
          %v6272 = vrot.slane %v6198, 2
          %v6273 = vsel %vm6025, %v6272, %v6271
          %v6274 = vrot.slane %v6199, 1
          %v6275 = vsel %vm6028, %v6274, %v6273
          %v6276 = vrot.slane %v6201, 7
          %v6277 = vsel %vm6010, %v6276, %v6200
          %v6278 = vrot.slane %v6202, 6
          %v6279 = vsel %vm6013, %v6278, %v6277
          %v6280 = vrot.slane %v6203, 5
          %v6281 = vsel %vm6016, %v6280, %v6279
          %v6282 = vrot.slane %v6204, 4
          %v6283 = vsel %vm6019, %v6282, %v6281
          %v6284 = vrot.slane %v6205, 3
          %v6285 = vsel %vm6022, %v6284, %v6283
          %v6286 = vrot.slane %v6206, 2
          %v6287 = vsel %vm6025, %v6286, %v6285
          %v6288 = vrot.slane %v6207, 1
          %v6289 = vsel %vm6028, %v6288, %v6287
          %v6290 = vrot.slane %v6209, 7
          %v6291 = vsel %vm6010, %v6290, %v6208
          %v6292 = vrot.slane %v6210, 6
          %v6293 = vsel %vm6013, %v6292, %v6291
          %v6294 = vrot.slane %v6211, 5
          %v6295 = vsel %vm6016, %v6294, %v6293
          %v6296 = vrot.slane %v6212, 4
          %v6297 = vsel %vm6019, %v6296, %v6295
          %v6298 = vrot.slane %v6213, 3
          %v6299 = vsel %vm6022, %v6298, %v6297
          %v6300 = vrot.slane %v6214, 2
          %v6301 = vsel %vm6025, %v6300, %v6299
          %v6302 = vrot.slane %v6215, 1
          %v6303 = vsel %vm6028, %v6302, %v6301
          %6308 = vadd.xlane.f32.xlu0 %v6261
          %v6309 = vpop.xlane.xlu0 %6308
          %6310 = vadd.xlane.f32.xlu0 %v6275
          %v6311 = vpop.xlane.xlu0 %6310
          %6312 = vadd.xlane.f32.xlu0 %v6289
          %v6313 = vpop.xlane.xlu0 %6312
          %6314 = vadd.xlane.f32.xlu0 %v6303
          %v6315 = vpop.xlane.xlu0 %6314
          %v6316 = vmul.f32 %v6309, %v1652
          %v6317 = vmul.f32 %v6311, %v1652
          %v6318 = vmul.f32 %v6313, %v1652
          %v6319 = vmul.f32 %v6315, %v1652
          %v6320 = vadd.f32 %v6316, 1e-05
          %v6321 = vadd.f32 %v6317, 1e-05
          %v6322 = vadd.f32 %v6318, 1e-05
          %v6323 = vadd.f32 %v6319, 1e-05
          %v6324 = vrsqrt.pop %v6320
          %v6325 = vrsqrt.pop %v6321
          %v6326 = vrsqrt.pop %v6322
          %v6327 = vrsqrt.pop %v6323
          %v6332 = vrot.slane %v6324, 1
          %v6333 = vrot.slane %v6324, 2
          %v6334 = vrot.slane %v6324, 3
          %v6335 = vrot.slane %v6324, 4
          %v6336 = vrot.slane %v6324, 5
          %v6337 = vrot.slane %v6324, 6
          %v6338 = vrot.slane %v6324, 7
          %v6339 = vrot.slane %v6325, 1
          %v6340 = vrot.slane %v6325, 2
          %v6341 = vrot.slane %v6325, 3
          %v6342 = vrot.slane %v6325, 4
          %v6343 = vrot.slane %v6325, 5
          %v6344 = vrot.slane %v6325, 6
          %v6345 = vrot.slane %v6325, 7
          %v6346 = vrot.slane %v6326, 1
          %v6347 = vrot.slane %v6326, 2
          %v6348 = vrot.slane %v6326, 3
          %v6349 = vrot.slane %v6326, 4
          %v6350 = vrot.slane %v6326, 5
          %v6351 = vrot.slane %v6326, 6
          %v6352 = vrot.slane %v6326, 7
          %v6353 = vrot.slane %v6327, 1
          %v6354 = vrot.slane %v6327, 2
          %v6355 = vrot.slane %v6327, 3
          %v6356 = vrot.slane %v6327, 4
          %v6357 = vrot.slane %v6327, 5
          %v6358 = vrot.slane %v6327, 6
          %v6359 = vrot.slane %v6327, 7
          %v6392 = vmul.f32 %v6152, %v6324
          %v6393 = vmul.f32 %v6153, %v6332
          %v6394 = vmul.f32 %v6154, %v6333
          %v6395 = vmul.f32 %v6155, %v6334
          %v6396 = vmul.f32 %v6156, %v6335
          %v6397 = vmul.f32 %v6157, %v6336
          %v6398 = vmul.f32 %v6158, %v6337
          %v6399 = vmul.f32 %v6159, %v6338
          %v6400 = vmul.f32 %v6160, %v6325
          %v6401 = vmul.f32 %v6161, %v6339
          %v6402 = vmul.f32 %v6162, %v6340
          %v6403 = vmul.f32 %v6163, %v6341
          %v6404 = vmul.f32 %v6164, %v6342
          %v6405 = vmul.f32 %v6165, %v6343
          %v6406 = vmul.f32 %v6166, %v6344
          %v6407 = vmul.f32 %v6167, %v6345
          %v6408 = vmul.f32 %v6168, %v6326
          %v6409 = vmul.f32 %v6169, %v6346
          %v6410 = vmul.f32 %v6170, %v6347
          %v6411 = vmul.f32 %v6171, %v6348
          %v6412 = vmul.f32 %v6172, %v6349
          %v6413 = vmul.f32 %v6173, %v6350
          %v6414 = vmul.f32 %v6174, %v6351
          %v6415 = vmul.f32 %v6175, %v6352
          %v6416 = vmul.f32 %v6176, %v6327
          %v6417 = vmul.f32 %v6177, %v6353
          %v6418 = vmul.f32 %v6178, %v6354
          %v6419 = vmul.f32 %v6179, %v6355
          %v6420 = vmul.f32 %v6180, %v6356
          %v6421 = vmul.f32 %v6181, %v6357
          %v6422 = vmul.f32 %v6182, %v6358
          %v6423 = vmul.f32 %v6183, %v6359
          %v6424 = vadd.f32 %v5913, 1.0
          %v6425 = vadd.f32 %v5914, 1.0
          %v6426 = vadd.f32 %v5915, 1.0
          %v6427 = vadd.f32 %v5916, 1.0
          %v6428 = vadd.f32 %v5917, 1.0
          %v6429 = vadd.f32 %v5918, 1.0
          %v6430 = vadd.f32 %v5919, 1.0
          %v6431 = vadd.f32 %v5920, 1.0
          %v6432 = vadd.f32 %v5921, 1.0
          %v6433 = vadd.f32 %v5922, 1.0
          %v6434 = vadd.f32 %v5923, 1.0
          %v6435 = vadd.f32 %v5924, 1.0
          %v6436 = vadd.f32 %v5925, 1.0
          %v6437 = vadd.f32 %v5926, 1.0
          %v6438 = vadd.f32 %v5927, 1.0
          %v6439 = vadd.f32 %v5928, 1.0
          %v6440 = vadd.f32 %v5929, 1.0
          %v6441 = vadd.f32 %v5930, 1.0
          %v6442 = vadd.f32 %v5931, 1.0
          %v6443 = vadd.f32 %v5932, 1.0
          %v6444 = vadd.f32 %v5933, 1.0
          %v6445 = vadd.f32 %v5934, 1.0
          %v6446 = vadd.f32 %v5935, 1.0
          %v6447 = vadd.f32 %v5936, 1.0
          %v6448 = vadd.f32 %v5937, 1.0
          %v6449 = vadd.f32 %v5938, 1.0
          %v6450 = vadd.f32 %v5939, 1.0
          %v6451 = vadd.f32 %v5940, 1.0
          %v6452 = vadd.f32 %v5941, 1.0
          %v6453 = vadd.f32 %v5942, 1.0
          %v6454 = vadd.f32 %v5943, 1.0
          %v6455 = vadd.f32 %v5944, 1.0
          %6457 = vset.pattern.permute.xlu0 4
          %6458 = vperm.xlu0 %6457, %v6424
          %v6459 = vpop.permute.xlu0 %6458
          %6462 = vset.pattern.permute.xlu0 4
          %6463 = vperm.xlu0 %6462, %v6425
          %v6464 = vpop.permute.xlu0 %6463
          %6467 = vset.pattern.permute.xlu0 4
          %6468 = vperm.xlu0 %6467, %v6426
          %v6469 = vpop.permute.xlu0 %6468
          %6472 = vset.pattern.permute.xlu0 4
          %6473 = vperm.xlu0 %6472, %v6427
          %v6474 = vpop.permute.xlu0 %6473
          %6477 = vset.pattern.permute.xlu0 4
          %6478 = vperm.xlu0 %6477, %v6428
          %v6479 = vpop.permute.xlu0 %6478
          %6482 = vset.pattern.permute.xlu0 4
          %6483 = vperm.xlu0 %6482, %v6429
          %v6484 = vpop.permute.xlu0 %6483
          %6487 = vset.pattern.permute.xlu0 4
          %6488 = vperm.xlu0 %6487, %v6430
          %v6489 = vpop.permute.xlu0 %6488
          %6492 = vset.pattern.permute.xlu0 4
          %6493 = vperm.xlu0 %6492, %v6431
          %v6494 = vpop.permute.xlu0 %6493
          %6497 = vset.pattern.permute.xlu0 4
          %6498 = vperm.xlu0 %6497, %v6432
          %v6499 = vpop.permute.xlu0 %6498
          %6502 = vset.pattern.permute.xlu0 4
          %6503 = vperm.xlu0 %6502, %v6433
          %v6504 = vpop.permute.xlu0 %6503
          %6507 = vset.pattern.permute.xlu0 4
          %6508 = vperm.xlu0 %6507, %v6434
          %v6509 = vpop.permute.xlu0 %6508
          %6512 = vset.pattern.permute.xlu0 4
          %6513 = vperm.xlu0 %6512, %v6435
          %v6514 = vpop.permute.xlu0 %6513
          %6517 = vset.pattern.permute.xlu0 4
          %6518 = vperm.xlu0 %6517, %v6436
          %v6519 = vpop.permute.xlu0 %6518
          %6522 = vset.pattern.permute.xlu0 4
          %6523 = vperm.xlu0 %6522, %v6437
          %v6524 = vpop.permute.xlu0 %6523
          %6527 = vset.pattern.permute.xlu0 4
          %6528 = vperm.xlu0 %6527, %v6438
          %v6529 = vpop.permute.xlu0 %6528
          %6532 = vset.pattern.permute.xlu0 4
          %6533 = vperm.xlu0 %6532, %v6439
          %v6534 = vpop.permute.xlu0 %6533
          %6537 = vset.pattern.permute.xlu0 4
          %6538 = vperm.xlu0 %6537, %v6440
          %v6539 = vpop.permute.xlu0 %6538
          %6542 = vset.pattern.permute.xlu0 4
          %6543 = vperm.xlu0 %6542, %v6441
          %v6544 = vpop.permute.xlu0 %6543
          %6547 = vset.pattern.permute.xlu0 4
          %6548 = vperm.xlu0 %6547, %v6442
          %v6549 = vpop.permute.xlu0 %6548
          %6552 = vset.pattern.permute.xlu0 4
          %6553 = vperm.xlu0 %6552, %v6443
          %v6554 = vpop.permute.xlu0 %6553
          %6557 = vset.pattern.permute.xlu0 4
          %6558 = vperm.xlu0 %6557, %v6444
          %v6559 = vpop.permute.xlu0 %6558
          %6562 = vset.pattern.permute.xlu0 4
          %6563 = vperm.xlu0 %6562, %v6445
          %v6564 = vpop.permute.xlu0 %6563
          %6567 = vset.pattern.permute.xlu0 4
          %6568 = vperm.xlu0 %6567, %v6446
          %v6569 = vpop.permute.xlu0 %6568
          %6572 = vset.pattern.permute.xlu0 4
          %6573 = vperm.xlu0 %6572, %v6447
          %v6574 = vpop.permute.xlu0 %6573
          %6577 = vset.pattern.permute.xlu0 4
          %6578 = vperm.xlu0 %6577, %v6448
          %v6579 = vpop.permute.xlu0 %6578
          %6582 = vset.pattern.permute.xlu0 4
          %6583 = vperm.xlu0 %6582, %v6449
          %v6584 = vpop.permute.xlu0 %6583
          %6587 = vset.pattern.permute.xlu0 4
          %6588 = vperm.xlu0 %6587, %v6450
          %v6589 = vpop.permute.xlu0 %6588
          %6592 = vset.pattern.permute.xlu0 4
          %6593 = vperm.xlu0 %6592, %v6451
          %v6594 = vpop.permute.xlu0 %6593
          %6597 = vset.pattern.permute.xlu0 4
          %6598 = vperm.xlu0 %6597, %v6452
          %v6599 = vpop.permute.xlu0 %6598
          %6602 = vset.pattern.permute.xlu0 4
          %6603 = vperm.xlu0 %6602, %v6453
          %v6604 = vpop.permute.xlu0 %6603
          %6607 = vset.pattern.permute.xlu0 4
          %6608 = vperm.xlu0 %6607, %v6454
          %v6609 = vpop.permute.xlu0 %6608
          %6612 = vset.pattern.permute.xlu0 4
          %6613 = vperm.xlu0 %6612, %v6455
          %v6614 = vpop.permute.xlu0 %6613
          %v6616 = vmul.f32 %v6392, %v6459
          %v6617 = vmul.f32 %v6393, %v6464
          %v6618 = vmul.f32 %v6394, %v6469
          %v6619 = vmul.f32 %v6395, %v6474
          %v6620 = vmul.f32 %v6396, %v6479
          %v6621 = vmul.f32 %v6397, %v6484
          %v6622 = vmul.f32 %v6398, %v6489
          %v6623 = vmul.f32 %v6399, %v6494
          %v6624 = vmul.f32 %v6400, %v6499
          %v6625 = vmul.f32 %v6401, %v6504
          %v6626 = vmul.f32 %v6402, %v6509
          %v6627 = vmul.f32 %v6403, %v6514
          %v6628 = vmul.f32 %v6404, %v6519
          %v6629 = vmul.f32 %v6405, %v6524
          %v6630 = vmul.f32 %v6406, %v6529
          %v6631 = vmul.f32 %v6407, %v6534
          %v6632 = vmul.f32 %v6408, %v6539
          %v6633 = vmul.f32 %v6409, %v6544
          %v6634 = vmul.f32 %v6410, %v6549
          %v6635 = vmul.f32 %v6411, %v6554
          %v6636 = vmul.f32 %v6412, %v6559
          %v6637 = vmul.f32 %v6413, %v6564
          %v6638 = vmul.f32 %v6414, %v6569
          %v6639 = vmul.f32 %v6415, %v6574
          %v6640 = vmul.f32 %v6416, %v6579
          %v6641 = vmul.f32 %v6417, %v6584
          %v6642 = vmul.f32 %v6418, %v6589
          %v6643 = vmul.f32 %v6419, %v6594
          %v6644 = vmul.f32 %v6420, %v6599
          %v6645 = vmul.f32 %v6421, %v6604
          %v6646 = vmul.f32 %v6422, %v6609
          %v6647 = vmul.f32 %v6423, %v6614
          %6649 = vset.pattern.permute.xlu0 3
          %6650 = vperm.xlu0 %6649, %v5913
          %v6651 = vpop.permute.xlu0 %6650
          %6654 = vset.pattern.permute.xlu0 3
          %6655 = vperm.xlu0 %6654, %v5914
          %v6656 = vpop.permute.xlu0 %6655
          %6659 = vset.pattern.permute.xlu0 3
          %6660 = vperm.xlu0 %6659, %v5915
          %v6661 = vpop.permute.xlu0 %6660
          %6664 = vset.pattern.permute.xlu0 3
          %6665 = vperm.xlu0 %6664, %v5916
          %v6666 = vpop.permute.xlu0 %6665
          %6669 = vset.pattern.permute.xlu0 3
          %6670 = vperm.xlu0 %6669, %v5917
          %v6671 = vpop.permute.xlu0 %6670
          %6674 = vset.pattern.permute.xlu0 3
          %6675 = vperm.xlu0 %6674, %v5918
          %v6676 = vpop.permute.xlu0 %6675
          %6679 = vset.pattern.permute.xlu0 3
          %6680 = vperm.xlu0 %6679, %v5919
          %v6681 = vpop.permute.xlu0 %6680
          %6684 = vset.pattern.permute.xlu0 3
          %6685 = vperm.xlu0 %6684, %v5920
          %v6686 = vpop.permute.xlu0 %6685
          %6689 = vset.pattern.permute.xlu0 3
          %6690 = vperm.xlu0 %6689, %v5921
          %v6691 = vpop.permute.xlu0 %6690
          %6694 = vset.pattern.permute.xlu0 3
          %6695 = vperm.xlu0 %6694, %v5922
          %v6696 = vpop.permute.xlu0 %6695
          %6699 = vset.pattern.permute.xlu0 3
          %6700 = vperm.xlu0 %6699, %v5923
          %v6701 = vpop.permute.xlu0 %6700
          %6704 = vset.pattern.permute.xlu0 3
          %6705 = vperm.xlu0 %6704, %v5924
          %v6706 = vpop.permute.xlu0 %6705
          %6709 = vset.pattern.permute.xlu0 3
          %6710 = vperm.xlu0 %6709, %v5925
          %v6711 = vpop.permute.xlu0 %6710
          %6714 = vset.pattern.permute.xlu0 3
          %6715 = vperm.xlu0 %6714, %v5926
          %v6716 = vpop.permute.xlu0 %6715
          %6719 = vset.pattern.permute.xlu0 3
          %6720 = vperm.xlu0 %6719, %v5927
          %v6721 = vpop.permute.xlu0 %6720
          %6724 = vset.pattern.permute.xlu0 3
          %6725 = vperm.xlu0 %6724, %v5928
          %v6726 = vpop.permute.xlu0 %6725
          %6729 = vset.pattern.permute.xlu0 3
          %6730 = vperm.xlu0 %6729, %v5929
          %v6731 = vpop.permute.xlu0 %6730
          %6734 = vset.pattern.permute.xlu0 3
          %6735 = vperm.xlu0 %6734, %v5930
          %v6736 = vpop.permute.xlu0 %6735
          %6739 = vset.pattern.permute.xlu0 3
          %6740 = vperm.xlu0 %6739, %v5931
          %v6741 = vpop.permute.xlu0 %6740
          %6744 = vset.pattern.permute.xlu0 3
          %6745 = vperm.xlu0 %6744, %v5932
          %v6746 = vpop.permute.xlu0 %6745
          %6749 = vset.pattern.permute.xlu0 3
          %6750 = vperm.xlu0 %6749, %v5933
          %v6751 = vpop.permute.xlu0 %6750
          %6754 = vset.pattern.permute.xlu0 3
          %6755 = vperm.xlu0 %6754, %v5934
          %v6756 = vpop.permute.xlu0 %6755
          %6759 = vset.pattern.permute.xlu0 3
          %6760 = vperm.xlu0 %6759, %v5935
          %v6761 = vpop.permute.xlu0 %6760
          %6764 = vset.pattern.permute.xlu0 3
          %6765 = vperm.xlu0 %6764, %v5936
          %v6766 = vpop.permute.xlu0 %6765
          %6769 = vset.pattern.permute.xlu0 3
          %6770 = vperm.xlu0 %6769, %v5937
          %v6771 = vpop.permute.xlu0 %6770
          %6774 = vset.pattern.permute.xlu0 3
          %6775 = vperm.xlu0 %6774, %v5938
          %v6776 = vpop.permute.xlu0 %6775
          %6779 = vset.pattern.permute.xlu0 3
          %6780 = vperm.xlu0 %6779, %v5939
          %v6781 = vpop.permute.xlu0 %6780
          %6784 = vset.pattern.permute.xlu0 3
          %6785 = vperm.xlu0 %6784, %v5940
          %v6786 = vpop.permute.xlu0 %6785
          %6789 = vset.pattern.permute.xlu0 3
          %6790 = vperm.xlu0 %6789, %v5941
          %v6791 = vpop.permute.xlu0 %6790
          %6794 = vset.pattern.permute.xlu0 3
          %6795 = vperm.xlu0 %6794, %v5942
          %v6796 = vpop.permute.xlu0 %6795
          %6799 = vset.pattern.permute.xlu0 3
          %6800 = vperm.xlu0 %6799, %v5943
          %v6801 = vpop.permute.xlu0 %6800
          %6804 = vset.pattern.permute.xlu0 3
          %6805 = vperm.xlu0 %6804, %v5944
          %v6806 = vpop.permute.xlu0 %6805
          %v6808 = vadd.f32 %v6616, %v6651
          %v6809 = vadd.f32 %v6617, %v6656
          %v6810 = vadd.f32 %v6618, %v6661
          %v6811 = vadd.f32 %v6619, %v6666
          %v6812 = vadd.f32 %v6620, %v6671
          %v6813 = vadd.f32 %v6621, %v6676
          %v6814 = vadd.f32 %v6622, %v6681
          %v6815 = vadd.f32 %v6623, %v6686
          %v6816 = vadd.f32 %v6624, %v6691
          %v6817 = vadd.f32 %v6625, %v6696
          %v6818 = vadd.f32 %v6626, %v6701
          %v6819 = vadd.f32 %v6627, %v6706
          %v6820 = vadd.f32 %v6628, %v6711
          %v6821 = vadd.f32 %v6629, %v6716
          %v6822 = vadd.f32 %v6630, %v6721
          %v6823 = vadd.f32 %v6631, %v6726
          %v6824 = vadd.f32 %v6632, %v6731
          %v6825 = vadd.f32 %v6633, %v6736
          %v6826 = vadd.f32 %v6634, %v6741
          %v6827 = vadd.f32 %v6635, %v6746
          %v6828 = vadd.f32 %v6636, %v6751
          %v6829 = vadd.f32 %v6637, %v6756
          %v6830 = vadd.f32 %v6638, %v6761
          %v6831 = vadd.f32 %v6639, %v6766
          %v6832 = vadd.f32 %v6640, %v6771
          %v6833 = vadd.f32 %v6641, %v6776
          %v6834 = vadd.f32 %v6642, %v6781
          %v6835 = vadd.f32 %v6643, %v6786
          %v6836 = vadd.f32 %v6644, %v6791
          %v6837 = vadd.f32 %v6645, %v6796
          %v6838 = vadd.f32 %v6646, %v6801
          %v6839 = vadd.f32 %v6647, %v6806
          %v6840 = vld [vmem:[%s591] sm:$0xff]
          %v6841 = vld [vmem:[%s591 + $0x8] sm:$0xff]
          %v6842 = vld [vmem:[%s591 + $0x10] sm:$0xff]
          %v6843 = vld [vmem:[%s591 + $0x18] sm:$0xff]
          %v6844 = vld [vmem:[%s591 + $0x20] sm:$0xff]
          %v6845 = vld [vmem:[%s591 + $0x28] sm:$0xff]
          %v6846 = vld [vmem:[%s591 + $0x30] sm:$0xff]
          %v6847 = vld [vmem:[%s591 + $0x38] sm:$0xff]
          %v6848 = vld [vmem:[%s600] sm:$0xff]
          %v6849 = vld [vmem:[%s600 + $0x8] sm:$0xff]
          %v6850 = vld [vmem:[%s600 + $0x10] sm:$0xff]
          %v6851 = vld [vmem:[%s600 + $0x18] sm:$0xff]
          %v6852 = vld [vmem:[%s600 + $0x20] sm:$0xff]
          %v6853 = vld [vmem:[%s600 + $0x28] sm:$0xff]
          %v6854 = vld [vmem:[%s600 + $0x30] sm:$0xff]
          %v6855 = vld [vmem:[%s600 + $0x38] sm:$0xff]
          %6857 = vset.pattern.permute.xlu0 0
          %6858 = vperm.xlu0 %6857, %v6848
          %v6859 = vpop.permute.xlu0 %6858
          %6862 = vset.pattern.permute.xlu0 0
          %6863 = vperm.xlu0 %6862, %v6849
          %v6864 = vpop.permute.xlu0 %6863
          %6867 = vset.pattern.permute.xlu0 0
          %6868 = vperm.xlu0 %6867, %v6850
          %v6869 = vpop.permute.xlu0 %6868
          %6872 = vset.pattern.permute.xlu0 0
          %6873 = vperm.xlu0 %6872, %v6851
          %v6874 = vpop.permute.xlu0 %6873
          %6877 = vset.pattern.permute.xlu0 0
          %6878 = vperm.xlu0 %6877, %v6852
          %v6879 = vpop.permute.xlu0 %6878
          %6882 = vset.pattern.permute.xlu0 0
          %6883 = vperm.xlu0 %6882, %v6853
          %v6884 = vpop.permute.xlu0 %6883
          %6887 = vset.pattern.permute.xlu0 0
          %6888 = vperm.xlu0 %6887, %v6854
          %v6889 = vpop.permute.xlu0 %6888
          %6892 = vset.pattern.permute.xlu0 0
          %6893 = vperm.xlu0 %6892, %v6855
          %v6894 = vpop.permute.xlu0 %6893
          %v6928 = vrot.slane %v6809, 7
          %v6929 = vsel %vm6010, %v6928, %v6808
          %v6930 = vrot.slane %v6810, 6
          %v6931 = vsel %vm6013, %v6930, %v6929
          %v6932 = vrot.slane %v6811, 5
          %v6933 = vsel %vm6016, %v6932, %v6931
          %v6934 = vrot.slane %v6812, 4
          %v6935 = vsel %vm6019, %v6934, %v6933
          %v6936 = vrot.slane %v6813, 3
          %v6937 = vsel %vm6022, %v6936, %v6935
          %v6938 = vrot.slane %v6814, 2
          %v6939 = vsel %vm6025, %v6938, %v6937
          %v6940 = vrot.slane %v6815, 1
          %v6941 = vsel %vm6028, %v6940, %v6939
          %v6942 = vrot.slane %v6817, 7
          %v6943 = vsel %vm6010, %v6942, %v6816
          %v6944 = vrot.slane %v6818, 6
          %v6945 = vsel %vm6013, %v6944, %v6943
          %v6946 = vrot.slane %v6819, 5
          %v6947 = vsel %vm6016, %v6946, %v6945
          %v6948 = vrot.slane %v6820, 4
          %v6949 = vsel %vm6019, %v6948, %v6947
          %v6950 = vrot.slane %v6821, 3
          %v6951 = vsel %vm6022, %v6950, %v6949
          %v6952 = vrot.slane %v6822, 2
          %v6953 = vsel %vm6025, %v6952, %v6951
          %v6954 = vrot.slane %v6823, 1
          %v6955 = vsel %vm6028, %v6954, %v6953
          %v6956 = vrot.slane %v6825, 7
          %v6957 = vsel %vm6010, %v6956, %v6824
          %v6958 = vrot.slane %v6826, 6
          %v6959 = vsel %vm6013, %v6958, %v6957
          %v6960 = vrot.slane %v6827, 5
          %v6961 = vsel %vm6016, %v6960, %v6959
          %v6962 = vrot.slane %v6828, 4
          %v6963 = vsel %vm6019, %v6962, %v6961
          %v6964 = vrot.slane %v6829, 3
          %v6965 = vsel %vm6022, %v6964, %v6963
          %v6966 = vrot.slane %v6830, 2
          %v6967 = vsel %vm6025, %v6966, %v6965
          %v6968 = vrot.slane %v6831, 1
          %v6969 = vsel %vm6028, %v6968, %v6967
          %v6970 = vrot.slane %v6833, 7
          %v6971 = vsel %vm6010, %v6970, %v6832
          %v6972 = vrot.slane %v6834, 6
          %v6973 = vsel %vm6013, %v6972, %v6971
          %v6974 = vrot.slane %v6835, 5
          %v6975 = vsel %vm6016, %v6974, %v6973
          %v6976 = vrot.slane %v6836, 4
          %v6977 = vsel %vm6019, %v6976, %v6975
          %v6978 = vrot.slane %v6837, 3
          %v6979 = vsel %vm6022, %v6978, %v6977
          %v6980 = vrot.slane %v6838, 2
          %v6981 = vsel %vm6025, %v6980, %v6979
          %v6982 = vrot.slane %v6839, 1
          %v6983 = vsel %vm6028, %v6982, %v6981
          %vm6988 = vcmask 261120
          %v6990 = vsel %vm6988, %v6840, 0
          %v6993 = vsel %vm6988, %v6841, 0
          %v6996 = vsel %vm6988, %v6842, 0
          %v6999 = vsel %vm6988, %v6843, 0
          %v7002 = vsel %vm6988, %v6844, 0
          %v7005 = vsel %vm6988, %v6845, 0
          %v7008 = vsel %vm6988, %v6846, 0
          %v7011 = vsel %vm6988, %v6847, 0
          %7013 = vmatprep.subr.mxu0 0.0
          %7014 = vmatpush1.msra.mxu0 0.0
          %7015 = vmatprep.subr.mxu0 0.0
          %7016 = vmatpush1.msra.mxu0 0.0
          %7017 = vmatprep.subr.mxu0 0.0
          %7018 = vmatpush1.msra.mxu0 0.0
          %7019 = vmatprep.subr.mxu0 0.0
          %7020 = vmatpush1.msra.mxu0 0.0
          %7021 = vmatprep.subr.mxu0 0.0
          %7022 = vmatpush1.msra.mxu0 0.0
          %7023 = vmatprep.subr.mxu0 0.0
          %7024 = vmatpush1.msra.mxu0 0.0
          %7025 = vmatprep.subr.mxu0 0.0
          %7026 = vmatpush1.msra.mxu0 0.0
          %7027 = vmatprep.subr.mxu0 0.0
          %7028 = vmatpush1.msra.mxu0 0.0
          %7029 = vmatprep.subr.mxu0 0.0
          %7030 = vmatpush1.msra.mxu0 0.0
          %7031 = vmatprep.subr.mxu0 0.0
          %7032 = vmatpush1.msra.mxu0 0.0
          %7033 = vmatprep.subr.mxu0 0.0
          %7034 = vmatpush1.msra.mxu0 0.0
          %7035 = vmatprep.subr.mxu0 0.0
          %7036 = vmatpush1.msra.mxu0 0.0
          %7037 = vmatprep.subr.mxu0 0.0
          %7038 = vmatpush1.msra.mxu0 %v6983
          %7039 = vmatprep.subr.mxu0 0.0
          %7040 = vmatpush1.msra.mxu0 %v6969
          %7041 = vmatprep.subr.mxu0 0.0
          %7042 = vmatpush1.msra.mxu0 %v6955
          %7043 = vmatprep.subr.mxu0 0.0
          %7044 = vmatpush1.msra.mxu0 %v6941
          %7045 = vmatprep.subr.mxu0 0.0
          %7046 = vmatpush2.msra.mxu0 0.0
          %7047 = vmatprep.subr.mxu0 0.0
          %7048 = vmatpush2.msra.mxu0 0.0
          %7049 = vmatprep.subr.mxu0 0.0
          %7050 = vmatpush2.msra.mxu0 0.0
          %7051 = vmatprep.subr.mxu0 0.0
          %7052 = vmatpush2.msra.mxu0 0.0
          %7053 = vmatprep.subr.mxu0 0.0
          %7054 = vmatpush2.msra.mxu0 0.0
          %7055 = vmatprep.subr.mxu0 0.0
          %7056 = vmatpush2.msra.mxu0 0.0
          %7057 = vmatprep.subr.mxu0 0.0
          %7058 = vmatpush2.msra.mxu0 0.0
          %7059 = vmatprep.subr.mxu0 0.0
          %7060 = vmatpush2.msra.mxu0 0.0
          %7061 = vmatprep.subr.mxu0 0.0
          %7062 = vmatpush2.msra.mxu0 0.0
          %7063 = vmatprep.subr.mxu0 0.0
          %7064 = vmatpush2.msra.mxu0 0.0
          %7065 = vmatprep.subr.mxu0 0.0
          %7066 = vmatpush2.msra.mxu0 0.0
          %7067 = vmatprep.subr.mxu0 0.0
          %7068 = vmatpush2.msra.mxu0 0.0
          %7069 = vmatprep.subr.mxu0 0.0
          %7070 = vmatpush2.msra.mxu0 0.0
          %7071 = vmatprep.subr.mxu0 0.0
          %7072 = vmatpush2.msra.mxu0 0.0
          %7073 = vmatprep.subr.mxu0 0.0
          %7074 = vmatpush2.msra.mxu0 0.0
          %7075 = vmatprep.subr.mxu0 0.0
          %7076 = vmatpush2.msra.mxu0 0.0
          %7077 = vmatprep.mubr.f32.mxu0 0.0
          %7078 = vmatmul.mubr.f32.gmra.mxu0 %v6990
          %v7079 = vpop.f32.mrf.mxu0
          %v7080 = vadd.f32 %v6859, %v7079
          %v7081 = vpop.f32.mrf.mxu0
          %7082 = vmatprep.mubr.f32.mxu0 0.0
          %7083 = vmatmul.mubr.f32.gmra.mxu0 %v6993
          %v7084 = vpop.f32.mrf.mxu0
          %v7085 = vadd.f32 %v6864, %v7084
          %v7086 = vpop.f32.mrf.mxu0
          %7087 = vmatprep.mubr.f32.mxu0 0.0
          %7088 = vmatmul.mubr.f32.gmra.mxu0 %v6996
          %v7089 = vpop.f32.mrf.mxu0
          %v7090 = vadd.f32 %v6869, %v7089
          %v7091 = vpop.f32.mrf.mxu0
          %7092 = vmatprep.mubr.f32.mxu0 0.0
          %7093 = vmatmul.mubr.f32.gmra.mxu0 %v6999
          %v7094 = vpop.f32.mrf.mxu0
          %v7095 = vadd.f32 %v6874, %v7094
          %v7096 = vpop.f32.mrf.mxu0
          %7097 = vmatprep.mubr.f32.mxu0 0.0
          %7098 = vmatmul.mubr.f32.gmra.mxu0 %v7002
          %v7099 = vpop.f32.mrf.mxu0
          %v7100 = vadd.f32 %v6879, %v7099
          %v7101 = vpop.f32.mrf.mxu0
          %7102 = vmatprep.mubr.f32.mxu0 0.0
          %7103 = vmatmul.mubr.f32.gmra.mxu0 %v7005
          %v7104 = vpop.f32.mrf.mxu0
          %v7105 = vadd.f32 %v6884, %v7104
          %v7106 = vpop.f32.mrf.mxu0
          %7107 = vmatprep.mubr.f32.mxu0 0.0
          %7108 = vmatmul.mubr.f32.gmra.mxu0 %v7008
          %v7109 = vpop.f32.mrf.mxu0
          %v7110 = vadd.f32 %v6889, %v7109
          %v7111 = vpop.f32.mrf.mxu0
          %7112 = vmatprep.mubr.f32.mxu0 0.0
          %7113 = vmatmul.mubr.f32.gmra.mxu0 %v7011
          %v7114 = vpop.f32.mrf.mxu0
          %v7115 = vadd.f32 %v6894, %v7114
          %v7116 = vpop.f32.mrf.mxu0
          %7117 = vdwg.mxu0
          %v7118 = vmul.f32 %v7080, 0.5
          %v7119 = vmul.f32 %v7085, 0.5
          %v7120 = vmul.f32 %v7090, 0.5
          %v7121 = vmul.f32 %v7095, 0.5
          %v7122 = vmul.f32 %v7100, 0.5
          %v7123 = vmul.f32 %v7105, 0.5
          %v7124 = vmul.f32 %v7110, 0.5
          %v7125 = vmul.f32 %v7115, 0.5
          %v7126 = vmul.f32 %v7080, 0.70710677
          %v7127 = vmul.f32 %v7085, 0.70710677
          %v7128 = vmul.f32 %v7090, 0.70710677
          %v7129 = vmul.f32 %v7095, 0.70710677
          %v7130 = vmul.f32 %v7100, 0.70710677
          %v7131 = vmul.f32 %v7105, 0.70710677
          %v7132 = vmul.f32 %v7110, 0.70710677
          %v7133 = vmul.f32 %v7115, 0.70710677
          %v7134 = verf.f32.pop %v7126
          %v7135 = verf.f32.pop %v7127
          %v7136 = verf.f32.pop %v7128
          %v7137 = verf.f32.pop %v7129
          %v7138 = verf.f32.pop %v7130
          %v7139 = verf.f32.pop %v7131
          %v7140 = verf.f32.pop %v7132
          %v7141 = verf.f32.pop %v7133
          %v7142 = vadd.f32 %v7134, 1.0
          %v7143 = vadd.f32 %v7135, 1.0
          %v7144 = vadd.f32 %v7136, 1.0
          %v7145 = vadd.f32 %v7137, 1.0
          %v7146 = vadd.f32 %v7138, 1.0
          %v7147 = vadd.f32 %v7139, 1.0
          %v7148 = vadd.f32 %v7140, 1.0
          %v7149 = vadd.f32 %v7141, 1.0
          %v7150 = vmul.f32 %v7118, %v7142
          %v7151 = vmul.f32 %v7119, %v7143
          %v7152 = vmul.f32 %v7120, %v7144
          %v7153 = vmul.f32 %v7121, %v7145
          %v7154 = vmul.f32 %v7122, %v7146
          %v7155 = vmul.f32 %v7123, %v7147
          %v7156 = vmul.f32 %v7124, %v7148
          %v7157 = vmul.f32 %v7125, %v7149
          %v7158 = vld [vmem:[%s609] sm:$0xff]
          %v7159 = vld [vmem:[%s609 + $0x8] sm:$0xff]
          %v7160 = vld [vmem:[%s609 + $0x10] sm:$0xff]
          %v7161 = vld [vmem:[%s609 + $0x18] sm:$0xff]
          %v7162 = vld [vmem:[%s618] sm:$0xff]
          %v7163 = vld [vmem:[%s618 + $0x8] sm:$0xff]
          %v7164 = vld [vmem:[%s618 + $0x10] sm:$0xff]
          %v7165 = vld [vmem:[%s618 + $0x18] sm:$0xff]
          %7167 = vset.pattern.permute.xlu0 0
          %7168 = vperm.xlu0 %7167, %v7162
          %v7169 = vpop.permute.xlu0 %7168
          %7172 = vset.pattern.permute.xlu0 0
          %7173 = vperm.xlu0 %7172, %v7163
          %v7174 = vpop.permute.xlu0 %7173
          %7177 = vset.pattern.permute.xlu0 0
          %7178 = vperm.xlu0 %7177, %v7164
          %v7179 = vpop.permute.xlu0 %7178
          %7182 = vset.pattern.permute.xlu0 0
          %7183 = vperm.xlu0 %7182, %v7165
          %v7184 = vpop.permute.xlu0 %7183
          %vm7186 = vcmask 523264
          %v7188 = vsel %vm7186, %v7158, 0
          %v7191 = vsel %vm7186, %v7159, 0
          %v7194 = vsel %vm7186, %v7160, 0
          %v7197 = vsel %vm7186, %v7161, 0
          %7199 = vmatprep.subr.mxu0 0.0
          %7200 = vmatpush1.msra.mxu0 0.0
          %7201 = vmatprep.subr.mxu0 0.0
          %7202 = vmatpush1.msra.mxu0 0.0
          %7203 = vmatprep.subr.mxu0 0.0
          %7204 = vmatpush1.msra.mxu0 0.0
          %7205 = vmatprep.subr.mxu0 0.0
          %7206 = vmatpush1.msra.mxu0 0.0
          %7207 = vmatprep.subr.mxu0 0.0
          %7208 = vmatpush1.msra.mxu0 0.0
          %7209 = vmatprep.subr.mxu0 0.0
          %7210 = vmatpush1.msra.mxu0 0.0
          %7211 = vmatprep.subr.mxu0 0.0
          %7212 = vmatpush1.msra.mxu0 0.0
          %7213 = vmatprep.subr.mxu0 0.0
          %7214 = vmatpush1.msra.mxu0 0.0
          %7215 = vmatprep.subr.mxu0 0.0
          %7216 = vmatpush1.msra.mxu0 %v7157
          %7217 = vmatprep.subr.mxu0 0.0
          %7218 = vmatpush1.msra.mxu0 %v7156
          %7219 = vmatprep.subr.mxu0 0.0
          %7220 = vmatpush1.msra.mxu0 %v7155
          %7221 = vmatprep.subr.mxu0 0.0
          %7222 = vmatpush1.msra.mxu0 %v7154
          %7223 = vmatprep.subr.mxu0 0.0
          %7224 = vmatpush1.msra.mxu0 %v7153
          %7225 = vmatprep.subr.mxu0 0.0
          %7226 = vmatpush1.msra.mxu0 %v7152
          %7227 = vmatprep.subr.mxu0 0.0
          %7228 = vmatpush1.msra.mxu0 %v7151
          %7229 = vmatprep.subr.mxu0 0.0
          %7230 = vmatpush1.msra.mxu0 %v7150
          %7231 = vmatprep.subr.mxu0 0.0
          %7232 = vmatpush2.msra.mxu0 0.0
          %7233 = vmatprep.subr.mxu0 0.0
          %7234 = vmatpush2.msra.mxu0 0.0
          %7235 = vmatprep.subr.mxu0 0.0
          %7236 = vmatpush2.msra.mxu0 0.0
          %7237 = vmatprep.subr.mxu0 0.0
          %7238 = vmatpush2.msra.mxu0 0.0
          %7239 = vmatprep.subr.mxu0 0.0
          %7240 = vmatpush2.msra.mxu0 0.0
          %7241 = vmatprep.subr.mxu0 0.0
          %7242 = vmatpush2.msra.mxu0 0.0
          %7243 = vmatprep.subr.mxu0 0.0
          %7244 = vmatpush2.msra.mxu0 0.0
          %7245 = vmatprep.subr.mxu0 0.0
          %7246 = vmatpush2.msra.mxu0 0.0
          %7247 = vmatprep.subr.mxu0 0.0
          %7248 = vmatpush2.msra.mxu0 0.0
          %7249 = vmatprep.subr.mxu0 0.0
          %7250 = vmatpush2.msra.mxu0 0.0
          %7251 = vmatprep.subr.mxu0 0.0
          %7252 = vmatpush2.msra.mxu0 0.0
          %7253 = vmatprep.subr.mxu0 0.0
          %7254 = vmatpush2.msra.mxu0 0.0
          %7255 = vmatprep.subr.mxu0 0.0
          %7256 = vmatpush2.msra.mxu0 0.0
          %7257 = vmatprep.subr.mxu0 0.0
          %7258 = vmatpush2.msra.mxu0 0.0
          %7259 = vmatprep.subr.mxu0 0.0
          %7260 = vmatpush2.msra.mxu0 0.0
          %7261 = vmatprep.subr.mxu0 0.0
          %7262 = vmatpush2.msra.mxu0 0.0
          %7263 = vmatprep.mubr.f32.mxu0 0.0
          %7264 = vmatmul.mubr.f32.gmra.mxu0 %v7188
          %v7265 = vpop.f32.mrf.mxu0
          %v7266 = vadd.f32 %v7169, %v7265
          %v7267 = vpop.f32.mrf.mxu0
          %7268 = vmatprep.mubr.f32.mxu0 0.0
          %7269 = vmatmul.mubr.f32.gmra.mxu0 %v7191
          %v7270 = vpop.f32.mrf.mxu0
          %v7271 = vadd.f32 %v7174, %v7270
          %v7272 = vpop.f32.mrf.mxu0
          %7273 = vmatprep.mubr.f32.mxu0 0.0
          %7274 = vmatmul.mubr.f32.gmra.mxu0 %v7194
          %v7275 = vpop.f32.mrf.mxu0
          %v7276 = vadd.f32 %v7179, %v7275
          %v7277 = vpop.f32.mrf.mxu0
          %7278 = vmatprep.mubr.f32.mxu0 0.0
          %7279 = vmatmul.mubr.f32.gmra.mxu0 %v7197
          %v7280 = vpop.f32.mrf.mxu0
          %v7281 = vadd.f32 %v7184, %v7280
          %v7282 = vpop.f32.mrf.mxu0
          %7283 = vdwg.mxu0
          %7284 = vset.pattern.permute.xlu0 5
          %7285 = vperm.xlu0 %7284, %v5913
          %v7286 = vpop.permute.xlu0 %7285
          %7288 = vset.pattern.permute.xlu0 5
          %7289 = vperm.xlu0 %7288, %v5914
          %v7290 = vpop.permute.xlu0 %7289
          %7292 = vset.pattern.permute.xlu0 5
          %7293 = vperm.xlu0 %7292, %v5915
          %v7294 = vpop.permute.xlu0 %7293
          %7296 = vset.pattern.permute.xlu0 5
          %7297 = vperm.xlu0 %7296, %v5916
          %v7298 = vpop.permute.xlu0 %7297
          %7300 = vset.pattern.permute.xlu0 5
          %7301 = vperm.xlu0 %7300, %v5917
          %v7302 = vpop.permute.xlu0 %7301
          %7304 = vset.pattern.permute.xlu0 5
          %7305 = vperm.xlu0 %7304, %v5918
          %v7306 = vpop.permute.xlu0 %7305
          %7308 = vset.pattern.permute.xlu0 5
          %7309 = vperm.xlu0 %7308, %v5919
          %v7310 = vpop.permute.xlu0 %7309
          %7312 = vset.pattern.permute.xlu0 5
          %7313 = vperm.xlu0 %7312, %v5920
          %v7314 = vpop.permute.xlu0 %7313
          %7316 = vset.pattern.permute.xlu0 5
          %7317 = vperm.xlu0 %7316, %v5921
          %v7318 = vpop.permute.xlu0 %7317
          %7320 = vset.pattern.permute.xlu0 5
          %7321 = vperm.xlu0 %7320, %v5922
          %v7322 = vpop.permute.xlu0 %7321
          %7324 = vset.pattern.permute.xlu0 5
          %7325 = vperm.xlu0 %7324, %v5923
          %v7326 = vpop.permute.xlu0 %7325
          %7328 = vset.pattern.permute.xlu0 5
          %7329 = vperm.xlu0 %7328, %v5924
          %v7330 = vpop.permute.xlu0 %7329
          %7332 = vset.pattern.permute.xlu0 5
          %7333 = vperm.xlu0 %7332, %v5925
          %v7334 = vpop.permute.xlu0 %7333
          %7336 = vset.pattern.permute.xlu0 5
          %7337 = vperm.xlu0 %7336, %v5926
          %v7338 = vpop.permute.xlu0 %7337
          %7340 = vset.pattern.permute.xlu0 5
          %7341 = vperm.xlu0 %7340, %v5927
          %v7342 = vpop.permute.xlu0 %7341
          %7344 = vset.pattern.permute.xlu0 5
          %7345 = vperm.xlu0 %7344, %v5928
          %v7346 = vpop.permute.xlu0 %7345
          %7348 = vset.pattern.permute.xlu0 5
          %7349 = vperm.xlu0 %7348, %v5929
          %v7350 = vpop.permute.xlu0 %7349
          %7352 = vset.pattern.permute.xlu0 5
          %7353 = vperm.xlu0 %7352, %v5930
          %v7354 = vpop.permute.xlu0 %7353
          %7356 = vset.pattern.permute.xlu0 5
          %7357 = vperm.xlu0 %7356, %v5931
          %v7358 = vpop.permute.xlu0 %7357
          %7360 = vset.pattern.permute.xlu0 5
          %7361 = vperm.xlu0 %7360, %v5932
          %v7362 = vpop.permute.xlu0 %7361
          %7364 = vset.pattern.permute.xlu0 5
          %7365 = vperm.xlu0 %7364, %v5933
          %v7366 = vpop.permute.xlu0 %7365
          %7368 = vset.pattern.permute.xlu0 5
          %7369 = vperm.xlu0 %7368, %v5934
          %v7370 = vpop.permute.xlu0 %7369
          %7372 = vset.pattern.permute.xlu0 5
          %7373 = vperm.xlu0 %7372, %v5935
          %v7374 = vpop.permute.xlu0 %7373
          %7376 = vset.pattern.permute.xlu0 5
          %7377 = vperm.xlu0 %7376, %v5936
          %v7378 = vpop.permute.xlu0 %7377
          %7380 = vset.pattern.permute.xlu0 5
          %7381 = vperm.xlu0 %7380, %v5937
          %v7382 = vpop.permute.xlu0 %7381
          %7384 = vset.pattern.permute.xlu0 5
          %7385 = vperm.xlu0 %7384, %v5938
          %v7386 = vpop.permute.xlu0 %7385
          %7388 = vset.pattern.permute.xlu0 5
          %7389 = vperm.xlu0 %7388, %v5939
          %v7390 = vpop.permute.xlu0 %7389
          %7392 = vset.pattern.permute.xlu0 5
          %7393 = vperm.xlu0 %7392, %v5940
          %v7394 = vpop.permute.xlu0 %7393
          %7396 = vset.pattern.permute.xlu0 5
          %7397 = vperm.xlu0 %7396, %v5941
          %v7398 = vpop.permute.xlu0 %7397
          %7400 = vset.pattern.permute.xlu0 5
          %7401 = vperm.xlu0 %7400, %v5942
          %v7402 = vpop.permute.xlu0 %7401
          %7404 = vset.pattern.permute.xlu0 5
          %7405 = vperm.xlu0 %7404, %v5943
          %v7406 = vpop.permute.xlu0 %7405
          %7408 = vset.pattern.permute.xlu0 5
          %7409 = vperm.xlu0 %7408, %v5944
          %v7410 = vpop.permute.xlu0 %7409
          %v7416 = vrot.slane %v7266, 1
          %v7417 = vrot.slane %v7266, 2
          %v7418 = vrot.slane %v7266, 3
          %v7419 = vrot.slane %v7266, 4
          %v7420 = vrot.slane %v7266, 5
          %v7421 = vrot.slane %v7266, 6
          %v7422 = vrot.slane %v7266, 7
          %v7423 = vrot.slane %v7271, 1
          %v7424 = vrot.slane %v7271, 2
          %v7425 = vrot.slane %v7271, 3
          %v7426 = vrot.slane %v7271, 4
          %v7427 = vrot.slane %v7271, 5
          %v7428 = vrot.slane %v7271, 6
          %v7429 = vrot.slane %v7271, 7
          %v7430 = vrot.slane %v7276, 1
          %v7431 = vrot.slane %v7276, 2
          %v7432 = vrot.slane %v7276, 3
          %v7433 = vrot.slane %v7276, 4
          %v7434 = vrot.slane %v7276, 5
          %v7435 = vrot.slane %v7276, 6
          %v7436 = vrot.slane %v7276, 7
          %v7437 = vrot.slane %v7281, 1
          %v7438 = vrot.slane %v7281, 2
          %v7439 = vrot.slane %v7281, 3
          %v7440 = vrot.slane %v7281, 4
          %v7441 = vrot.slane %v7281, 5
          %v7442 = vrot.slane %v7281, 6
          %v7443 = vrot.slane %v7281, 7
          %v7476 = vmul.f32 %v7286, %v7266
          %v7477 = vmul.f32 %v7290, %v7416
          %v7478 = vmul.f32 %v7294, %v7417
          %v7479 = vmul.f32 %v7298, %v7418
          %v7480 = vmul.f32 %v7302, %v7419
          %v7481 = vmul.f32 %v7306, %v7420
          %v7482 = vmul.f32 %v7310, %v7421
          %v7483 = vmul.f32 %v7314, %v7422
          %v7484 = vmul.f32 %v7318, %v7271
          %v7485 = vmul.f32 %v7322, %v7423
          %v7486 = vmul.f32 %v7326, %v7424
          %v7487 = vmul.f32 %v7330, %v7425
          %v7488 = vmul.f32 %v7334, %v7426
          %v7489 = vmul.f32 %v7338, %v7427
          %v7490 = vmul.f32 %v7342, %v7428
          %v7491 = vmul.f32 %v7346, %v7429
          %v7492 = vmul.f32 %v7350, %v7276
          %v7493 = vmul.f32 %v7354, %v7430
          %v7494 = vmul.f32 %v7358, %v7431
          %v7495 = vmul.f32 %v7362, %v7432
          %v7496 = vmul.f32 %v7366, %v7433
          %v7497 = vmul.f32 %v7370, %v7434
          %v7498 = vmul.f32 %v7374, %v7435
          %v7499 = vmul.f32 %v7378, %v7436
          %v7500 = vmul.f32 %v7382, %v7281
          %v7501 = vmul.f32 %v7386, %v7437
          %v7502 = vmul.f32 %v7390, %v7438
          %v7503 = vmul.f32 %v7394, %v7439
          %v7504 = vmul.f32 %v7398, %v7440
          %v7505 = vmul.f32 %v7402, %v7441
          %v7506 = vmul.f32 %v7406, %v7442
          %v7507 = vmul.f32 %v7410, %v7443
          %v7508 = vadd.f32 %v5945, %v7476
          %v7509 = vadd.f32 %v5946, %v7477
          %v7510 = vadd.f32 %v5947, %v7478
          %v7511 = vadd.f32 %v5948, %v7479
          %v7512 = vadd.f32 %v5949, %v7480
          %v7513 = vadd.f32 %v5950, %v7481
          %v7514 = vadd.f32 %v5951, %v7482
          %v7515 = vadd.f32 %v5952, %v7483
          %v7516 = vadd.f32 %v5953, %v7484
          %v7517 = vadd.f32 %v5954, %v7485
          %v7518 = vadd.f32 %v5955, %v7486
          %v7519 = vadd.f32 %v5956, %v7487
          %v7520 = vadd.f32 %v5957, %v7488
          %v7521 = vadd.f32 %v5958, %v7489
          %v7522 = vadd.f32 %v5959, %v7490
          %v7523 = vadd.f32 %v5960, %v7491
          %v7524 = vadd.f32 %v5961, %v7492
          %v7525 = vadd.f32 %v5962, %v7493
          %v7526 = vadd.f32 %v5963, %v7494
          %v7527 = vadd.f32 %v5964, %v7495
          %v7528 = vadd.f32 %v5965, %v7496
          %v7529 = vadd.f32 %v5966, %v7497
          %v7530 = vadd.f32 %v5967, %v7498
          %v7531 = vadd.f32 %v5968, %v7499
          %v7532 = vadd.f32 %v5969, %v7500
          %v7533 = vadd.f32 %v5970, %v7501
          %v7534 = vadd.f32 %v5971, %v7502
          %v7535 = vadd.f32 %v5972, %v7503
          %v7536 = vadd.f32 %v5973, %v7504
          %v7537 = vadd.f32 %v5974, %v7505
          %v7538 = vadd.f32 %v5975, %v7506
          %v7539 = vadd.f32 %v5976, %v7507
          %7540 = vst [vmem:[#allocation2] sm:$0x1] %v7508
          %7541 = vst [vmem:[#allocation2 + $0x2] sm:$0x1] %v7509
          %7542 = vst [vmem:[#allocation2 + $0x4] sm:$0x1] %v7510
          %7543 = vst [vmem:[#allocation2 + $0x6] sm:$0x1] %v7511
          %7544 = vst [vmem:[#allocation2 + $0x8] sm:$0x1] %v7512
          %7545 = vst [vmem:[#allocation2 + $0xa] sm:$0x1] %v7513
          %7546 = vst [vmem:[#allocation2 + $0xc] sm:$0x1] %v7514
          %7547 = vst [vmem:[#allocation2 + $0xe] sm:$0x1] %v7515
          %7548 = vst [vmem:[#allocation2 + $0x10] sm:$0x1] %v7516
          %7549 = vst [vmem:[#allocation2 + $0x12] sm:$0x1] %v7517
          %7550 = vst [vmem:[#allocation2 + $0x14] sm:$0x1] %v7518
          %7551 = vst [vmem:[#allocation2 + $0x16] sm:$0x1] %v7519
          %7552 = vst [vmem:[#allocation2 + $0x18] sm:$0x1] %v7520
          %7553 = vst [vmem:[#allocation2 + $0x1a] sm:$0x1] %v7521
          %7554 = vst [vmem:[#allocation2 + $0x1c] sm:$0x1] %v7522
          %7555 = vst [vmem:[#allocation2 + $0x1e] sm:$0x1] %v7523
          %7556 = vst [vmem:[#allocation2 + $0x20] sm:$0x1] %v7524
          %7557 = vst [vmem:[#allocation2 + $0x22] sm:$0x1] %v7525
          %7558 = vst [vmem:[#allocation2 + $0x24] sm:$0x1] %v7526
          %7559 = vst [vmem:[#allocation2 + $0x26] sm:$0x1] %v7527
          %7560 = vst [vmem:[#allocation2 + $0x28] sm:$0x1] %v7528
          %7561 = vst [vmem:[#allocation2 + $0x2a] sm:$0x1] %v7529
          %7562 = vst [vmem:[#allocation2 + $0x2c] sm:$0x1] %v7530
          %7563 = vst [vmem:[#allocation2 + $0x2e] sm:$0x1] %v7531
          %7564 = vst [vmem:[#allocation2 + $0x30] sm:$0x1] %v7532
          %7565 = vst [vmem:[#allocation2 + $0x32] sm:$0x1] %v7533
          %7566 = vst [vmem:[#allocation2 + $0x34] sm:$0x1] %v7534
          %7567 = vst [vmem:[#allocation2 + $0x36] sm:$0x1] %v7535
          %7568 = vst [vmem:[#allocation2 + $0x38] sm:$0x1] %v7536
          %7569 = vst [vmem:[#allocation2 + $0x3a] sm:$0x1] %v7537
          %7570 = vst [vmem:[#allocation2 + $0x3c] sm:$0x1] %v7538
          %7571 = vst [vmem:[#allocation2 + $0x3e] sm:$0x1] %v7539
          %v7572 = vld [vmem:[#allocation2 + $0x1] sm:$0x1]
          %v7573 = vld [vmem:[#allocation2 + $0x3] sm:$0x1]
          %v7574 = vld [vmem:[#allocation2 + $0x5] sm:$0x1]
          %v7575 = vld [vmem:[#allocation2 + $0x7] sm:$0x1]
          %v7576 = vld [vmem:[#allocation2 + $0x9] sm:$0x1]
          %v7577 = vld [vmem:[#allocation2 + $0xb] sm:$0x1]
          %v7578 = vld [vmem:[#allocation2 + $0xd] sm:$0x1]
          %v7579 = vld [vmem:[#allocation2 + $0xf] sm:$0x1]
          %v7580 = vld [vmem:[#allocation2 + $0x11] sm:$0x1]
          %v7581 = vld [vmem:[#allocation2 + $0x13] sm:$0x1]
          %v7582 = vld [vmem:[#allocation2 + $0x15] sm:$0x1]
          %v7583 = vld [vmem:[#allocation2 + $0x17] sm:$0x1]
          %v7584 = vld [vmem:[#allocation2 + $0x19] sm:$0x1]
          %v7585 = vld [vmem:[#allocation2 + $0x1b] sm:$0x1]
          %v7586 = vld [vmem:[#allocation2 + $0x1d] sm:$0x1]
          %v7587 = vld [vmem:[#allocation2 + $0x1f] sm:$0x1]
          %v7588 = vld [vmem:[#allocation2 + $0x21] sm:$0x1]
          %v7589 = vld [vmem:[#allocation2 + $0x23] sm:$0x1]
          %v7590 = vld [vmem:[#allocation2 + $0x25] sm:$0x1]
          %v7591 = vld [vmem:[#allocation2 + $0x27] sm:$0x1]
          %v7592 = vld [vmem:[#allocation2 + $0x29] sm:$0x1]
          %v7593 = vld [vmem:[#allocation2 + $0x2b] sm:$0x1]
          %v7594 = vld [vmem:[#allocation2 + $0x2d] sm:$0x1]
          %v7595 = vld [vmem:[#allocation2 + $0x2f] sm:$0x1]
          %v7596 = vld [vmem:[#allocation2 + $0x31] sm:$0x1]
          %v7597 = vld [vmem:[#allocation2 + $0x33] sm:$0x1]
          %v7598 = vld [vmem:[#allocation2 + $0x35] sm:$0x1]
          %v7599 = vld [vmem:[#allocation2 + $0x37] sm:$0x1]
          %v7600 = vld [vmem:[#allocation2 + $0x39] sm:$0x1]
          %v7601 = vld [vmem:[#allocation2 + $0x3b] sm:$0x1]
          %v7602 = vld [vmem:[#allocation2 + $0x3d] sm:$0x1]
          %v7603 = vld [vmem:[#allocation2 + $0x3f] sm:$0x1]
          %v7636 = vrot.slane %v7573, 7
          %v7637 = vsel %vm6010, %v7636, %v7572
          %v7638 = vrot.slane %v7574, 6
          %v7639 = vsel %vm6013, %v7638, %v7637
          %v7640 = vrot.slane %v7575, 5
          %v7641 = vsel %vm6016, %v7640, %v7639
          %v7642 = vrot.slane %v7576, 4
          %v7643 = vsel %vm6019, %v7642, %v7641
          %v7644 = vrot.slane %v7577, 3
          %v7645 = vsel %vm6022, %v7644, %v7643
          %v7646 = vrot.slane %v7578, 2
          %v7647 = vsel %vm6025, %v7646, %v7645
          %v7648 = vrot.slane %v7579, 1
          %v7649 = vsel %vm6028, %v7648, %v7647
          %v7650 = vrot.slane %v7581, 7
          %v7651 = vsel %vm6010, %v7650, %v7580
          %v7652 = vrot.slane %v7582, 6
          %v7653 = vsel %vm6013, %v7652, %v7651
          %v7654 = vrot.slane %v7583, 5
          %v7655 = vsel %vm6016, %v7654, %v7653
          %v7656 = vrot.slane %v7584, 4
          %v7657 = vsel %vm6019, %v7656, %v7655
          %v7658 = vrot.slane %v7585, 3
          %v7659 = vsel %vm6022, %v7658, %v7657
          %v7660 = vrot.slane %v7586, 2
          %v7661 = vsel %vm6025, %v7660, %v7659
          %v7662 = vrot.slane %v7587, 1
          %v7663 = vsel %vm6028, %v7662, %v7661
          %v7664 = vrot.slane %v7589, 7
          %v7665 = vsel %vm6010, %v7664, %v7588
          %v7666 = vrot.slane %v7590, 6
          %v7667 = vsel %vm6013, %v7666, %v7665
          %v7668 = vrot.slane %v7591, 5
          %v7669 = vsel %vm6016, %v7668, %v7667
          %v7670 = vrot.slane %v7592, 4
          %v7671 = vsel %vm6019, %v7670, %v7669
          %v7672 = vrot.slane %v7593, 3
          %v7673 = vsel %vm6022, %v7672, %v7671
          %v7674 = vrot.slane %v7594, 2
          %v7675 = vsel %vm6025, %v7674, %v7673
          %v7676 = vrot.slane %v7595, 1
          %v7677 = vsel %vm6028, %v7676, %v7675
          %v7678 = vrot.slane %v7597, 7
          %v7679 = vsel %vm6010, %v7678, %v7596
          %v7680 = vrot.slane %v7598, 6
          %v7681 = vsel %vm6013, %v7680, %v7679
          %v7682 = vrot.slane %v7599, 5
          %v7683 = vsel %vm6016, %v7682, %v7681
          %v7684 = vrot.slane %v7600, 4
          %v7685 = vsel %vm6019, %v7684, %v7683
          %v7686 = vrot.slane %v7601, 3
          %v7687 = vsel %vm6022, %v7686, %v7685
          %v7688 = vrot.slane %v7602, 2
          %v7689 = vsel %vm6025, %v7688, %v7687
          %v7690 = vrot.slane %v7603, 1
          %v7691 = vsel %vm6028, %v7690, %v7689
          %7696 = vadd.xlane.f32.xlu0 %v7649
          %v7697 = vpop.xlane.xlu0 %7696
          %7698 = vadd.xlane.f32.xlu0 %v7663
          %v7699 = vpop.xlane.xlu0 %7698
          %7700 = vadd.xlane.f32.xlu0 %v7677
          %v7701 = vpop.xlane.xlu0 %7700
          %7702 = vadd.xlane.f32.xlu0 %v7691
          %v7703 = vpop.xlane.xlu0 %7702
          %v7704 = vmul.f32 %v7697, %v1652
          %v7705 = vmul.f32 %v7699, %v1652
          %v7706 = vmul.f32 %v7701, %v1652
          %v7707 = vmul.f32 %v7703, %v1652
          %v7712 = vrot.slane %v7704, 1
          %v7713 = vrot.slane %v7704, 2
          %v7714 = vrot.slane %v7704, 3
          %v7715 = vrot.slane %v7704, 4
          %v7716 = vrot.slane %v7704, 5
          %v7717 = vrot.slane %v7704, 6
          %v7718 = vrot.slane %v7704, 7
          %v7719 = vrot.slane %v7705, 1
          %v7720 = vrot.slane %v7705, 2
          %v7721 = vrot.slane %v7705, 3
          %v7722 = vrot.slane %v7705, 4
          %v7723 = vrot.slane %v7705, 5
          %v7724 = vrot.slane %v7705, 6
          %v7725 = vrot.slane %v7705, 7
          %v7726 = vrot.slane %v7706, 1
          %v7727 = vrot.slane %v7706, 2
          %v7728 = vrot.slane %v7706, 3
          %v7729 = vrot.slane %v7706, 4
          %v7730 = vrot.slane %v7706, 5
          %v7731 = vrot.slane %v7706, 6
          %v7732 = vrot.slane %v7706, 7
          %v7733 = vrot.slane %v7707, 1
          %v7734 = vrot.slane %v7707, 2
          %v7735 = vrot.slane %v7707, 3
          %v7736 = vrot.slane %v7707, 4
          %v7737 = vrot.slane %v7707, 5
          %v7738 = vrot.slane %v7707, 6
          %v7739 = vrot.slane %v7707, 7
          %v7772 = vsub.f32 %v7572, %v7704
          %v7773 = vsub.f32 %v7573, %v7712
          %v7774 = vsub.f32 %v7574, %v7713
          %v7775 = vsub.f32 %v7575, %v7714
          %v7776 = vsub.f32 %v7576, %v7715
          %v7777 = vsub.f32 %v7577, %v7716
          %v7778 = vsub.f32 %v7578, %v7717
          %v7779 = vsub.f32 %v7579, %v7718
          %v7780 = vsub.f32 %v7580, %v7705
          %v7781 = vsub.f32 %v7581, %v7719
          %v7782 = vsub.f32 %v7582, %v7720
          %v7783 = vsub.f32 %v7583, %v7721
          %v7784 = vsub.f32 %v7584, %v7722
          %v7785 = vsub.f32 %v7585, %v7723
          %v7786 = vsub.f32 %v7586, %v7724
          %v7787 = vsub.f32 %v7587, %v7725
          %v7788 = vsub.f32 %v7588, %v7706
          %v7789 = vsub.f32 %v7589, %v7726
          %v7790 = vsub.f32 %v7590, %v7727
          %v7791 = vsub.f32 %v7591, %v7728
          %v7792 = vsub.f32 %v7592, %v7729
          %v7793 = vsub.f32 %v7593, %v7730
          %v7794 = vsub.f32 %v7594, %v7731
          %v7795 = vsub.f32 %v7595, %v7732
          %v7796 = vsub.f32 %v7596, %v7707
          %v7797 = vsub.f32 %v7597, %v7733
          %v7798 = vsub.f32 %v7598, %v7734
          %v7799 = vsub.f32 %v7599, %v7735
          %v7800 = vsub.f32 %v7600, %v7736
          %v7801 = vsub.f32 %v7601, %v7737
          %v7802 = vsub.f32 %v7602, %v7738
          %v7803 = vsub.f32 %v7603, %v7739
          %v7804 = vmul.f32 %v7772, %v7772
          %v7805 = vmul.f32 %v7773, %v7773
          %v7806 = vmul.f32 %v7774, %v7774
          %v7807 = vmul.f32 %v7775, %v7775
          %v7808 = vmul.f32 %v7776, %v7776
          %v7809 = vmul.f32 %v7777, %v7777
          %v7810 = vmul.f32 %v7778, %v7778
          %v7811 = vmul.f32 %v7779, %v7779
          %v7812 = vmul.f32 %v7780, %v7780
          %v7813 = vmul.f32 %v7781, %v7781
          %v7814 = vmul.f32 %v7782, %v7782
          %v7815 = vmul.f32 %v7783, %v7783
          %v7816 = vmul.f32 %v7784, %v7784
          %v7817 = vmul.f32 %v7785, %v7785
          %v7818 = vmul.f32 %v7786, %v7786
          %v7819 = vmul.f32 %v7787, %v7787
          %v7820 = vmul.f32 %v7788, %v7788
          %v7821 = vmul.f32 %v7789, %v7789
          %v7822 = vmul.f32 %v7790, %v7790
          %v7823 = vmul.f32 %v7791, %v7791
          %v7824 = vmul.f32 %v7792, %v7792
          %v7825 = vmul.f32 %v7793, %v7793
          %v7826 = vmul.f32 %v7794, %v7794
          %v7827 = vmul.f32 %v7795, %v7795
          %v7828 = vmul.f32 %v7796, %v7796
          %v7829 = vmul.f32 %v7797, %v7797
          %v7830 = vmul.f32 %v7798, %v7798
          %v7831 = vmul.f32 %v7799, %v7799
          %v7832 = vmul.f32 %v7800, %v7800
          %v7833 = vmul.f32 %v7801, %v7801
          %v7834 = vmul.f32 %v7802, %v7802
          %v7835 = vmul.f32 %v7803, %v7803
          %v7868 = vrot.slane %v7805, 7
          %v7869 = vsel %vm6010, %v7868, %v7804
          %v7870 = vrot.slane %v7806, 6
          %v7871 = vsel %vm6013, %v7870, %v7869
          %v7872 = vrot.slane %v7807, 5
          %v7873 = vsel %vm6016, %v7872, %v7871
          %v7874 = vrot.slane %v7808, 4
          %v7875 = vsel %vm6019, %v7874, %v7873
          %v7876 = vrot.slane %v7809, 3
          %v7877 = vsel %vm6022, %v7876, %v7875
          %v7878 = vrot.slane %v7810, 2
          %v7879 = vsel %vm6025, %v7878, %v7877
          %v7880 = vrot.slane %v7811, 1
          %v7881 = vsel %vm6028, %v7880, %v7879
          %v7882 = vrot.slane %v7813, 7
          %v7883 = vsel %vm6010, %v7882, %v7812
          %v7884 = vrot.slane %v7814, 6
          %v7885 = vsel %vm6013, %v7884, %v7883
          %v7886 = vrot.slane %v7815, 5
          %v7887 = vsel %vm6016, %v7886, %v7885
          %v7888 = vrot.slane %v7816, 4
          %v7889 = vsel %vm6019, %v7888, %v7887
          %v7890 = vrot.slane %v7817, 3
          %v7891 = vsel %vm6022, %v7890, %v7889
          %v7892 = vrot.slane %v7818, 2
          %v7893 = vsel %vm6025, %v7892, %v7891
          %v7894 = vrot.slane %v7819, 1
          %v7895 = vsel %vm6028, %v7894, %v7893
          %v7896 = vrot.slane %v7821, 7
          %v7897 = vsel %vm6010, %v7896, %v7820
          %v7898 = vrot.slane %v7822, 6
          %v7899 = vsel %vm6013, %v7898, %v7897
          %v7900 = vrot.slane %v7823, 5
          %v7901 = vsel %vm6016, %v7900, %v7899
          %v7902 = vrot.slane %v7824, 4
          %v7903 = vsel %vm6019, %v7902, %v7901
          %v7904 = vrot.slane %v7825, 3
          %v7905 = vsel %vm6022, %v7904, %v7903
          %v7906 = vrot.slane %v7826, 2
          %v7907 = vsel %vm6025, %v7906, %v7905
          %v7908 = vrot.slane %v7827, 1
          %v7909 = vsel %vm6028, %v7908, %v7907
          %v7910 = vrot.slane %v7829, 7
          %v7911 = vsel %vm6010, %v7910, %v7828
          %v7912 = vrot.slane %v7830, 6
          %v7913 = vsel %vm6013, %v7912, %v7911
          %v7914 = vrot.slane %v7831, 5
          %v7915 = vsel %vm6016, %v7914, %v7913
          %v7916 = vrot.slane %v7832, 4
          %v7917 = vsel %vm6019, %v7916, %v7915
          %v7918 = vrot.slane %v7833, 3
          %v7919 = vsel %vm6022, %v7918, %v7917
          %v7920 = vrot.slane %v7834, 2
          %v7921 = vsel %vm6025, %v7920, %v7919
          %v7922 = vrot.slane %v7835, 1
          %v7923 = vsel %vm6028, %v7922, %v7921
          %7928 = vadd.xlane.f32.xlu0 %v7881
          %v7929 = vpop.xlane.xlu0 %7928
          %7930 = vadd.xlane.f32.xlu0 %v7895
          %v7931 = vpop.xlane.xlu0 %7930
          %7932 = vadd.xlane.f32.xlu0 %v7909
          %v7933 = vpop.xlane.xlu0 %7932
          %7934 = vadd.xlane.f32.xlu0 %v7923
          %v7935 = vpop.xlane.xlu0 %7934
          %v7936 = vmul.f32 %v7929, %v1652
          %v7937 = vmul.f32 %v7931, %v1652
          %v7938 = vmul.f32 %v7933, %v1652
          %v7939 = vmul.f32 %v7935, %v1652
          %v7940 = vadd.f32 %v7936, 1e-05
          %v7941 = vadd.f32 %v7937, 1e-05
          %v7942 = vadd.f32 %v7938, 1e-05
          %v7943 = vadd.f32 %v7939, 1e-05
          %v7944 = vrsqrt.pop %v7940
          %v7945 = vrsqrt.pop %v7941
          %v7946 = vrsqrt.pop %v7942
          %v7947 = vrsqrt.pop %v7943
          %v7952 = vrot.slane %v7944, 1
          %v7953 = vrot.slane %v7944, 2
          %v7954 = vrot.slane %v7944, 3
          %v7955 = vrot.slane %v7944, 4
          %v7956 = vrot.slane %v7944, 5
          %v7957 = vrot.slane %v7944, 6
          %v7958 = vrot.slane %v7944, 7
          %v7959 = vrot.slane %v7945, 1
          %v7960 = vrot.slane %v7945, 2
          %v7961 = vrot.slane %v7945, 3
          %v7962 = vrot.slane %v7945, 4
          %v7963 = vrot.slane %v7945, 5
          %v7964 = vrot.slane %v7945, 6
          %v7965 = vrot.slane %v7945, 7
          %v7966 = vrot.slane %v7946, 1
          %v7967 = vrot.slane %v7946, 2
          %v7968 = vrot.slane %v7946, 3
          %v7969 = vrot.slane %v7946, 4
          %v7970 = vrot.slane %v7946, 5
          %v7971 = vrot.slane %v7946, 6
          %v7972 = vrot.slane %v7946, 7
          %v7973 = vrot.slane %v7947, 1
          %v7974 = vrot.slane %v7947, 2
          %v7975 = vrot.slane %v7947, 3
          %v7976 = vrot.slane %v7947, 4
          %v7977 = vrot.slane %v7947, 5
          %v7978 = vrot.slane %v7947, 6
          %v7979 = vrot.slane %v7947, 7
          %v8012 = vmul.f32 %v7772, %v7944
          %v8013 = vmul.f32 %v7773, %v7952
          %v8014 = vmul.f32 %v7774, %v7953
          %v8015 = vmul.f32 %v7775, %v7954
          %v8016 = vmul.f32 %v7776, %v7955
          %v8017 = vmul.f32 %v7777, %v7956
          %v8018 = vmul.f32 %v7778, %v7957
          %v8019 = vmul.f32 %v7779, %v7958
          %v8020 = vmul.f32 %v7780, %v7945
          %v8021 = vmul.f32 %v7781, %v7959
          %v8022 = vmul.f32 %v7782, %v7960
          %v8023 = vmul.f32 %v7783, %v7961
          %v8024 = vmul.f32 %v7784, %v7962
          %v8025 = vmul.f32 %v7785, %v7963
          %v8026 = vmul.f32 %v7786, %v7964
          %v8027 = vmul.f32 %v7787, %v7965
          %v8028 = vmul.f32 %v7788, %v7946
          %v8029 = vmul.f32 %v7789, %v7966
          %v8030 = vmul.f32 %v7790, %v7967
          %v8031 = vmul.f32 %v7791, %v7968
          %v8032 = vmul.f32 %v7792, %v7969
          %v8033 = vmul.f32 %v7793, %v7970
          %v8034 = vmul.f32 %v7794, %v7971
          %v8035 = vmul.f32 %v7795, %v7972
          %v8036 = vmul.f32 %v7796, %v7947
          %v8037 = vmul.f32 %v7797, %v7973
          %v8038 = vmul.f32 %v7798, %v7974
          %v8039 = vmul.f32 %v7799, %v7975
          %v8040 = vmul.f32 %v7800, %v7976
          %v8041 = vmul.f32 %v7801, %v7977
          %v8042 = vmul.f32 %v7802, %v7978
          %v8043 = vmul.f32 %v7803, %v7979
          %v8044 = vrot.slane %v6459, 1
          %v8045 = vrot.slane %v6464, 1
          %v8046 = vrot.slane %v6469, 1
          %v8047 = vrot.slane %v6474, 1
          %v8048 = vrot.slane %v6479, 1
          %v8049 = vrot.slane %v6484, 1
          %v8050 = vrot.slane %v6489, 1
          %v8051 = vrot.slane %v6494, 1
          %v8052 = vrot.slane %v6499, 1
          %v8053 = vrot.slane %v6504, 1
          %v8054 = vrot.slane %v6509, 1
          %v8055 = vrot.slane %v6514, 1
          %v8056 = vrot.slane %v6519, 1
          %v8057 = vrot.slane %v6524, 1
          %v8058 = vrot.slane %v6529, 1
          %v8059 = vrot.slane %v6534, 1
          %v8060 = vrot.slane %v6539, 1
          %v8061 = vrot.slane %v6544, 1
          %v8062 = vrot.slane %v6549, 1
          %v8063 = vrot.slane %v6554, 1
          %v8064 = vrot.slane %v6559, 1
          %v8065 = vrot.slane %v6564, 1
          %v8066 = vrot.slane %v6569, 1
          %v8067 = vrot.slane %v6574, 1
          %v8068 = vrot.slane %v6579, 1
          %v8069 = vrot.slane %v6584, 1
          %v8070 = vrot.slane %v6589, 1
          %v8071 = vrot.slane %v6594, 1
          %v8072 = vrot.slane %v6599, 1
          %v8073 = vrot.slane %v6604, 1
          %v8074 = vrot.slane %v6609, 1
          %v8075 = vrot.slane %v6614, 1
          %v8108 = vmul.f32 %v8012, %v8044
          %v8109 = vmul.f32 %v8013, %v8045
          %v8110 = vmul.f32 %v8014, %v8046
          %v8111 = vmul.f32 %v8015, %v8047
          %v8112 = vmul.f32 %v8016, %v8048
          %v8113 = vmul.f32 %v8017, %v8049
          %v8114 = vmul.f32 %v8018, %v8050
          %v8115 = vmul.f32 %v8019, %v8051
          %v8116 = vmul.f32 %v8020, %v8052
          %v8117 = vmul.f32 %v8021, %v8053
          %v8118 = vmul.f32 %v8022, %v8054
          %v8119 = vmul.f32 %v8023, %v8055
          %v8120 = vmul.f32 %v8024, %v8056
          %v8121 = vmul.f32 %v8025, %v8057
          %v8122 = vmul.f32 %v8026, %v8058
          %v8123 = vmul.f32 %v8027, %v8059
          %v8124 = vmul.f32 %v8028, %v8060
          %v8125 = vmul.f32 %v8029, %v8061
          %v8126 = vmul.f32 %v8030, %v8062
          %v8127 = vmul.f32 %v8031, %v8063
          %v8128 = vmul.f32 %v8032, %v8064
          %v8129 = vmul.f32 %v8033, %v8065
          %v8130 = vmul.f32 %v8034, %v8066
          %v8131 = vmul.f32 %v8035, %v8067
          %v8132 = vmul.f32 %v8036, %v8068
          %v8133 = vmul.f32 %v8037, %v8069
          %v8134 = vmul.f32 %v8038, %v8070
          %v8135 = vmul.f32 %v8039, %v8071
          %v8136 = vmul.f32 %v8040, %v8072
          %v8137 = vmul.f32 %v8041, %v8073
          %v8138 = vmul.f32 %v8042, %v8074
          %v8139 = vmul.f32 %v8043, %v8075
          %v8140 = vrot.slane %v6651, 1
          %v8141 = vrot.slane %v6656, 1
          %v8142 = vrot.slane %v6661, 1
          %v8143 = vrot.slane %v6666, 1
          %v8144 = vrot.slane %v6671, 1
          %v8145 = vrot.slane %v6676, 1
          %v8146 = vrot.slane %v6681, 1
          %v8147 = vrot.slane %v6686, 1
          %v8148 = vrot.slane %v6691, 1
          %v8149 = vrot.slane %v6696, 1
          %v8150 = vrot.slane %v6701, 1
          %v8151 = vrot.slane %v6706, 1
          %v8152 = vrot.slane %v6711, 1
          %v8153 = vrot.slane %v6716, 1
          %v8154 = vrot.slane %v6721, 1
          %v8155 = vrot.slane %v6726, 1
          %v8156 = vrot.slane %v6731, 1
          %v8157 = vrot.slane %v6736, 1
          %v8158 = vrot.slane %v6741, 1
          %v8159 = vrot.slane %v6746, 1
          %v8160 = vrot.slane %v6751, 1
          %v8161 = vrot.slane %v6756, 1
          %v8162 = vrot.slane %v6761, 1
          %v8163 = vrot.slane %v6766, 1
          %v8164 = vrot.slane %v6771, 1
          %v8165 = vrot.slane %v6776, 1
          %v8166 = vrot.slane %v6781, 1
          %v8167 = vrot.slane %v6786, 1
          %v8168 = vrot.slane %v6791, 1
          %v8169 = vrot.slane %v6796, 1
          %v8170 = vrot.slane %v6801, 1
          %v8171 = vrot.slane %v6806, 1
          %v8204 = vadd.f32 %v8108, %v8140
          %v8205 = vadd.f32 %v8109, %v8141
          %v8206 = vadd.f32 %v8110, %v8142
          %v8207 = vadd.f32 %v8111, %v8143
          %v8208 = vadd.f32 %v8112, %v8144
          %v8209 = vadd.f32 %v8113, %v8145
          %v8210 = vadd.f32 %v8114, %v8146
          %v8211 = vadd.f32 %v8115, %v8147
          %v8212 = vadd.f32 %v8116, %v8148
          %v8213 = vadd.f32 %v8117, %v8149
          %v8214 = vadd.f32 %v8118, %v8150
          %v8215 = vadd.f32 %v8119, %v8151
          %v8216 = vadd.f32 %v8120, %v8152
          %v8217 = vadd.f32 %v8121, %v8153
          %v8218 = vadd.f32 %v8122, %v8154
          %v8219 = vadd.f32 %v8123, %v8155
          %v8220 = vadd.f32 %v8124, %v8156
          %v8221 = vadd.f32 %v8125, %v8157
          %v8222 = vadd.f32 %v8126, %v8158
          %v8223 = vadd.f32 %v8127, %v8159
          %v8224 = vadd.f32 %v8128, %v8160
          %v8225 = vadd.f32 %v8129, %v8161
          %v8226 = vadd.f32 %v8130, %v8162
          %v8227 = vadd.f32 %v8131, %v8163
          %v8228 = vadd.f32 %v8132, %v8164
          %v8229 = vadd.f32 %v8133, %v8165
          %v8230 = vadd.f32 %v8134, %v8166
          %v8231 = vadd.f32 %v8135, %v8167
          %v8232 = vadd.f32 %v8136, %v8168
          %v8233 = vadd.f32 %v8137, %v8169
          %v8234 = vadd.f32 %v8138, %v8170
          %v8235 = vadd.f32 %v8139, %v8171
          %v8236 = vld [vmem:[%s591] sm:$0xff]
          %v8237 = vld [vmem:[%s591 + $0x8] sm:$0xff]
          %v8238 = vld [vmem:[%s591 + $0x10] sm:$0xff]
          %v8239 = vld [vmem:[%s591 + $0x18] sm:$0xff]
          %v8240 = vld [vmem:[%s591 + $0x20] sm:$0xff]
          %v8241 = vld [vmem:[%s591 + $0x28] sm:$0xff]
          %v8242 = vld [vmem:[%s591 + $0x30] sm:$0xff]
          %v8243 = vld [vmem:[%s591 + $0x38] sm:$0xff]
          %v8244 = vld [vmem:[%s600] sm:$0xff]
          %v8245 = vld [vmem:[%s600 + $0x8] sm:$0xff]
          %v8246 = vld [vmem:[%s600 + $0x10] sm:$0xff]
          %v8247 = vld [vmem:[%s600 + $0x18] sm:$0xff]
          %v8248 = vld [vmem:[%s600 + $0x20] sm:$0xff]
          %v8249 = vld [vmem:[%s600 + $0x28] sm:$0xff]
          %v8250 = vld [vmem:[%s600 + $0x30] sm:$0xff]
          %v8251 = vld [vmem:[%s600 + $0x38] sm:$0xff]
          %8253 = vset.pattern.permute.xlu0 0
          %8254 = vperm.xlu0 %8253, %v8244
          %v8255 = vpop.permute.xlu0 %8254
          %8258 = vset.pattern.permute.xlu0 0
          %8259 = vperm.xlu0 %8258, %v8245
          %v8260 = vpop.permute.xlu0 %8259
          %8263 = vset.pattern.permute.xlu0 0
          %8264 = vperm.xlu0 %8263, %v8246
          %v8265 = vpop.permute.xlu0 %8264
          %8268 = vset.pattern.permute.xlu0 0
          %8269 = vperm.xlu0 %8268, %v8247
          %v8270 = vpop.permute.xlu0 %8269
          %8273 = vset.pattern.permute.xlu0 0
          %8274 = vperm.xlu0 %8273, %v8248
          %v8275 = vpop.permute.xlu0 %8274
          %8278 = vset.pattern.permute.xlu0 0
          %8279 = vperm.xlu0 %8278, %v8249
          %v8280 = vpop.permute.xlu0 %8279
          %8283 = vset.pattern.permute.xlu0 0
          %8284 = vperm.xlu0 %8283, %v8250
          %v8285 = vpop.permute.xlu0 %8284
          %8288 = vset.pattern.permute.xlu0 0
          %8289 = vperm.xlu0 %8288, %v8251
          %v8290 = vpop.permute.xlu0 %8289
          %v8324 = vrot.slane %v8205, 7
          %v8325 = vsel %vm6010, %v8324, %v8204
          %v8326 = vrot.slane %v8206, 6
          %v8327 = vsel %vm6013, %v8326, %v8325
          %v8328 = vrot.slane %v8207, 5
          %v8329 = vsel %vm6016, %v8328, %v8327
          %v8330 = vrot.slane %v8208, 4
          %v8331 = vsel %vm6019, %v8330, %v8329
          %v8332 = vrot.slane %v8209, 3
          %v8333 = vsel %vm6022, %v8332, %v8331
          %v8334 = vrot.slane %v8210, 2
          %v8335 = vsel %vm6025, %v8334, %v8333
          %v8336 = vrot.slane %v8211, 1
          %v8337 = vsel %vm6028, %v8336, %v8335
          %v8338 = vrot.slane %v8213, 7
          %v8339 = vsel %vm6010, %v8338, %v8212
          %v8340 = vrot.slane %v8214, 6
          %v8341 = vsel %vm6013, %v8340, %v8339
          %v8342 = vrot.slane %v8215, 5
          %v8343 = vsel %vm6016, %v8342, %v8341
          %v8344 = vrot.slane %v8216, 4
          %v8345 = vsel %vm6019, %v8344, %v8343
          %v8346 = vrot.slane %v8217, 3
          %v8347 = vsel %vm6022, %v8346, %v8345
          %v8348 = vrot.slane %v8218, 2
          %v8349 = vsel %vm6025, %v8348, %v8347
          %v8350 = vrot.slane %v8219, 1
          %v8351 = vsel %vm6028, %v8350, %v8349
          %v8352 = vrot.slane %v8221, 7
          %v8353 = vsel %vm6010, %v8352, %v8220
          %v8354 = vrot.slane %v8222, 6
          %v8355 = vsel %vm6013, %v8354, %v8353
          %v8356 = vrot.slane %v8223, 5
          %v8357 = vsel %vm6016, %v8356, %v8355
          %v8358 = vrot.slane %v8224, 4
          %v8359 = vsel %vm6019, %v8358, %v8357
          %v8360 = vrot.slane %v8225, 3
          %v8361 = vsel %vm6022, %v8360, %v8359
          %v8362 = vrot.slane %v8226, 2
          %v8363 = vsel %vm6025, %v8362, %v8361
          %v8364 = vrot.slane %v8227, 1
          %v8365 = vsel %vm6028, %v8364, %v8363
          %v8366 = vrot.slane %v8229, 7
          %v8367 = vsel %vm6010, %v8366, %v8228
          %v8368 = vrot.slane %v8230, 6
          %v8369 = vsel %vm6013, %v8368, %v8367
          %v8370 = vrot.slane %v8231, 5
          %v8371 = vsel %vm6016, %v8370, %v8369
          %v8372 = vrot.slane %v8232, 4
          %v8373 = vsel %vm6019, %v8372, %v8371
          %v8374 = vrot.slane %v8233, 3
          %v8375 = vsel %vm6022, %v8374, %v8373
          %v8376 = vrot.slane %v8234, 2
          %v8377 = vsel %vm6025, %v8376, %v8375
          %v8378 = vrot.slane %v8235, 1
          %v8379 = vsel %vm6028, %v8378, %v8377
          %v8385 = vsel %vm6988, %v8236, 0
          %v8388 = vsel %vm6988, %v8237, 0
          %v8391 = vsel %vm6988, %v8238, 0
          %v8394 = vsel %vm6988, %v8239, 0
          %v8397 = vsel %vm6988, %v8240, 0
          %v8400 = vsel %vm6988, %v8241, 0
          %v8403 = vsel %vm6988, %v8242, 0
          %v8406 = vsel %vm6988, %v8243, 0
          %8408 = vmatprep.subr.mxu0 0.0
          %8409 = vmatpush1.msra.mxu0 0.0
          %8410 = vmatprep.subr.mxu0 0.0
          %8411 = vmatpush1.msra.mxu0 0.0
          %8412 = vmatprep.subr.mxu0 0.0
          %8413 = vmatpush1.msra.mxu0 0.0
          %8414 = vmatprep.subr.mxu0 0.0
          %8415 = vmatpush1.msra.mxu0 0.0
          %8416 = vmatprep.subr.mxu0 0.0
          %8417 = vmatpush1.msra.mxu0 0.0
          %8418 = vmatprep.subr.mxu0 0.0
          %8419 = vmatpush1.msra.mxu0 0.0
          %8420 = vmatprep.subr.mxu0 0.0
          %8421 = vmatpush1.msra.mxu0 0.0
          %8422 = vmatprep.subr.mxu0 0.0
          %8423 = vmatpush1.msra.mxu0 0.0
          %8424 = vmatprep.subr.mxu0 0.0
          %8425 = vmatpush1.msra.mxu0 0.0
          %8426 = vmatprep.subr.mxu0 0.0
          %8427 = vmatpush1.msra.mxu0 0.0
          %8428 = vmatprep.subr.mxu0 0.0
          %8429 = vmatpush1.msra.mxu0 0.0
          %8430 = vmatprep.subr.mxu0 0.0
          %8431 = vmatpush1.msra.mxu0 0.0
          %8432 = vmatprep.subr.mxu0 0.0
          %8433 = vmatpush1.msra.mxu0 %v8379
          %8434 = vmatprep.subr.mxu0 0.0
          %8435 = vmatpush1.msra.mxu0 %v8365
          %8436 = vmatprep.subr.mxu0 0.0
          %8437 = vmatpush1.msra.mxu0 %v8351
          %8438 = vmatprep.subr.mxu0 0.0
          %8439 = vmatpush1.msra.mxu0 %v8337
          %8440 = vmatprep.subr.mxu0 0.0
          %8441 = vmatpush2.msra.mxu0 0.0
          %8442 = vmatprep.subr.mxu0 0.0
          %8443 = vmatpush2.msra.mxu0 0.0
          %8444 = vmatprep.subr.mxu0 0.0
          %8445 = vmatpush2.msra.mxu0 0.0
          %8446 = vmatprep.subr.mxu0 0.0
          %8447 = vmatpush2.msra.mxu0 0.0
          %8448 = vmatprep.subr.mxu0 0.0
          %8449 = vmatpush2.msra.mxu0 0.0
          %8450 = vmatprep.subr.mxu0 0.0
          %8451 = vmatpush2.msra.mxu0 0.0
          %8452 = vmatprep.subr.mxu0 0.0
          %8453 = vmatpush2.msra.mxu0 0.0
          %8454 = vmatprep.subr.mxu0 0.0
          %8455 = vmatpush2.msra.mxu0 0.0
          %8456 = vmatprep.subr.mxu0 0.0
          %8457 = vmatpush2.msra.mxu0 0.0
          %8458 = vmatprep.subr.mxu0 0.0
          %8459 = vmatpush2.msra.mxu0 0.0
          %8460 = vmatprep.subr.mxu0 0.0
          %8461 = vmatpush2.msra.mxu0 0.0
          %8462 = vmatprep.subr.mxu0 0.0
          %8463 = vmatpush2.msra.mxu0 0.0
          %8464 = vmatprep.subr.mxu0 0.0
          %8465 = vmatpush2.msra.mxu0 0.0
          %8466 = vmatprep.subr.mxu0 0.0
          %8467 = vmatpush2.msra.mxu0 0.0
          %8468 = vmatprep.subr.mxu0 0.0
          %8469 = vmatpush2.msra.mxu0 0.0
          %8470 = vmatprep.subr.mxu0 0.0
          %8471 = vmatpush2.msra.mxu0 0.0
          %8472 = vmatprep.mubr.f32.mxu0 0.0
          %8473 = vmatmul.mubr.f32.gmra.mxu0 %v8385
          %v8474 = vpop.f32.mrf.mxu0
          %v8475 = vadd.f32 %v8255, %v8474
          %v8476 = vpop.f32.mrf.mxu0
          %8477 = vmatprep.mubr.f32.mxu0 0.0
          %8478 = vmatmul.mubr.f32.gmra.mxu0 %v8388
          %v8479 = vpop.f32.mrf.mxu0
          %v8480 = vadd.f32 %v8260, %v8479
          %v8481 = vpop.f32.mrf.mxu0
          %8482 = vmatprep.mubr.f32.mxu0 0.0
          %8483 = vmatmul.mubr.f32.gmra.mxu0 %v8391
          %v8484 = vpop.f32.mrf.mxu0
          %v8485 = vadd.f32 %v8265, %v8484
          %v8486 = vpop.f32.mrf.mxu0
          %8487 = vmatprep.mubr.f32.mxu0 0.0
          %8488 = vmatmul.mubr.f32.gmra.mxu0 %v8394
          %v8489 = vpop.f32.mrf.mxu0
          %v8490 = vadd.f32 %v8270, %v8489
          %v8491 = vpop.f32.mrf.mxu0
          %8492 = vmatprep.mubr.f32.mxu0 0.0
          %8493 = vmatmul.mubr.f32.gmra.mxu0 %v8397
          %v8494 = vpop.f32.mrf.mxu0
          %v8495 = vadd.f32 %v8275, %v8494
          %v8496 = vpop.f32.mrf.mxu0
          %8497 = vmatprep.mubr.f32.mxu0 0.0
          %8498 = vmatmul.mubr.f32.gmra.mxu0 %v8400
          %v8499 = vpop.f32.mrf.mxu0
          %v8500 = vadd.f32 %v8280, %v8499
          %v8501 = vpop.f32.mrf.mxu0
          %8502 = vmatprep.mubr.f32.mxu0 0.0
          %8503 = vmatmul.mubr.f32.gmra.mxu0 %v8403
          %v8504 = vpop.f32.mrf.mxu0
          %v8505 = vadd.f32 %v8285, %v8504
          %v8506 = vpop.f32.mrf.mxu0
          %8507 = vmatprep.mubr.f32.mxu0 0.0
          %8508 = vmatmul.mubr.f32.gmra.mxu0 %v8406
          %v8509 = vpop.f32.mrf.mxu0
          %v8510 = vadd.f32 %v8290, %v8509
          %v8511 = vpop.f32.mrf.mxu0
          %8512 = vdwg.mxu0
          %v8513 = vmul.f32 %v8475, 0.5
          %v8514 = vmul.f32 %v8480, 0.5
          %v8515 = vmul.f32 %v8485, 0.5
          %v8516 = vmul.f32 %v8490, 0.5
          %v8517 = vmul.f32 %v8495, 0.5
          %v8518 = vmul.f32 %v8500, 0.5
          %v8519 = vmul.f32 %v8505, 0.5
          %v8520 = vmul.f32 %v8510, 0.5
          %v8521 = vmul.f32 %v8475, 0.70710677
          %v8522 = vmul.f32 %v8480, 0.70710677
          %v8523 = vmul.f32 %v8485, 0.70710677
          %v8524 = vmul.f32 %v8490, 0.70710677
          %v8525 = vmul.f32 %v8495, 0.70710677
          %v8526 = vmul.f32 %v8500, 0.70710677
          %v8527 = vmul.f32 %v8505, 0.70710677
          %v8528 = vmul.f32 %v8510, 0.70710677
          %v8529 = verf.f32.pop %v8521
          %v8530 = verf.f32.pop %v8522
          %v8531 = verf.f32.pop %v8523
          %v8532 = verf.f32.pop %v8524
          %v8533 = verf.f32.pop %v8525
          %v8534 = verf.f32.pop %v8526
          %v8535 = verf.f32.pop %v8527
          %v8536 = verf.f32.pop %v8528
          %v8537 = vadd.f32 %v8529, 1.0
          %v8538 = vadd.f32 %v8530, 1.0
          %v8539 = vadd.f32 %v8531, 1.0
          %v8540 = vadd.f32 %v8532, 1.0
          %v8541 = vadd.f32 %v8533, 1.0
          %v8542 = vadd.f32 %v8534, 1.0
          %v8543 = vadd.f32 %v8535, 1.0
          %v8544 = vadd.f32 %v8536, 1.0
          %v8545 = vmul.f32 %v8513, %v8537
          %v8546 = vmul.f32 %v8514, %v8538
          %v8547 = vmul.f32 %v8515, %v8539
          %v8548 = vmul.f32 %v8516, %v8540
          %v8549 = vmul.f32 %v8517, %v8541
          %v8550 = vmul.f32 %v8518, %v8542
          %v8551 = vmul.f32 %v8519, %v8543
          %v8552 = vmul.f32 %v8520, %v8544
          %v8553 = vld [vmem:[%s609] sm:$0xff]
          %v8554 = vld [vmem:[%s609 + $0x8] sm:$0xff]
          %v8555 = vld [vmem:[%s609 + $0x10] sm:$0xff]
          %v8556 = vld [vmem:[%s609 + $0x18] sm:$0xff]
          %v8557 = vld [vmem:[%s618] sm:$0xff]
          %v8558 = vld [vmem:[%s618 + $0x8] sm:$0xff]
          %v8559 = vld [vmem:[%s618 + $0x10] sm:$0xff]
          %v8560 = vld [vmem:[%s618 + $0x18] sm:$0xff]
          %8562 = vset.pattern.permute.xlu0 0
          %8563 = vperm.xlu0 %8562, %v8557
          %v8564 = vpop.permute.xlu0 %8563
          %8567 = vset.pattern.permute.xlu0 0
          %8568 = vperm.xlu0 %8567, %v8558
          %v8569 = vpop.permute.xlu0 %8568
          %8572 = vset.pattern.permute.xlu0 0
          %8573 = vperm.xlu0 %8572, %v8559
          %v8574 = vpop.permute.xlu0 %8573
          %8577 = vset.pattern.permute.xlu0 0
          %8578 = vperm.xlu0 %8577, %v8560
          %v8579 = vpop.permute.xlu0 %8578
          %v8582 = vsel %vm7186, %v8553, 0
          %v8585 = vsel %vm7186, %v8554, 0
          %v8588 = vsel %vm7186, %v8555, 0
          %v8591 = vsel %vm7186, %v8556, 0
          %8593 = vmatprep.subr.mxu0 0.0
          %8594 = vmatpush1.msra.mxu0 0.0
          %8595 = vmatprep.subr.mxu0 0.0
          %8596 = vmatpush1.msra.mxu0 0.0
          %8597 = vmatprep.subr.mxu0 0.0
          %8598 = vmatpush1.msra.mxu0 0.0
          %8599 = vmatprep.subr.mxu0 0.0
          %8600 = vmatpush1.msra.mxu0 0.0
          %8601 = vmatprep.subr.mxu0 0.0
          %8602 = vmatpush1.msra.mxu0 0.0
          %8603 = vmatprep.subr.mxu0 0.0
          %8604 = vmatpush1.msra.mxu0 0.0
          %8605 = vmatprep.subr.mxu0 0.0
          %8606 = vmatpush1.msra.mxu0 0.0
          %8607 = vmatprep.subr.mxu0 0.0
          %8608 = vmatpush1.msra.mxu0 0.0
          %8609 = vmatprep.subr.mxu0 0.0
          %8610 = vmatpush1.msra.mxu0 %v8552
          %8611 = vmatprep.subr.mxu0 0.0
          %8612 = vmatpush1.msra.mxu0 %v8551
          %8613 = vmatprep.subr.mxu0 0.0
          %8614 = vmatpush1.msra.mxu0 %v8550
          %8615 = vmatprep.subr.mxu0 0.0
          %8616 = vmatpush1.msra.mxu0 %v8549
          %8617 = vmatprep.subr.mxu0 0.0
          %8618 = vmatpush1.msra.mxu0 %v8548
          %8619 = vmatprep.subr.mxu0 0.0
          %8620 = vmatpush1.msra.mxu0 %v8547
          %8621 = vmatprep.subr.mxu0 0.0
          %8622 = vmatpush1.msra.mxu0 %v8546
          %8623 = vmatprep.subr.mxu0 0.0
          %8624 = vmatpush1.msra.mxu0 %v8545
          %8625 = vmatprep.subr.mxu0 0.0
          %8626 = vmatpush2.msra.mxu0 0.0
          %8627 = vmatprep.subr.mxu0 0.0
          %8628 = vmatpush2.msra.mxu0 0.0
          %8629 = vmatprep.subr.mxu0 0.0
          %8630 = vmatpush2.msra.mxu0 0.0
          %8631 = vmatprep.subr.mxu0 0.0
          %8632 = vmatpush2.msra.mxu0 0.0
          %8633 = vmatprep.subr.mxu0 0.0
          %8634 = vmatpush2.msra.mxu0 0.0
          %8635 = vmatprep.subr.mxu0 0.0
          %8636 = vmatpush2.msra.mxu0 0.0
          %8637 = vmatprep.subr.mxu0 0.0
          %8638 = vmatpush2.msra.mxu0 0.0
          %8639 = vmatprep.subr.mxu0 0.0
          %8640 = vmatpush2.msra.mxu0 0.0
          %8641 = vmatprep.subr.mxu0 0.0
          %8642 = vmatpush2.msra.mxu0 0.0
          %8643 = vmatprep.subr.mxu0 0.0
          %8644 = vmatpush2.msra.mxu0 0.0
          %8645 = vmatprep.subr.mxu0 0.0
          %8646 = vmatpush2.msra.mxu0 0.0
          %8647 = vmatprep.subr.mxu0 0.0
          %8648 = vmatpush2.msra.mxu0 0.0
          %8649 = vmatprep.subr.mxu0 0.0
          %8650 = vmatpush2.msra.mxu0 0.0
          %8651 = vmatprep.subr.mxu0 0.0
          %8652 = vmatpush2.msra.mxu0 0.0
          %8653 = vmatprep.subr.mxu0 0.0
          %8654 = vmatpush2.msra.mxu0 0.0
          %8655 = vmatprep.subr.mxu0 0.0
          %8656 = vmatpush2.msra.mxu0 0.0
          %8657 = vmatprep.mubr.f32.mxu0 0.0
          %8658 = vmatmul.mubr.f32.gmra.mxu0 %v8582
          %v8659 = vpop.f32.mrf.mxu0
          %v8660 = vadd.f32 %v8564, %v8659
          %v8661 = vpop.f32.mrf.mxu0
          %8662 = vmatprep.mubr.f32.mxu0 0.0
          %8663 = vmatmul.mubr.f32.gmra.mxu0 %v8585
          %v8664 = vpop.f32.mrf.mxu0
          %v8665 = vadd.f32 %v8569, %v8664
          %v8666 = vpop.f32.mrf.mxu0
          %8667 = vmatprep.mubr.f32.mxu0 0.0
          %8668 = vmatmul.mubr.f32.gmra.mxu0 %v8588
          %v8669 = vpop.f32.mrf.mxu0
          %v8670 = vadd.f32 %v8574, %v8669
          %v8671 = vpop.f32.mrf.mxu0
          %8672 = vmatprep.mubr.f32.mxu0 0.0
          %8673 = vmatmul.mubr.f32.gmra.mxu0 %v8591
          %v8674 = vpop.f32.mrf.mxu0
          %v8675 = vadd.f32 %v8579, %v8674
          %v8676 = vpop.f32.mrf.mxu0
          %8677 = vdwg.mxu0
          %v8682 = vrot.slane %v8660, 7
          %v8683 = vrot.slane %v8660, 1
          %v8684 = vrot.slane %v8660, 2
          %v8685 = vrot.slane %v8660, 3
          %v8686 = vrot.slane %v8660, 4
          %v8687 = vrot.slane %v8660, 5
          %v8688 = vrot.slane %v8660, 6
          %v8689 = vrot.slane %v8665, 7
          %v8690 = vrot.slane %v8665, 1
          %v8691 = vrot.slane %v8665, 2
          %v8692 = vrot.slane %v8665, 3
          %v8693 = vrot.slane %v8665, 4
          %v8694 = vrot.slane %v8665, 5
          %v8695 = vrot.slane %v8665, 6
          %v8696 = vrot.slane %v8670, 7
          %v8697 = vrot.slane %v8670, 1
          %v8698 = vrot.slane %v8670, 2
          %v8699 = vrot.slane %v8670, 3
          %v8700 = vrot.slane %v8670, 4
          %v8701 = vrot.slane %v8670, 5
          %v8702 = vrot.slane %v8670, 6
          %v8703 = vrot.slane %v8675, 7
          %v8704 = vrot.slane %v8675, 1
          %v8705 = vrot.slane %v8675, 2
          %v8706 = vrot.slane %v8675, 3
          %v8707 = vrot.slane %v8675, 4
          %v8708 = vrot.slane %v8675, 5
          %v8709 = vrot.slane %v8675, 6
          %v8742 = vmul.f32 %v7286, %v8682
          %v8743 = vmul.f32 %v7290, %v8660
          %v8744 = vmul.f32 %v7294, %v8683
          %v8745 = vmul.f32 %v7298, %v8684
          %v8746 = vmul.f32 %v7302, %v8685
          %v8747 = vmul.f32 %v7306, %v8686
          %v8748 = vmul.f32 %v7310, %v8687
          %v8749 = vmul.f32 %v7314, %v8688
          %v8750 = vmul.f32 %v7318, %v8689
          %v8751 = vmul.f32 %v7322, %v8665
          %v8752 = vmul.f32 %v7326, %v8690
          %v8753 = vmul.f32 %v7330, %v8691
          %v8754 = vmul.f32 %v7334, %v8692
          %v8755 = vmul.f32 %v7338, %v8693
          %v8756 = vmul.f32 %v7342, %v8694
          %v8757 = vmul.f32 %v7346, %v8695
          %v8758 = vmul.f32 %v7350, %v8696
          %v8759 = vmul.f32 %v7354, %v8670
          %v8760 = vmul.f32 %v7358, %v8697
          %v8761 = vmul.f32 %v7362, %v8698
          %v8762 = vmul.f32 %v7366, %v8699
          %v8763 = vmul.f32 %v7370, %v8700
          %v8764 = vmul.f32 %v7374, %v8701
          %v8765 = vmul.f32 %v7378, %v8702
          %v8766 = vmul.f32 %v7382, %v8703
          %v8767 = vmul.f32 %v7386, %v8675
          %v8768 = vmul.f32 %v7390, %v8704
          %v8769 = vmul.f32 %v7394, %v8705
          %v8770 = vmul.f32 %v7398, %v8706
          %v8771 = vmul.f32 %v7402, %v8707
          %v8772 = vmul.f32 %v7406, %v8708
          %v8773 = vmul.f32 %v7410, %v8709
          %v8806 = vrot.slane %v8742, 1
          %v8807 = vrot.slane %v8743, 1
          %v8808 = vrot.slane %v8744, 1
          %v8809 = vrot.slane %v8745, 1
          %v8810 = vrot.slane %v8746, 1
          %v8811 = vrot.slane %v8747, 1
          %v8812 = vrot.slane %v8748, 1
          %v8813 = vrot.slane %v8749, 1
          %v8814 = vrot.slane %v8750, 1
          %v8815 = vrot.slane %v8751, 1
          %v8816 = vrot.slane %v8752, 1
          %v8817 = vrot.slane %v8753, 1
          %v8818 = vrot.slane %v8754, 1
          %v8819 = vrot.slane %v8755, 1
          %v8820 = vrot.slane %v8756, 1
          %v8821 = vrot.slane %v8757, 1
          %v8822 = vrot.slane %v8758, 1
          %v8823 = vrot.slane %v8759, 1
          %v8824 = vrot.slane %v8760, 1
          %v8825 = vrot.slane %v8761, 1
          %v8826 = vrot.slane %v8762, 1
          %v8827 = vrot.slane %v8763, 1
          %v8828 = vrot.slane %v8764, 1
          %v8829 = vrot.slane %v8765, 1
          %v8830 = vrot.slane %v8766, 1
          %v8831 = vrot.slane %v8767, 1
          %v8832 = vrot.slane %v8768, 1
          %v8833 = vrot.slane %v8769, 1
          %v8834 = vrot.slane %v8770, 1
          %v8835 = vrot.slane %v8771, 1
          %v8836 = vrot.slane %v8772, 1
          %v8837 = vrot.slane %v8773, 1
          %v8870 = vadd.f32 %v7572, %v8806
          %v8871 = vadd.f32 %v7573, %v8807
          %v8872 = vadd.f32 %v7574, %v8808
          %v8873 = vadd.f32 %v7575, %v8809
          %v8874 = vadd.f32 %v7576, %v8810
          %v8875 = vadd.f32 %v7577, %v8811
          %v8876 = vadd.f32 %v7578, %v8812
          %v8877 = vadd.f32 %v7579, %v8813
          %v8878 = vadd.f32 %v7580, %v8814
          %v8879 = vadd.f32 %v7581, %v8815
          %v8880 = vadd.f32 %v7582, %v8816
          %v8881 = vadd.f32 %v7583, %v8817
          %v8882 = vadd.f32 %v7584, %v8818
          %v8883 = vadd.f32 %v7585, %v8819
          %v8884 = vadd.f32 %v7586, %v8820
          %v8885 = vadd.f32 %v7587, %v8821
          %v8886 = vadd.f32 %v7588, %v8822
          %v8887 = vadd.f32 %v7589, %v8823
          %v8888 = vadd.f32 %v7590, %v8824
          %v8889 = vadd.f32 %v7591, %v8825
          %v8890 = vadd.f32 %v7592, %v8826
          %v8891 = vadd.f32 %v7593, %v8827
          %v8892 = vadd.f32 %v7594, %v8828
          %v8893 = vadd.f32 %v7595, %v8829
          %v8894 = vadd.f32 %v7596, %v8830
          %v8895 = vadd.f32 %v7597, %v8831
          %v8896 = vadd.f32 %v7598, %v8832
          %v8897 = vadd.f32 %v7599, %v8833
          %v8898 = vadd.f32 %v7600, %v8834
          %v8899 = vadd.f32 %v7601, %v8835
          %v8900 = vadd.f32 %v7602, %v8836
          %v8901 = vadd.f32 %v7603, %v8837
          %8902 = vst [vmem:[#allocation2 + $0x1] sm:$0x1] %v8870
          %8903 = vst [vmem:[#allocation2 + $0x3] sm:$0x1] %v8871
          %8904 = vst [vmem:[#allocation2 + $0x5] sm:$0x1] %v8872
          %8905 = vst [vmem:[#allocation2 + $0x7] sm:$0x1] %v8873
          %8906 = vst [vmem:[#allocation2 + $0x9] sm:$0x1] %v8874
          %8907 = vst [vmem:[#allocation2 + $0xb] sm:$0x1] %v8875
          %8908 = vst [vmem:[#allocation2 + $0xd] sm:$0x1] %v8876
          %8909 = vst [vmem:[#allocation2 + $0xf] sm:$0x1] %v8877
          %8910 = vst [vmem:[#allocation2 + $0x11] sm:$0x1] %v8878
          %8911 = vst [vmem:[#allocation2 + $0x13] sm:$0x1] %v8879
          %8912 = vst [vmem:[#allocation2 + $0x15] sm:$0x1] %v8880
          %8913 = vst [vmem:[#allocation2 + $0x17] sm:$0x1] %v8881
          %8914 = vst [vmem:[#allocation2 + $0x19] sm:$0x1] %v8882
          %8915 = vst [vmem:[#allocation2 + $0x1b] sm:$0x1] %v8883
          %8916 = vst [vmem:[#allocation2 + $0x1d] sm:$0x1] %v8884
          %8917 = vst [vmem:[#allocation2 + $0x1f] sm:$0x1] %v8885
          %8918 = vst [vmem:[#allocation2 + $0x21] sm:$0x1] %v8886
          %8919 = vst [vmem:[#allocation2 + $0x23] sm:$0x1] %v8887
          %8920 = vst [vmem:[#allocation2 + $0x25] sm:$0x1] %v8888
          %8921 = vst [vmem:[#allocation2 + $0x27] sm:$0x1] %v8889
          %8922 = vst [vmem:[#allocation2 + $0x29] sm:$0x1] %v8890
          %8923 = vst [vmem:[#allocation2 + $0x2b] sm:$0x1] %v8891
          %8924 = vst [vmem:[#allocation2 + $0x2d] sm:$0x1] %v8892
          %8925 = vst [vmem:[#allocation2 + $0x2f] sm:$0x1] %v8893
          %8926 = vst [vmem:[#allocation2 + $0x31] sm:$0x1] %v8894
          %8927 = vst [vmem:[#allocation2 + $0x33] sm:$0x1] %v8895
          %8928 = vst [vmem:[#allocation2 + $0x35] sm:$0x1] %v8896
          %8929 = vst [vmem:[#allocation2 + $0x37] sm:$0x1] %v8897
          %8930 = vst [vmem:[#allocation2 + $0x39] sm:$0x1] %v8898
          %8931 = vst [vmem:[#allocation2 + $0x3b] sm:$0x1] %v8899
          %8932 = vst [vmem:[#allocation2 + $0x3d] sm:$0x1] %v8900
          %8933 = vst [vmem:[#allocation2 + $0x3f] sm:$0x1] %v8901
        $region116: #{conditional_denoiser_forward.3} parent=67 // pred_fallthru
          _
        %p8934 = scmp.eq.s32.totalorder %s30, 5
        %p8935 = pnand %p8934, %p700
        %p8936 = pneg %p8935
        // Predicated region
        $region117: #{conditional_denoiser_forward.3} parent=67 // pred_check
          _
        $region118: #{conditional_denoiser_forward.3} parent=67 // pred_check_branch
          %8938 = sbr.rel (%p8935) target = $region120
        $region119: #{conditional_denoiser_forward.3} parent=67 // pred_region
          %v8939 = vld [vmem:[#allocation13] sm:$0xf]
          %v8940 = vld [vmem:[#allocation2] sm:$0x1]
          %v8941 = vld [vmem:[#allocation2 + $0x2] sm:$0x1]
          %v8942 = vld [vmem:[#allocation2 + $0x4] sm:$0x1]
          %v8943 = vld [vmem:[#allocation2 + $0x6] sm:$0x1]
          %v8944 = vld [vmem:[#allocation2 + $0x8] sm:$0x1]
          %v8945 = vld [vmem:[#allocation2 + $0xa] sm:$0x1]
          %v8946 = vld [vmem:[#allocation2 + $0xc] sm:$0x1]
          %v8947 = vld [vmem:[#allocation2 + $0xe] sm:$0x1]
          %v8948 = vld [vmem:[#allocation2 + $0x10] sm:$0x1]
          %v8949 = vld [vmem:[#allocation2 + $0x12] sm:$0x1]
          %v8950 = vld [vmem:[#allocation2 + $0x14] sm:$0x1]
          %v8951 = vld [vmem:[#allocation2 + $0x16] sm:$0x1]
          %v8952 = vld [vmem:[#allocation2 + $0x18] sm:$0x1]
          %v8953 = vld [vmem:[#allocation2 + $0x1a] sm:$0x1]
          %v8954 = vld [vmem:[#allocation2 + $0x1c] sm:$0x1]
          %v8955 = vld [vmem:[#allocation2 + $0x1e] sm:$0x1]
          %v8956 = vld [vmem:[#allocation2 + $0x20] sm:$0x1]
          %v8957 = vld [vmem:[#allocation2 + $0x22] sm:$0x1]
          %v8958 = vld [vmem:[#allocation2 + $0x24] sm:$0x1]
          %v8959 = vld [vmem:[#allocation2 + $0x26] sm:$0x1]
          %v8960 = vld [vmem:[#allocation2 + $0x28] sm:$0x1]
          %v8961 = vld [vmem:[#allocation2 + $0x2a] sm:$0x1]
          %v8962 = vld [vmem:[#allocation2 + $0x2c] sm:$0x1]
          %v8963 = vld [vmem:[#allocation2 + $0x2e] sm:$0x1]
          %v8964 = vld [vmem:[#allocation2 + $0x30] sm:$0x1]
          %v8965 = vld [vmem:[#allocation2 + $0x32] sm:$0x1]
          %v8966 = vld [vmem:[#allocation2 + $0x34] sm:$0x1]
          %v8967 = vld [vmem:[#allocation2 + $0x36] sm:$0x1]
          %v8968 = vld [vmem:[#allocation2 + $0x38] sm:$0x1]
          %v8969 = vld [vmem:[#allocation2 + $0x3a] sm:$0x1]
          %v8970 = vld [vmem:[#allocation2 + $0x3c] sm:$0x1]
          %v8971 = vld [vmem:[#allocation2 + $0x3e] sm:$0x1]
          %v8972 = vld [vmem:[#allocation14] sm:$0xf]
          %8974 = vset.pattern.permute.xlu0 0
          %8975 = vperm.xlu0 %8974, %v8972
          %v8976 = vpop.permute.xlu0 %8975
          %v9010 = vrot.slane %v8941, 7
          %vm9011 = vcmask 1041409
          %v9012 = vsel %vm9011, %v9010, %v8940
          %v9013 = vrot.slane %v8942, 6
          %vm9014 = vcmask 1042434
          %v9015 = vsel %vm9014, %v9013, %v9012
          %v9016 = vrot.slane %v8943, 5
          %vm9017 = vcmask 1043459
          %v9018 = vsel %vm9017, %v9016, %v9015
          %v9019 = vrot.slane %v8944, 4
          %vm9020 = vcmask 1044484
          %v9021 = vsel %vm9020, %v9019, %v9018
          %v9022 = vrot.slane %v8945, 3
          %vm9023 = vcmask 1045509
          %v9024 = vsel %vm9023, %v9022, %v9021
          %v9025 = vrot.slane %v8946, 2
          %vm9026 = vcmask 1046534
          %v9027 = vsel %vm9026, %v9025, %v9024
          %v9028 = vrot.slane %v8947, 1
          %vm9029 = vcmask 1047559
          %v9030 = vsel %vm9029, %v9028, %v9027
          %v9031 = vrot.slane %v8949, 7
          %v9032 = vsel %vm9011, %v9031, %v8948
          %v9033 = vrot.slane %v8950, 6
          %v9034 = vsel %vm9014, %v9033, %v9032
          %v9035 = vrot.slane %v8951, 5
          %v9036 = vsel %vm9017, %v9035, %v9034
          %v9037 = vrot.slane %v8952, 4
          %v9038 = vsel %vm9020, %v9037, %v9036
          %v9039 = vrot.slane %v8953, 3
          %v9040 = vsel %vm9023, %v9039, %v9038
          %v9041 = vrot.slane %v8954, 2
          %v9042 = vsel %vm9026, %v9041, %v9040
          %v9043 = vrot.slane %v8955, 1
          %v9044 = vsel %vm9029, %v9043, %v9042
          %v9045 = vrot.slane %v8957, 7
          %v9046 = vsel %vm9011, %v9045, %v8956
          %v9047 = vrot.slane %v8958, 6
          %v9048 = vsel %vm9014, %v9047, %v9046
          %v9049 = vrot.slane %v8959, 5
          %v9050 = vsel %vm9017, %v9049, %v9048
          %v9051 = vrot.slane %v8960, 4
          %v9052 = vsel %vm9020, %v9051, %v9050
          %v9053 = vrot.slane %v8961, 3
          %v9054 = vsel %vm9023, %v9053, %v9052
          %v9055 = vrot.slane %v8962, 2
          %v9056 = vsel %vm9026, %v9055, %v9054
          %v9057 = vrot.slane %v8963, 1
          %v9058 = vsel %vm9029, %v9057, %v9056
          %v9059 = vrot.slane %v8965, 7
          %v9060 = vsel %vm9011, %v9059, %v8964
          %v9061 = vrot.slane %v8966, 6
          %v9062 = vsel %vm9014, %v9061, %v9060
          %v9063 = vrot.slane %v8967, 5
          %v9064 = vsel %vm9017, %v9063, %v9062
          %v9065 = vrot.slane %v8968, 4
          %v9066 = vsel %vm9020, %v9065, %v9064
          %v9067 = vrot.slane %v8969, 3
          %v9068 = vsel %vm9023, %v9067, %v9066
          %v9069 = vrot.slane %v8970, 2
          %v9070 = vsel %vm9026, %v9069, %v9068
          %v9071 = vrot.slane %v8971, 1
          %v9072 = vsel %vm9029, %v9071, %v9070
          %vm9077 = vcmask 261120
          %v9079 = vsel %vm9077, %v8939, 0
          %9081 = vmatprep.subr.mxu0 0.0
          %9082 = vmatpush1.msra.mxu0 0.0
          %9083 = vmatprep.subr.mxu0 0.0
          %9084 = vmatpush1.msra.mxu0 0.0
          %9085 = vmatprep.subr.mxu0 0.0
          %9086 = vmatpush1.msra.mxu0 0.0
          %9087 = vmatprep.subr.mxu0 0.0
          %9088 = vmatpush1.msra.mxu0 0.0
          %9089 = vmatprep.subr.mxu0 0.0
          %9090 = vmatpush1.msra.mxu0 0.0
          %9091 = vmatprep.subr.mxu0 0.0
          %9092 = vmatpush1.msra.mxu0 0.0
          %9093 = vmatprep.subr.mxu0 0.0
          %9094 = vmatpush1.msra.mxu0 0.0
          %9095 = vmatprep.subr.mxu0 0.0
          %9096 = vmatpush1.msra.mxu0 0.0
          %9097 = vmatprep.subr.mxu0 0.0
          %9098 = vmatpush1.msra.mxu0 0.0
          %9099 = vmatprep.subr.mxu0 0.0
          %9100 = vmatpush1.msra.mxu0 0.0
          %9101 = vmatprep.subr.mxu0 0.0
          %9102 = vmatpush1.msra.mxu0 0.0
          %9103 = vmatprep.subr.mxu0 0.0
          %9104 = vmatpush1.msra.mxu0 0.0
          %9105 = vmatprep.subr.mxu0 0.0
          %9106 = vmatpush1.msra.mxu0 %v9072
          %9107 = vmatprep.subr.mxu0 0.0
          %9108 = vmatpush1.msra.mxu0 %v9058
          %9109 = vmatprep.subr.mxu0 0.0
          %9110 = vmatpush1.msra.mxu0 %v9044
          %9111 = vmatprep.subr.mxu0 0.0
          %9112 = vmatpush1.msra.mxu0 %v9030
          %9113 = vmatprep.subr.mxu0 0.0
          %9114 = vmatpush2.msra.mxu0 0.0
          %9115 = vmatprep.subr.mxu0 0.0
          %9116 = vmatpush2.msra.mxu0 0.0
          %9117 = vmatprep.subr.mxu0 0.0
          %9118 = vmatpush2.msra.mxu0 0.0
          %9119 = vmatprep.subr.mxu0 0.0
          %9120 = vmatpush2.msra.mxu0 0.0
          %9121 = vmatprep.subr.mxu0 0.0
          %9122 = vmatpush2.msra.mxu0 0.0
          %9123 = vmatprep.subr.mxu0 0.0
          %9124 = vmatpush2.msra.mxu0 0.0
          %9125 = vmatprep.subr.mxu0 0.0
          %9126 = vmatpush2.msra.mxu0 0.0
          %9127 = vmatprep.subr.mxu0 0.0
          %9128 = vmatpush2.msra.mxu0 0.0
          %9129 = vmatprep.subr.mxu0 0.0
          %9130 = vmatpush2.msra.mxu0 0.0
          %9131 = vmatprep.subr.mxu0 0.0
          %9132 = vmatpush2.msra.mxu0 0.0
          %9133 = vmatprep.subr.mxu0 0.0
          %9134 = vmatpush2.msra.mxu0 0.0
          %9135 = vmatprep.subr.mxu0 0.0
          %9136 = vmatpush2.msra.mxu0 0.0
          %9137 = vmatprep.subr.mxu0 0.0
          %9138 = vmatpush2.msra.mxu0 0.0
          %9139 = vmatprep.subr.mxu0 0.0
          %9140 = vmatpush2.msra.mxu0 0.0
          %9141 = vmatprep.subr.mxu0 0.0
          %9142 = vmatpush2.msra.mxu0 0.0
          %9143 = vmatprep.subr.mxu0 0.0
          %9144 = vmatpush2.msra.mxu0 0.0
          %9145 = vmatprep.mubr.f32.mxu0 0.0
          %9146 = vmatmul.mubr.f32.gmra.mxu0 %v9079
          %v9147 = vpop.f32.mrf.mxu0
          %v9148 = vadd.f32 %v8976, %v9147
          %v9149 = vpop.f32.mrf.mxu0
          %9150 = vdwg.mxu0
          %v9153 = vunpack.c.l.s4 1966171168
          %v9154 = vunpack.c.0.s8 %v9153
          %v9155 = vlaneseq
          %v9156 = vshrl.u32 %v9155, 7
          %v9157 = vsub.s32 %v9154, %v9156
          %v9158 = vrot.slane %v9148, %v9157
          %v9159 = vcombine.high %v9158, %v9158
          %v9161 = vunpack.c.l.s4 1966171168
          %v9162 = vunpack.c.0.s8 %v9161
          %v9163 = vlaneseq
          %v9164 = vshrl.u32 %v9163, 7
          %v9165 = vsub.s32 %v9162, %v9164
          %v9166 = vrot.slane %v9158, %v9165
          %v9168 = vunpack.c.l.s4 1966171168
          %v9169 = vunpack.c.0.s8 %v9168
          %v9170 = vlaneseq
          %v9171 = vshrl.u32 %v9170, 7
          %v9172 = vsub.s32 %v9169, %v9171
          %v9173 = vrot.slane %v9159, %v9172
          %v9174 = vcombine.high %v9166, %v9166
          %v9175 = vcombine.high %v9173, %v9173
          %9180 = vst [vmem:[%s12] sm:$0x1] %v9166
          %9181 = vst [vmem:[%s12 + $0x2] sm:$0x1] %v9173
          %9182 = vst [vmem:[%s12 + $0x4] sm:$0x1] %v9174
          %9183 = vst [vmem:[%s12 + $0x6] sm:$0x1] %v9175
          %v9184 = vld [vmem:[#allocation13] sm:$0xf]
          %v9185 = vld [vmem:[#allocation2 + $0x1] sm:$0x1]
          %v9186 = vld [vmem:[#allocation2 + $0x3] sm:$0x1]
          %v9187 = vld [vmem:[#allocation2 + $0x5] sm:$0x1]
          %v9188 = vld [vmem:[#allocation2 + $0x7] sm:$0x1]
          %v9189 = vld [vmem:[#allocation2 + $0x9] sm:$0x1]
          %v9190 = vld [vmem:[#allocation2 + $0xb] sm:$0x1]
          %v9191 = vld [vmem:[#allocation2 + $0xd] sm:$0x1]
          %v9192 = vld [vmem:[#allocation2 + $0xf] sm:$0x1]
          %v9193 = vld [vmem:[#allocation2 + $0x11] sm:$0x1]
          %v9194 = vld [vmem:[#allocation2 + $0x13] sm:$0x1]
          %v9195 = vld [vmem:[#allocation2 + $0x15] sm:$0x1]
          %v9196 = vld [vmem:[#allocation2 + $0x17] sm:$0x1]
          %v9197 = vld [vmem:[#allocation2 + $0x19] sm:$0x1]
          %v9198 = vld [vmem:[#allocation2 + $0x1b] sm:$0x1]
          %v9199 = vld [vmem:[#allocation2 + $0x1d] sm:$0x1]
          %v9200 = vld [vmem:[#allocation2 + $0x1f] sm:$0x1]
          %v9201 = vld [vmem:[#allocation2 + $0x21] sm:$0x1]
          %v9202 = vld [vmem:[#allocation2 + $0x23] sm:$0x1]
          %v9203 = vld [vmem:[#allocation2 + $0x25] sm:$0x1]
          %v9204 = vld [vmem:[#allocation2 + $0x27] sm:$0x1]
          %v9205 = vld [vmem:[#allocation2 + $0x29] sm:$0x1]
          %v9206 = vld [vmem:[#allocation2 + $0x2b] sm:$0x1]
          %v9207 = vld [vmem:[#allocation2 + $0x2d] sm:$0x1]
          %v9208 = vld [vmem:[#allocation2 + $0x2f] sm:$0x1]
          %v9209 = vld [vmem:[#allocation2 + $0x31] sm:$0x1]
          %v9210 = vld [vmem:[#allocation2 + $0x33] sm:$0x1]
          %v9211 = vld [vmem:[#allocation2 + $0x35] sm:$0x1]
          %v9212 = vld [vmem:[#allocation2 + $0x37] sm:$0x1]
          %v9213 = vld [vmem:[#allocation2 + $0x39] sm:$0x1]
          %v9214 = vld [vmem:[#allocation2 + $0x3b] sm:$0x1]
          %v9215 = vld [vmem:[#allocation2 + $0x3d] sm:$0x1]
          %v9216 = vld [vmem:[#allocation2 + $0x3f] sm:$0x1]
          %v9217 = vld [vmem:[#allocation14] sm:$0xf]
          %9219 = vset.pattern.permute.xlu0 0
          %9220 = vperm.xlu0 %9219, %v9217
          %v9221 = vpop.permute.xlu0 %9220
          %v9255 = vrot.slane %v9186, 7
          %v9256 = vsel %vm9011, %v9255, %v9185
          %v9257 = vrot.slane %v9187, 6
          %v9258 = vsel %vm9014, %v9257, %v9256
          %v9259 = vrot.slane %v9188, 5
          %v9260 = vsel %vm9017, %v9259, %v9258
          %v9261 = vrot.slane %v9189, 4
          %v9262 = vsel %vm9020, %v9261, %v9260
          %v9263 = vrot.slane %v9190, 3
          %v9264 = vsel %vm9023, %v9263, %v9262
          %v9265 = vrot.slane %v9191, 2
          %v9266 = vsel %vm9026, %v9265, %v9264
          %v9267 = vrot.slane %v9192, 1
          %v9268 = vsel %vm9029, %v9267, %v9266
          %v9269 = vrot.slane %v9194, 7
          %v9270 = vsel %vm9011, %v9269, %v9193
          %v9271 = vrot.slane %v9195, 6
          %v9272 = vsel %vm9014, %v9271, %v9270
          %v9273 = vrot.slane %v9196, 5
          %v9274 = vsel %vm9017, %v9273, %v9272
          %v9275 = vrot.slane %v9197, 4
          %v9276 = vsel %vm9020, %v9275, %v9274
          %v9277 = vrot.slane %v9198, 3
          %v9278 = vsel %vm9023, %v9277, %v9276
          %v9279 = vrot.slane %v9199, 2
          %v9280 = vsel %vm9026, %v9279, %v9278
          %v9281 = vrot.slane %v9200, 1
          %v9282 = vsel %vm9029, %v9281, %v9280
          %v9283 = vrot.slane %v9202, 7
          %v9284 = vsel %vm9011, %v9283, %v9201
          %v9285 = vrot.slane %v9203, 6
          %v9286 = vsel %vm9014, %v9285, %v9284
          %v9287 = vrot.slane %v9204, 5
          %v9288 = vsel %vm9017, %v9287, %v9286
          %v9289 = vrot.slane %v9205, 4
          %v9290 = vsel %vm9020, %v9289, %v9288
          %v9291 = vrot.slane %v9206, 3
          %v9292 = vsel %vm9023, %v9291, %v9290
          %v9293 = vrot.slane %v9207, 2
          %v9294 = vsel %vm9026, %v9293, %v9292
          %v9295 = vrot.slane %v9208, 1
          %v9296 = vsel %vm9029, %v9295, %v9294
          %v9297 = vrot.slane %v9210, 7
          %v9298 = vsel %vm9011, %v9297, %v9209
          %v9299 = vrot.slane %v9211, 6
          %v9300 = vsel %vm9014, %v9299, %v9298
          %v9301 = vrot.slane %v9212, 5
          %v9302 = vsel %vm9017, %v9301, %v9300
          %v9303 = vrot.slane %v9213, 4
          %v9304 = vsel %vm9020, %v9303, %v9302
          %v9305 = vrot.slane %v9214, 3
          %v9306 = vsel %vm9023, %v9305, %v9304
          %v9307 = vrot.slane %v9215, 2
          %v9308 = vsel %vm9026, %v9307, %v9306
          %v9309 = vrot.slane %v9216, 1
          %v9310 = vsel %vm9029, %v9309, %v9308
          %v9316 = vsel %vm9077, %v9184, 0
          %9318 = vmatprep.subr.mxu0 0.0
          %9319 = vmatpush1.msra.mxu0 0.0
          %9320 = vmatprep.subr.mxu0 0.0
          %9321 = vmatpush1.msra.mxu0 0.0
          %9322 = vmatprep.subr.mxu0 0.0
          %9323 = vmatpush1.msra.mxu0 0.0
          %9324 = vmatprep.subr.mxu0 0.0
          %9325 = vmatpush1.msra.mxu0 0.0
          %9326 = vmatprep.subr.mxu0 0.0
          %9327 = vmatpush1.msra.mxu0 0.0
          %9328 = vmatprep.subr.mxu0 0.0
          %9329 = vmatpush1.msra.mxu0 0.0
          %9330 = vmatprep.subr.mxu0 0.0
          %9331 = vmatpush1.msra.mxu0 0.0
          %9332 = vmatprep.subr.mxu0 0.0
          %9333 = vmatpush1.msra.mxu0 0.0
          %9334 = vmatprep.subr.mxu0 0.0
          %9335 = vmatpush1.msra.mxu0 0.0
          %9336 = vmatprep.subr.mxu0 0.0
          %9337 = vmatpush1.msra.mxu0 0.0
          %9338 = vmatprep.subr.mxu0 0.0
          %9339 = vmatpush1.msra.mxu0 0.0
          %9340 = vmatprep.subr.mxu0 0.0
          %9341 = vmatpush1.msra.mxu0 0.0
          %9342 = vmatprep.subr.mxu0 0.0
          %9343 = vmatpush1.msra.mxu0 %v9310
          %9344 = vmatprep.subr.mxu0 0.0
          %9345 = vmatpush1.msra.mxu0 %v9296
          %9346 = vmatprep.subr.mxu0 0.0
          %9347 = vmatpush1.msra.mxu0 %v9282
          %9348 = vmatprep.subr.mxu0 0.0
          %9349 = vmatpush1.msra.mxu0 %v9268
          %9350 = vmatprep.subr.mxu0 0.0
          %9351 = vmatpush2.msra.mxu0 0.0
          %9352 = vmatprep.subr.mxu0 0.0
          %9353 = vmatpush2.msra.mxu0 0.0
          %9354 = vmatprep.subr.mxu0 0.0
          %9355 = vmatpush2.msra.mxu0 0.0
          %9356 = vmatprep.subr.mxu0 0.0
          %9357 = vmatpush2.msra.mxu0 0.0
          %9358 = vmatprep.subr.mxu0 0.0
          %9359 = vmatpush2.msra.mxu0 0.0
          %9360 = vmatprep.subr.mxu0 0.0
          %9361 = vmatpush2.msra.mxu0 0.0
          %9362 = vmatprep.subr.mxu0 0.0
          %9363 = vmatpush2.msra.mxu0 0.0
          %9364 = vmatprep.subr.mxu0 0.0
          %9365 = vmatpush2.msra.mxu0 0.0
          %9366 = vmatprep.subr.mxu0 0.0
          %9367 = vmatpush2.msra.mxu0 0.0
          %9368 = vmatprep.subr.mxu0 0.0
          %9369 = vmatpush2.msra.mxu0 0.0
          %9370 = vmatprep.subr.mxu0 0.0
          %9371 = vmatpush2.msra.mxu0 0.0
          %9372 = vmatprep.subr.mxu0 0.0
          %9373 = vmatpush2.msra.mxu0 0.0
          %9374 = vmatprep.subr.mxu0 0.0
          %9375 = vmatpush2.msra.mxu0 0.0
          %9376 = vmatprep.subr.mxu0 0.0
          %9377 = vmatpush2.msra.mxu0 0.0
          %9378 = vmatprep.subr.mxu0 0.0
          %9379 = vmatpush2.msra.mxu0 0.0
          %9380 = vmatprep.subr.mxu0 0.0
          %9381 = vmatpush2.msra.mxu0 0.0
          %9382 = vmatprep.mubr.f32.mxu0 0.0
          %9383 = vmatmul.mubr.f32.gmra.mxu0 %v9316
          %v9384 = vpop.f32.mrf.mxu0
          %v9385 = vadd.f32 %v9221, %v9384
          %v9386 = vpop.f32.mrf.mxu0
          %9387 = vdwg.mxu0
          %v9390 = vunpack.c.l.s4 1966171168
          %v9391 = vunpack.c.0.s8 %v9390
          %v9392 = vlaneseq
          %v9393 = vshrl.u32 %v9392, 7
          %v9394 = vsub.s32 %v9391, %v9393
          %v9395 = vrot.slane %v9385, %v9394
          %v9396 = vcombine.high %v9395, %v9395
          %v9398 = vunpack.c.l.s4 1966171168
          %v9399 = vunpack.c.0.s8 %v9398
          %v9400 = vlaneseq
          %v9401 = vshrl.u32 %v9400, 7
          %v9402 = vsub.s32 %v9399, %v9401
          %v9403 = vrot.slane %v9395, %v9402
          %v9405 = vunpack.c.l.s4 1966171168
          %v9406 = vunpack.c.0.s8 %v9405
          %v9407 = vlaneseq
          %v9408 = vshrl.u32 %v9407, 7
          %v9409 = vsub.s32 %v9406, %v9408
          %v9410 = vrot.slane %v9396, %v9409
          %v9411 = vcombine.high %v9403, %v9403
          %v9412 = vcombine.high %v9410, %v9410
          %9417 = vst [vmem:[%s12 + $0x1] sm:$0x1] %v9403
          %9418 = vst [vmem:[%s12 + $0x3] sm:$0x1] %v9410
          %9419 = vst [vmem:[%s12 + $0x5] sm:$0x1] %v9411
          %9420 = vst [vmem:[%s12 + $0x7] sm:$0x1] %v9412
        $region120: #{conditional_denoiser_forward.3} parent=67 // pred_fallthru
          _
        // Predicated region
        $region121: #{conditional_denoiser_forward.3} parent=67 // pred_check
          %p9421 = pneg %p342
        $region122: #{conditional_denoiser_forward.3} parent=67 // pred_check_branch
          %9423 = sbr.rel (%p9421) target = $region124
        $region123: #{conditional_denoiser_forward.3} parent=67 // pred_region
          _
        $region124: #{conditional_denoiser_forward.3} parent=67 // pred_fallthru
          _
        // Predicated region
        $region125: #{conditional_denoiser_forward.3} parent=67 // pred_check
          %p9424 = pneg %p342
        $region126: #{conditional_denoiser_forward.3} parent=67 // pred_check_branch
          %9426 = sbr.rel (%p9424) target = $region128
        $region127: #{conditional_denoiser_forward.3} parent=67 // pred_region
          _
        $region128: #{conditional_denoiser_forward.3} parent=67 // pred_fallthru
          _
      $region68: #{conditional_denoiser_forward.3} parent=5 // pred_fallthru
        _
      %p9427 = scmp.le.s32.totalorder 2, %s21
      // Predicated region
      $region129: #{conditional_denoiser_forward.3} parent=5 // pred_check
        %p9428 = pneg %p9427
      $region130: #{conditional_denoiser_forward.3} parent=5 // pred_check_branch
        %9430 = sbr.rel (%p9428) target = $region132
      $region131: #{conditional_denoiser_forward.3} parent=5 // pred_region
        %s9431 = ssub.s32 %s21, 2
      $region132: #{conditional_denoiser_forward.3} parent=5 // pred_fallthru
        _
    $region6: #{conditional_denoiser_forward.3} parent=1 // loop_footer
      %s25 = sadd.s32 1, %s21
    $region7: #{conditional_denoiser_forward.3} parent=1 // loop_footer_branch
      %20 = sbr.rel target = $region3
    $region8: #{conditional_denoiser_forward.3} parent=1 // loop_exit
      _
    %9432 = vsyncpa [#allocation4], 1
    %s9433 = scalar_lea.sflag [#allocation4], 1
    %9434 = vsyncpa %s9433, 1
    %9435 = vsyncpa [#allocation6], 1
    %9436 = vsyncpa [#allocation15], 1

</llo_original>
